<compile_context>
chip_gen: v7x
topology: tpu7x:2x2x1
jax: 0.10.0
libtpu: 0.0.40
codegen_flags: <defaults>
</compile_context>

<pallas_src>
import functools

import jax
import jax.numpy as jnp
from jax.experimental import pallas as pl
from jax.experimental.pallas import tpu as pltpu


# (dy, dx) enumeration shared by the kernel, the boundary masks and the weight
# packing: k = (dy+1)*3 + (dx+1) == ky*3 + kx of the torch weight.
_OFFSETS = tuple((dy, dx) for dy in (-1, 0, 1) for dx in (-1, 0, 1))


# ------------------------------ fused kernel -------------------------------

def _fsan_kernel(x_ref, m_ref, wn_ref, wh1_ref, w5_ref, b_ref, wsa_ref,
                 bsa_ref, o_ref, *, W, D, T_int, if_refine):
    """Whole Feedback_saliency_generator forward for a block of NB images.

    Layout: channel-major (rows, L) f32 with L = NB*H*W on the lane axis;
    channel rows are zero-padded to a sublane multiple and stay exactly zero
    through every layer (zero weight rows / zero bias pads).
    """
    masks = m_ref[...]                    # (9, L): 1.0 = in-bounds neighbour

    def conv3(a, wmat, bias, relu=False):
        # 3x3, stride 1, pad 1.  Fused im2col: 9 masked lane-rolls of the
        # flattened spatial axis, stacked on sublanes, then ONE small GEMM
        # against the packed (cf, 9*rows) weight.  Image boundaries (and image
        # -> image wraparound of the roll) are zeroed by the masks.
        parts = []
        for k, (dy, dx) in enumerate(_OFFSETS):
            off = dy * W + dx
            if off == 0:
                parts.append(a)
            else:
                parts.append(jnp.roll(a, -off, axis=1) * masks[k:k + 1])
        stack = jnp.concatenate(parts, axis=0)                    # (9*rows, L)
        y = jnp.dot(wmat, stack, preferred_element_type=jnp.float32) + bias
        return jnp.maximum(y, 0.0) if relu else y

    x = x_ref[0]                                                  # (ci, L)
    n = conv3(x, wn_ref[...], b_ref[0], relu=True)                # conv_n
    F_in = conv3(n, w5_ref[0], b_ref[1], relu=True)               # conv_F_in

    FB_out = F_in                     # first iteration: F_out = F_in
    p0s = []
    for _ in range(T_int):
        # torch.cat((F_in, F_out), 1): both already cf rows, hdc1 weight is
        # packed with the F_out taps at column offset cf -> plain concat.
        ncat = jnp.concatenate([F_in, FB_out], axis=0)            # (2*cf, L)
        innodes = conv3(ncat, wh1_ref[...], b_ref[2])             # HDC.conv1
        cur = innodes                                             # D >= 1
        for _ in range(D):
            innodes = conv3(innodes, w5_ref[1], b_ref[3])         # HDC.conv2
            cur = conv3(innodes, w5_ref[2], b_ref[4])             # HDC.conv3
        FB_out = cur
        t = conv3(FB_out, w5_ref[3], b_ref[5])                    # gen_SA.conv1
        t = conv3(t, w5_ref[4], b_ref[6])                         # gen_SA.conv2
        t = jnp.dot(wsa_ref[...], t,
                    preferred_element_type=jnp.float32) + bsa_ref[...]  # 1x1
        # softmax over the 2 channels == sigmoid of the logit difference.
        p0s.append(1.0 / (1.0 + jnp.exp(t[1:2, :] - t[0:1, :])))

    rows = []
    for p0 in p0s:
        rows += [p0, 1.0 - p0]
    if if_refine == 1:
        acc = p0s[0]
        for p0 in p0s[1:]:
            acc = acc + p0
        a0 = acc * (1.0 / 3.0)        # reference hard-codes coefficient 1/3
        q0 = 1.0 / (1.0 + jnp.exp(1.0 - 2.0 * a0))   # softmax of the average
        rows += [q0, 1.0 - q0]

    # One lane-dense (2*n_maps, L) store for all saliency maps of the block.
    o_ref[0] = jnp.concatenate(rows, axis=0)


# --------------------------- packing / wrapper ------------------------------

def _round8(n):
    return max(8, ((n + 7) // 8) * 8)


def _pack_w3(w, cin_pad, cout_pad):
    # torch Conv2d weight (cout, cin, 3, 3) -> (cout_pad, 9*cin_pad); column
    # order is (ky, kx) outer, cin inner -- matches _OFFSETS / in-kernel stack.
    cout, cin = w.shape[:2]
    wp = jnp.zeros((cout_pad, cin_pad, 3, 3), jnp.float32).at[:cout, :cin].set(w)
    return jnp.transpose(wp, (0, 2, 3, 1)).reshape(cout_pad, 9 * cin_pad)


def _pack_w3_cat2(w, feat, cf, cout_pad):
    # HDC.conv1 weight (cout, 2*feat, 3, 3): split cin into the F_in / F_out
    # halves and pad EACH to cf so columns line up with concat([F_in, F_out]).
    cout = w.shape[0]
    wa = jnp.zeros((cout_pad, cf, 3, 3), jnp.float32).at[:cout, :feat].set(w[:, :feat])
    wb = jnp.zeros((cout_pad, cf, 3, 3), jnp.float32).at[:cout, :feat].set(w[:, feat:])
    wp = jnp.concatenate([wa, wb], axis=1)            # (cout_pad, 2*cf, 3, 3)
    return jnp.transpose(wp, (0, 2, 3, 1)).reshape(cout_pad, 9 * 2 * cf)


def _pack_b(b, rows):
    return jnp.zeros((rows, 1), jnp.float32).at[:b.shape[0], 0].set(b)


def _boundary_masks(H, W):
    # masks[k, h*W + w] = 1.0 iff the (dy, dx)-neighbour of pixel (h, w) lies
    # inside the image (zero padding otherwise); k enumerates _OFFSETS.
    hh = jnp.arange(H * W, dtype=jnp.int32) // W
    ww = jnp.arange(H * W, dtype=jnp.int32) % W
    ms = []
    for dy, dx in _OFFSETS:
        keep = ((hh + dy >= 0) & (hh + dy < H) &
                (ww + dx >= 0) & (ww + dx < W))
        ms.append(keep.astype(jnp.float32))
    return jnp.stack(ms, axis=0)                      # (9, H*W)


def _pick_nb(N, M, cf, ci):
    # Largest divisor of N whose im2col stack (the biggest in-kernel temp,
    # 9 * 2*cf rows x NB*M lanes f32) stays under a conservative VMEM budget.
    rows = 9 * max(2 * cf, ci)
    budget = 4 * 1024 * 1024
    max_nb = max(1, budget // (rows * M * 4))
    nb = 1
    for d in range(1, N + 1):
        if N % d == 0 and d <= max_nb:
            nb = d
    return nb


def fsan_forward(params, x_nchw, *, features, D=2, T_int=3, if_refine=1):
    """Fused Pallas forward.  x_nchw: (N, 3, H, W) f32.  Returns a list of
    (N, 2, H, W) saliency maps (length T_int, +1 if if_refine == 1)."""
    N, cin, H, W = x_nchw.shape
    M = H * W
    assert M % 128 == 0, "H*W must be a lane multiple (pad spatially otherwise)"
    assert D >= 1 and T_int >= 1
    ci = _round8(cin)                    # padded input-image channels
    cf = _round8(features)               # padded feature channels
    nb = _pick_nb(N, M, cf, ci)          # images packed per grid step
    nblk = N // nb
    L = nb * M

    # One-time tiny packing (XLA glue); no per-layer HBM traffic.
    xg = x_nchw.reshape(N, cin, M).astype(jnp.float32)
    xg = xg.reshape(nblk, nb, cin, M).transpose(0, 2, 1, 3).reshape(nblk, cin, L)
    xp = jnp.zeros((nblk, ci, L), jnp.float32).at[:, :cin].set(xg)
    masks = jnp.tile(_boundary_masks(H, W), (1, nb))              # (9, L)

    wn = _pack_w3(params['conv_n'][0], ci, cf)                    # (cf, 9*ci)
    wh1 = _pack_w3_cat2(params['hdc1'][0], features, cf, cf)      # (cf, 18*cf)
    w5 = jnp.stack([_pack_w3(params[k][0], cf, cf)
                    for k in ('conv_Fin', 'hdc2', 'hdc3', 'sa1', 'sa2')])
    b7 = jnp.stack([_pack_b(params[k][1], cf)
                    for k in ('conv_n', 'conv_Fin', 'hdc1', 'hdc2', 'hdc3',
                              'sa1', 'sa2')])
    wsa = jnp.zeros((2, cf), jnp.float32).at[:, :features].set(
        params['sa3'][0][:, :, 0, 0])
    bsa = _pack_b(params['sa3'][1], 2)

    n_maps = T_int + (1 if if_refine == 1 else 0)
    kernel = functools.partial(_fsan_kernel, W=W, D=D, T_int=T_int,
                               if_refine=if_refine)
    out = pl.pallas_call(
        kernel,
        out_shape=jax.ShapeDtypeStruct((nblk, 2 * n_maps, L), jnp.float32),
        grid=(nblk,),
        in_specs=[
            pl.BlockSpec((1, ci, L), lambda b: (b, 0, 0)),          # images
            pl.BlockSpec((9, L), lambda b: (0, 0)),                 # shift masks
            pl.BlockSpec((cf, 9 * ci), lambda b: (0, 0)),           # conv_n W
            pl.BlockSpec((cf, 18 * cf), lambda b: (0, 0)),          # hdc1 W
            pl.BlockSpec((5, cf, 9 * cf), lambda b: (0, 0, 0)),     # other 3x3 W
            pl.BlockSpec((7, cf, 1), lambda b: (0, 0, 0)),          # 3x3 biases
            pl.BlockSpec((2, cf), lambda b: (0, 0)),                # 1x1 weight
            pl.BlockSpec((2, 1), lambda b: (0, 0)),                 # 1x1 bias
        ],
        out_specs=pl.BlockSpec((1, 2 * n_maps, L), lambda b: (b, 0, 0)),
        compiler_params=pltpu.CompilerParams(
            dimension_semantics=("parallel",)),
    )(xp, masks, wn, wh1, w5, b7, wsa, bsa)

    # Unpack the lane-batched slab back to (N, 2, H, W) per saliency map.
    out = out.reshape(nblk, 2 * n_maps, nb, M)
    out = jnp.transpose(out, (0, 2, 1, 3)).reshape(N, 2 * n_maps, M)
    return [out[:, 2 * i:2 * i + 2, :].reshape(N, 2, H, W)
            for i in range(n_maps)]


# ------------------------------- parameters ---------------------------------

def init_conv(key, k, cin, cout):
    wk, bk = jax.random.split(key)
    bound = 1.0 / float(k * k * cin) ** 0.5
    w = jax.random.uniform(wk, (cout, cin, k, k), jnp.float32, -bound, bound)
    b = jax.random.uniform(bk, (cout,), jnp.float32, -bound, bound)
    return w, b


def init_params(key, features):
    ks = jax.random.split(key, 8)
    return {
        'conv_n':   init_conv(ks[0], 3, 3, features),
        'conv_Fin': init_conv(ks[1], 3, features, features),
        'hdc1':     init_conv(ks[2], 3, 2 * features, features),
        'hdc2':     init_conv(ks[3], 3, features, features),
        'hdc3':     init_conv(ks[4], 3, features, features),
        'sa1':      init_conv(ks[5], 3, features, features),
        'sa2':      init_conv(ks[6], 3, features, features),
        'sa3':      init_conv(ks[7], 1, features, 2),
    }


# --------------------- pure-JAX reference (for checking) --------------------

def _conv_ref(x, w, b, relu=False):
    pad = 'SAME' if w.shape[-1] == 3 else 'VALID'
    y = jax.lax.conv_general_dilated(
        x, w, (1, 1), pad, dimension_numbers=('NCHW', 'OIHW', 'NCHW'),
        precision=jax.lax.Precision.HIGHEST)
    y = y + b[None, :, None, None]
    return jnp.maximum(y, 0.0) if relu else y


def fsan_reference(p, x, *, D=2, T_int=3, if_refine=1):
    n = _conv_ref(x, *p['conv_n'], relu=True)
    F_in = _conv_ref(n, *p['conv_Fin'], relu=True)
    FB_out = None
    outs = []
    for i in range(T_int):
        F_out = FB_out if i > 0 else F_in
        m = jnp.concatenate([F_in, F_out], axis=1)
        innodes = _conv_ref(m, *p['hdc1'])
        cur = innodes
        for _ in range(D):
            innodes = _conv_ref(innodes, *p['hdc2'])
            cur = _conv_ref(innodes, *p['hdc3'])
        FB_out = cur
        t = _conv_ref(FB_out, *p['sa1'])
        t = _conv_ref(t, *p['sa2'])
        t = _conv_ref(t, *p['sa3'])
        outs.append(jax.nn.softmax(t, axis=1))
    # TODO(synk): reference calls save_feature(FB_out), an undefined external
    # file-dump side effect; skipped in both implementations.
    if if_refine == 1:
        c = jnp.float32(1.0 / 3.0)
        final = c * outs[0]
        for j in range(1, T_int):
            final = final + c * outs[j]
        outs.append(jax.nn.softmax(final, axis=1))
    return outs


# ----------------------------------- main -----------------------------------

if __name__ == "__main__":
    key = jax.random.PRNGKey(0)
    pkey, xkey = jax.random.split(key)

    features, D, T_int, if_refine = 4, 2, 3, 1
    params = init_params(pkey, features)

    # NCHW input, exactly like the PyTorch module: [2, 3, 16, 16].
    x = jax.random.normal(xkey, (2, 3, 16, 16), jnp.float32)

    fwd = jax.jit(functools.partial(
        fsan_forward, features=features, D=D, T_int=T_int, if_refine=if_refine))
    outs = fwd(params, x)
    outs = jax.block_until_ready(outs)

    refs = fsan_reference(params, x, D=D, T_int=T_int, if_refine=if_refine)

    assert len(outs) == T_int + 1
    for o, r in zip(outs, refs):
        assert o.shape == (2, 2, 16, 16)
        # each saliency map is a channel softmax: channels sum to 1
        assert bool(jnp.allclose(jnp.sum(o, axis=1), 1.0, atol=1e-5))
        # matches the pure-JAX/XLA reference forward
        assert bool(jnp.allclose(o, r, atol=1e-2, rtol=1e-2))
    print("KERNEL_OK")
</pallas_src>

<mosaic_0001>
module attributes {stable_mosaic.version = 11 : i64} {
  func.func @_fsan_kernel(%arg0: i32, %arg1: memref<1x8x512xf32, #tpu.memory_space<vmem>>, %arg2: memref<9x512xf32, #tpu.memory_space<vmem>>, %arg3: memref<8x72xf32, #tpu.memory_space<vmem>>, %arg4: memref<8x144xf32, #tpu.memory_space<vmem>>, %arg5: memref<5x8x72xf32, #tpu.memory_space<vmem>>, %arg6: memref<7x8x1xf32, #tpu.memory_space<vmem>>, %arg7: memref<2x8xf32, #tpu.memory_space<vmem>>, %arg8: memref<2x1xf32, #tpu.memory_space<vmem>>, %arg9: memref<1x8x512xf32, #tpu.memory_space<vmem>>) attributes {dimension_semantics = [#tpu.dimension_semantics<parallel>], iteration_bounds = array<i64: 1>, scalar_prefetch = 0 : i64, scratch_operands = 0 : i64, tpu.core_type = #tpu.core_type<tc>, window_params = [{transform_indices = @transform_0, window_bounds = array<i64: 1, 8, 512>}, {pipeline_mode = #tpu.pipeline_mode<synchronous>, transform_indices = @transform_1, window_bounds = array<i64: 9, 512>}, {pipeline_mode = #tpu.pipeline_mode<synchronous>, transform_indices = @transform_2, window_bounds = array<i64: 8, 72>}, {pipeline_mode = #tpu.pipeline_mode<synchronous>, transform_indices = @transform_3, window_bounds = array<i64: 8, 144>}, {pipeline_mode = #tpu.pipeline_mode<synchronous>, transform_indices = @transform_4, window_bounds = array<i64: 5, 8, 72>}, {pipeline_mode = #tpu.pipeline_mode<synchronous>, transform_indices = @transform_5, window_bounds = array<i64: 7, 8, 1>}, {pipeline_mode = #tpu.pipeline_mode<synchronous>, transform_indices = @transform_6, window_bounds = array<i64: 2, 8>}, {pipeline_mode = #tpu.pipeline_mode<synchronous>, transform_indices = @transform_7, window_bounds = array<i64: 2, 1>}, {transform_indices = @transform_8, window_bounds = array<i64: 1, 8, 512>}]} {
    %c0 = arith.constant 0 : index
    %c0_0 = arith.constant 0 : index
    %0 = vector.load %arg2[%c0, %c0_0] : memref<9x512xf32, #tpu.memory_space<vmem>>, vector<9x512xf32>
    %c0_1 = arith.constant 0 : index
    %c0_2 = arith.constant 0 : index
    %c0_3 = arith.constant 0 : index
    %1 = vector.load %arg1[%c0_1, %c0_2, %c0_3] : memref<1x8x512xf32, #tpu.memory_space<vmem>>, vector<1x8x512xf32>
    %2 = vector.shape_cast %1 : vector<1x8x512xf32> to vector<8x512xf32>
    %c0_4 = arith.constant 0 : index
    %c0_5 = arith.constant 0 : index
    %3 = vector.load %arg3[%c0_4, %c0_5] : memref<8x72xf32, #tpu.memory_space<vmem>>, vector<8x72xf32>
    %c0_6 = arith.constant 0 : index
    %c0_7 = arith.constant 0 : index
    %c0_8 = arith.constant 0 : index
    %4 = vector.load %arg6[%c0_6, %c0_7, %c0_8] : memref<7x8x1xf32, #tpu.memory_space<vmem>>, vector<1x8x1xf32>
    %5 = vector.shape_cast %4 : vector<1x8x1xf32> to vector<8x1xf32>
    %6 = vector.extract_strided_slice %2 {offsets = [0, 495], sizes = [8, 17], strides = [1, 1]} : vector<8x512xf32> to vector<8x17xf32>
    %7 = vector.extract_strided_slice %2 {offsets = [0, 0], sizes = [8, 495], strides = [1, 1]} : vector<8x512xf32> to vector<8x495xf32>
    %8 = tpu.concatenate %6, %7 in 1 : vector<8x17xf32>, vector<8x495xf32> -> vector<8x512xf32>
    %9 = vector.extract_strided_slice %0 {offsets = [0, 0], sizes = [1, 512], strides = [1, 1]} : vector<9x512xf32> to vector<1x512xf32>
    %10 = vector.broadcast %9 : vector<1x512xf32> to vector<8x512xf32>
    %11 = arith.mulf %8, %10 : vector<8x512xf32>
    %12 = vector.extract_strided_slice %2 {offsets = [0, 496], sizes = [8, 16], strides = [1, 1]} : vector<8x512xf32> to vector<8x16xf32>
    %13 = vector.extract_strided_slice %2 {offsets = [0, 0], sizes = [8, 496], strides = [1, 1]} : vector<8x512xf32> to vector<8x496xf32>
    %14 = tpu.concatenate %12, %13 in 1 : vector<8x16xf32>, vector<8x496xf32> -> vector<8x512xf32>
    %15 = vector.extract_strided_slice %0 {offsets = [1, 0], sizes = [1, 512], strides = [1, 1]} : vector<9x512xf32> to vector<1x512xf32>
    %16 = vector.broadcast %15 : vector<1x512xf32> to vector<8x512xf32>
    %17 = arith.mulf %14, %16 : vector<8x512xf32>
    %18 = vector.extract_strided_slice %2 {offsets = [0, 497], sizes = [8, 15], strides = [1, 1]} : vector<8x512xf32> to vector<8x15xf32>
    %19 = vector.extract_strided_slice %2 {offsets = [0, 0], sizes = [8, 497], strides = [1, 1]} : vector<8x512xf32> to vector<8x497xf32>
    %20 = tpu.concatenate %18, %19 in 1 : vector<8x15xf32>, vector<8x497xf32> -> vector<8x512xf32>
    %21 = vector.extract_strided_slice %0 {offsets = [2, 0], sizes = [1, 512], strides = [1, 1]} : vector<9x512xf32> to vector<1x512xf32>
    %22 = vector.broadcast %21 : vector<1x512xf32> to vector<8x512xf32>
    %23 = arith.mulf %20, %22 : vector<8x512xf32>
    %24 = vector.extract_strided_slice %2 {offsets = [0, 511], sizes = [8, 1], strides = [1, 1]} : vector<8x512xf32> to vector<8x1xf32>
    %25 = vector.extract_strided_slice %2 {offsets = [0, 0], sizes = [8, 511], strides = [1, 1]} : vector<8x512xf32> to vector<8x511xf32>
    %26 = tpu.concatenate %24, %25 in 1 : vector<8x1xf32>, vector<8x511xf32> -> vector<8x512xf32>
    %27 = vector.extract_strided_slice %0 {offsets = [3, 0], sizes = [1, 512], strides = [1, 1]} : vector<9x512xf32> to vector<1x512xf32>
    %28 = vector.broadcast %27 : vector<1x512xf32> to vector<8x512xf32>
    %29 = arith.mulf %26, %28 : vector<8x512xf32>
    %30 = vector.extract_strided_slice %2 {offsets = [0, 1], sizes = [8, 511], strides = [1, 1]} : vector<8x512xf32> to vector<8x511xf32>
    %31 = vector.extract_strided_slice %2 {offsets = [0, 0], sizes = [8, 1], strides = [1, 1]} : vector<8x512xf32> to vector<8x1xf32>
    %32 = tpu.concatenate %30, %31 in 1 : vector<8x511xf32>, vector<8x1xf32> -> vector<8x512xf32>
    %33 = vector.extract_strided_slice %0 {offsets = [5, 0], sizes = [1, 512], strides = [1, 1]} : vector<9x512xf32> to vector<1x512xf32>
    %34 = vector.broadcast %33 : vector<1x512xf32> to vector<8x512xf32>
    %35 = arith.mulf %32, %34 : vector<8x512xf32>
    %36 = vector.extract_strided_slice %2 {offsets = [0, 15], sizes = [8, 497], strides = [1, 1]} : vector<8x512xf32> to vector<8x497xf32>
    %37 = vector.extract_strided_slice %2 {offsets = [0, 0], sizes = [8, 15], strides = [1, 1]} : vector<8x512xf32> to vector<8x15xf32>
    %38 = tpu.concatenate %36, %37 in 1 : vector<8x497xf32>, vector<8x15xf32> -> vector<8x512xf32>
    %39 = vector.extract_strided_slice %0 {offsets = [6, 0], sizes = [1, 512], strides = [1, 1]} : vector<9x512xf32> to vector<1x512xf32>
    %40 = vector.broadcast %39 : vector<1x512xf32> to vector<8x512xf32>
    %41 = arith.mulf %38, %40 : vector<8x512xf32>
    %42 = vector.extract_strided_slice %2 {offsets = [0, 16], sizes = [8, 496], strides = [1, 1]} : vector<8x512xf32> to vector<8x496xf32>
    %43 = vector.extract_strided_slice %2 {offsets = [0, 0], sizes = [8, 16], strides = [1, 1]} : vector<8x512xf32> to vector<8x16xf32>
    %44 = tpu.concatenate %42, %43 in 1 : vector<8x496xf32>, vector<8x16xf32> -> vector<8x512xf32>
    %45 = vector.extract_strided_slice %0 {offsets = [7, 0], sizes = [1, 512], strides = [1, 1]} : vector<9x512xf32> to vector<1x512xf32>
    %46 = vector.broadcast %45 : vector<1x512xf32> to vector<8x512xf32>
    %47 = arith.mulf %44, %46 : vector<8x512xf32>
    %48 = vector.extract_strided_slice %2 {offsets = [0, 17], sizes = [8, 495], strides = [1, 1]} : vector<8x512xf32> to vector<8x495xf32>
    %49 = vector.extract_strided_slice %2 {offsets = [0, 0], sizes = [8, 17], strides = [1, 1]} : vector<8x512xf32> to vector<8x17xf32>
    %50 = tpu.concatenate %48, %49 in 1 : vector<8x495xf32>, vector<8x17xf32> -> vector<8x512xf32>
    %51 = vector.extract_strided_slice %0 {offsets = [8, 0], sizes = [1, 512], strides = [1, 1]} : vector<9x512xf32> to vector<1x512xf32>
    %52 = vector.broadcast %51 : vector<1x512xf32> to vector<8x512xf32>
    %53 = arith.mulf %50, %52 : vector<8x512xf32>
    %54 = tpu.concatenate %11, %17, %23, %29, %2, %35, %41, %47, %53 in 0 : vector<8x512xf32>, vector<8x512xf32>, vector<8x512xf32>, vector<8x512xf32>, vector<8x512xf32>, vector<8x512xf32>, vector<8x512xf32>, vector<8x512xf32>, vector<8x512xf32> -> vector<72x512xf32>
    %cst = arith.constant dense<0.000000e+00> : vector<8x512xf32>
    %55 = tpu.matmul %3, %54, %cst {dimension_numbers = #tpu.dot_dimension_numbers<[1], [0], [0], [1], [0, 0, 1, 1], [], []>} : vector<8x72xf32>, vector<72x512xf32>, vector<8x512xf32> -> vector<8x512xf32>
    %56 = vector.broadcast %5 : vector<8x1xf32> to vector<8x512xf32>
    %57 = arith.addf %55, %56 : vector<8x512xf32>
    %cst_9 = arith.constant 0.000000e+00 : f32
    %58 = vector.broadcast %cst_9 : f32 to vector<8x512xf32>
    %59 = arith.maximumf %57, %58 : vector<8x512xf32>
    %c0_10 = arith.constant 0 : index
    %c0_11 = arith.constant 0 : index
    %c0_12 = arith.constant 0 : index
    %60 = vector.load %arg5[%c0_10, %c0_11, %c0_12] : memref<5x8x72xf32, #tpu.memory_space<vmem>>, vector<1x8x72xf32>
    %61 = vector.shape_cast %60 : vector<1x8x72xf32> to vector<8x72xf32>
    %c1 = arith.constant 1 : index
    %c0_13 = arith.constant 0 : index
    %c0_14 = arith.constant 0 : index
    %62 = vector.load %arg6[%c1, %c0_13, %c0_14] : memref<7x8x1xf32, #tpu.memory_space<vmem>>, vector<1x8x1xf32>
    %63 = vector.shape_cast %62 : vector<1x8x1xf32> to vector<8x1xf32>
    %64 = vector.extract_strided_slice %59 {offsets = [0, 495], sizes = [8, 17], strides = [1, 1]} : vector<8x512xf32> to vector<8x17xf32>
    %65 = vector.extract_strided_slice %59 {offsets = [0, 0], sizes = [8, 495], strides = [1, 1]} : vector<8x512xf32> to vector<8x495xf32>
    %66 = tpu.concatenate %64, %65 in 1 : vector<8x17xf32>, vector<8x495xf32> -> vector<8x512xf32>
    %67 = vector.extract_strided_slice %0 {offsets = [0, 0], sizes = [1, 512], strides = [1, 1]} : vector<9x512xf32> to vector<1x512xf32>
    %68 = vector.broadcast %67 : vector<1x512xf32> to vector<8x512xf32>
    %69 = arith.mulf %66, %68 : vector<8x512xf32>
    %70 = vector.extract_strided_slice %59 {offsets = [0, 496], sizes = [8, 16], strides = [1, 1]} : vector<8x512xf32> to vector<8x16xf32>
    %71 = vector.extract_strided_slice %59 {offsets = [0, 0], sizes = [8, 496], strides = [1, 1]} : vector<8x512xf32> to vector<8x496xf32>
    %72 = tpu.concatenate %70, %71 in 1 : vector<8x16xf32>, vector<8x496xf32> -> vector<8x512xf32>
    %73 = vector.extract_strided_slice %0 {offsets = [1, 0], sizes = [1, 512], strides = [1, 1]} : vector<9x512xf32> to vector<1x512xf32>
    %74 = vector.broadcast %73 : vector<1x512xf32> to vector<8x512xf32>
    %75 = arith.mulf %72, %74 : vector<8x512xf32>
    %76 = vector.extract_strided_slice %59 {offsets = [0, 497], sizes = [8, 15], strides = [1, 1]} : vector<8x512xf32> to vector<8x15xf32>
    %77 = vector.extract_strided_slice %59 {offsets = [0, 0], sizes = [8, 497], strides = [1, 1]} : vector<8x512xf32> to vector<8x497xf32>
    %78 = tpu.concatenate %76, %77 in 1 : vector<8x15xf32>, vector<8x497xf32> -> vector<8x512xf32>
    %79 = vector.extract_strided_slice %0 {offsets = [2, 0], sizes = [1, 512], strides = [1, 1]} : vector<9x512xf32> to vector<1x512xf32>
    %80 = vector.broadcast %79 : vector<1x512xf32> to vector<8x512xf32>
    %81 = arith.mulf %78, %80 : vector<8x512xf32>
    %82 = vector.extract_strided_slice %59 {offsets = [0, 511], sizes = [8, 1], strides = [1, 1]} : vector<8x512xf32> to vector<8x1xf32>
    %83 = vector.extract_strided_slice %59 {offsets = [0, 0], sizes = [8, 511], strides = [1, 1]} : vector<8x512xf32> to vector<8x511xf32>
    %84 = tpu.concatenate %82, %83 in 1 : vector<8x1xf32>, vector<8x511xf32> -> vector<8x512xf32>
    %85 = vector.extract_strided_slice %0 {offsets = [3, 0], sizes = [1, 512], strides = [1, 1]} : vector<9x512xf32> to vector<1x512xf32>
    %86 = vector.broadcast %85 : vector<1x512xf32> to vector<8x512xf32>
    %87 = arith.mulf %84, %86 : vector<8x512xf32>
    %88 = vector.extract_strided_slice %59 {offsets = [0, 1], sizes = [8, 511], strides = [1, 1]} : vector<8x512xf32> to vector<8x511xf32>
    %89 = vector.extract_strided_slice %59 {offsets = [0, 0], sizes = [8, 1], strides = [1, 1]} : vector<8x512xf32> to vector<8x1xf32>
    %90 = tpu.concatenate %88, %89 in 1 : vector<8x511xf32>, vector<8x1xf32> -> vector<8x512xf32>
    %91 = vector.extract_strided_slice %0 {offsets = [5, 0], sizes = [1, 512], strides = [1, 1]} : vector<9x512xf32> to vector<1x512xf32>
    %92 = vector.broadcast %91 : vector<1x512xf32> to vector<8x512xf32>
    %93 = arith.mulf %90, %92 : vector<8x512xf32>
    %94 = vector.extract_strided_slice %59 {offsets = [0, 15], sizes = [8, 497], strides = [1, 1]} : vector<8x512xf32> to vector<8x497xf32>
    %95 = vector.extract_strided_slice %59 {offsets = [0, 0], sizes = [8, 15], strides = [1, 1]} : vector<8x512xf32> to vector<8x15xf32>
    %96 = tpu.concatenate %94, %95 in 1 : vector<8x497xf32>, vector<8x15xf32> -> vector<8x512xf32>
    %97 = vector.extract_strided_slice %0 {offsets = [6, 0], sizes = [1, 512], strides = [1, 1]} : vector<9x512xf32> to vector<1x512xf32>
    %98 = vector.broadcast %97 : vector<1x512xf32> to vector<8x512xf32>
    %99 = arith.mulf %96, %98 : vector<8x512xf32>
    %100 = vector.extract_strided_slice %59 {offsets = [0, 16], sizes = [8, 496], strides = [1, 1]} : vector<8x512xf32> to vector<8x496xf32>
    %101 = vector.extract_strided_slice %59 {offsets = [0, 0], sizes = [8, 16], strides = [1, 1]} : vector<8x512xf32> to vector<8x16xf32>
    %102 = tpu.concatenate %100, %101 in 1 : vector<8x496xf32>, vector<8x16xf32> -> vector<8x512xf32>
    %103 = vector.extract_strided_slice %0 {offsets = [7, 0], sizes = [1, 512], strides = [1, 1]} : vector<9x512xf32> to vector<1x512xf32>
    %104 = vector.broadcast %103 : vector<1x512xf32> to vector<8x512xf32>
    %105 = arith.mulf %102, %104 : vector<8x512xf32>
    %106 = vector.extract_strided_slice %59 {offsets = [0, 17], sizes = [8, 495], strides = [1, 1]} : vector<8x512xf32> to vector<8x495xf32>
    %107 = vector.extract_strided_slice %59 {offsets = [0, 0], sizes = [8, 17], strides = [1, 1]} : vector<8x512xf32> to vector<8x17xf32>
    %108 = tpu.concatenate %106, %107 in 1 : vector<8x495xf32>, vector<8x17xf32> -> vector<8x512xf32>
    %109 = vector.extract_strided_slice %0 {offsets = [8, 0], sizes = [1, 512], strides = [1, 1]} : vector<9x512xf32> to vector<1x512xf32>
    %110 = vector.broadcast %109 : vector<1x512xf32> to vector<8x512xf32>
    %111 = arith.mulf %108, %110 : vector<8x512xf32>
    %112 = tpu.concatenate %69, %75, %81, %87, %59, %93, %99, %105, %111 in 0 : vector<8x512xf32>, vector<8x512xf32>, vector<8x512xf32>, vector<8x512xf32>, vector<8x512xf32>, vector<8x512xf32>, vector<8x512xf32>, vector<8x512xf32>, vector<8x512xf32> -> vector<72x512xf32>
    %cst_15 = arith.constant dense<0.000000e+00> : vector<8x512xf32>
    %113 = tpu.matmul %61, %112, %cst_15 {dimension_numbers = #tpu.dot_dimension_numbers<[1], [0], [0], [1], [0, 0, 1, 1], [], []>} : vector<8x72xf32>, vector<72x512xf32>, vector<8x512xf32> -> vector<8x512xf32>
    %114 = vector.broadcast %63 : vector<8x1xf32> to vector<8x512xf32>
    %115 = arith.addf %113, %114 : vector<8x512xf32>
    %cst_16 = arith.constant 0.000000e+00 : f32
    %116 = vector.broadcast %cst_16 : f32 to vector<8x512xf32>
    %117 = arith.maximumf %115, %116 : vector<8x512xf32>
    %118 = tpu.concatenate %117, %117 in 0 : vector<8x512xf32>, vector<8x512xf32> -> vector<16x512xf32>
    %c0_17 = arith.constant 0 : index
    %c0_18 = arith.constant 0 : index
    %119 = vector.load %arg4[%c0_17, %c0_18] : memref<8x144xf32, #tpu.memory_space<vmem>>, vector<8x144xf32>
    %c2 = arith.constant 2 : index
    %c0_19 = arith.constant 0 : index
    %c0_20 = arith.constant 0 : index
    %120 = vector.load %arg6[%c2, %c0_19, %c0_20] : memref<7x8x1xf32, #tpu.memory_space<vmem>>, vector<1x8x1xf32>
    %121 = vector.shape_cast %120 : vector<1x8x1xf32> to vector<8x1xf32>
    %122 = vector.extract_strided_slice %118 {offsets = [0, 495], sizes = [16, 17], strides = [1, 1]} : vector<16x512xf32> to vector<16x17xf32>
    %123 = vector.extract_strided_slice %118 {offsets = [0, 0], sizes = [16, 495], strides = [1, 1]} : vector<16x512xf32> to vector<16x495xf32>
    %124 = tpu.concatenate %122, %123 in 1 : vector<16x17xf32>, vector<16x495xf32> -> vector<16x512xf32>
    %125 = vector.extract_strided_slice %0 {offsets = [0, 0], sizes = [1, 512], strides = [1, 1]} : vector<9x512xf32> to vector<1x512xf32>
    %126 = vector.broadcast %125 : vector<1x512xf32> to vector<16x512xf32>
    %127 = arith.mulf %124, %126 : vector<16x512xf32>
    %128 = vector.extract_strided_slice %118 {offsets = [0, 496], sizes = [16, 16], strides = [1, 1]} : vector<16x512xf32> to vector<16x16xf32>
    %129 = vector.extract_strided_slice %118 {offsets = [0, 0], sizes = [16, 496], strides = [1, 1]} : vector<16x512xf32> to vector<16x496xf32>
    %130 = tpu.concatenate %128, %129 in 1 : vector<16x16xf32>, vector<16x496xf32> -> vector<16x512xf32>
    %131 = vector.extract_strided_slice %0 {offsets = [1, 0], sizes = [1, 512], strides = [1, 1]} : vector<9x512xf32> to vector<1x512xf32>
    %132 = vector.broadcast %131 : vector<1x512xf32> to vector<16x512xf32>
    %133 = arith.mulf %130, %132 : vector<16x512xf32>
    %134 = vector.extract_strided_slice %118 {offsets = [0, 497], sizes = [16, 15], strides = [1, 1]} : vector<16x512xf32> to vector<16x15xf32>
    %135 = vector.extract_strided_slice %118 {offsets = [0, 0], sizes = [16, 497], strides = [1, 1]} : vector<16x512xf32> to vector<16x497xf32>
    %136 = tpu.concatenate %134, %135 in 1 : vector<16x15xf32>, vector<16x497xf32> -> vector<16x512xf32>
    %137 = vector.extract_strided_slice %0 {offsets = [2, 0], sizes = [1, 512], strides = [1, 1]} : vector<9x512xf32> to vector<1x512xf32>
    %138 = vector.broadcast %137 : vector<1x512xf32> to vector<16x512xf32>
    %139 = arith.mulf %136, %138 : vector<16x512xf32>
    %140 = vector.extract_strided_slice %118 {offsets = [0, 511], sizes = [16, 1], strides = [1, 1]} : vector<16x512xf32> to vector<16x1xf32>
    %141 = vector.extract_strided_slice %118 {offsets = [0, 0], sizes = [16, 511], strides = [1, 1]} : vector<16x512xf32> to vector<16x511xf32>
    %142 = tpu.concatenate %140, %141 in 1 : vector<16x1xf32>, vector<16x511xf32> -> vector<16x512xf32>
    %143 = vector.extract_strided_slice %0 {offsets = [3, 0], sizes = [1, 512], strides = [1, 1]} : vector<9x512xf32> to vector<1x512xf32>
    %144 = vector.broadcast %143 : vector<1x512xf32> to vector<16x512xf32>
    %145 = arith.mulf %142, %144 : vector<16x512xf32>
    %146 = vector.extract_strided_slice %118 {offsets = [0, 1], sizes = [16, 511], strides = [1, 1]} : vector<16x512xf32> to vector<16x511xf32>
    %147 = vector.extract_strided_slice %118 {offsets = [0, 0], sizes = [16, 1], strides = [1, 1]} : vector<16x512xf32> to vector<16x1xf32>
    %148 = tpu.concatenate %146, %147 in 1 : vector<16x511xf32>, vector<16x1xf32> -> vector<16x512xf32>
    %149 = vector.extract_strided_slice %0 {offsets = [5, 0], sizes = [1, 512], strides = [1, 1]} : vector<9x512xf32> to vector<1x512xf32>
    %150 = vector.broadcast %149 : vector<1x512xf32> to vector<16x512xf32>
    %151 = arith.mulf %148, %150 : vector<16x512xf32>
    %152 = vector.extract_strided_slice %118 {offsets = [0, 15], sizes = [16, 497], strides = [1, 1]} : vector<16x512xf32> to vector<16x497xf32>
    %153 = vector.extract_strided_slice %118 {offsets = [0, 0], sizes = [16, 15], strides = [1, 1]} : vector<16x512xf32> to vector<16x15xf32>
    %154 = tpu.concatenate %152, %153 in 1 : vector<16x497xf32>, vector<16x15xf32> -> vector<16x512xf32>
    %155 = vector.extract_strided_slice %0 {offsets = [6, 0], sizes = [1, 512], strides = [1, 1]} : vector<9x512xf32> to vector<1x512xf32>
    %156 = vector.broadcast %155 : vector<1x512xf32> to vector<16x512xf32>
    %157 = arith.mulf %154, %156 : vector<16x512xf32>
    %158 = vector.extract_strided_slice %118 {offsets = [0, 16], sizes = [16, 496], strides = [1, 1]} : vector<16x512xf32> to vector<16x496xf32>
    %159 = vector.extract_strided_slice %118 {offsets = [0, 0], sizes = [16, 16], strides = [1, 1]} : vector<16x512xf32> to vector<16x16xf32>
    %160 = tpu.concatenate %158, %159 in 1 : vector<16x496xf32>, vector<16x16xf32> -> vector<16x512xf32>
    %161 = vector.extract_strided_slice %0 {offsets = [7, 0], sizes = [1, 512], strides = [1, 1]} : vector<9x512xf32> to vector<1x512xf32>
    %162 = vector.broadcast %161 : vector<1x512xf32> to vector<16x512xf32>
    %163 = arith.mulf %160, %162 : vector<16x512xf32>
    %164 = vector.extract_strided_slice %118 {offsets = [0, 17], sizes = [16, 495], strides = [1, 1]} : vector<16x512xf32> to vector<16x495xf32>
    %165 = vector.extract_strided_slice %118 {offsets = [0, 0], sizes = [16, 17], strides = [1, 1]} : vector<16x512xf32> to vector<16x17xf32>
    %166 = tpu.concatenate %164, %165 in 1 : vector<16x495xf32>, vector<16x17xf32> -> vector<16x512xf32>
    %167 = vector.extract_strided_slice %0 {offsets = [8, 0], sizes = [1, 512], strides = [1, 1]} : vector<9x512xf32> to vector<1x512xf32>
    %168 = vector.broadcast %167 : vector<1x512xf32> to vector<16x512xf32>
    %169 = arith.mulf %166, %168 : vector<16x512xf32>
    %170 = tpu.concatenate %127, %133, %139, %145, %118, %151, %157, %163, %169 in 0 : vector<16x512xf32>, vector<16x512xf32>, vector<16x512xf32>, vector<16x512xf32>, vector<16x512xf32>, vector<16x512xf32>, vector<16x512xf32>, vector<16x512xf32>, vector<16x512xf32> -> vector<144x512xf32>
    %cst_21 = arith.constant dense<0.000000e+00> : vector<8x512xf32>
    %171 = tpu.matmul %119, %170, %cst_21 {dimension_numbers = #tpu.dot_dimension_numbers<[1], [0], [0], [1], [0, 0, 1, 1], [], []>} : vector<8x144xf32>, vector<144x512xf32>, vector<8x512xf32> -> vector<8x512xf32>
    %172 = vector.broadcast %121 : vector<8x1xf32> to vector<8x512xf32>
    %173 = arith.addf %171, %172 : vector<8x512xf32>
    %c1_22 = arith.constant 1 : index
    %c0_23 = arith.constant 0 : index
    %c0_24 = arith.constant 0 : index
    %174 = vector.load %arg5[%c1_22, %c0_23, %c0_24] : memref<5x8x72xf32, #tpu.memory_space<vmem>>, vector<1x8x72xf32>
    %175 = vector.shape_cast %174 : vector<1x8x72xf32> to vector<8x72xf32>
    %c3 = arith.constant 3 : index
    %c0_25 = arith.constant 0 : index
    %c0_26 = arith.constant 0 : index
    %176 = vector.load %arg6[%c3, %c0_25, %c0_26] : memref<7x8x1xf32, #tpu.memory_space<vmem>>, vector<1x8x1xf32>
    %177 = vector.shape_cast %176 : vector<1x8x1xf32> to vector<8x1xf32>
    %178 = vector.extract_strided_slice %173 {offsets = [0, 495], sizes = [8, 17], strides = [1, 1]} : vector<8x512xf32> to vector<8x17xf32>
    %179 = vector.extract_strided_slice %173 {offsets = [0, 0], sizes = [8, 495], strides = [1, 1]} : vector<8x512xf32> to vector<8x495xf32>
    %180 = tpu.concatenate %178, %179 in 1 : vector<8x17xf32>, vector<8x495xf32> -> vector<8x512xf32>
    %181 = vector.extract_strided_slice %0 {offsets = [0, 0], sizes = [1, 512], strides = [1, 1]} : vector<9x512xf32> to vector<1x512xf32>
    %182 = vector.broadcast %181 : vector<1x512xf32> to vector<8x512xf32>
    %183 = arith.mulf %180, %182 : vector<8x512xf32>
    %184 = vector.extract_strided_slice %173 {offsets = [0, 496], sizes = [8, 16], strides = [1, 1]} : vector<8x512xf32> to vector<8x16xf32>
    %185 = vector.extract_strided_slice %173 {offsets = [0, 0], sizes = [8, 496], strides = [1, 1]} : vector<8x512xf32> to vector<8x496xf32>
    %186 = tpu.concatenate %184, %185 in 1 : vector<8x16xf32>, vector<8x496xf32> -> vector<8x512xf32>
    %187 = vector.extract_strided_slice %0 {offsets = [1, 0], sizes = [1, 512], strides = [1, 1]} : vector<9x512xf32> to vector<1x512xf32>
    %188 = vector.broadcast %187 : vector<1x512xf32> to vector<8x512xf32>
    %189 = arith.mulf %186, %188 : vector<8x512xf32>
    %190 = vector.extract_strided_slice %173 {offsets = [0, 497], sizes = [8, 15], strides = [1, 1]} : vector<8x512xf32> to vector<8x15xf32>
    %191 = vector.extract_strided_slice %173 {offsets = [0, 0], sizes = [8, 497], strides = [1, 1]} : vector<8x512xf32> to vector<8x497xf32>
    %192 = tpu.concatenate %190, %191 in 1 : vector<8x15xf32>, vector<8x497xf32> -> vector<8x512xf32>
    %193 = vector.extract_strided_slice %0 {offsets = [2, 0], sizes = [1, 512], strides = [1, 1]} : vector<9x512xf32> to vector<1x512xf32>
    %194 = vector.broadcast %193 : vector<1x512xf32> to vector<8x512xf32>
    %195 = arith.mulf %192, %194 : vector<8x512xf32>
    %196 = vector.extract_strided_slice %173 {offsets = [0, 511], sizes = [8, 1], strides = [1, 1]} : vector<8x512xf32> to vector<8x1xf32>
    %197 = vector.extract_strided_slice %173 {offsets = [0, 0], sizes = [8, 511], strides = [1, 1]} : vector<8x512xf32> to vector<8x511xf32>
    %198 = tpu.concatenate %196, %197 in 1 : vector<8x1xf32>, vector<8x511xf32> -> vector<8x512xf32>
    %199 = vector.extract_strided_slice %0 {offsets = [3, 0], sizes = [1, 512], strides = [1, 1]} : vector<9x512xf32> to vector<1x512xf32>
    %200 = vector.broadcast %199 : vector<1x512xf32> to vector<8x512xf32>
    %201 = arith.mulf %198, %200 : vector<8x512xf32>
    %202 = vector.extract_strided_slice %173 {offsets = [0, 1], sizes = [8, 511], strides = [1, 1]} : vector<8x512xf32> to vector<8x511xf32>
    %203 = vector.extract_strided_slice %173 {offsets = [0, 0], sizes = [8, 1], strides = [1, 1]} : vector<8x512xf32> to vector<8x1xf32>
    %204 = tpu.concatenate %202, %203 in 1 : vector<8x511xf32>, vector<8x1xf32> -> vector<8x512xf32>
    %205 = vector.extract_strided_slice %0 {offsets = [5, 0], sizes = [1, 512], strides = [1, 1]} : vector<9x512xf32> to vector<1x512xf32>
    %206 = vector.broadcast %205 : vector<1x512xf32> to vector<8x512xf32>
    %207 = arith.mulf %204, %206 : vector<8x512xf32>
    %208 = vector.extract_strided_slice %173 {offsets = [0, 15], sizes = [8, 497], strides = [1, 1]} : vector<8x512xf32> to vector<8x497xf32>
    %209 = vector.extract_strided_slice %173 {offsets = [0, 0], sizes = [8, 15], strides = [1, 1]} : vector<8x512xf32> to vector<8x15xf32>
    %210 = tpu.concatenate %208, %209 in 1 : vector<8x497xf32>, vector<8x15xf32> -> vector<8x512xf32>
    %211 = vector.extract_strided_slice %0 {offsets = [6, 0], sizes = [1, 512], strides = [1, 1]} : vector<9x512xf32> to vector<1x512xf32>
    %212 = vector.broadcast %211 : vector<1x512xf32> to vector<8x512xf32>
    %213 = arith.mulf %210, %212 : vector<8x512xf32>
    %214 = vector.extract_strided_slice %173 {offsets = [0, 16], sizes = [8, 496], strides = [1, 1]} : vector<8x512xf32> to vector<8x496xf32>
    %215 = vector.extract_strided_slice %173 {offsets = [0, 0], sizes = [8, 16], strides = [1, 1]} : vector<8x512xf32> to vector<8x16xf32>
    %216 = tpu.concatenate %214, %215 in 1 : vector<8x496xf32>, vector<8x16xf32> -> vector<8x512xf32>
    %217 = vector.extract_strided_slice %0 {offsets = [7, 0], sizes = [1, 512], strides = [1, 1]} : vector<9x512xf32> to vector<1x512xf32>
    %218 = vector.broadcast %217 : vector<1x512xf32> to vector<8x512xf32>
    %219 = arith.mulf %216, %218 : vector<8x512xf32>
    %220 = vector.extract_strided_slice %173 {offsets = [0, 17], sizes = [8, 495], strides = [1, 1]} : vector<8x512xf32> to vector<8x495xf32>
    %221 = vector.extract_strided_slice %173 {offsets = [0, 0], sizes = [8, 17], strides = [1, 1]} : vector<8x512xf32> to vector<8x17xf32>
    %222 = tpu.concatenate %220, %221 in 1 : vector<8x495xf32>, vector<8x17xf32> -> vector<8x512xf32>
    %223 = vector.extract_strided_slice %0 {offsets = [8, 0], sizes = [1, 512], strides = [1, 1]} : vector<9x512xf32> to vector<1x512xf32>
    %224 = vector.broadcast %223 : vector<1x512xf32> to vector<8x512xf32>
    %225 = arith.mulf %222, %224 : vector<8x512xf32>
    %226 = tpu.concatenate %183, %189, %195, %201, %173, %207, %213, %219, %225 in 0 : vector<8x512xf32>, vector<8x512xf32>, vector<8x512xf32>, vector<8x512xf32>, vector<8x512xf32>, vector<8x512xf32>, vector<8x512xf32>, vector<8x512xf32>, vector<8x512xf32> -> vector<72x512xf32>
    %cst_27 = arith.constant dense<0.000000e+00> : vector<8x512xf32>
    %227 = tpu.matmul %175, %226, %cst_27 {dimension_numbers = #tpu.dot_dimension_numbers<[1], [0], [0], [1], [0, 0, 1, 1], [], []>} : vector<8x72xf32>, vector<72x512xf32>, vector<8x512xf32> -> vector<8x512xf32>
    %228 = vector.broadcast %177 : vector<8x1xf32> to vector<8x512xf32>
    %229 = arith.addf %227, %228 : vector<8x512xf32>
    %c1_28 = arith.constant 1 : index
    %c0_29 = arith.constant 0 : index
    %c0_30 = arith.constant 0 : index
    %230 = vector.load %arg5[%c1_28, %c0_29, %c0_30] : memref<5x8x72xf32, #tpu.memory_space<vmem>>, vector<1x8x72xf32>
    %231 = vector.shape_cast %230 : vector<1x8x72xf32> to vector<8x72xf32>
    %c3_31 = arith.constant 3 : index
    %c0_32 = arith.constant 0 : index
    %c0_33 = arith.constant 0 : index
    %232 = vector.load %arg6[%c3_31, %c0_32, %c0_33] : memref<7x8x1xf32, #tpu.memory_space<vmem>>, vector<1x8x1xf32>
    %233 = vector.shape_cast %232 : vector<1x8x1xf32> to vector<8x1xf32>
    %234 = vector.extract_strided_slice %229 {offsets = [0, 495], sizes = [8, 17], strides = [1, 1]} : vector<8x512xf32> to vector<8x17xf32>
    %235 = vector.extract_strided_slice %229 {offsets = [0, 0], sizes = [8, 495], strides = [1, 1]} : vector<8x512xf32> to vector<8x495xf32>
    %236 = tpu.concatenate %234, %235 in 1 : vector<8x17xf32>, vector<8x495xf32> -> vector<8x512xf32>
    %237 = vector.extract_strided_slice %0 {offsets = [0, 0], sizes = [1, 512], strides = [1, 1]} : vector<9x512xf32> to vector<1x512xf32>
    %238 = vector.broadcast %237 : vector<1x512xf32> to vector<8x512xf32>
    %239 = arith.mulf %236, %238 : vector<8x512xf32>
    %240 = vector.extract_strided_slice %229 {offsets = [0, 496], sizes = [8, 16], strides = [1, 1]} : vector<8x512xf32> to vector<8x16xf32>
    %241 = vector.extract_strided_slice %229 {offsets = [0, 0], sizes = [8, 496], strides = [1, 1]} : vector<8x512xf32> to vector<8x496xf32>
    %242 = tpu.concatenate %240, %241 in 1 : vector<8x16xf32>, vector<8x496xf32> -> vector<8x512xf32>
    %243 = vector.extract_strided_slice %0 {offsets = [1, 0], sizes = [1, 512], strides = [1, 1]} : vector<9x512xf32> to vector<1x512xf32>
    %244 = vector.broadcast %243 : vector<1x512xf32> to vector<8x512xf32>
    %245 = arith.mulf %242, %244 : vector<8x512xf32>
    %246 = vector.extract_strided_slice %229 {offsets = [0, 497], sizes = [8, 15], strides = [1, 1]} : vector<8x512xf32> to vector<8x15xf32>
    %247 = vector.extract_strided_slice %229 {offsets = [0, 0], sizes = [8, 497], strides = [1, 1]} : vector<8x512xf32> to vector<8x497xf32>
    %248 = tpu.concatenate %246, %247 in 1 : vector<8x15xf32>, vector<8x497xf32> -> vector<8x512xf32>
    %249 = vector.extract_strided_slice %0 {offsets = [2, 0], sizes = [1, 512], strides = [1, 1]} : vector<9x512xf32> to vector<1x512xf32>
    %250 = vector.broadcast %249 : vector<1x512xf32> to vector<8x512xf32>
    %251 = arith.mulf %248, %250 : vector<8x512xf32>
    %252 = vector.extract_strided_slice %229 {offsets = [0, 511], sizes = [8, 1], strides = [1, 1]} : vector<8x512xf32> to vector<8x1xf32>
    %253 = vector.extract_strided_slice %229 {offsets = [0, 0], sizes = [8, 511], strides = [1, 1]} : vector<8x512xf32> to vector<8x511xf32>
    %254 = tpu.concatenate %252, %253 in 1 : vector<8x1xf32>, vector<8x511xf32> -> vector<8x512xf32>
    %255 = vector.extract_strided_slice %0 {offsets = [3, 0], sizes = [1, 512], strides = [1, 1]} : vector<9x512xf32> to vector<1x512xf32>
    %256 = vector.broadcast %255 : vector<1x512xf32> to vector<8x512xf32>
    %257 = arith.mulf %254, %256 : vector<8x512xf32>
    %258 = vector.extract_strided_slice %229 {offsets = [0, 1], sizes = [8, 511], strides = [1, 1]} : vector<8x512xf32> to vector<8x511xf32>
    %259 = vector.extract_strided_slice %229 {offsets = [0, 0], sizes = [8, 1], strides = [1, 1]} : vector<8x512xf32> to vector<8x1xf32>
    %260 = tpu.concatenate %258, %259 in 1 : vector<8x511xf32>, vector<8x1xf32> -> vector<8x512xf32>
    %261 = vector.extract_strided_slice %0 {offsets = [5, 0], sizes = [1, 512], strides = [1, 1]} : vector<9x512xf32> to vector<1x512xf32>
    %262 = vector.broadcast %261 : vector<1x512xf32> to vector<8x512xf32>
    %263 = arith.mulf %260, %262 : vector<8x512xf32>
    %264 = vector.extract_strided_slice %229 {offsets = [0, 15], sizes = [8, 497], strides = [1, 1]} : vector<8x512xf32> to vector<8x497xf32>
    %265 = vector.extract_strided_slice %229 {offsets = [0, 0], sizes = [8, 15], strides = [1, 1]} : vector<8x512xf32> to vector<8x15xf32>
    %266 = tpu.concatenate %264, %265 in 1 : vector<8x497xf32>, vector<8x15xf32> -> vector<8x512xf32>
    %267 = vector.extract_strided_slice %0 {offsets = [6, 0], sizes = [1, 512], strides = [1, 1]} : vector<9x512xf32> to vector<1x512xf32>
    %268 = vector.broadcast %267 : vector<1x512xf32> to vector<8x512xf32>
    %269 = arith.mulf %266, %268 : vector<8x512xf32>
    %270 = vector.extract_strided_slice %229 {offsets = [0, 16], sizes = [8, 496], strides = [1, 1]} : vector<8x512xf32> to vector<8x496xf32>
    %271 = vector.extract_strided_slice %229 {offsets = [0, 0], sizes = [8, 16], strides = [1, 1]} : vector<8x512xf32> to vector<8x16xf32>
    %272 = tpu.concatenate %270, %271 in 1 : vector<8x496xf32>, vector<8x16xf32> -> vector<8x512xf32>
    %273 = vector.extract_strided_slice %0 {offsets = [7, 0], sizes = [1, 512], strides = [1, 1]} : vector<9x512xf32> to vector<1x512xf32>
    %274 = vector.broadcast %273 : vector<1x512xf32> to vector<8x512xf32>
    %275 = arith.mulf %272, %274 : vector<8x512xf32>
    %276 = vector.extract_strided_slice %229 {offsets = [0, 17], sizes = [8, 495], strides = [1, 1]} : vector<8x512xf32> to vector<8x495xf32>
    %277 = vector.extract_strided_slice %229 {offsets = [0, 0], sizes = [8, 17], strides = [1, 1]} : vector<8x512xf32> to vector<8x17xf32>
    %278 = tpu.concatenate %276, %277 in 1 : vector<8x495xf32>, vector<8x17xf32> -> vector<8x512xf32>
    %279 = vector.extract_strided_slice %0 {offsets = [8, 0], sizes = [1, 512], strides = [1, 1]} : vector<9x512xf32> to vector<1x512xf32>
    %280 = vector.broadcast %279 : vector<1x512xf32> to vector<8x512xf32>
    %281 = arith.mulf %278, %280 : vector<8x512xf32>
    %282 = tpu.concatenate %239, %245, %251, %257, %229, %263, %269, %275, %281 in 0 : vector<8x512xf32>, vector<8x512xf32>, vector<8x512xf32>, vector<8x512xf32>, vector<8x512xf32>, vector<8x512xf32>, vector<8x512xf32>, vector<8x512xf32>, vector<8x512xf32> -> vector<72x512xf32>
    %cst_34 = arith.constant dense<0.000000e+00> : vector<8x512xf32>
    %283 = tpu.matmul %231, %282, %cst_34 {dimension_numbers = #tpu.dot_dimension_numbers<[1], [0], [0], [1], [0, 0, 1, 1], [], []>} : vector<8x72xf32>, vector<72x512xf32>, vector<8x512xf32> -> vector<8x512xf32>
    %284 = vector.broadcast %233 : vector<8x1xf32> to vector<8x512xf32>
    %285 = arith.addf %283, %284 : vector<8x512xf32>
    %c2_35 = arith.constant 2 : index
    %c0_36 = arith.constant 0 : index
    %c0_37 = arith.constant 0 : index
    %286 = vector.load %arg5[%c2_35, %c0_36, %c0_37] : memref<5x8x72xf32, #tpu.memory_space<vmem>>, vector<1x8x72xf32>
    %287 = vector.shape_cast %286 : vector<1x8x72xf32> to vector<8x72xf32>
    %c4 = arith.constant 4 : index
    %c0_38 = arith.constant 0 : index
    %c0_39 = arith.constant 0 : index
    %288 = vector.load %arg6[%c4, %c0_38, %c0_39] : memref<7x8x1xf32, #tpu.memory_space<vmem>>, vector<1x8x1xf32>
    %289 = vector.shape_cast %288 : vector<1x8x1xf32> to vector<8x1xf32>
    %290 = vector.extract_strided_slice %285 {offsets = [0, 495], sizes = [8, 17], strides = [1, 1]} : vector<8x512xf32> to vector<8x17xf32>
    %291 = vector.extract_strided_slice %285 {offsets = [0, 0], sizes = [8, 495], strides = [1, 1]} : vector<8x512xf32> to vector<8x495xf32>
    %292 = tpu.concatenate %290, %291 in 1 : vector<8x17xf32>, vector<8x495xf32> -> vector<8x512xf32>
    %293 = vector.extract_strided_slice %0 {offsets = [0, 0], sizes = [1, 512], strides = [1, 1]} : vector<9x512xf32> to vector<1x512xf32>
    %294 = vector.broadcast %293 : vector<1x512xf32> to vector<8x512xf32>
    %295 = arith.mulf %292, %294 : vector<8x512xf32>
    %296 = vector.extract_strided_slice %285 {offsets = [0, 496], sizes = [8, 16], strides = [1, 1]} : vector<8x512xf32> to vector<8x16xf32>
    %297 = vector.extract_strided_slice %285 {offsets = [0, 0], sizes = [8, 496], strides = [1, 1]} : vector<8x512xf32> to vector<8x496xf32>
    %298 = tpu.concatenate %296, %297 in 1 : vector<8x16xf32>, vector<8x496xf32> -> vector<8x512xf32>
    %299 = vector.extract_strided_slice %0 {offsets = [1, 0], sizes = [1, 512], strides = [1, 1]} : vector<9x512xf32> to vector<1x512xf32>
    %300 = vector.broadcast %299 : vector<1x512xf32> to vector<8x512xf32>
    %301 = arith.mulf %298, %300 : vector<8x512xf32>
    %302 = vector.extract_strided_slice %285 {offsets = [0, 497], sizes = [8, 15], strides = [1, 1]} : vector<8x512xf32> to vector<8x15xf32>
    %303 = vector.extract_strided_slice %285 {offsets = [0, 0], sizes = [8, 497], strides = [1, 1]} : vector<8x512xf32> to vector<8x497xf32>
    %304 = tpu.concatenate %302, %303 in 1 : vector<8x15xf32>, vector<8x497xf32> -> vector<8x512xf32>
    %305 = vector.extract_strided_slice %0 {offsets = [2, 0], sizes = [1, 512], strides = [1, 1]} : vector<9x512xf32> to vector<1x512xf32>
    %306 = vector.broadcast %305 : vector<1x512xf32> to vector<8x512xf32>
    %307 = arith.mulf %304, %306 : vector<8x512xf32>
    %308 = vector.extract_strided_slice %285 {offsets = [0, 511], sizes = [8, 1], strides = [1, 1]} : vector<8x512xf32> to vector<8x1xf32>
    %309 = vector.extract_strided_slice %285 {offsets = [0, 0], sizes = [8, 511], strides = [1, 1]} : vector<8x512xf32> to vector<8x511xf32>
    %310 = tpu.concatenate %308, %309 in 1 : vector<8x1xf32>, vector<8x511xf32> -> vector<8x512xf32>
    %311 = vector.extract_strided_slice %0 {offsets = [3, 0], sizes = [1, 512], strides = [1, 1]} : vector<9x512xf32> to vector<1x512xf32>
    %312 = vector.broadcast %311 : vector<1x512xf32> to vector<8x512xf32>
    %313 = arith.mulf %310, %312 : vector<8x512xf32>
    %314 = vector.extract_strided_slice %285 {offsets = [0, 1], sizes = [8, 511], strides = [1, 1]} : vector<8x512xf32> to vector<8x511xf32>
    %315 = vector.extract_strided_slice %285 {offsets = [0, 0], sizes = [8, 1], strides = [1, 1]} : vector<8x512xf32> to vector<8x1xf32>
    %316 = tpu.concatenate %314, %315 in 1 : vector<8x511xf32>, vector<8x1xf32> -> vector<8x512xf32>
    %317 = vector.extract_strided_slice %0 {offsets = [5, 0], sizes = [1, 512], strides = [1, 1]} : vector<9x512xf32> to vector<1x512xf32>
    %318 = vector.broadcast %317 : vector<1x512xf32> to vector<8x512xf32>
    %319 = arith.mulf %316, %318 : vector<8x512xf32>
    %320 = vector.extract_strided_slice %285 {offsets = [0, 15], sizes = [8, 497], strides = [1, 1]} : vector<8x512xf32> to vector<8x497xf32>
    %321 = vector.extract_strided_slice %285 {offsets = [0, 0], sizes = [8, 15], strides = [1, 1]} : vector<8x512xf32> to vector<8x15xf32>
    %322 = tpu.concatenate %320, %321 in 1 : vector<8x497xf32>, vector<8x15xf32> -> vector<8x512xf32>
    %323 = vector.extract_strided_slice %0 {offsets = [6, 0], sizes = [1, 512], strides = [1, 1]} : vector<9x512xf32> to vector<1x512xf32>
    %324 = vector.broadcast %323 : vector<1x512xf32> to vector<8x512xf32>
    %325 = arith.mulf %322, %324 : vector<8x512xf32>
    %326 = vector.extract_strided_slice %285 {offsets = [0, 16], sizes = [8, 496], strides = [1, 1]} : vector<8x512xf32> to vector<8x496xf32>
    %327 = vector.extract_strided_slice %285 {offsets = [0, 0], sizes = [8, 16], strides = [1, 1]} : vector<8x512xf32> to vector<8x16xf32>
    %328 = tpu.concatenate %326, %327 in 1 : vector<8x496xf32>, vector<8x16xf32> -> vector<8x512xf32>
    %329 = vector.extract_strided_slice %0 {offsets = [7, 0], sizes = [1, 512], strides = [1, 1]} : vector<9x512xf32> to vector<1x512xf32>
    %330 = vector.broadcast %329 : vector<1x512xf32> to vector<8x512xf32>
    %331 = arith.mulf %328, %330 : vector<8x512xf32>
    %332 = vector.extract_strided_slice %285 {offsets = [0, 17], sizes = [8, 495], strides = [1, 1]} : vector<8x512xf32> to vector<8x495xf32>
    %333 = vector.extract_strided_slice %285 {offsets = [0, 0], sizes = [8, 17], strides = [1, 1]} : vector<8x512xf32> to vector<8x17xf32>
    %334 = tpu.concatenate %332, %333 in 1 : vector<8x495xf32>, vector<8x17xf32> -> vector<8x512xf32>
    %335 = vector.extract_strided_slice %0 {offsets = [8, 0], sizes = [1, 512], strides = [1, 1]} : vector<9x512xf32> to vector<1x512xf32>
    %336 = vector.broadcast %335 : vector<1x512xf32> to vector<8x512xf32>
    %337 = arith.mulf %334, %336 : vector<8x512xf32>
    %338 = tpu.concatenate %295, %301, %307, %313, %285, %319, %325, %331, %337 in 0 : vector<8x512xf32>, vector<8x512xf32>, vector<8x512xf32>, vector<8x512xf32>, vector<8x512xf32>, vector<8x512xf32>, vector<8x512xf32>, vector<8x512xf32>, vector<8x512xf32> -> vector<72x512xf32>
    %cst_40 = arith.constant dense<0.000000e+00> : vector<8x512xf32>
    %339 = tpu.matmul %287, %338, %cst_40 {dimension_numbers = #tpu.dot_dimension_numbers<[1], [0], [0], [1], [0, 0, 1, 1], [], []>} : vector<8x72xf32>, vector<72x512xf32>, vector<8x512xf32> -> vector<8x512xf32>
    %340 = vector.broadcast %289 : vector<8x1xf32> to vector<8x512xf32>
    %341 = arith.addf %339, %340 : vector<8x512xf32>
    %c3_41 = arith.constant 3 : index
    %c0_42 = arith.constant 0 : index
    %c0_43 = arith.constant 0 : index
    %342 = vector.load %arg5[%c3_41, %c0_42, %c0_43] : memref<5x8x72xf32, #tpu.memory_space<vmem>>, vector<1x8x72xf32>
    %343 = vector.shape_cast %342 : vector<1x8x72xf32> to vector<8x72xf32>
    %c5 = arith.constant 5 : index
    %c0_44 = arith.constant 0 : index
    %c0_45 = arith.constant 0 : index
    %344 = vector.load %arg6[%c5, %c0_44, %c0_45] : memref<7x8x1xf32, #tpu.memory_space<vmem>>, vector<1x8x1xf32>
    %345 = vector.shape_cast %344 : vector<1x8x1xf32> to vector<8x1xf32>
    %346 = vector.extract_strided_slice %341 {offsets = [0, 495], sizes = [8, 17], strides = [1, 1]} : vector<8x512xf32> to vector<8x17xf32>
    %347 = vector.extract_strided_slice %341 {offsets = [0, 0], sizes = [8, 495], strides = [1, 1]} : vector<8x512xf32> to vector<8x495xf32>
    %348 = tpu.concatenate %346, %347 in 1 : vector<8x17xf32>, vector<8x495xf32> -> vector<8x512xf32>
    %349 = vector.extract_strided_slice %0 {offsets = [0, 0], sizes = [1, 512], strides = [1, 1]} : vector<9x512xf32> to vector<1x512xf32>
    %350 = vector.broadcast %349 : vector<1x512xf32> to vector<8x512xf32>
    %351 = arith.mulf %348, %350 : vector<8x512xf32>
    %352 = vector.extract_strided_slice %341 {offsets = [0, 496], sizes = [8, 16], strides = [1, 1]} : vector<8x512xf32> to vector<8x16xf32>
    %353 = vector.extract_strided_slice %341 {offsets = [0, 0], sizes = [8, 496], strides = [1, 1]} : vector<8x512xf32> to vector<8x496xf32>
    %354 = tpu.concatenate %352, %353 in 1 : vector<8x16xf32>, vector<8x496xf32> -> vector<8x512xf32>
    %355 = vector.extract_strided_slice %0 {offsets = [1, 0], sizes = [1, 512], strides = [1, 1]} : vector<9x512xf32> to vector<1x512xf32>
    %356 = vector.broadcast %355 : vector<1x512xf32> to vector<8x512xf32>
    %357 = arith.mulf %354, %356 : vector<8x512xf32>
    %358 = vector.extract_strided_slice %341 {offsets = [0, 497], sizes = [8, 15], strides = [1, 1]} : vector<8x512xf32> to vector<8x15xf32>
    %359 = vector.extract_strided_slice %341 {offsets = [0, 0], sizes = [8, 497], strides = [1, 1]} : vector<8x512xf32> to vector<8x497xf32>
    %360 = tpu.concatenate %358, %359 in 1 : vector<8x15xf32>, vector<8x497xf32> -> vector<8x512xf32>
    %361 = vector.extract_strided_slice %0 {offsets = [2, 0], sizes = [1, 512], strides = [1, 1]} : vector<9x512xf32> to vector<1x512xf32>
    %362 = vector.broadcast %361 : vector<1x512xf32> to vector<8x512xf32>
    %363 = arith.mulf %360, %362 : vector<8x512xf32>
    %364 = vector.extract_strided_slice %341 {offsets = [0, 511], sizes = [8, 1], strides = [1, 1]} : vector<8x512xf32> to vector<8x1xf32>
    %365 = vector.extract_strided_slice %341 {offsets = [0, 0], sizes = [8, 511], strides = [1, 1]} : vector<8x512xf32> to vector<8x511xf32>
    %366 = tpu.concatenate %364, %365 in 1 : vector<8x1xf32>, vector<8x511xf32> -> vector<8x512xf32>
    %367 = vector.extract_strided_slice %0 {offsets = [3, 0], sizes = [1, 512], strides = [1, 1]} : vector<9x512xf32> to vector<1x512xf32>
    %368 = vector.broadcast %367 : vector<1x512xf32> to vector<8x512xf32>
    %369 = arith.mulf %366, %368 : vector<8x512xf32>
    %370 = vector.extract_strided_slice %341 {offsets = [0, 1], sizes = [8, 511], strides = [1, 1]} : vector<8x512xf32> to vector<8x511xf32>
    %371 = vector.extract_strided_slice %341 {offsets = [0, 0], sizes = [8, 1], strides = [1, 1]} : vector<8x512xf32> to vector<8x1xf32>
    %372 = tpu.concatenate %370, %371 in 1 : vector<8x511xf32>, vector<8x1xf32> -> vector<8x512xf32>
    %373 = vector.extract_strided_slice %0 {offsets = [5, 0], sizes = [1, 512], strides = [1, 1]} : vector<9x512xf32> to vector<1x512xf32>
    %374 = vector.broadcast %373 : vector<1x512xf32> to vector<8x512xf32>
    %375 = arith.mulf %372, %374 : vector<8x512xf32>
    %376 = vector.extract_strided_slice %341 {offsets = [0, 15], sizes = [8, 497], strides = [1, 1]} : vector<8x512xf32> to vector<8x497xf32>
    %377 = vector.extract_strided_slice %341 {offsets = [0, 0], sizes = [8, 15], strides = [1, 1]} : vector<8x512xf32> to vector<8x15xf32>
    %378 = tpu.concatenate %376, %377 in 1 : vector<8x497xf32>, vector<8x15xf32> -> vector<8x512xf32>
    %379 = vector.extract_strided_slice %0 {offsets = [6, 0], sizes = [1, 512], strides = [1, 1]} : vector<9x512xf32> to vector<1x512xf32>
    %380 = vector.broadcast %379 : vector<1x512xf32> to vector<8x512xf32>
    %381 = arith.mulf %378, %380 : vector<8x512xf32>
    %382 = vector.extract_strided_slice %341 {offsets = [0, 16], sizes = [8, 496], strides = [1, 1]} : vector<8x512xf32> to vector<8x496xf32>
    %383 = vector.extract_strided_slice %341 {offsets = [0, 0], sizes = [8, 16], strides = [1, 1]} : vector<8x512xf32> to vector<8x16xf32>
    %384 = tpu.concatenate %382, %383 in 1 : vector<8x496xf32>, vector<8x16xf32> -> vector<8x512xf32>
    %385 = vector.extract_strided_slice %0 {offsets = [7, 0], sizes = [1, 512], strides = [1, 1]} : vector<9x512xf32> to vector<1x512xf32>
    %386 = vector.broadcast %385 : vector<1x512xf32> to vector<8x512xf32>
    %387 = arith.mulf %384, %386 : vector<8x512xf32>
    %388 = vector.extract_strided_slice %341 {offsets = [0, 17], sizes = [8, 495], strides = [1, 1]} : vector<8x512xf32> to vector<8x495xf32>
    %389 = vector.extract_strided_slice %341 {offsets = [0, 0], sizes = [8, 17], strides = [1, 1]} : vector<8x512xf32> to vector<8x17xf32>
    %390 = tpu.concatenate %388, %389 in 1 : vector<8x495xf32>, vector<8x17xf32> -> vector<8x512xf32>
    %391 = vector.extract_strided_slice %0 {offsets = [8, 0], sizes = [1, 512], strides = [1, 1]} : vector<9x512xf32> to vector<1x512xf32>
    %392 = vector.broadcast %391 : vector<1x512xf32> to vector<8x512xf32>
    %393 = arith.mulf %390, %392 : vector<8x512xf32>
    %394 = tpu.concatenate %351, %357, %363, %369, %341, %375, %381, %387, %393 in 0 : vector<8x512xf32>, vector<8x512xf32>, vector<8x512xf32>, vector<8x512xf32>, vector<8x512xf32>, vector<8x512xf32>, vector<8x512xf32>, vector<8x512xf32>, vector<8x512xf32> -> vector<72x512xf32>
    %cst_46 = arith.constant dense<0.000000e+00> : vector<8x512xf32>
    %395 = tpu.matmul %343, %394, %cst_46 {dimension_numbers = #tpu.dot_dimension_numbers<[1], [0], [0], [1], [0, 0, 1, 1], [], []>} : vector<8x72xf32>, vector<72x512xf32>, vector<8x512xf32> -> vector<8x512xf32>
    %396 = vector.broadcast %345 : vector<8x1xf32> to vector<8x512xf32>
    %397 = arith.addf %395, %396 : vector<8x512xf32>
    %c4_47 = arith.constant 4 : index
    %c0_48 = arith.constant 0 : index
    %c0_49 = arith.constant 0 : index
    %398 = vector.load %arg5[%c4_47, %c0_48, %c0_49] : memref<5x8x72xf32, #tpu.memory_space<vmem>>, vector<1x8x72xf32>
    %399 = vector.shape_cast %398 : vector<1x8x72xf32> to vector<8x72xf32>
    %c6 = arith.constant 6 : index
    %c0_50 = arith.constant 0 : index
    %c0_51 = arith.constant 0 : index
    %400 = vector.load %arg6[%c6, %c0_50, %c0_51] : memref<7x8x1xf32, #tpu.memory_space<vmem>>, vector<1x8x1xf32>
    %401 = vector.shape_cast %400 : vector<1x8x1xf32> to vector<8x1xf32>
    %402 = vector.extract_strided_slice %397 {offsets = [0, 495], sizes = [8, 17], strides = [1, 1]} : vector<8x512xf32> to vector<8x17xf32>
    %403 = vector.extract_strided_slice %397 {offsets = [0, 0], sizes = [8, 495], strides = [1, 1]} : vector<8x512xf32> to vector<8x495xf32>
    %404 = tpu.concatenate %402, %403 in 1 : vector<8x17xf32>, vector<8x495xf32> -> vector<8x512xf32>
    %405 = vector.extract_strided_slice %0 {offsets = [0, 0], sizes = [1, 512], strides = [1, 1]} : vector<9x512xf32> to vector<1x512xf32>
    %406 = vector.broadcast %405 : vector<1x512xf32> to vector<8x512xf32>
    %407 = arith.mulf %404, %406 : vector<8x512xf32>
    %408 = vector.extract_strided_slice %397 {offsets = [0, 496], sizes = [8, 16], strides = [1, 1]} : vector<8x512xf32> to vector<8x16xf32>
    %409 = vector.extract_strided_slice %397 {offsets = [0, 0], sizes = [8, 496], strides = [1, 1]} : vector<8x512xf32> to vector<8x496xf32>
    %410 = tpu.concatenate %408, %409 in 1 : vector<8x16xf32>, vector<8x496xf32> -> vector<8x512xf32>
    %411 = vector.extract_strided_slice %0 {offsets = [1, 0], sizes = [1, 512], strides = [1, 1]} : vector<9x512xf32> to vector<1x512xf32>
    %412 = vector.broadcast %411 : vector<1x512xf32> to vector<8x512xf32>
    %413 = arith.mulf %410, %412 : vector<8x512xf32>
    %414 = vector.extract_strided_slice %397 {offsets = [0, 497], sizes = [8, 15], strides = [1, 1]} : vector<8x512xf32> to vector<8x15xf32>
    %415 = vector.extract_strided_slice %397 {offsets = [0, 0], sizes = [8, 497], strides = [1, 1]} : vector<8x512xf32> to vector<8x497xf32>
    %416 = tpu.concatenate %414, %415 in 1 : vector<8x15xf32>, vector<8x497xf32> -> vector<8x512xf32>
    %417 = vector.extract_strided_slice %0 {offsets = [2, 0], sizes = [1, 512], strides = [1, 1]} : vector<9x512xf32> to vector<1x512xf32>
    %418 = vector.broadcast %417 : vector<1x512xf32> to vector<8x512xf32>
    %419 = arith.mulf %416, %418 : vector<8x512xf32>
    %420 = vector.extract_strided_slice %397 {offsets = [0, 511], sizes = [8, 1], strides = [1, 1]} : vector<8x512xf32> to vector<8x1xf32>
    %421 = vector.extract_strided_slice %397 {offsets = [0, 0], sizes = [8, 511], strides = [1, 1]} : vector<8x512xf32> to vector<8x511xf32>
    %422 = tpu.concatenate %420, %421 in 1 : vector<8x1xf32>, vector<8x511xf32> -> vector<8x512xf32>
    %423 = vector.extract_strided_slice %0 {offsets = [3, 0], sizes = [1, 512], strides = [1, 1]} : vector<9x512xf32> to vector<1x512xf32>
    %424 = vector.broadcast %423 : vector<1x512xf32> to vector<8x512xf32>
    %425 = arith.mulf %422, %424 : vector<8x512xf32>
    %426 = vector.extract_strided_slice %397 {offsets = [0, 1], sizes = [8, 511], strides = [1, 1]} : vector<8x512xf32> to vector<8x511xf32>
    %427 = vector.extract_strided_slice %397 {offsets = [0, 0], sizes = [8, 1], strides = [1, 1]} : vector<8x512xf32> to vector<8x1xf32>
    %428 = tpu.concatenate %426, %427 in 1 : vector<8x511xf32>, vector<8x1xf32> -> vector<8x512xf32>
    %429 = vector.extract_strided_slice %0 {offsets = [5, 0], sizes = [1, 512], strides = [1, 1]} : vector<9x512xf32> to vector<1x512xf32>
    %430 = vector.broadcast %429 : vector<1x512xf32> to vector<8x512xf32>
    %431 = arith.mulf %428, %430 : vector<8x512xf32>
    %432 = vector.extract_strided_slice %397 {offsets = [0, 15], sizes = [8, 497], strides = [1, 1]} : vector<8x512xf32> to vector<8x497xf32>
    %433 = vector.extract_strided_slice %397 {offsets = [0, 0], sizes = [8, 15], strides = [1, 1]} : vector<8x512xf32> to vector<8x15xf32>
    %434 = tpu.concatenate %432, %433 in 1 : vector<8x497xf32>, vector<8x15xf32> -> vector<8x512xf32>
    %435 = vector.extract_strided_slice %0 {offsets = [6, 0], sizes = [1, 512], strides = [1, 1]} : vector<9x512xf32> to vector<1x512xf32>
    %436 = vector.broadcast %435 : vector<1x512xf32> to vector<8x512xf32>
    %437 = arith.mulf %434, %436 : vector<8x512xf32>
    %438 = vector.extract_strided_slice %397 {offsets = [0, 16], sizes = [8, 496], strides = [1, 1]} : vector<8x512xf32> to vector<8x496xf32>
    %439 = vector.extract_strided_slice %397 {offsets = [0, 0], sizes = [8, 16], strides = [1, 1]} : vector<8x512xf32> to vector<8x16xf32>
    %440 = tpu.concatenate %438, %439 in 1 : vector<8x496xf32>, vector<8x16xf32> -> vector<8x512xf32>
    %441 = vector.extract_strided_slice %0 {offsets = [7, 0], sizes = [1, 512], strides = [1, 1]} : vector<9x512xf32> to vector<1x512xf32>
    %442 = vector.broadcast %441 : vector<1x512xf32> to vector<8x512xf32>
    %443 = arith.mulf %440, %442 : vector<8x512xf32>
    %444 = vector.extract_strided_slice %397 {offsets = [0, 17], sizes = [8, 495], strides = [1, 1]} : vector<8x512xf32> to vector<8x495xf32>
    %445 = vector.extract_strided_slice %397 {offsets = [0, 0], sizes = [8, 17], strides = [1, 1]} : vector<8x512xf32> to vector<8x17xf32>
    %446 = tpu.concatenate %444, %445 in 1 : vector<8x495xf32>, vector<8x17xf32> -> vector<8x512xf32>
    %447 = vector.extract_strided_slice %0 {offsets = [8, 0], sizes = [1, 512], strides = [1, 1]} : vector<9x512xf32> to vector<1x512xf32>
    %448 = vector.broadcast %447 : vector<1x512xf32> to vector<8x512xf32>
    %449 = arith.mulf %446, %448 : vector<8x512xf32>
    %450 = tpu.concatenate %407, %413, %419, %425, %397, %431, %437, %443, %449 in 0 : vector<8x512xf32>, vector<8x512xf32>, vector<8x512xf32>, vector<8x512xf32>, vector<8x512xf32>, vector<8x512xf32>, vector<8x512xf32>, vector<8x512xf32>, vector<8x512xf32> -> vector<72x512xf32>
    %cst_52 = arith.constant dense<0.000000e+00> : vector<8x512xf32>
    %451 = tpu.matmul %399, %450, %cst_52 {dimension_numbers = #tpu.dot_dimension_numbers<[1], [0], [0], [1], [0, 0, 1, 1], [], []>} : vector<8x72xf32>, vector<72x512xf32>, vector<8x512xf32> -> vector<8x512xf32>
    %452 = vector.broadcast %401 : vector<8x1xf32> to vector<8x512xf32>
    %453 = arith.addf %451, %452 : vector<8x512xf32>
    %c0_53 = arith.constant 0 : index
    %c0_54 = arith.constant 0 : index
    %454 = vector.load %arg7[%c0_53, %c0_54] : memref<2x8xf32, #tpu.memory_space<vmem>>, vector<2x8xf32>
    %cst_55 = arith.constant dense<0.000000e+00> : vector<2x512xf32>
    %455 = tpu.matmul %454, %453, %cst_55 {dimension_numbers = #tpu.dot_dimension_numbers<[1], [0], [0], [1], [0, 0, 1, 1], [], []>} : vector<2x8xf32>, vector<8x512xf32>, vector<2x512xf32> -> vector<2x512xf32>
    %c0_56 = arith.constant 0 : index
    %c0_57 = arith.constant 0 : index
    %456 = vector.load %arg8[%c0_56, %c0_57] : memref<2x1xf32, #tpu.memory_space<vmem>>, vector<2x1xf32>
    %457 = vector.broadcast %456 : vector<2x1xf32> to vector<2x512xf32>
    %458 = arith.addf %455, %457 : vector<2x512xf32>
    %459 = vector.extract_strided_slice %458 {offsets = [1, 0], sizes = [1, 512], strides = [1, 1]} : vector<2x512xf32> to vector<1x512xf32>
    %460 = vector.extract_strided_slice %458 {offsets = [0, 0], sizes = [1, 512], strides = [1, 1]} : vector<2x512xf32> to vector<1x512xf32>
    %461 = arith.subf %459, %460 : vector<1x512xf32>
    %462 = math.exp %461 : vector<1x512xf32>
    %cst_58 = arith.constant 1.000000e+00 : f32
    %463 = vector.broadcast %cst_58 : f32 to vector<1x512xf32>
    %464 = arith.addf %463, %462 : vector<1x512xf32>
    %cst_59 = arith.constant 1.000000e+00 : f32
    %465 = vector.broadcast %cst_59 : f32 to vector<1x512xf32>
    %466 = arith.divf %465, %464 : vector<1x512xf32>
    %467 = tpu.concatenate %117, %341 in 0 : vector<8x512xf32>, vector<8x512xf32> -> vector<16x512xf32>
    %c0_60 = arith.constant 0 : index
    %c0_61 = arith.constant 0 : index
    %468 = vector.load %arg4[%c0_60, %c0_61] : memref<8x144xf32, #tpu.memory_space<vmem>>, vector<8x144xf32>
    %c2_62 = arith.constant 2 : index
    %c0_63 = arith.constant 0 : index
    %c0_64 = arith.constant 0 : index
    %469 = vector.load %arg6[%c2_62, %c0_63, %c0_64] : memref<7x8x1xf32, #tpu.memory_space<vmem>>, vector<1x8x1xf32>
    %470 = vector.shape_cast %469 : vector<1x8x1xf32> to vector<8x1xf32>
    %471 = vector.extract_strided_slice %467 {offsets = [0, 495], sizes = [16, 17], strides = [1, 1]} : vector<16x512xf32> to vector<16x17xf32>
    %472 = vector.extract_strided_slice %467 {offsets = [0, 0], sizes = [16, 495], strides = [1, 1]} : vector<16x512xf32> to vector<16x495xf32>
    %473 = tpu.concatenate %471, %472 in 1 : vector<16x17xf32>, vector<16x495xf32> -> vector<16x512xf32>
    %474 = vector.extract_strided_slice %0 {offsets = [0, 0], sizes = [1, 512], strides = [1, 1]} : vector<9x512xf32> to vector<1x512xf32>
    %475 = vector.broadcast %474 : vector<1x512xf32> to vector<16x512xf32>
    %476 = arith.mulf %473, %475 : vector<16x512xf32>
    %477 = vector.extract_strided_slice %467 {offsets = [0, 496], sizes = [16, 16], strides = [1, 1]} : vector<16x512xf32> to vector<16x16xf32>
    %478 = vector.extract_strided_slice %467 {offsets = [0, 0], sizes = [16, 496], strides = [1, 1]} : vector<16x512xf32> to vector<16x496xf32>
    %479 = tpu.concatenate %477, %478 in 1 : vector<16x16xf32>, vector<16x496xf32> -> vector<16x512xf32>
    %480 = vector.extract_strided_slice %0 {offsets = [1, 0], sizes = [1, 512], strides = [1, 1]} : vector<9x512xf32> to vector<1x512xf32>
    %481 = vector.broadcast %480 : vector<1x512xf32> to vector<16x512xf32>
    %482 = arith.mulf %479, %481 : vector<16x512xf32>
    %483 = vector.extract_strided_slice %467 {offsets = [0, 497], sizes = [16, 15], strides = [1, 1]} : vector<16x512xf32> to vector<16x15xf32>
    %484 = vector.extract_strided_slice %467 {offsets = [0, 0], sizes = [16, 497], strides = [1, 1]} : vector<16x512xf32> to vector<16x497xf32>
    %485 = tpu.concatenate %483, %484 in 1 : vector<16x15xf32>, vector<16x497xf32> -> vector<16x512xf32>
    %486 = vector.extract_strided_slice %0 {offsets = [2, 0], sizes = [1, 512], strides = [1, 1]} : vector<9x512xf32> to vector<1x512xf32>
    %487 = vector.broadcast %486 : vector<1x512xf32> to vector<16x512xf32>
    %488 = arith.mulf %485, %487 : vector<16x512xf32>
    %489 = vector.extract_strided_slice %467 {offsets = [0, 511], sizes = [16, 1], strides = [1, 1]} : vector<16x512xf32> to vector<16x1xf32>
    %490 = vector.extract_strided_slice %467 {offsets = [0, 0], sizes = [16, 511], strides = [1, 1]} : vector<16x512xf32> to vector<16x511xf32>
    %491 = tpu.concatenate %489, %490 in 1 : vector<16x1xf32>, vector<16x511xf32> -> vector<16x512xf32>
    %492 = vector.extract_strided_slice %0 {offsets = [3, 0], sizes = [1, 512], strides = [1, 1]} : vector<9x512xf32> to vector<1x512xf32>
    %493 = vector.broadcast %492 : vector<1x512xf32> to vector<16x512xf32>
    %494 = arith.mulf %491, %493 : vector<16x512xf32>
    %495 = vector.extract_strided_slice %467 {offsets = [0, 1], sizes = [16, 511], strides = [1, 1]} : vector<16x512xf32> to vector<16x511xf32>
    %496 = vector.extract_strided_slice %467 {offsets = [0, 0], sizes = [16, 1], strides = [1, 1]} : vector<16x512xf32> to vector<16x1xf32>
    %497 = tpu.concatenate %495, %496 in 1 : vector<16x511xf32>, vector<16x1xf32> -> vector<16x512xf32>
    %498 = vector.extract_strided_slice %0 {offsets = [5, 0], sizes = [1, 512], strides = [1, 1]} : vector<9x512xf32> to vector<1x512xf32>
    %499 = vector.broadcast %498 : vector<1x512xf32> to vector<16x512xf32>
    %500 = arith.mulf %497, %499 : vector<16x512xf32>
    %501 = vector.extract_strided_slice %467 {offsets = [0, 15], sizes = [16, 497], strides = [1, 1]} : vector<16x512xf32> to vector<16x497xf32>
    %502 = vector.extract_strided_slice %467 {offsets = [0, 0], sizes = [16, 15], strides = [1, 1]} : vector<16x512xf32> to vector<16x15xf32>
    %503 = tpu.concatenate %501, %502 in 1 : vector<16x497xf32>, vector<16x15xf32> -> vector<16x512xf32>
    %504 = vector.extract_strided_slice %0 {offsets = [6, 0], sizes = [1, 512], strides = [1, 1]} : vector<9x512xf32> to vector<1x512xf32>
    %505 = vector.broadcast %504 : vector<1x512xf32> to vector<16x512xf32>
    %506 = arith.mulf %503, %505 : vector<16x512xf32>
    %507 = vector.extract_strided_slice %467 {offsets = [0, 16], sizes = [16, 496], strides = [1, 1]} : vector<16x512xf32> to vector<16x496xf32>
    %508 = vector.extract_strided_slice %467 {offsets = [0, 0], sizes = [16, 16], strides = [1, 1]} : vector<16x512xf32> to vector<16x16xf32>
    %509 = tpu.concatenate %507, %508 in 1 : vector<16x496xf32>, vector<16x16xf32> -> vector<16x512xf32>
    %510 = vector.extract_strided_slice %0 {offsets = [7, 0], sizes = [1, 512], strides = [1, 1]} : vector<9x512xf32> to vector<1x512xf32>
    %511 = vector.broadcast %510 : vector<1x512xf32> to vector<16x512xf32>
    %512 = arith.mulf %509, %511 : vector<16x512xf32>
    %513 = vector.extract_strided_slice %467 {offsets = [0, 17], sizes = [16, 495], strides = [1, 1]} : vector<16x512xf32> to vector<16x495xf32>
    %514 = vector.extract_strided_slice %467 {offsets = [0, 0], sizes = [16, 17], strides = [1, 1]} : vector<16x512xf32> to vector<16x17xf32>
    %515 = tpu.concatenate %513, %514 in 1 : vector<16x495xf32>, vector<16x17xf32> -> vector<16x512xf32>
    %516 = vector.extract_strided_slice %0 {offsets = [8, 0], sizes = [1, 512], strides = [1, 1]} : vector<9x512xf32> to vector<1x512xf32>
    %517 = vector.broadcast %516 : vector<1x512xf32> to vector<16x512xf32>
    %518 = arith.mulf %515, %517 : vector<16x512xf32>
    %519 = tpu.concatenate %476, %482, %488, %494, %467, %500, %506, %512, %518 in 0 : vector<16x512xf32>, vector<16x512xf32>, vector<16x512xf32>, vector<16x512xf32>, vector<16x512xf32>, vector<16x512xf32>, vector<16x512xf32>, vector<16x512xf32>, vector<16x512xf32> -> vector<144x512xf32>
    %cst_65 = arith.constant dense<0.000000e+00> : vector<8x512xf32>
    %520 = tpu.matmul %468, %519, %cst_65 {dimension_numbers = #tpu.dot_dimension_numbers<[1], [0], [0], [1], [0, 0, 1, 1], [], []>} : vector<8x144xf32>, vector<144x512xf32>, vector<8x512xf32> -> vector<8x512xf32>
    %521 = vector.broadcast %470 : vector<8x1xf32> to vector<8x512xf32>
    %522 = arith.addf %520, %521 : vector<8x512xf32>
    %c1_66 = arith.constant 1 : index
    %c0_67 = arith.constant 0 : index
    %c0_68 = arith.constant 0 : index
    %523 = vector.load %arg5[%c1_66, %c0_67, %c0_68] : memref<5x8x72xf32, #tpu.memory_space<vmem>>, vector<1x8x72xf32>
    %524 = vector.shape_cast %523 : vector<1x8x72xf32> to vector<8x72xf32>
    %c3_69 = arith.constant 3 : index
    %c0_70 = arith.constant 0 : index
    %c0_71 = arith.constant 0 : index
    %525 = vector.load %arg6[%c3_69, %c0_70, %c0_71] : memref<7x8x1xf32, #tpu.memory_space<vmem>>, vector<1x8x1xf32>
    %526 = vector.shape_cast %525 : vector<1x8x1xf32> to vector<8x1xf32>
    %527 = vector.extract_strided_slice %522 {offsets = [0, 495], sizes = [8, 17], strides = [1, 1]} : vector<8x512xf32> to vector<8x17xf32>
    %528 = vector.extract_strided_slice %522 {offsets = [0, 0], sizes = [8, 495], strides = [1, 1]} : vector<8x512xf32> to vector<8x495xf32>
    %529 = tpu.concatenate %527, %528 in 1 : vector<8x17xf32>, vector<8x495xf32> -> vector<8x512xf32>
    %530 = vector.extract_strided_slice %0 {offsets = [0, 0], sizes = [1, 512], strides = [1, 1]} : vector<9x512xf32> to vector<1x512xf32>
    %531 = vector.broadcast %530 : vector<1x512xf32> to vector<8x512xf32>
    %532 = arith.mulf %529, %531 : vector<8x512xf32>
    %533 = vector.extract_strided_slice %522 {offsets = [0, 496], sizes = [8, 16], strides = [1, 1]} : vector<8x512xf32> to vector<8x16xf32>
    %534 = vector.extract_strided_slice %522 {offsets = [0, 0], sizes = [8, 496], strides = [1, 1]} : vector<8x512xf32> to vector<8x496xf32>
    %535 = tpu.concatenate %533, %534 in 1 : vector<8x16xf32>, vector<8x496xf32> -> vector<8x512xf32>
    %536 = vector.extract_strided_slice %0 {offsets = [1, 0], sizes = [1, 512], strides = [1, 1]} : vector<9x512xf32> to vector<1x512xf32>
    %537 = vector.broadcast %536 : vector<1x512xf32> to vector<8x512xf32>
    %538 = arith.mulf %535, %537 : vector<8x512xf32>
    %539 = vector.extract_strided_slice %522 {offsets = [0, 497], sizes = [8, 15], strides = [1, 1]} : vector<8x512xf32> to vector<8x15xf32>
    %540 = vector.extract_strided_slice %522 {offsets = [0, 0], sizes = [8, 497], strides = [1, 1]} : vector<8x512xf32> to vector<8x497xf32>
    %541 = tpu.concatenate %539, %540 in 1 : vector<8x15xf32>, vector<8x497xf32> -> vector<8x512xf32>
    %542 = vector.extract_strided_slice %0 {offsets = [2, 0], sizes = [1, 512], strides = [1, 1]} : vector<9x512xf32> to vector<1x512xf32>
    %543 = vector.broadcast %542 : vector<1x512xf32> to vector<8x512xf32>
    %544 = arith.mulf %541, %543 : vector<8x512xf32>
    %545 = vector.extract_strided_slice %522 {offsets = [0, 511], sizes = [8, 1], strides = [1, 1]} : vector<8x512xf32> to vector<8x1xf32>
    %546 = vector.extract_strided_slice %522 {offsets = [0, 0], sizes = [8, 511], strides = [1, 1]} : vector<8x512xf32> to vector<8x511xf32>
    %547 = tpu.concatenate %545, %546 in 1 : vector<8x1xf32>, vector<8x511xf32> -> vector<8x512xf32>
    %548 = vector.extract_strided_slice %0 {offsets = [3, 0], sizes = [1, 512], strides = [1, 1]} : vector<9x512xf32> to vector<1x512xf32>
    %549 = vector.broadcast %548 : vector<1x512xf32> to vector<8x512xf32>
    %550 = arith.mulf %547, %549 : vector<8x512xf32>
    %551 = vector.extract_strided_slice %522 {offsets = [0, 1], sizes = [8, 511], strides = [1, 1]} : vector<8x512xf32> to vector<8x511xf32>
    %552 = vector.extract_strided_slice %522 {offsets = [0, 0], sizes = [8, 1], strides = [1, 1]} : vector<8x512xf32> to vector<8x1xf32>
    %553 = tpu.concatenate %551, %552 in 1 : vector<8x511xf32>, vector<8x1xf32> -> vector<8x512xf32>
    %554 = vector.extract_strided_slice %0 {offsets = [5, 0], sizes = [1, 512], strides = [1, 1]} : vector<9x512xf32> to vector<1x512xf32>
    %555 = vector.broadcast %554 : vector<1x512xf32> to vector<8x512xf32>
    %556 = arith.mulf %553, %555 : vector<8x512xf32>
    %557 = vector.extract_strided_slice %522 {offsets = [0, 15], sizes = [8, 497], strides = [1, 1]} : vector<8x512xf32> to vector<8x497xf32>
    %558 = vector.extract_strided_slice %522 {offsets = [0, 0], sizes = [8, 15], strides = [1, 1]} : vector<8x512xf32> to vector<8x15xf32>
    %559 = tpu.concatenate %557, %558 in 1 : vector<8x497xf32>, vector<8x15xf32> -> vector<8x512xf32>
    %560 = vector.extract_strided_slice %0 {offsets = [6, 0], sizes = [1, 512], strides = [1, 1]} : vector<9x512xf32> to vector<1x512xf32>
    %561 = vector.broadcast %560 : vector<1x512xf32> to vector<8x512xf32>
    %562 = arith.mulf %559, %561 : vector<8x512xf32>
    %563 = vector.extract_strided_slice %522 {offsets = [0, 16], sizes = [8, 496], strides = [1, 1]} : vector<8x512xf32> to vector<8x496xf32>
    %564 = vector.extract_strided_slice %522 {offsets = [0, 0], sizes = [8, 16], strides = [1, 1]} : vector<8x512xf32> to vector<8x16xf32>
    %565 = tpu.concatenate %563, %564 in 1 : vector<8x496xf32>, vector<8x16xf32> -> vector<8x512xf32>
    %566 = vector.extract_strided_slice %0 {offsets = [7, 0], sizes = [1, 512], strides = [1, 1]} : vector<9x512xf32> to vector<1x512xf32>
    %567 = vector.broadcast %566 : vector<1x512xf32> to vector<8x512xf32>
    %568 = arith.mulf %565, %567 : vector<8x512xf32>
    %569 = vector.extract_strided_slice %522 {offsets = [0, 17], sizes = [8, 495], strides = [1, 1]} : vector<8x512xf32> to vector<8x495xf32>
    %570 = vector.extract_strided_slice %522 {offsets = [0, 0], sizes = [8, 17], strides = [1, 1]} : vector<8x512xf32> to vector<8x17xf32>
    %571 = tpu.concatenate %569, %570 in 1 : vector<8x495xf32>, vector<8x17xf32> -> vector<8x512xf32>
    %572 = vector.extract_strided_slice %0 {offsets = [8, 0], sizes = [1, 512], strides = [1, 1]} : vector<9x512xf32> to vector<1x512xf32>
    %573 = vector.broadcast %572 : vector<1x512xf32> to vector<8x512xf32>
    %574 = arith.mulf %571, %573 : vector<8x512xf32>
    %575 = tpu.concatenate %532, %538, %544, %550, %522, %556, %562, %568, %574 in 0 : vector<8x512xf32>, vector<8x512xf32>, vector<8x512xf32>, vector<8x512xf32>, vector<8x512xf32>, vector<8x512xf32>, vector<8x512xf32>, vector<8x512xf32>, vector<8x512xf32> -> vector<72x512xf32>
    %cst_72 = arith.constant dense<0.000000e+00> : vector<8x512xf32>
    %576 = tpu.matmul %524, %575, %cst_72 {dimension_numbers = #tpu.dot_dimension_numbers<[1], [0], [0], [1], [0, 0, 1, 1], [], []>} : vector<8x72xf32>, vector<72x512xf32>, vector<8x512xf32> -> vector<8x512xf32>
    %577 = vector.broadcast %526 : vector<8x1xf32> to vector<8x512xf32>
    %578 = arith.addf %576, %577 : vector<8x512xf32>
    %c1_73 = arith.constant 1 : index
    %c0_74 = arith.constant 0 : index
    %c0_75 = arith.constant 0 : index
    %579 = vector.load %arg5[%c1_73, %c0_74, %c0_75] : memref<5x8x72xf32, #tpu.memory_space<vmem>>, vector<1x8x72xf32>
    %580 = vector.shape_cast %579 : vector<1x8x72xf32> to vector<8x72xf32>
    %c3_76 = arith.constant 3 : index
    %c0_77 = arith.constant 0 : index
    %c0_78 = arith.constant 0 : index
    %581 = vector.load %arg6[%c3_76, %c0_77, %c0_78] : memref<7x8x1xf32, #tpu.memory_space<vmem>>, vector<1x8x1xf32>
    %582 = vector.shape_cast %581 : vector<1x8x1xf32> to vector<8x1xf32>
    %583 = vector.extract_strided_slice %578 {offsets = [0, 495], sizes = [8, 17], strides = [1, 1]} : vector<8x512xf32> to vector<8x17xf32>
    %584 = vector.extract_strided_slice %578 {offsets = [0, 0], sizes = [8, 495], strides = [1, 1]} : vector<8x512xf32> to vector<8x495xf32>
    %585 = tpu.concatenate %583, %584 in 1 : vector<8x17xf32>, vector<8x495xf32> -> vector<8x512xf32>
    %586 = vector.extract_strided_slice %0 {offsets = [0, 0], sizes = [1, 512], strides = [1, 1]} : vector<9x512xf32> to vector<1x512xf32>
    %587 = vector.broadcast %586 : vector<1x512xf32> to vector<8x512xf32>
    %588 = arith.mulf %585, %587 : vector<8x512xf32>
    %589 = vector.extract_strided_slice %578 {offsets = [0, 496], sizes = [8, 16], strides = [1, 1]} : vector<8x512xf32> to vector<8x16xf32>
    %590 = vector.extract_strided_slice %578 {offsets = [0, 0], sizes = [8, 496], strides = [1, 1]} : vector<8x512xf32> to vector<8x496xf32>
    %591 = tpu.concatenate %589, %590 in 1 : vector<8x16xf32>, vector<8x496xf32> -> vector<8x512xf32>
    %592 = vector.extract_strided_slice %0 {offsets = [1, 0], sizes = [1, 512], strides = [1, 1]} : vector<9x512xf32> to vector<1x512xf32>
    %593 = vector.broadcast %592 : vector<1x512xf32> to vector<8x512xf32>
    %594 = arith.mulf %591, %593 : vector<8x512xf32>
    %595 = vector.extract_strided_slice %578 {offsets = [0, 497], sizes = [8, 15], strides = [1, 1]} : vector<8x512xf32> to vector<8x15xf32>
    %596 = vector.extract_strided_slice %578 {offsets = [0, 0], sizes = [8, 497], strides = [1, 1]} : vector<8x512xf32> to vector<8x497xf32>
    %597 = tpu.concatenate %595, %596 in 1 : vector<8x15xf32>, vector<8x497xf32> -> vector<8x512xf32>
    %598 = vector.extract_strided_slice %0 {offsets = [2, 0], sizes = [1, 512], strides = [1, 1]} : vector<9x512xf32> to vector<1x512xf32>
    %599 = vector.broadcast %598 : vector<1x512xf32> to vector<8x512xf32>
    %600 = arith.mulf %597, %599 : vector<8x512xf32>
    %601 = vector.extract_strided_slice %578 {offsets = [0, 511], sizes = [8, 1], strides = [1, 1]} : vector<8x512xf32> to vector<8x1xf32>
    %602 = vector.extract_strided_slice %578 {offsets = [0, 0], sizes = [8, 511], strides = [1, 1]} : vector<8x512xf32> to vector<8x511xf32>
    %603 = tpu.concatenate %601, %602 in 1 : vector<8x1xf32>, vector<8x511xf32> -> vector<8x512xf32>
    %604 = vector.extract_strided_slice %0 {offsets = [3, 0], sizes = [1, 512], strides = [1, 1]} : vector<9x512xf32> to vector<1x512xf32>
    %605 = vector.broadcast %604 : vector<1x512xf32> to vector<8x512xf32>
    %606 = arith.mulf %603, %605 : vector<8x512xf32>
    %607 = vector.extract_strided_slice %578 {offsets = [0, 1], sizes = [8, 511], strides = [1, 1]} : vector<8x512xf32> to vector<8x511xf32>
    %608 = vector.extract_strided_slice %578 {offsets = [0, 0], sizes = [8, 1], strides = [1, 1]} : vector<8x512xf32> to vector<8x1xf32>
    %609 = tpu.concatenate %607, %608 in 1 : vector<8x511xf32>, vector<8x1xf32> -> vector<8x512xf32>
    %610 = vector.extract_strided_slice %0 {offsets = [5, 0], sizes = [1, 512], strides = [1, 1]} : vector<9x512xf32> to vector<1x512xf32>
    %611 = vector.broadcast %610 : vector<1x512xf32> to vector<8x512xf32>
    %612 = arith.mulf %609, %611 : vector<8x512xf32>
    %613 = vector.extract_strided_slice %578 {offsets = [0, 15], sizes = [8, 497], strides = [1, 1]} : vector<8x512xf32> to vector<8x497xf32>
    %614 = vector.extract_strided_slice %578 {offsets = [0, 0], sizes = [8, 15], strides = [1, 1]} : vector<8x512xf32> to vector<8x15xf32>
    %615 = tpu.concatenate %613, %614 in 1 : vector<8x497xf32>, vector<8x15xf32> -> vector<8x512xf32>
    %616 = vector.extract_strided_slice %0 {offsets = [6, 0], sizes = [1, 512], strides = [1, 1]} : vector<9x512xf32> to vector<1x512xf32>
    %617 = vector.broadcast %616 : vector<1x512xf32> to vector<8x512xf32>
    %618 = arith.mulf %615, %617 : vector<8x512xf32>
    %619 = vector.extract_strided_slice %578 {offsets = [0, 16], sizes = [8, 496], strides = [1, 1]} : vector<8x512xf32> to vector<8x496xf32>
    %620 = vector.extract_strided_slice %578 {offsets = [0, 0], sizes = [8, 16], strides = [1, 1]} : vector<8x512xf32> to vector<8x16xf32>
    %621 = tpu.concatenate %619, %620 in 1 : vector<8x496xf32>, vector<8x16xf32> -> vector<8x512xf32>
    %622 = vector.extract_strided_slice %0 {offsets = [7, 0], sizes = [1, 512], strides = [1, 1]} : vector<9x512xf32> to vector<1x512xf32>
    %623 = vector.broadcast %622 : vector<1x512xf32> to vector<8x512xf32>
    %624 = arith.mulf %621, %623 : vector<8x512xf32>
    %625 = vector.extract_strided_slice %578 {offsets = [0, 17], sizes = [8, 495], strides = [1, 1]} : vector<8x512xf32> to vector<8x495xf32>
    %626 = vector.extract_strided_slice %578 {offsets = [0, 0], sizes = [8, 17], strides = [1, 1]} : vector<8x512xf32> to vector<8x17xf32>
    %627 = tpu.concatenate %625, %626 in 1 : vector<8x495xf32>, vector<8x17xf32> -> vector<8x512xf32>
    %628 = vector.extract_strided_slice %0 {offsets = [8, 0], sizes = [1, 512], strides = [1, 1]} : vector<9x512xf32> to vector<1x512xf32>
    %629 = vector.broadcast %628 : vector<1x512xf32> to vector<8x512xf32>
    %630 = arith.mulf %627, %629 : vector<8x512xf32>
    %631 = tpu.concatenate %588, %594, %600, %606, %578, %612, %618, %624, %630 in 0 : vector<8x512xf32>, vector<8x512xf32>, vector<8x512xf32>, vector<8x512xf32>, vector<8x512xf32>, vector<8x512xf32>, vector<8x512xf32>, vector<8x512xf32>, vector<8x512xf32> -> vector<72x512xf32>
    %cst_79 = arith.constant dense<0.000000e+00> : vector<8x512xf32>
    %632 = tpu.matmul %580, %631, %cst_79 {dimension_numbers = #tpu.dot_dimension_numbers<[1], [0], [0], [1], [0, 0, 1, 1], [], []>} : vector<8x72xf32>, vector<72x512xf32>, vector<8x512xf32> -> vector<8x512xf32>
    %633 = vector.broadcast %582 : vector<8x1xf32> to vector<8x512xf32>
    %634 = arith.addf %632, %633 : vector<8x512xf32>
    %c2_80 = arith.constant 2 : index
    %c0_81 = arith.constant 0 : index
    %c0_82 = arith.constant 0 : index
    %635 = vector.load %arg5[%c2_80, %c0_81, %c0_82] : memref<5x8x72xf32, #tpu.memory_space<vmem>>, vector<1x8x72xf32>
    %636 = vector.shape_cast %635 : vector<1x8x72xf32> to vector<8x72xf32>
    %c4_83 = arith.constant 4 : index
    %c0_84 = arith.constant 0 : index
    %c0_85 = arith.constant 0 : index
    %637 = vector.load %arg6[%c4_83, %c0_84, %c0_85] : memref<7x8x1xf32, #tpu.memory_space<vmem>>, vector<1x8x1xf32>
    %638 = vector.shape_cast %637 : vector<1x8x1xf32> to vector<8x1xf32>
    %639 = vector.extract_strided_slice %634 {offsets = [0, 495], sizes = [8, 17], strides = [1, 1]} : vector<8x512xf32> to vector<8x17xf32>
    %640 = vector.extract_strided_slice %634 {offsets = [0, 0], sizes = [8, 495], strides = [1, 1]} : vector<8x512xf32> to vector<8x495xf32>
    %641 = tpu.concatenate %639, %640 in 1 : vector<8x17xf32>, vector<8x495xf32> -> vector<8x512xf32>
    %642 = vector.extract_strided_slice %0 {offsets = [0, 0], sizes = [1, 512], strides = [1, 1]} : vector<9x512xf32> to vector<1x512xf32>
    %643 = vector.broadcast %642 : vector<1x512xf32> to vector<8x512xf32>
    %644 = arith.mulf %641, %643 : vector<8x512xf32>
    %645 = vector.extract_strided_slice %634 {offsets = [0, 496], sizes = [8, 16], strides = [1, 1]} : vector<8x512xf32> to vector<8x16xf32>
    %646 = vector.extract_strided_slice %634 {offsets = [0, 0], sizes = [8, 496], strides = [1, 1]} : vector<8x512xf32> to vector<8x496xf32>
    %647 = tpu.concatenate %645, %646 in 1 : vector<8x16xf32>, vector<8x496xf32> -> vector<8x512xf32>
    %648 = vector.extract_strided_slice %0 {offsets = [1, 0], sizes = [1, 512], strides = [1, 1]} : vector<9x512xf32> to vector<1x512xf32>
    %649 = vector.broadcast %648 : vector<1x512xf32> to vector<8x512xf32>
    %650 = arith.mulf %647, %649 : vector<8x512xf32>
    %651 = vector.extract_strided_slice %634 {offsets = [0, 497], sizes = [8, 15], strides = [1, 1]} : vector<8x512xf32> to vector<8x15xf32>
    %652 = vector.extract_strided_slice %634 {offsets = [0, 0], sizes = [8, 497], strides = [1, 1]} : vector<8x512xf32> to vector<8x497xf32>
    %653 = tpu.concatenate %651, %652 in 1 : vector<8x15xf32>, vector<8x497xf32> -> vector<8x512xf32>
    %654 = vector.extract_strided_slice %0 {offsets = [2, 0], sizes = [1, 512], strides = [1, 1]} : vector<9x512xf32> to vector<1x512xf32>
    %655 = vector.broadcast %654 : vector<1x512xf32> to vector<8x512xf32>
    %656 = arith.mulf %653, %655 : vector<8x512xf32>
    %657 = vector.extract_strided_slice %634 {offsets = [0, 511], sizes = [8, 1], strides = [1, 1]} : vector<8x512xf32> to vector<8x1xf32>
    %658 = vector.extract_strided_slice %634 {offsets = [0, 0], sizes = [8, 511], strides = [1, 1]} : vector<8x512xf32> to vector<8x511xf32>
    %659 = tpu.concatenate %657, %658 in 1 : vector<8x1xf32>, vector<8x511xf32> -> vector<8x512xf32>
    %660 = vector.extract_strided_slice %0 {offsets = [3, 0], sizes = [1, 512], strides = [1, 1]} : vector<9x512xf32> to vector<1x512xf32>
    %661 = vector.broadcast %660 : vector<1x512xf32> to vector<8x512xf32>
    %662 = arith.mulf %659, %661 : vector<8x512xf32>
    %663 = vector.extract_strided_slice %634 {offsets = [0, 1], sizes = [8, 511], strides = [1, 1]} : vector<8x512xf32> to vector<8x511xf32>
    %664 = vector.extract_strided_slice %634 {offsets = [0, 0], sizes = [8, 1], strides = [1, 1]} : vector<8x512xf32> to vector<8x1xf32>
    %665 = tpu.concatenate %663, %664 in 1 : vector<8x511xf32>, vector<8x1xf32> -> vector<8x512xf32>
    %666 = vector.extract_strided_slice %0 {offsets = [5, 0], sizes = [1, 512], strides = [1, 1]} : vector<9x512xf32> to vector<1x512xf32>
    %667 = vector.broadcast %666 : vector<1x512xf32> to vector<8x512xf32>
    %668 = arith.mulf %665, %667 : vector<8x512xf32>
    %669 = vector.extract_strided_slice %634 {offsets = [0, 15], sizes = [8, 497], strides = [1, 1]} : vector<8x512xf32> to vector<8x497xf32>
    %670 = vector.extract_strided_slice %634 {offsets = [0, 0], sizes = [8, 15], strides = [1, 1]} : vector<8x512xf32> to vector<8x15xf32>
    %671 = tpu.concatenate %669, %670 in 1 : vector<8x497xf32>, vector<8x15xf32> -> vector<8x512xf32>
    %672 = vector.extract_strided_slice %0 {offsets = [6, 0], sizes = [1, 512], strides = [1, 1]} : vector<9x512xf32> to vector<1x512xf32>
    %673 = vector.broadcast %672 : vector<1x512xf32> to vector<8x512xf32>
    %674 = arith.mulf %671, %673 : vector<8x512xf32>
    %675 = vector.extract_strided_slice %634 {offsets = [0, 16], sizes = [8, 496], strides = [1, 1]} : vector<8x512xf32> to vector<8x496xf32>
    %676 = vector.extract_strided_slice %634 {offsets = [0, 0], sizes = [8, 16], strides = [1, 1]} : vector<8x512xf32> to vector<8x16xf32>
    %677 = tpu.concatenate %675, %676 in 1 : vector<8x496xf32>, vector<8x16xf32> -> vector<8x512xf32>
    %678 = vector.extract_strided_slice %0 {offsets = [7, 0], sizes = [1, 512], strides = [1, 1]} : vector<9x512xf32> to vector<1x512xf32>
    %679 = vector.broadcast %678 : vector<1x512xf32> to vector<8x512xf32>
    %680 = arith.mulf %677, %679 : vector<8x512xf32>
    %681 = vector.extract_strided_slice %634 {offsets = [0, 17], sizes = [8, 495], strides = [1, 1]} : vector<8x512xf32> to vector<8x495xf32>
    %682 = vector.extract_strided_slice %634 {offsets = [0, 0], sizes = [8, 17], strides = [1, 1]} : vector<8x512xf32> to vector<8x17xf32>
    %683 = tpu.concatenate %681, %682 in 1 : vector<8x495xf32>, vector<8x17xf32> -> vector<8x512xf32>
    %684 = vector.extract_strided_slice %0 {offsets = [8, 0], sizes = [1, 512], strides = [1, 1]} : vector<9x512xf32> to vector<1x512xf32>
    %685 = vector.broadcast %684 : vector<1x512xf32> to vector<8x512xf32>
    %686 = arith.mulf %683, %685 : vector<8x512xf32>
    %687 = tpu.concatenate %644, %650, %656, %662, %634, %668, %674, %680, %686 in 0 : vector<8x512xf32>, vector<8x512xf32>, vector<8x512xf32>, vector<8x512xf32>, vector<8x512xf32>, vector<8x512xf32>, vector<8x512xf32>, vector<8x512xf32>, vector<8x512xf32> -> vector<72x512xf32>
    %cst_86 = arith.constant dense<0.000000e+00> : vector<8x512xf32>
    %688 = tpu.matmul %636, %687, %cst_86 {dimension_numbers = #tpu.dot_dimension_numbers<[1], [0], [0], [1], [0, 0, 1, 1], [], []>} : vector<8x72xf32>, vector<72x512xf32>, vector<8x512xf32> -> vector<8x512xf32>
    %689 = vector.broadcast %638 : vector<8x1xf32> to vector<8x512xf32>
    %690 = arith.addf %688, %689 : vector<8x512xf32>
    %c3_87 = arith.constant 3 : index
    %c0_88 = arith.constant 0 : index
    %c0_89 = arith.constant 0 : index
    %691 = vector.load %arg5[%c3_87, %c0_88, %c0_89] : memref<5x8x72xf32, #tpu.memory_space<vmem>>, vector<1x8x72xf32>
    %692 = vector.shape_cast %691 : vector<1x8x72xf32> to vector<8x72xf32>
    %c5_90 = arith.constant 5 : index
    %c0_91 = arith.constant 0 : index
    %c0_92 = arith.constant 0 : index
    %693 = vector.load %arg6[%c5_90, %c0_91, %c0_92] : memref<7x8x1xf32, #tpu.memory_space<vmem>>, vector<1x8x1xf32>
    %694 = vector.shape_cast %693 : vector<1x8x1xf32> to vector<8x1xf32>
    %695 = vector.extract_strided_slice %690 {offsets = [0, 495], sizes = [8, 17], strides = [1, 1]} : vector<8x512xf32> to vector<8x17xf32>
    %696 = vector.extract_strided_slice %690 {offsets = [0, 0], sizes = [8, 495], strides = [1, 1]} : vector<8x512xf32> to vector<8x495xf32>
    %697 = tpu.concatenate %695, %696 in 1 : vector<8x17xf32>, vector<8x495xf32> -> vector<8x512xf32>
    %698 = vector.extract_strided_slice %0 {offsets = [0, 0], sizes = [1, 512], strides = [1, 1]} : vector<9x512xf32> to vector<1x512xf32>
    %699 = vector.broadcast %698 : vector<1x512xf32> to vector<8x512xf32>
    %700 = arith.mulf %697, %699 : vector<8x512xf32>
    %701 = vector.extract_strided_slice %690 {offsets = [0, 496], sizes = [8, 16], strides = [1, 1]} : vector<8x512xf32> to vector<8x16xf32>
    %702 = vector.extract_strided_slice %690 {offsets = [0, 0], sizes = [8, 496], strides = [1, 1]} : vector<8x512xf32> to vector<8x496xf32>
    %703 = tpu.concatenate %701, %702 in 1 : vector<8x16xf32>, vector<8x496xf32> -> vector<8x512xf32>
    %704 = vector.extract_strided_slice %0 {offsets = [1, 0], sizes = [1, 512], strides = [1, 1]} : vector<9x512xf32> to vector<1x512xf32>
    %705 = vector.broadcast %704 : vector<1x512xf32> to vector<8x512xf32>
    %706 = arith.mulf %703, %705 : vector<8x512xf32>
    %707 = vector.extract_strided_slice %690 {offsets = [0, 497], sizes = [8, 15], strides = [1, 1]} : vector<8x512xf32> to vector<8x15xf32>
    %708 = vector.extract_strided_slice %690 {offsets = [0, 0], sizes = [8, 497], strides = [1, 1]} : vector<8x512xf32> to vector<8x497xf32>
    %709 = tpu.concatenate %707, %708 in 1 : vector<8x15xf32>, vector<8x497xf32> -> vector<8x512xf32>
    %710 = vector.extract_strided_slice %0 {offsets = [2, 0], sizes = [1, 512], strides = [1, 1]} : vector<9x512xf32> to vector<1x512xf32>
    %711 = vector.broadcast %710 : vector<1x512xf32> to vector<8x512xf32>
    %712 = arith.mulf %709, %711 : vector<8x512xf32>
    %713 = vector.extract_strided_slice %690 {offsets = [0, 511], sizes = [8, 1], strides = [1, 1]} : vector<8x512xf32> to vector<8x1xf32>
    %714 = vector.extract_strided_slice %690 {offsets = [0, 0], sizes = [8, 511], strides = [1, 1]} : vector<8x512xf32> to vector<8x511xf32>
    %715 = tpu.concatenate %713, %714 in 1 : vector<8x1xf32>, vector<8x511xf32> -> vector<8x512xf32>
    %716 = vector.extract_strided_slice %0 {offsets = [3, 0], sizes = [1, 512], strides = [1, 1]} : vector<9x512xf32> to vector<1x512xf32>
    %717 = vector.broadcast %716 : vector<1x512xf32> to vector<8x512xf32>
    %718 = arith.mulf %715, %717 : vector<8x512xf32>
    %719 = vector.extract_strided_slice %690 {offsets = [0, 1], sizes = [8, 511], strides = [1, 1]} : vector<8x512xf32> to vector<8x511xf32>
    %720 = vector.extract_strided_slice %690 {offsets = [0, 0], sizes = [8, 1], strides = [1, 1]} : vector<8x512xf32> to vector<8x1xf32>
    %721 = tpu.concatenate %719, %720 in 1 : vector<8x511xf32>, vector<8x1xf32> -> vector<8x512xf32>
    %722 = vector.extract_strided_slice %0 {offsets = [5, 0], sizes = [1, 512], strides = [1, 1]} : vector<9x512xf32> to vector<1x512xf32>
    %723 = vector.broadcast %722 : vector<1x512xf32> to vector<8x512xf32>
    %724 = arith.mulf %721, %723 : vector<8x512xf32>
    %725 = vector.extract_strided_slice %690 {offsets = [0, 15], sizes = [8, 497], strides = [1, 1]} : vector<8x512xf32> to vector<8x497xf32>
    %726 = vector.extract_strided_slice %690 {offsets = [0, 0], sizes = [8, 15], strides = [1, 1]} : vector<8x512xf32> to vector<8x15xf32>
    %727 = tpu.concatenate %725, %726 in 1 : vector<8x497xf32>, vector<8x15xf32> -> vector<8x512xf32>
    %728 = vector.extract_strided_slice %0 {offsets = [6, 0], sizes = [1, 512], strides = [1, 1]} : vector<9x512xf32> to vector<1x512xf32>
    %729 = vector.broadcast %728 : vector<1x512xf32> to vector<8x512xf32>
    %730 = arith.mulf %727, %729 : vector<8x512xf32>
    %731 = vector.extract_strided_slice %690 {offsets = [0, 16], sizes = [8, 496], strides = [1, 1]} : vector<8x512xf32> to vector<8x496xf32>
    %732 = vector.extract_strided_slice %690 {offsets = [0, 0], sizes = [8, 16], strides = [1, 1]} : vector<8x512xf32> to vector<8x16xf32>
    %733 = tpu.concatenate %731, %732 in 1 : vector<8x496xf32>, vector<8x16xf32> -> vector<8x512xf32>
    %734 = vector.extract_strided_slice %0 {offsets = [7, 0], sizes = [1, 512], strides = [1, 1]} : vector<9x512xf32> to vector<1x512xf32>
    %735 = vector.broadcast %734 : vector<1x512xf32> to vector<8x512xf32>
    %736 = arith.mulf %733, %735 : vector<8x512xf32>
    %737 = vector.extract_strided_slice %690 {offsets = [0, 17], sizes = [8, 495], strides = [1, 1]} : vector<8x512xf32> to vector<8x495xf32>
    %738 = vector.extract_strided_slice %690 {offsets = [0, 0], sizes = [8, 17], strides = [1, 1]} : vector<8x512xf32> to vector<8x17xf32>
    %739 = tpu.concatenate %737, %738 in 1 : vector<8x495xf32>, vector<8x17xf32> -> vector<8x512xf32>
    %740 = vector.extract_strided_slice %0 {offsets = [8, 0], sizes = [1, 512], strides = [1, 1]} : vector<9x512xf32> to vector<1x512xf32>
    %741 = vector.broadcast %740 : vector<1x512xf32> to vector<8x512xf32>
    %742 = arith.mulf %739, %741 : vector<8x512xf32>
    %743 = tpu.concatenate %700, %706, %712, %718, %690, %724, %730, %736, %742 in 0 : vector<8x512xf32>, vector<8x512xf32>, vector<8x512xf32>, vector<8x512xf32>, vector<8x512xf32>, vector<8x512xf32>, vector<8x512xf32>, vector<8x512xf32>, vector<8x512xf32> -> vector<72x512xf32>
    %cst_93 = arith.constant dense<0.000000e+00> : vector<8x512xf32>
    %744 = tpu.matmul %692, %743, %cst_93 {dimension_numbers = #tpu.dot_dimension_numbers<[1], [0], [0], [1], [0, 0, 1, 1], [], []>} : vector<8x72xf32>, vector<72x512xf32>, vector<8x512xf32> -> vector<8x512xf32>
    %745 = vector.broadcast %694 : vector<8x1xf32> to vector<8x512xf32>
    %746 = arith.addf %744, %745 : vector<8x512xf32>
    %c4_94 = arith.constant 4 : index
    %c0_95 = arith.constant 0 : index
    %c0_96 = arith.constant 0 : index
    %747 = vector.load %arg5[%c4_94, %c0_95, %c0_96] : memref<5x8x72xf32, #tpu.memory_space<vmem>>, vector<1x8x72xf32>
    %748 = vector.shape_cast %747 : vector<1x8x72xf32> to vector<8x72xf32>
    %c6_97 = arith.constant 6 : index
    %c0_98 = arith.constant 0 : index
    %c0_99 = arith.constant 0 : index
    %749 = vector.load %arg6[%c6_97, %c0_98, %c0_99] : memref<7x8x1xf32, #tpu.memory_space<vmem>>, vector<1x8x1xf32>
    %750 = vector.shape_cast %749 : vector<1x8x1xf32> to vector<8x1xf32>
    %751 = vector.extract_strided_slice %746 {offsets = [0, 495], sizes = [8, 17], strides = [1, 1]} : vector<8x512xf32> to vector<8x17xf32>
    %752 = vector.extract_strided_slice %746 {offsets = [0, 0], sizes = [8, 495], strides = [1, 1]} : vector<8x512xf32> to vector<8x495xf32>
    %753 = tpu.concatenate %751, %752 in 1 : vector<8x17xf32>, vector<8x495xf32> -> vector<8x512xf32>
    %754 = vector.extract_strided_slice %0 {offsets = [0, 0], sizes = [1, 512], strides = [1, 1]} : vector<9x512xf32> to vector<1x512xf32>
    %755 = vector.broadcast %754 : vector<1x512xf32> to vector<8x512xf32>
    %756 = arith.mulf %753, %755 : vector<8x512xf32>
    %757 = vector.extract_strided_slice %746 {offsets = [0, 496], sizes = [8, 16], strides = [1, 1]} : vector<8x512xf32> to vector<8x16xf32>
    %758 = vector.extract_strided_slice %746 {offsets = [0, 0], sizes = [8, 496], strides = [1, 1]} : vector<8x512xf32> to vector<8x496xf32>
    %759 = tpu.concatenate %757, %758 in 1 : vector<8x16xf32>, vector<8x496xf32> -> vector<8x512xf32>
    %760 = vector.extract_strided_slice %0 {offsets = [1, 0], sizes = [1, 512], strides = [1, 1]} : vector<9x512xf32> to vector<1x512xf32>
    %761 = vector.broadcast %760 : vector<1x512xf32> to vector<8x512xf32>
    %762 = arith.mulf %759, %761 : vector<8x512xf32>
    %763 = vector.extract_strided_slice %746 {offsets = [0, 497], sizes = [8, 15], strides = [1, 1]} : vector<8x512xf32> to vector<8x15xf32>
    %764 = vector.extract_strided_slice %746 {offsets = [0, 0], sizes = [8, 497], strides = [1, 1]} : vector<8x512xf32> to vector<8x497xf32>
    %765 = tpu.concatenate %763, %764 in 1 : vector<8x15xf32>, vector<8x497xf32> -> vector<8x512xf32>
    %766 = vector.extract_strided_slice %0 {offsets = [2, 0], sizes = [1, 512], strides = [1, 1]} : vector<9x512xf32> to vector<1x512xf32>
    %767 = vector.broadcast %766 : vector<1x512xf32> to vector<8x512xf32>
    %768 = arith.mulf %765, %767 : vector<8x512xf32>
    %769 = vector.extract_strided_slice %746 {offsets = [0, 511], sizes = [8, 1], strides = [1, 1]} : vector<8x512xf32> to vector<8x1xf32>
    %770 = vector.extract_strided_slice %746 {offsets = [0, 0], sizes = [8, 511], strides = [1, 1]} : vector<8x512xf32> to vector<8x511xf32>
    %771 = tpu.concatenate %769, %770 in 1 : vector<8x1xf32>, vector<8x511xf32> -> vector<8x512xf32>
    %772 = vector.extract_strided_slice %0 {offsets = [3, 0], sizes = [1, 512], strides = [1, 1]} : vector<9x512xf32> to vector<1x512xf32>
    %773 = vector.broadcast %772 : vector<1x512xf32> to vector<8x512xf32>
    %774 = arith.mulf %771, %773 : vector<8x512xf32>
    %775 = vector.extract_strided_slice %746 {offsets = [0, 1], sizes = [8, 511], strides = [1, 1]} : vector<8x512xf32> to vector<8x511xf32>
    %776 = vector.extract_strided_slice %746 {offsets = [0, 0], sizes = [8, 1], strides = [1, 1]} : vector<8x512xf32> to vector<8x1xf32>
    %777 = tpu.concatenate %775, %776 in 1 : vector<8x511xf32>, vector<8x1xf32> -> vector<8x512xf32>
    %778 = vector.extract_strided_slice %0 {offsets = [5, 0], sizes = [1, 512], strides = [1, 1]} : vector<9x512xf32> to vector<1x512xf32>
    %779 = vector.broadcast %778 : vector<1x512xf32> to vector<8x512xf32>
    %780 = arith.mulf %777, %779 : vector<8x512xf32>
    %781 = vector.extract_strided_slice %746 {offsets = [0, 15], sizes = [8, 497], strides = [1, 1]} : vector<8x512xf32> to vector<8x497xf32>
    %782 = vector.extract_strided_slice %746 {offsets = [0, 0], sizes = [8, 15], strides = [1, 1]} : vector<8x512xf32> to vector<8x15xf32>
    %783 = tpu.concatenate %781, %782 in 1 : vector<8x497xf32>, vector<8x15xf32> -> vector<8x512xf32>
    %784 = vector.extract_strided_slice %0 {offsets = [6, 0], sizes = [1, 512], strides = [1, 1]} : vector<9x512xf32> to vector<1x512xf32>
    %785 = vector.broadcast %784 : vector<1x512xf32> to vector<8x512xf32>
    %786 = arith.mulf %783, %785 : vector<8x512xf32>
    %787 = vector.extract_strided_slice %746 {offsets = [0, 16], sizes = [8, 496], strides = [1, 1]} : vector<8x512xf32> to vector<8x496xf32>
    %788 = vector.extract_strided_slice %746 {offsets = [0, 0], sizes = [8, 16], strides = [1, 1]} : vector<8x512xf32> to vector<8x16xf32>
    %789 = tpu.concatenate %787, %788 in 1 : vector<8x496xf32>, vector<8x16xf32> -> vector<8x512xf32>
    %790 = vector.extract_strided_slice %0 {offsets = [7, 0], sizes = [1, 512], strides = [1, 1]} : vector<9x512xf32> to vector<1x512xf32>
    %791 = vector.broadcast %790 : vector<1x512xf32> to vector<8x512xf32>
    %792 = arith.mulf %789, %791 : vector<8x512xf32>
    %793 = vector.extract_strided_slice %746 {offsets = [0, 17], sizes = [8, 495], strides = [1, 1]} : vector<8x512xf32> to vector<8x495xf32>
    %794 = vector.extract_strided_slice %746 {offsets = [0, 0], sizes = [8, 17], strides = [1, 1]} : vector<8x512xf32> to vector<8x17xf32>
    %795 = tpu.concatenate %793, %794 in 1 : vector<8x495xf32>, vector<8x17xf32> -> vector<8x512xf32>
    %796 = vector.extract_strided_slice %0 {offsets = [8, 0], sizes = [1, 512], strides = [1, 1]} : vector<9x512xf32> to vector<1x512xf32>
    %797 = vector.broadcast %796 : vector<1x512xf32> to vector<8x512xf32>
    %798 = arith.mulf %795, %797 : vector<8x512xf32>
    %799 = tpu.concatenate %756, %762, %768, %774, %746, %780, %786, %792, %798 in 0 : vector<8x512xf32>, vector<8x512xf32>, vector<8x512xf32>, vector<8x512xf32>, vector<8x512xf32>, vector<8x512xf32>, vector<8x512xf32>, vector<8x512xf32>, vector<8x512xf32> -> vector<72x512xf32>
    %cst_100 = arith.constant dense<0.000000e+00> : vector<8x512xf32>
    %800 = tpu.matmul %748, %799, %cst_100 {dimension_numbers = #tpu.dot_dimension_numbers<[1], [0], [0], [1], [0, 0, 1, 1], [], []>} : vector<8x72xf32>, vector<72x512xf32>, vector<8x512xf32> -> vector<8x512xf32>
    %801 = vector.broadcast %750 : vector<8x1xf32> to vector<8x512xf32>
    %802 = arith.addf %800, %801 : vector<8x512xf32>
    %c0_101 = arith.constant 0 : index
    %c0_102 = arith.constant 0 : index
    %803 = vector.load %arg7[%c0_101, %c0_102] : memref<2x8xf32, #tpu.memory_space<vmem>>, vector<2x8xf32>
    %cst_103 = arith.constant dense<0.000000e+00> : vector<2x512xf32>
    %804 = tpu.matmul %803, %802, %cst_103 {dimension_numbers = #tpu.dot_dimension_numbers<[1], [0], [0], [1], [0, 0, 1, 1], [], []>} : vector<2x8xf32>, vector<8x512xf32>, vector<2x512xf32> -> vector<2x512xf32>
    %c0_104 = arith.constant 0 : index
    %c0_105 = arith.constant 0 : index
    %805 = vector.load %arg8[%c0_104, %c0_105] : memref<2x1xf32, #tpu.memory_space<vmem>>, vector<2x1xf32>
    %806 = vector.broadcast %805 : vector<2x1xf32> to vector<2x512xf32>
    %807 = arith.addf %804, %806 : vector<2x512xf32>
    %808 = vector.extract_strided_slice %807 {offsets = [1, 0], sizes = [1, 512], strides = [1, 1]} : vector<2x512xf32> to vector<1x512xf32>
    %809 = vector.extract_strided_slice %807 {offsets = [0, 0], sizes = [1, 512], strides = [1, 1]} : vector<2x512xf32> to vector<1x512xf32>
    %810 = arith.subf %808, %809 : vector<1x512xf32>
    %811 = math.exp %810 : vector<1x512xf32>
    %cst_106 = arith.constant 1.000000e+00 : f32
    %812 = vector.broadcast %cst_106 : f32 to vector<1x512xf32>
    %813 = arith.addf %812, %811 : vector<1x512xf32>
    %cst_107 = arith.constant 1.000000e+00 : f32
    %814 = vector.broadcast %cst_107 : f32 to vector<1x512xf32>
    %815 = arith.divf %814, %813 : vector<1x512xf32>
    %816 = tpu.concatenate %117, %690 in 0 : vector<8x512xf32>, vector<8x512xf32> -> vector<16x512xf32>
    %c0_108 = arith.constant 0 : index
    %c0_109 = arith.constant 0 : index
    %817 = vector.load %arg4[%c0_108, %c0_109] : memref<8x144xf32, #tpu.memory_space<vmem>>, vector<8x144xf32>
    %c2_110 = arith.constant 2 : index
    %c0_111 = arith.constant 0 : index
    %c0_112 = arith.constant 0 : index
    %818 = vector.load %arg6[%c2_110, %c0_111, %c0_112] : memref<7x8x1xf32, #tpu.memory_space<vmem>>, vector<1x8x1xf32>
    %819 = vector.shape_cast %818 : vector<1x8x1xf32> to vector<8x1xf32>
    %820 = vector.extract_strided_slice %816 {offsets = [0, 495], sizes = [16, 17], strides = [1, 1]} : vector<16x512xf32> to vector<16x17xf32>
    %821 = vector.extract_strided_slice %816 {offsets = [0, 0], sizes = [16, 495], strides = [1, 1]} : vector<16x512xf32> to vector<16x495xf32>
    %822 = tpu.concatenate %820, %821 in 1 : vector<16x17xf32>, vector<16x495xf32> -> vector<16x512xf32>
    %823 = vector.extract_strided_slice %0 {offsets = [0, 0], sizes = [1, 512], strides = [1, 1]} : vector<9x512xf32> to vector<1x512xf32>
    %824 = vector.broadcast %823 : vector<1x512xf32> to vector<16x512xf32>
    %825 = arith.mulf %822, %824 : vector<16x512xf32>
    %826 = vector.extract_strided_slice %816 {offsets = [0, 496], sizes = [16, 16], strides = [1, 1]} : vector<16x512xf32> to vector<16x16xf32>
    %827 = vector.extract_strided_slice %816 {offsets = [0, 0], sizes = [16, 496], strides = [1, 1]} : vector<16x512xf32> to vector<16x496xf32>
    %828 = tpu.concatenate %826, %827 in 1 : vector<16x16xf32>, vector<16x496xf32> -> vector<16x512xf32>
    %829 = vector.extract_strided_slice %0 {offsets = [1, 0], sizes = [1, 512], strides = [1, 1]} : vector<9x512xf32> to vector<1x512xf32>
    %830 = vector.broadcast %829 : vector<1x512xf32> to vector<16x512xf32>
    %831 = arith.mulf %828, %830 : vector<16x512xf32>
    %832 = vector.extract_strided_slice %816 {offsets = [0, 497], sizes = [16, 15], strides = [1, 1]} : vector<16x512xf32> to vector<16x15xf32>
    %833 = vector.extract_strided_slice %816 {offsets = [0, 0], sizes = [16, 497], strides = [1, 1]} : vector<16x512xf32> to vector<16x497xf32>
    %834 = tpu.concatenate %832, %833 in 1 : vector<16x15xf32>, vector<16x497xf32> -> vector<16x512xf32>
    %835 = vector.extract_strided_slice %0 {offsets = [2, 0], sizes = [1, 512], strides = [1, 1]} : vector<9x512xf32> to vector<1x512xf32>
    %836 = vector.broadcast %835 : vector<1x512xf32> to vector<16x512xf32>
    %837 = arith.mulf %834, %836 : vector<16x512xf32>
    %838 = vector.extract_strided_slice %816 {offsets = [0, 511], sizes = [16, 1], strides = [1, 1]} : vector<16x512xf32> to vector<16x1xf32>
    %839 = vector.extract_strided_slice %816 {offsets = [0, 0], sizes = [16, 511], strides = [1, 1]} : vector<16x512xf32> to vector<16x511xf32>
    %840 = tpu.concatenate %838, %839 in 1 : vector<16x1xf32>, vector<16x511xf32> -> vector<16x512xf32>
    %841 = vector.extract_strided_slice %0 {offsets = [3, 0], sizes = [1, 512], strides = [1, 1]} : vector<9x512xf32> to vector<1x512xf32>
    %842 = vector.broadcast %841 : vector<1x512xf32> to vector<16x512xf32>
    %843 = arith.mulf %840, %842 : vector<16x512xf32>
    %844 = vector.extract_strided_slice %816 {offsets = [0, 1], sizes = [16, 511], strides = [1, 1]} : vector<16x512xf32> to vector<16x511xf32>
    %845 = vector.extract_strided_slice %816 {offsets = [0, 0], sizes = [16, 1], strides = [1, 1]} : vector<16x512xf32> to vector<16x1xf32>
    %846 = tpu.concatenate %844, %845 in 1 : vector<16x511xf32>, vector<16x1xf32> -> vector<16x512xf32>
    %847 = vector.extract_strided_slice %0 {offsets = [5, 0], sizes = [1, 512], strides = [1, 1]} : vector<9x512xf32> to vector<1x512xf32>
    %848 = vector.broadcast %847 : vector<1x512xf32> to vector<16x512xf32>
    %849 = arith.mulf %846, %848 : vector<16x512xf32>
    %850 = vector.extract_strided_slice %816 {offsets = [0, 15], sizes = [16, 497], strides = [1, 1]} : vector<16x512xf32> to vector<16x497xf32>
    %851 = vector.extract_strided_slice %816 {offsets = [0, 0], sizes = [16, 15], strides = [1, 1]} : vector<16x512xf32> to vector<16x15xf32>
    %852 = tpu.concatenate %850, %851 in 1 : vector<16x497xf32>, vector<16x15xf32> -> vector<16x512xf32>
    %853 = vector.extract_strided_slice %0 {offsets = [6, 0], sizes = [1, 512], strides = [1, 1]} : vector<9x512xf32> to vector<1x512xf32>
    %854 = vector.broadcast %853 : vector<1x512xf32> to vector<16x512xf32>
    %855 = arith.mulf %852, %854 : vector<16x512xf32>
    %856 = vector.extract_strided_slice %816 {offsets = [0, 16], sizes = [16, 496], strides = [1, 1]} : vector<16x512xf32> to vector<16x496xf32>
    %857 = vector.extract_strided_slice %816 {offsets = [0, 0], sizes = [16, 16], strides = [1, 1]} : vector<16x512xf32> to vector<16x16xf32>
    %858 = tpu.concatenate %856, %857 in 1 : vector<16x496xf32>, vector<16x16xf32> -> vector<16x512xf32>
    %859 = vector.extract_strided_slice %0 {offsets = [7, 0], sizes = [1, 512], strides = [1, 1]} : vector<9x512xf32> to vector<1x512xf32>
    %860 = vector.broadcast %859 : vector<1x512xf32> to vector<16x512xf32>
    %861 = arith.mulf %858, %860 : vector<16x512xf32>
    %862 = vector.extract_strided_slice %816 {offsets = [0, 17], sizes = [16, 495], strides = [1, 1]} : vector<16x512xf32> to vector<16x495xf32>
    %863 = vector.extract_strided_slice %816 {offsets = [0, 0], sizes = [16, 17], strides = [1, 1]} : vector<16x512xf32> to vector<16x17xf32>
    %864 = tpu.concatenate %862, %863 in 1 : vector<16x495xf32>, vector<16x17xf32> -> vector<16x512xf32>
    %865 = vector.extract_strided_slice %0 {offsets = [8, 0], sizes = [1, 512], strides = [1, 1]} : vector<9x512xf32> to vector<1x512xf32>
    %866 = vector.broadcast %865 : vector<1x512xf32> to vector<16x512xf32>
    %867 = arith.mulf %864, %866 : vector<16x512xf32>
    %868 = tpu.concatenate %825, %831, %837, %843, %816, %849, %855, %861, %867 in 0 : vector<16x512xf32>, vector<16x512xf32>, vector<16x512xf32>, vector<16x512xf32>, vector<16x512xf32>, vector<16x512xf32>, vector<16x512xf32>, vector<16x512xf32>, vector<16x512xf32> -> vector<144x512xf32>
    %cst_113 = arith.constant dense<0.000000e+00> : vector<8x512xf32>
    %869 = tpu.matmul %817, %868, %cst_113 {dimension_numbers = #tpu.dot_dimension_numbers<[1], [0], [0], [1], [0, 0, 1, 1], [], []>} : vector<8x144xf32>, vector<144x512xf32>, vector<8x512xf32> -> vector<8x512xf32>
    %870 = vector.broadcast %819 : vector<8x1xf32> to vector<8x512xf32>
    %871 = arith.addf %869, %870 : vector<8x512xf32>
    %c1_114 = arith.constant 1 : index
    %c0_115 = arith.constant 0 : index
    %c0_116 = arith.constant 0 : index
    %872 = vector.load %arg5[%c1_114, %c0_115, %c0_116] : memref<5x8x72xf32, #tpu.memory_space<vmem>>, vector<1x8x72xf32>
    %873 = vector.shape_cast %872 : vector<1x8x72xf32> to vector<8x72xf32>
    %c3_117 = arith.constant 3 : index
    %c0_118 = arith.constant 0 : index
    %c0_119 = arith.constant 0 : index
    %874 = vector.load %arg6[%c3_117, %c0_118, %c0_119] : memref<7x8x1xf32, #tpu.memory_space<vmem>>, vector<1x8x1xf32>
    %875 = vector.shape_cast %874 : vector<1x8x1xf32> to vector<8x1xf32>
    %876 = vector.extract_strided_slice %871 {offsets = [0, 495], sizes = [8, 17], strides = [1, 1]} : vector<8x512xf32> to vector<8x17xf32>
    %877 = vector.extract_strided_slice %871 {offsets = [0, 0], sizes = [8, 495], strides = [1, 1]} : vector<8x512xf32> to vector<8x495xf32>
    %878 = tpu.concatenate %876, %877 in 1 : vector<8x17xf32>, vector<8x495xf32> -> vector<8x512xf32>
    %879 = vector.extract_strided_slice %0 {offsets = [0, 0], sizes = [1, 512], strides = [1, 1]} : vector<9x512xf32> to vector<1x512xf32>
    %880 = vector.broadcast %879 : vector<1x512xf32> to vector<8x512xf32>
    %881 = arith.mulf %878, %880 : vector<8x512xf32>
    %882 = vector.extract_strided_slice %871 {offsets = [0, 496], sizes = [8, 16], strides = [1, 1]} : vector<8x512xf32> to vector<8x16xf32>
    %883 = vector.extract_strided_slice %871 {offsets = [0, 0], sizes = [8, 496], strides = [1, 1]} : vector<8x512xf32> to vector<8x496xf32>
    %884 = tpu.concatenate %882, %883 in 1 : vector<8x16xf32>, vector<8x496xf32> -> vector<8x512xf32>
    %885 = vector.extract_strided_slice %0 {offsets = [1, 0], sizes = [1, 512], strides = [1, 1]} : vector<9x512xf32> to vector<1x512xf32>
    %886 = vector.broadcast %885 : vector<1x512xf32> to vector<8x512xf32>
    %887 = arith.mulf %884, %886 : vector<8x512xf32>
    %888 = vector.extract_strided_slice %871 {offsets = [0, 497], sizes = [8, 15], strides = [1, 1]} : vector<8x512xf32> to vector<8x15xf32>
    %889 = vector.extract_strided_slice %871 {offsets = [0, 0], sizes = [8, 497], strides = [1, 1]} : vector<8x512xf32> to vector<8x497xf32>
    %890 = tpu.concatenate %888, %889 in 1 : vector<8x15xf32>, vector<8x497xf32> -> vector<8x512xf32>
    %891 = vector.extract_strided_slice %0 {offsets = [2, 0], sizes = [1, 512], strides = [1, 1]} : vector<9x512xf32> to vector<1x512xf32>
    %892 = vector.broadcast %891 : vector<1x512xf32> to vector<8x512xf32>
    %893 = arith.mulf %890, %892 : vector<8x512xf32>
    %894 = vector.extract_strided_slice %871 {offsets = [0, 511], sizes = [8, 1], strides = [1, 1]} : vector<8x512xf32> to vector<8x1xf32>
    %895 = vector.extract_strided_slice %871 {offsets = [0, 0], sizes = [8, 511], strides = [1, 1]} : vector<8x512xf32> to vector<8x511xf32>
    %896 = tpu.concatenate %894, %895 in 1 : vector<8x1xf32>, vector<8x511xf32> -> vector<8x512xf32>
    %897 = vector.extract_strided_slice %0 {offsets = [3, 0], sizes = [1, 512], strides = [1, 1]} : vector<9x512xf32> to vector<1x512xf32>
    %898 = vector.broadcast %897 : vector<1x512xf32> to vector<8x512xf32>
    %899 = arith.mulf %896, %898 : vector<8x512xf32>
    %900 = vector.extract_strided_slice %871 {offsets = [0, 1], sizes = [8, 511], strides = [1, 1]} : vector<8x512xf32> to vector<8x511xf32>
    %901 = vector.extract_strided_slice %871 {offsets = [0, 0], sizes = [8, 1], strides = [1, 1]} : vector<8x512xf32> to vector<8x1xf32>
    %902 = tpu.concatenate %900, %901 in 1 : vector<8x511xf32>, vector<8x1xf32> -> vector<8x512xf32>
    %903 = vector.extract_strided_slice %0 {offsets = [5, 0], sizes = [1, 512], strides = [1, 1]} : vector<9x512xf32> to vector<1x512xf32>
    %904 = vector.broadcast %903 : vector<1x512xf32> to vector<8x512xf32>
    %905 = arith.mulf %902, %904 : vector<8x512xf32>
    %906 = vector.extract_strided_slice %871 {offsets = [0, 15], sizes = [8, 497], strides = [1, 1]} : vector<8x512xf32> to vector<8x497xf32>
    %907 = vector.extract_strided_slice %871 {offsets = [0, 0], sizes = [8, 15], strides = [1, 1]} : vector<8x512xf32> to vector<8x15xf32>
    %908 = tpu.concatenate %906, %907 in 1 : vector<8x497xf32>, vector<8x15xf32> -> vector<8x512xf32>
    %909 = vector.extract_strided_slice %0 {offsets = [6, 0], sizes = [1, 512], strides = [1, 1]} : vector<9x512xf32> to vector<1x512xf32>
    %910 = vector.broadcast %909 : vector<1x512xf32> to vector<8x512xf32>
    %911 = arith.mulf %908, %910 : vector<8x512xf32>
    %912 = vector.extract_strided_slice %871 {offsets = [0, 16], sizes = [8, 496], strides = [1, 1]} : vector<8x512xf32> to vector<8x496xf32>
    %913 = vector.extract_strided_slice %871 {offsets = [0, 0], sizes = [8, 16], strides = [1, 1]} : vector<8x512xf32> to vector<8x16xf32>
    %914 = tpu.concatenate %912, %913 in 1 : vector<8x496xf32>, vector<8x16xf32> -> vector<8x512xf32>
    %915 = vector.extract_strided_slice %0 {offsets = [7, 0], sizes = [1, 512], strides = [1, 1]} : vector<9x512xf32> to vector<1x512xf32>
    %916 = vector.broadcast %915 : vector<1x512xf32> to vector<8x512xf32>
    %917 = arith.mulf %914, %916 : vector<8x512xf32>
    %918 = vector.extract_strided_slice %871 {offsets = [0, 17], sizes = [8, 495], strides = [1, 1]} : vector<8x512xf32> to vector<8x495xf32>
    %919 = vector.extract_strided_slice %871 {offsets = [0, 0], sizes = [8, 17], strides = [1, 1]} : vector<8x512xf32> to vector<8x17xf32>
    %920 = tpu.concatenate %918, %919 in 1 : vector<8x495xf32>, vector<8x17xf32> -> vector<8x512xf32>
    %921 = vector.extract_strided_slice %0 {offsets = [8, 0], sizes = [1, 512], strides = [1, 1]} : vector<9x512xf32> to vector<1x512xf32>
    %922 = vector.broadcast %921 : vector<1x512xf32> to vector<8x512xf32>
    %923 = arith.mulf %920, %922 : vector<8x512xf32>
    %924 = tpu.concatenate %881, %887, %893, %899, %871, %905, %911, %917, %923 in 0 : vector<8x512xf32>, vector<8x512xf32>, vector<8x512xf32>, vector<8x512xf32>, vector<8x512xf32>, vector<8x512xf32>, vector<8x512xf32>, vector<8x512xf32>, vector<8x512xf32> -> vector<72x512xf32>
    %cst_120 = arith.constant dense<0.000000e+00> : vector<8x512xf32>
    %925 = tpu.matmul %873, %924, %cst_120 {dimension_numbers = #tpu.dot_dimension_numbers<[1], [0], [0], [1], [0, 0, 1, 1], [], []>} : vector<8x72xf32>, vector<72x512xf32>, vector<8x512xf32> -> vector<8x512xf32>
    %926 = vector.broadcast %875 : vector<8x1xf32> to vector<8x512xf32>
    %927 = arith.addf %925, %926 : vector<8x512xf32>
    %c1_121 = arith.constant 1 : index
    %c0_122 = arith.constant 0 : index
    %c0_123 = arith.constant 0 : index
    %928 = vector.load %arg5[%c1_121, %c0_122, %c0_123] : memref<5x8x72xf32, #tpu.memory_space<vmem>>, vector<1x8x72xf32>
    %929 = vector.shape_cast %928 : vector<1x8x72xf32> to vector<8x72xf32>
    %c3_124 = arith.constant 3 : index
    %c0_125 = arith.constant 0 : index
    %c0_126 = arith.constant 0 : index
    %930 = vector.load %arg6[%c3_124, %c0_125, %c0_126] : memref<7x8x1xf32, #tpu.memory_space<vmem>>, vector<1x8x1xf32>
    %931 = vector.shape_cast %930 : vector<1x8x1xf32> to vector<8x1xf32>
    %932 = vector.extract_strided_slice %927 {offsets = [0, 495], sizes = [8, 17], strides = [1, 1]} : vector<8x512xf32> to vector<8x17xf32>
    %933 = vector.extract_strided_slice %927 {offsets = [0, 0], sizes = [8, 495], strides = [1, 1]} : vector<8x512xf32> to vector<8x495xf32>
    %934 = tpu.concatenate %932, %933 in 1 : vector<8x17xf32>, vector<8x495xf32> -> vector<8x512xf32>
    %935 = vector.extract_strided_slice %0 {offsets = [0, 0], sizes = [1, 512], strides = [1, 1]} : vector<9x512xf32> to vector<1x512xf32>
    %936 = vector.broadcast %935 : vector<1x512xf32> to vector<8x512xf32>
    %937 = arith.mulf %934, %936 : vector<8x512xf32>
    %938 = vector.extract_strided_slice %927 {offsets = [0, 496], sizes = [8, 16], strides = [1, 1]} : vector<8x512xf32> to vector<8x16xf32>
    %939 = vector.extract_strided_slice %927 {offsets = [0, 0], sizes = [8, 496], strides = [1, 1]} : vector<8x512xf32> to vector<8x496xf32>
    %940 = tpu.concatenate %938, %939 in 1 : vector<8x16xf32>, vector<8x496xf32> -> vector<8x512xf32>
    %941 = vector.extract_strided_slice %0 {offsets = [1, 0], sizes = [1, 512], strides = [1, 1]} : vector<9x512xf32> to vector<1x512xf32>
    %942 = vector.broadcast %941 : vector<1x512xf32> to vector<8x512xf32>
    %943 = arith.mulf %940, %942 : vector<8x512xf32>
    %944 = vector.extract_strided_slice %927 {offsets = [0, 497], sizes = [8, 15], strides = [1, 1]} : vector<8x512xf32> to vector<8x15xf32>
    %945 = vector.extract_strided_slice %927 {offsets = [0, 0], sizes = [8, 497], strides = [1, 1]} : vector<8x512xf32> to vector<8x497xf32>
    %946 = tpu.concatenate %944, %945 in 1 : vector<8x15xf32>, vector<8x497xf32> -> vector<8x512xf32>
    %947 = vector.extract_strided_slice %0 {offsets = [2, 0], sizes = [1, 512], strides = [1, 1]} : vector<9x512xf32> to vector<1x512xf32>
    %948 = vector.broadcast %947 : vector<1x512xf32> to vector<8x512xf32>
    %949 = arith.mulf %946, %948 : vector<8x512xf32>
    %950 = vector.extract_strided_slice %927 {offsets = [0, 511], sizes = [8, 1], strides = [1, 1]} : vector<8x512xf32> to vector<8x1xf32>
    %951 = vector.extract_strided_slice %927 {offsets = [0, 0], sizes = [8, 511], strides = [1, 1]} : vector<8x512xf32> to vector<8x511xf32>
    %952 = tpu.concatenate %950, %951 in 1 : vector<8x1xf32>, vector<8x511xf32> -> vector<8x512xf32>
    %953 = vector.extract_strided_slice %0 {offsets = [3, 0], sizes = [1, 512], strides = [1, 1]} : vector<9x512xf32> to vector<1x512xf32>
    %954 = vector.broadcast %953 : vector<1x512xf32> to vector<8x512xf32>
    %955 = arith.mulf %952, %954 : vector<8x512xf32>
    %956 = vector.extract_strided_slice %927 {offsets = [0, 1], sizes = [8, 511], strides = [1, 1]} : vector<8x512xf32> to vector<8x511xf32>
    %957 = vector.extract_strided_slice %927 {offsets = [0, 0], sizes = [8, 1], strides = [1, 1]} : vector<8x512xf32> to vector<8x1xf32>
    %958 = tpu.concatenate %956, %957 in 1 : vector<8x511xf32>, vector<8x1xf32> -> vector<8x512xf32>
    %959 = vector.extract_strided_slice %0 {offsets = [5, 0], sizes = [1, 512], strides = [1, 1]} : vector<9x512xf32> to vector<1x512xf32>
    %960 = vector.broadcast %959 : vector<1x512xf32> to vector<8x512xf32>
    %961 = arith.mulf %958, %960 : vector<8x512xf32>
    %962 = vector.extract_strided_slice %927 {offsets = [0, 15], sizes = [8, 497], strides = [1, 1]} : vector<8x512xf32> to vector<8x497xf32>
    %963 = vector.extract_strided_slice %927 {offsets = [0, 0], sizes = [8, 15], strides = [1, 1]} : vector<8x512xf32> to vector<8x15xf32>
    %964 = tpu.concatenate %962, %963 in 1 : vector<8x497xf32>, vector<8x15xf32> -> vector<8x512xf32>
    %965 = vector.extract_strided_slice %0 {offsets = [6, 0], sizes = [1, 512], strides = [1, 1]} : vector<9x512xf32> to vector<1x512xf32>
    %966 = vector.broadcast %965 : vector<1x512xf32> to vector<8x512xf32>
    %967 = arith.mulf %964, %966 : vector<8x512xf32>
    %968 = vector.extract_strided_slice %927 {offsets = [0, 16], sizes = [8, 496], strides = [1, 1]} : vector<8x512xf32> to vector<8x496xf32>
    %969 = vector.extract_strided_slice %927 {offsets = [0, 0], sizes = [8, 16], strides = [1, 1]} : vector<8x512xf32> to vector<8x16xf32>
    %970 = tpu.concatenate %968, %969 in 1 : vector<8x496xf32>, vector<8x16xf32> -> vector<8x512xf32>
    %971 = vector.extract_strided_slice %0 {offsets = [7, 0], sizes = [1, 512], strides = [1, 1]} : vector<9x512xf32> to vector<1x512xf32>
    %972 = vector.broadcast %971 : vector<1x512xf32> to vector<8x512xf32>
    %973 = arith.mulf %970, %972 : vector<8x512xf32>
    %974 = vector.extract_strided_slice %927 {offsets = [0, 17], sizes = [8, 495], strides = [1, 1]} : vector<8x512xf32> to vector<8x495xf32>
    %975 = vector.extract_strided_slice %927 {offsets = [0, 0], sizes = [8, 17], strides = [1, 1]} : vector<8x512xf32> to vector<8x17xf32>
    %976 = tpu.concatenate %974, %975 in 1 : vector<8x495xf32>, vector<8x17xf32> -> vector<8x512xf32>
    %977 = vector.extract_strided_slice %0 {offsets = [8, 0], sizes = [1, 512], strides = [1, 1]} : vector<9x512xf32> to vector<1x512xf32>
    %978 = vector.broadcast %977 : vector<1x512xf32> to vector<8x512xf32>
    %979 = arith.mulf %976, %978 : vector<8x512xf32>
    %980 = tpu.concatenate %937, %943, %949, %955, %927, %961, %967, %973, %979 in 0 : vector<8x512xf32>, vector<8x512xf32>, vector<8x512xf32>, vector<8x512xf32>, vector<8x512xf32>, vector<8x512xf32>, vector<8x512xf32>, vector<8x512xf32>, vector<8x512xf32> -> vector<72x512xf32>
    %cst_127 = arith.constant dense<0.000000e+00> : vector<8x512xf32>
    %981 = tpu.matmul %929, %980, %cst_127 {dimension_numbers = #tpu.dot_dimension_numbers<[1], [0], [0], [1], [0, 0, 1, 1], [], []>} : vector<8x72xf32>, vector<72x512xf32>, vector<8x512xf32> -> vector<8x512xf32>
    %982 = vector.broadcast %931 : vector<8x1xf32> to vector<8x512xf32>
    %983 = arith.addf %981, %982 : vector<8x512xf32>
    %c2_128 = arith.constant 2 : index
    %c0_129 = arith.constant 0 : index
    %c0_130 = arith.constant 0 : index
    %984 = vector.load %arg5[%c2_128, %c0_129, %c0_130] : memref<5x8x72xf32, #tpu.memory_space<vmem>>, vector<1x8x72xf32>
    %985 = vector.shape_cast %984 : vector<1x8x72xf32> to vector<8x72xf32>
    %c4_131 = arith.constant 4 : index
    %c0_132 = arith.constant 0 : index
    %c0_133 = arith.constant 0 : index
    %986 = vector.load %arg6[%c4_131, %c0_132, %c0_133] : memref<7x8x1xf32, #tpu.memory_space<vmem>>, vector<1x8x1xf32>
    %987 = vector.shape_cast %986 : vector<1x8x1xf32> to vector<8x1xf32>
    %988 = vector.extract_strided_slice %983 {offsets = [0, 495], sizes = [8, 17], strides = [1, 1]} : vector<8x512xf32> to vector<8x17xf32>
    %989 = vector.extract_strided_slice %983 {offsets = [0, 0], sizes = [8, 495], strides = [1, 1]} : vector<8x512xf32> to vector<8x495xf32>
    %990 = tpu.concatenate %988, %989 in 1 : vector<8x17xf32>, vector<8x495xf32> -> vector<8x512xf32>
    %991 = vector.extract_strided_slice %0 {offsets = [0, 0], sizes = [1, 512], strides = [1, 1]} : vector<9x512xf32> to vector<1x512xf32>
    %992 = vector.broadcast %991 : vector<1x512xf32> to vector<8x512xf32>
    %993 = arith.mulf %990, %992 : vector<8x512xf32>
    %994 = vector.extract_strided_slice %983 {offsets = [0, 496], sizes = [8, 16], strides = [1, 1]} : vector<8x512xf32> to vector<8x16xf32>
    %995 = vector.extract_strided_slice %983 {offsets = [0, 0], sizes = [8, 496], strides = [1, 1]} : vector<8x512xf32> to vector<8x496xf32>
    %996 = tpu.concatenate %994, %995 in 1 : vector<8x16xf32>, vector<8x496xf32> -> vector<8x512xf32>
    %997 = vector.extract_strided_slice %0 {offsets = [1, 0], sizes = [1, 512], strides = [1, 1]} : vector<9x512xf32> to vector<1x512xf32>
    %998 = vector.broadcast %997 : vector<1x512xf32> to vector<8x512xf32>
    %999 = arith.mulf %996, %998 : vector<8x512xf32>
    %1000 = vector.extract_strided_slice %983 {offsets = [0, 497], sizes = [8, 15], strides = [1, 1]} : vector<8x512xf32> to vector<8x15xf32>
    %1001 = vector.extract_strided_slice %983 {offsets = [0, 0], sizes = [8, 497], strides = [1, 1]} : vector<8x512xf32> to vector<8x497xf32>
    %1002 = tpu.concatenate %1000, %1001 in 1 : vector<8x15xf32>, vector<8x497xf32> -> vector<8x512xf32>
    %1003 = vector.extract_strided_slice %0 {offsets = [2, 0], sizes = [1, 512], strides = [1, 1]} : vector<9x512xf32> to vector<1x512xf32>
    %1004 = vector.broadcast %1003 : vector<1x512xf32> to vector<8x512xf32>
    %1005 = arith.mulf %1002, %1004 : vector<8x512xf32>
    %1006 = vector.extract_strided_slice %983 {offsets = [0, 511], sizes = [8, 1], strides = [1, 1]} : vector<8x512xf32> to vector<8x1xf32>
    %1007 = vector.extract_strided_slice %983 {offsets = [0, 0], sizes = [8, 511], strides = [1, 1]} : vector<8x512xf32> to vector<8x511xf32>
    %1008 = tpu.concatenate %1006, %1007 in 1 : vector<8x1xf32>, vector<8x511xf32> -> vector<8x512xf32>
    %1009 = vector.extract_strided_slice %0 {offsets = [3, 0], sizes = [1, 512], strides = [1, 1]} : vector<9x512xf32> to vector<1x512xf32>
    %1010 = vector.broadcast %1009 : vector<1x512xf32> to vector<8x512xf32>
    %1011 = arith.mulf %1008, %1010 : vector<8x512xf32>
    %1012 = vector.extract_strided_slice %983 {offsets = [0, 1], sizes = [8, 511], strides = [1, 1]} : vector<8x512xf32> to vector<8x511xf32>
    %1013 = vector.extract_strided_slice %983 {offsets = [0, 0], sizes = [8, 1], strides = [1, 1]} : vector<8x512xf32> to vector<8x1xf32>
    %1014 = tpu.concatenate %1012, %1013 in 1 : vector<8x511xf32>, vector<8x1xf32> -> vector<8x512xf32>
    %1015 = vector.extract_strided_slice %0 {offsets = [5, 0], sizes = [1, 512], strides = [1, 1]} : vector<9x512xf32> to vector<1x512xf32>
    %1016 = vector.broadcast %1015 : vector<1x512xf32> to vector<8x512xf32>
    %1017 = arith.mulf %1014, %1016 : vector<8x512xf32>
    %1018 = vector.extract_strided_slice %983 {offsets = [0, 15], sizes = [8, 497], strides = [1, 1]} : vector<8x512xf32> to vector<8x497xf32>
    %1019 = vector.extract_strided_slice %983 {offsets = [0, 0], sizes = [8, 15], strides = [1, 1]} : vector<8x512xf32> to vector<8x15xf32>
    %1020 = tpu.concatenate %1018, %1019 in 1 : vector<8x497xf32>, vector<8x15xf32> -> vector<8x512xf32>
    %1021 = vector.extract_strided_slice %0 {offsets = [6, 0], sizes = [1, 512], strides = [1, 1]} : vector<9x512xf32> to vector<1x512xf32>
    %1022 = vector.broadcast %1021 : vector<1x512xf32> to vector<8x512xf32>
    %1023 = arith.mulf %1020, %1022 : vector<8x512xf32>
    %1024 = vector.extract_strided_slice %983 {offsets = [0, 16], sizes = [8, 496], strides = [1, 1]} : vector<8x512xf32> to vector<8x496xf32>
    %1025 = vector.extract_strided_slice %983 {offsets = [0, 0], sizes = [8, 16], strides = [1, 1]} : vector<8x512xf32> to vector<8x16xf32>
    %1026 = tpu.concatenate %1024, %1025 in 1 : vector<8x496xf32>, vector<8x16xf32> -> vector<8x512xf32>
    %1027 = vector.extract_strided_slice %0 {offsets = [7, 0], sizes = [1, 512], strides = [1, 1]} : vector<9x512xf32> to vector<1x512xf32>
    %1028 = vector.broadcast %1027 : vector<1x512xf32> to vector<8x512xf32>
    %1029 = arith.mulf %1026, %1028 : vector<8x512xf32>
    %1030 = vector.extract_strided_slice %983 {offsets = [0, 17], sizes = [8, 495], strides = [1, 1]} : vector<8x512xf32> to vector<8x495xf32>
    %1031 = vector.extract_strided_slice %983 {offsets = [0, 0], sizes = [8, 17], strides = [1, 1]} : vector<8x512xf32> to vector<8x17xf32>
    %1032 = tpu.concatenate %1030, %1031 in 1 : vector<8x495xf32>, vector<8x17xf32> -> vector<8x512xf32>
    %1033 = vector.extract_strided_slice %0 {offsets = [8, 0], sizes = [1, 512], strides = [1, 1]} : vector<9x512xf32> to vector<1x512xf32>
    %1034 = vector.broadcast %1033 : vector<1x512xf32> to vector<8x512xf32>
    %1035 = arith.mulf %1032, %1034 : vector<8x512xf32>
    %1036 = tpu.concatenate %993, %999, %1005, %1011, %983, %1017, %1023, %1029, %1035 in 0 : vector<8x512xf32>, vector<8x512xf32>, vector<8x512xf32>, vector<8x512xf32>, vector<8x512xf32>, vector<8x512xf32>, vector<8x512xf32>, vector<8x512xf32>, vector<8x512xf32> -> vector<72x512xf32>
    %cst_134 = arith.constant dense<0.000000e+00> : vector<8x512xf32>
    %1037 = tpu.matmul %985, %1036, %cst_134 {dimension_numbers = #tpu.dot_dimension_numbers<[1], [0], [0], [1], [0, 0, 1, 1], [], []>} : vector<8x72xf32>, vector<72x512xf32>, vector<8x512xf32> -> vector<8x512xf32>
    %1038 = vector.broadcast %987 : vector<8x1xf32> to vector<8x512xf32>
    %1039 = arith.addf %1037, %1038 : vector<8x512xf32>
    %c3_135 = arith.constant 3 : index
    %c0_136 = arith.constant 0 : index
    %c0_137 = arith.constant 0 : index
    %1040 = vector.load %arg5[%c3_135, %c0_136, %c0_137] : memref<5x8x72xf32, #tpu.memory_space<vmem>>, vector<1x8x72xf32>
    %1041 = vector.shape_cast %1040 : vector<1x8x72xf32> to vector<8x72xf32>
    %c5_138 = arith.constant 5 : index
    %c0_139 = arith.constant 0 : index
    %c0_140 = arith.constant 0 : index
    %1042 = vector.load %arg6[%c5_138, %c0_139, %c0_140] : memref<7x8x1xf32, #tpu.memory_space<vmem>>, vector<1x8x1xf32>
    %1043 = vector.shape_cast %1042 : vector<1x8x1xf32> to vector<8x1xf32>
    %1044 = vector.extract_strided_slice %1039 {offsets = [0, 495], sizes = [8, 17], strides = [1, 1]} : vector<8x512xf32> to vector<8x17xf32>
    %1045 = vector.extract_strided_slice %1039 {offsets = [0, 0], sizes = [8, 495], strides = [1, 1]} : vector<8x512xf32> to vector<8x495xf32>
    %1046 = tpu.concatenate %1044, %1045 in 1 : vector<8x17xf32>, vector<8x495xf32> -> vector<8x512xf32>
    %1047 = vector.extract_strided_slice %0 {offsets = [0, 0], sizes = [1, 512], strides = [1, 1]} : vector<9x512xf32> to vector<1x512xf32>
    %1048 = vector.broadcast %1047 : vector<1x512xf32> to vector<8x512xf32>
    %1049 = arith.mulf %1046, %1048 : vector<8x512xf32>
    %1050 = vector.extract_strided_slice %1039 {offsets = [0, 496], sizes = [8, 16], strides = [1, 1]} : vector<8x512xf32> to vector<8x16xf32>
    %1051 = vector.extract_strided_slice %1039 {offsets = [0, 0], sizes = [8, 496], strides = [1, 1]} : vector<8x512xf32> to vector<8x496xf32>
    %1052 = tpu.concatenate %1050, %1051 in 1 : vector<8x16xf32>, vector<8x496xf32> -> vector<8x512xf32>
    %1053 = vector.extract_strided_slice %0 {offsets = [1, 0], sizes = [1, 512], strides = [1, 1]} : vector<9x512xf32> to vector<1x512xf32>
    %1054 = vector.broadcast %1053 : vector<1x512xf32> to vector<8x512xf32>
    %1055 = arith.mulf %1052, %1054 : vector<8x512xf32>
    %1056 = vector.extract_strided_slice %1039 {offsets = [0, 497], sizes = [8, 15], strides = [1, 1]} : vector<8x512xf32> to vector<8x15xf32>
    %1057 = vector.extract_strided_slice %1039 {offsets = [0, 0], sizes = [8, 497], strides = [1, 1]} : vector<8x512xf32> to vector<8x497xf32>
    %1058 = tpu.concatenate %1056, %1057 in 1 : vector<8x15xf32>, vector<8x497xf32> -> vector<8x512xf32>
    %1059 = vector.extract_strided_slice %0 {offsets = [2, 0], sizes = [1, 512], strides = [1, 1]} : vector<9x512xf32> to vector<1x512xf32>
    %1060 = vector.broadcast %1059 : vector<1x512xf32> to vector<8x512xf32>
    %1061 = arith.mulf %1058, %1060 : vector<8x512xf32>
    %1062 = vector.extract_strided_slice %1039 {offsets = [0, 511], sizes = [8, 1], strides = [1, 1]} : vector<8x512xf32> to vector<8x1xf32>
    %1063 = vector.extract_strided_slice %1039 {offsets = [0, 0], sizes = [8, 511], strides = [1, 1]} : vector<8x512xf32> to vector<8x511xf32>
    %1064 = tpu.concatenate %1062, %1063 in 1 : vector<8x1xf32>, vector<8x511xf32> -> vector<8x512xf32>
    %1065 = vector.extract_strided_slice %0 {offsets = [3, 0], sizes = [1, 512], strides = [1, 1]} : vector<9x512xf32> to vector<1x512xf32>
    %1066 = vector.broadcast %1065 : vector<1x512xf32> to vector<8x512xf32>
    %1067 = arith.mulf %1064, %1066 : vector<8x512xf32>
    %1068 = vector.extract_strided_slice %1039 {offsets = [0, 1], sizes = [8, 511], strides = [1, 1]} : vector<8x512xf32> to vector<8x511xf32>
    %1069 = vector.extract_strided_slice %1039 {offsets = [0, 0], sizes = [8, 1], strides = [1, 1]} : vector<8x512xf32> to vector<8x1xf32>
    %1070 = tpu.concatenate %1068, %1069 in 1 : vector<8x511xf32>, vector<8x1xf32> -> vector<8x512xf32>
    %1071 = vector.extract_strided_slice %0 {offsets = [5, 0], sizes = [1, 512], strides = [1, 1]} : vector<9x512xf32> to vector<1x512xf32>
    %1072 = vector.broadcast %1071 : vector<1x512xf32> to vector<8x512xf32>
    %1073 = arith.mulf %1070, %1072 : vector<8x512xf32>
    %1074 = vector.extract_strided_slice %1039 {offsets = [0, 15], sizes = [8, 497], strides = [1, 1]} : vector<8x512xf32> to vector<8x497xf32>
    %1075 = vector.extract_strided_slice %1039 {offsets = [0, 0], sizes = [8, 15], strides = [1, 1]} : vector<8x512xf32> to vector<8x15xf32>
    %1076 = tpu.concatenate %1074, %1075 in 1 : vector<8x497xf32>, vector<8x15xf32> -> vector<8x512xf32>
    %1077 = vector.extract_strided_slice %0 {offsets = [6, 0], sizes = [1, 512], strides = [1, 1]} : vector<9x512xf32> to vector<1x512xf32>
    %1078 = vector.broadcast %1077 : vector<1x512xf32> to vector<8x512xf32>
    %1079 = arith.mulf %1076, %1078 : vector<8x512xf32>
    %1080 = vector.extract_strided_slice %1039 {offsets = [0, 16], sizes = [8, 496], strides = [1, 1]} : vector<8x512xf32> to vector<8x496xf32>
    %1081 = vector.extract_strided_slice %1039 {offsets = [0, 0], sizes = [8, 16], strides = [1, 1]} : vector<8x512xf32> to vector<8x16xf32>
    %1082 = tpu.concatenate %1080, %1081 in 1 : vector<8x496xf32>, vector<8x16xf32> -> vector<8x512xf32>
    %1083 = vector.extract_strided_slice %0 {offsets = [7, 0], sizes = [1, 512], strides = [1, 1]} : vector<9x512xf32> to vector<1x512xf32>
    %1084 = vector.broadcast %1083 : vector<1x512xf32> to vector<8x512xf32>
    %1085 = arith.mulf %1082, %1084 : vector<8x512xf32>
    %1086 = vector.extract_strided_slice %1039 {offsets = [0, 17], sizes = [8, 495], strides = [1, 1]} : vector<8x512xf32> to vector<8x495xf32>
    %1087 = vector.extract_strided_slice %1039 {offsets = [0, 0], sizes = [8, 17], strides = [1, 1]} : vector<8x512xf32> to vector<8x17xf32>
    %1088 = tpu.concatenate %1086, %1087 in 1 : vector<8x495xf32>, vector<8x17xf32> -> vector<8x512xf32>
    %1089 = vector.extract_strided_slice %0 {offsets = [8, 0], sizes = [1, 512], strides = [1, 1]} : vector<9x512xf32> to vector<1x512xf32>
    %1090 = vector.broadcast %1089 : vector<1x512xf32> to vector<8x512xf32>
    %1091 = arith.mulf %1088, %1090 : vector<8x512xf32>
    %1092 = tpu.concatenate %1049, %1055, %1061, %1067, %1039, %1073, %1079, %1085, %1091 in 0 : vector<8x512xf32>, vector<8x512xf32>, vector<8x512xf32>, vector<8x512xf32>, vector<8x512xf32>, vector<8x512xf32>, vector<8x512xf32>, vector<8x512xf32>, vector<8x512xf32> -> vector<72x512xf32>
    %cst_141 = arith.constant dense<0.000000e+00> : vector<8x512xf32>
    %1093 = tpu.matmul %1041, %1092, %cst_141 {dimension_numbers = #tpu.dot_dimension_numbers<[1], [0], [0], [1], [0, 0, 1, 1], [], []>} : vector<8x72xf32>, vector<72x512xf32>, vector<8x512xf32> -> vector<8x512xf32>
    %1094 = vector.broadcast %1043 : vector<8x1xf32> to vector<8x512xf32>
    %1095 = arith.addf %1093, %1094 : vector<8x512xf32>
    %c4_142 = arith.constant 4 : index
    %c0_143 = arith.constant 0 : index
    %c0_144 = arith.constant 0 : index
    %1096 = vector.load %arg5[%c4_142, %c0_143, %c0_144] : memref<5x8x72xf32, #tpu.memory_space<vmem>>, vector<1x8x72xf32>
    %1097 = vector.shape_cast %1096 : vector<1x8x72xf32> to vector<8x72xf32>
    %c6_145 = arith.constant 6 : index
    %c0_146 = arith.constant 0 : index
    %c0_147 = arith.constant 0 : index
    %1098 = vector.load %arg6[%c6_145, %c0_146, %c0_147] : memref<7x8x1xf32, #tpu.memory_space<vmem>>, vector<1x8x1xf32>
    %1099 = vector.shape_cast %1098 : vector<1x8x1xf32> to vector<8x1xf32>
    %1100 = vector.extract_strided_slice %1095 {offsets = [0, 495], sizes = [8, 17], strides = [1, 1]} : vector<8x512xf32> to vector<8x17xf32>
    %1101 = vector.extract_strided_slice %1095 {offsets = [0, 0], sizes = [8, 495], strides = [1, 1]} : vector<8x512xf32> to vector<8x495xf32>
    %1102 = tpu.concatenate %1100, %1101 in 1 : vector<8x17xf32>, vector<8x495xf32> -> vector<8x512xf32>
    %1103 = vector.extract_strided_slice %0 {offsets = [0, 0], sizes = [1, 512], strides = [1, 1]} : vector<9x512xf32> to vector<1x512xf32>
    %1104 = vector.broadcast %1103 : vector<1x512xf32> to vector<8x512xf32>
    %1105 = arith.mulf %1102, %1104 : vector<8x512xf32>
    %1106 = vector.extract_strided_slice %1095 {offsets = [0, 496], sizes = [8, 16], strides = [1, 1]} : vector<8x512xf32> to vector<8x16xf32>
    %1107 = vector.extract_strided_slice %1095 {offsets = [0, 0], sizes = [8, 496], strides = [1, 1]} : vector<8x512xf32> to vector<8x496xf32>
    %1108 = tpu.concatenate %1106, %1107 in 1 : vector<8x16xf32>, vector<8x496xf32> -> vector<8x512xf32>
    %1109 = vector.extract_strided_slice %0 {offsets = [1, 0], sizes = [1, 512], strides = [1, 1]} : vector<9x512xf32> to vector<1x512xf32>
    %1110 = vector.broadcast %1109 : vector<1x512xf32> to vector<8x512xf32>
    %1111 = arith.mulf %1108, %1110 : vector<8x512xf32>
    %1112 = vector.extract_strided_slice %1095 {offsets = [0, 497], sizes = [8, 15], strides = [1, 1]} : vector<8x512xf32> to vector<8x15xf32>
    %1113 = vector.extract_strided_slice %1095 {offsets = [0, 0], sizes = [8, 497], strides = [1, 1]} : vector<8x512xf32> to vector<8x497xf32>
    %1114 = tpu.concatenate %1112, %1113 in 1 : vector<8x15xf32>, vector<8x497xf32> -> vector<8x512xf32>
    %1115 = vector.extract_strided_slice %0 {offsets = [2, 0], sizes = [1, 512], strides = [1, 1]} : vector<9x512xf32> to vector<1x512xf32>
    %1116 = vector.broadcast %1115 : vector<1x512xf32> to vector<8x512xf32>
    %1117 = arith.mulf %1114, %1116 : vector<8x512xf32>
    %1118 = vector.extract_strided_slice %1095 {offsets = [0, 511], sizes = [8, 1], strides = [1, 1]} : vector<8x512xf32> to vector<8x1xf32>
    %1119 = vector.extract_strided_slice %1095 {offsets = [0, 0], sizes = [8, 511], strides = [1, 1]} : vector<8x512xf32> to vector<8x511xf32>
    %1120 = tpu.concatenate %1118, %1119 in 1 : vector<8x1xf32>, vector<8x511xf32> -> vector<8x512xf32>
    %1121 = vector.extract_strided_slice %0 {offsets = [3, 0], sizes = [1, 512], strides = [1, 1]} : vector<9x512xf32> to vector<1x512xf32>
    %1122 = vector.broadcast %1121 : vector<1x512xf32> to vector<8x512xf32>
    %1123 = arith.mulf %1120, %1122 : vector<8x512xf32>
    %1124 = vector.extract_strided_slice %1095 {offsets = [0, 1], sizes = [8, 511], strides = [1, 1]} : vector<8x512xf32> to vector<8x511xf32>
    %1125 = vector.extract_strided_slice %1095 {offsets = [0, 0], sizes = [8, 1], strides = [1, 1]} : vector<8x512xf32> to vector<8x1xf32>
    %1126 = tpu.concatenate %1124, %1125 in 1 : vector<8x511xf32>, vector<8x1xf32> -> vector<8x512xf32>
    %1127 = vector.extract_strided_slice %0 {offsets = [5, 0], sizes = [1, 512], strides = [1, 1]} : vector<9x512xf32> to vector<1x512xf32>
    %1128 = vector.broadcast %1127 : vector<1x512xf32> to vector<8x512xf32>
    %1129 = arith.mulf %1126, %1128 : vector<8x512xf32>
    %1130 = vector.extract_strided_slice %1095 {offsets = [0, 15], sizes = [8, 497], strides = [1, 1]} : vector<8x512xf32> to vector<8x497xf32>
    %1131 = vector.extract_strided_slice %1095 {offsets = [0, 0], sizes = [8, 15], strides = [1, 1]} : vector<8x512xf32> to vector<8x15xf32>
    %1132 = tpu.concatenate %1130, %1131 in 1 : vector<8x497xf32>, vector<8x15xf32> -> vector<8x512xf32>
    %1133 = vector.extract_strided_slice %0 {offsets = [6, 0], sizes = [1, 512], strides = [1, 1]} : vector<9x512xf32> to vector<1x512xf32>
    %1134 = vector.broadcast %1133 : vector<1x512xf32> to vector<8x512xf32>
    %1135 = arith.mulf %1132, %1134 : vector<8x512xf32>
    %1136 = vector.extract_strided_slice %1095 {offsets = [0, 16], sizes = [8, 496], strides = [1, 1]} : vector<8x512xf32> to vector<8x496xf32>
    %1137 = vector.extract_strided_slice %1095 {offsets = [0, 0], sizes = [8, 16], strides = [1, 1]} : vector<8x512xf32> to vector<8x16xf32>
    %1138 = tpu.concatenate %1136, %1137 in 1 : vector<8x496xf32>, vector<8x16xf32> -> vector<8x512xf32>
    %1139 = vector.extract_strided_slice %0 {offsets = [7, 0], sizes = [1, 512], strides = [1, 1]} : vector<9x512xf32> to vector<1x512xf32>
    %1140 = vector.broadcast %1139 : vector<1x512xf32> to vector<8x512xf32>
    %1141 = arith.mulf %1138, %1140 : vector<8x512xf32>
    %1142 = vector.extract_strided_slice %1095 {offsets = [0, 17], sizes = [8, 495], strides = [1, 1]} : vector<8x512xf32> to vector<8x495xf32>
    %1143 = vector.extract_strided_slice %1095 {offsets = [0, 0], sizes = [8, 17], strides = [1, 1]} : vector<8x512xf32> to vector<8x17xf32>
    %1144 = tpu.concatenate %1142, %1143 in 1 : vector<8x495xf32>, vector<8x17xf32> -> vector<8x512xf32>
    %1145 = vector.extract_strided_slice %0 {offsets = [8, 0], sizes = [1, 512], strides = [1, 1]} : vector<9x512xf32> to vector<1x512xf32>
    %1146 = vector.broadcast %1145 : vector<1x512xf32> to vector<8x512xf32>
    %1147 = arith.mulf %1144, %1146 : vector<8x512xf32>
    %1148 = tpu.concatenate %1105, %1111, %1117, %1123, %1095, %1129, %1135, %1141, %1147 in 0 : vector<8x512xf32>, vector<8x512xf32>, vector<8x512xf32>, vector<8x512xf32>, vector<8x512xf32>, vector<8x512xf32>, vector<8x512xf32>, vector<8x512xf32>, vector<8x512xf32> -> vector<72x512xf32>
    %cst_148 = arith.constant dense<0.000000e+00> : vector<8x512xf32>
    %1149 = tpu.matmul %1097, %1148, %cst_148 {dimension_numbers = #tpu.dot_dimension_numbers<[1], [0], [0], [1], [0, 0, 1, 1], [], []>} : vector<8x72xf32>, vector<72x512xf32>, vector<8x512xf32> -> vector<8x512xf32>
    %1150 = vector.broadcast %1099 : vector<8x1xf32> to vector<8x512xf32>
    %1151 = arith.addf %1149, %1150 : vector<8x512xf32>
    %c0_149 = arith.constant 0 : index
    %c0_150 = arith.constant 0 : index
    %1152 = vector.load %arg7[%c0_149, %c0_150] : memref<2x8xf32, #tpu.memory_space<vmem>>, vector<2x8xf32>
    %cst_151 = arith.constant dense<0.000000e+00> : vector<2x512xf32>
    %1153 = tpu.matmul %1152, %1151, %cst_151 {dimension_numbers = #tpu.dot_dimension_numbers<[1], [0], [0], [1], [0, 0, 1, 1], [], []>} : vector<2x8xf32>, vector<8x512xf32>, vector<2x512xf32> -> vector<2x512xf32>
    %c0_152 = arith.constant 0 : index
    %c0_153 = arith.constant 0 : index
    %1154 = vector.load %arg8[%c0_152, %c0_153] : memref<2x1xf32, #tpu.memory_space<vmem>>, vector<2x1xf32>
    %1155 = vector.broadcast %1154 : vector<2x1xf32> to vector<2x512xf32>
    %1156 = arith.addf %1153, %1155 : vector<2x512xf32>
    %1157 = vector.extract_strided_slice %1156 {offsets = [1, 0], sizes = [1, 512], strides = [1, 1]} : vector<2x512xf32> to vector<1x512xf32>
    %1158 = vector.extract_strided_slice %1156 {offsets = [0, 0], sizes = [1, 512], strides = [1, 1]} : vector<2x512xf32> to vector<1x512xf32>
    %1159 = arith.subf %1157, %1158 : vector<1x512xf32>
    %1160 = math.exp %1159 : vector<1x512xf32>
    %cst_154 = arith.constant 1.000000e+00 : f32
    %1161 = vector.broadcast %cst_154 : f32 to vector<1x512xf32>
    %1162 = arith.addf %1161, %1160 : vector<1x512xf32>
    %cst_155 = arith.constant 1.000000e+00 : f32
    %1163 = vector.broadcast %cst_155 : f32 to vector<1x512xf32>
    %1164 = arith.divf %1163, %1162 : vector<1x512xf32>
    %cst_156 = arith.constant 1.000000e+00 : f32
    %1165 = vector.broadcast %cst_156 : f32 to vector<1x512xf32>
    %1166 = arith.subf %1165, %466 : vector<1x512xf32>
    %cst_157 = arith.constant 1.000000e+00 : f32
    %1167 = vector.broadcast %cst_157 : f32 to vector<1x512xf32>
    %1168 = arith.subf %1167, %815 : vector<1x512xf32>
    %cst_158 = arith.constant 1.000000e+00 : f32
    %1169 = vector.broadcast %cst_158 : f32 to vector<1x512xf32>
    %1170 = arith.subf %1169, %1164 : vector<1x512xf32>
    %1171 = arith.addf %466, %815 : vector<1x512xf32>
    %1172 = arith.addf %1171, %1164 : vector<1x512xf32>
    %cst_159 = arith.constant 0.333333343 : f32
    %1173 = vector.broadcast %cst_159 : f32 to vector<1x512xf32>
    %1174 = arith.mulf %1172, %1173 : vector<1x512xf32>
    %cst_160 = arith.constant 2.000000e+00 : f32
    %1175 = vector.broadcast %cst_160 : f32 to vector<1x512xf32>
    %1176 = arith.mulf %1175, %1174 : vector<1x512xf32>
    %cst_161 = arith.constant 1.000000e+00 : f32
    %1177 = vector.broadcast %cst_161 : f32 to vector<1x512xf32>
    %1178 = arith.subf %1177, %1176 : vector<1x512xf32>
    %1179 = math.exp %1178 : vector<1x512xf32>
    %cst_162 = arith.constant 1.000000e+00 : f32
    %1180 = vector.broadcast %cst_162 : f32 to vector<1x512xf32>
    %1181 = arith.addf %1180, %1179 : vector<1x512xf32>
    %cst_163 = arith.constant 1.000000e+00 : f32
    %1182 = vector.broadcast %cst_163 : f32 to vector<1x512xf32>
    %1183 = arith.divf %1182, %1181 : vector<1x512xf32>
    %cst_164 = arith.constant 1.000000e+00 : f32
    %1184 = vector.broadcast %cst_164 : f32 to vector<1x512xf32>
    %1185 = arith.subf %1184, %1183 : vector<1x512xf32>
    %1186 = tpu.concatenate %466, %1166, %815, %1168, %1164, %1170, %1183, %1185 in 0 : vector<1x512xf32>, vector<1x512xf32>, vector<1x512xf32>, vector<1x512xf32>, vector<1x512xf32>, vector<1x512xf32>, vector<1x512xf32>, vector<1x512xf32> -> vector<8x512xf32>
    %c0_165 = arith.constant 0 : index
    %c0_166 = arith.constant 0 : index
    %c0_167 = arith.constant 0 : index
    %1187 = vector.load %arg9[%c0_165, %c0_166, %c0_167] : memref<1x8x512xf32, #tpu.memory_space<vmem>>, vector<1x8x512xf32>
    %1188 = vector.shape_cast %1187 : vector<1x8x512xf32> to vector<8x512xf32>
    %1189 = vector.shape_cast %1186 : vector<8x512xf32> to vector<1x8x512xf32>
    tpu.vector_store %arg9[%c0_165, %c0_166, %c0_167], %1189 {strides = array<i32>} : memref<1x8x512xf32, #tpu.memory_space<vmem>>, vector<1x8x512xf32>,
    return
  }
  func.func @transform_0(%arg0: i32) -> (i32, i32, i32) {
    %c0_i32 = arith.constant 0 : i32
    %c0_i32_0 = arith.constant 0 : i32
    %c0_i32_1 = arith.constant 0 : i32
    return %arg0, %c0_i32, %c0_i32_0 : i32, i32, i32
  }
  func.func @transform_1(%arg0: i32) -> (i32, i32) {
    %c0_i32 = arith.constant 0 : i32
    %c0_i32_0 = arith.constant 0 : i32
    %c0_i32_1 = arith.constant 0 : i32
    return %c0_i32, %c0_i32_0 : i32, i32
  }
  func.func @transform_2(%arg0: i32) -> (i32, i32) {
    %c0_i32 = arith.constant 0 : i32
    %c0_i32_0 = arith.constant 0 : i32
    %c0_i32_1 = arith.constant 0 : i32
    return %c0_i32, %c0_i32_0 : i32, i32
  }
  func.func @transform_3(%arg0: i32) -> (i32, i32) {
    %c0_i32 = arith.constant 0 : i32
    %c0_i32_0 = arith.constant 0 : i32
    %c0_i32_1 = arith.constant 0 : i32
    return %c0_i32, %c0_i32_0 : i32, i32
  }
  func.func @transform_4(%arg0: i32) -> (i32, i32, i32) {
    %c0_i32 = arith.constant 0 : i32
    %c0_i32_0 = arith.constant 0 : i32
    %c0_i32_1 = arith.constant 0 : i32
    %c0_i32_2 = arith.constant 0 : i32
    return %c0_i32, %c0_i32_0, %c0_i32_1 : i32, i32, i32
  }
  func.func @transform_5(%arg0: i32) -> (i32, i32, i32) {
    %c0_i32 = arith.constant 0 : i32
    %c0_i32_0 = arith.constant 0 : i32
    %c0_i32_1 = arith.constant 0 : i32
    %c0_i32_2 = arith.constant 0 : i32
    return %c0_i32, %c0_i32_0, %c0_i32_1 : i32, i32, i32
  }
  func.func @transform_6(%arg0: i32) -> (i32, i32) {
    %c0_i32 = arith.constant 0 : i32
    %c0_i32_0 = arith.constant 0 : i32
    %c0_i32_1 = arith.constant 0 : i32
    return %c0_i32, %c0_i32_0 : i32, i32
  }
  func.func @transform_7(%arg0: i32) -> (i32, i32) {
    %c0_i32 = arith.constant 0 : i32
    %c0_i32_0 = arith.constant 0 : i32
    %c0_i32_1 = arith.constant 0 : i32
    return %c0_i32, %c0_i32_0 : i32, i32
  }
  func.func @transform_8(%arg0: i32) -> (i32, i32, i32) {
    %c0_i32 = arith.constant 0 : i32
    %c0_i32_0 = arith.constant 0 : i32
    %c0_i32_1 = arith.constant 0 : i32
    return %arg0, %c0_i32, %c0_i32_0 : i32, i32, i32
  }
}

</mosaic_0001>

<llo_original>
// kernel: fsan_forward.1
$region0: #{fsan_forward.1}
  #allocation0 [shape = 'u32[]', space=smem, size = 0x4, offset = 0x4, fixed_abs, tag = 'smem constant byte address 0x4 - core index']
  #allocation1 [shape = 'u32[144,128]{1,0:T(1,128)}', space=vmem, size = 0x12000, scoped, tag = 'internal scratch']
  %s0 = inlined_call_operand.vmem [shape: f32[1,8,512], index: 0, kind: input, shape index: {}]
  %s1 = inlined_call_operand.vmem [shape: f32[9,512], index: 1, kind: input, shape index: {}]
  %s2 = inlined_call_operand.vmem [shape: f32[8,72], index: 2, kind: input, shape index: {}]
  %s3 = inlined_call_operand.vmem [shape: f32[8,144], index: 3, kind: input, shape index: {}]
  %s4 = inlined_call_operand.vmem [shape: f32[5,8,72], index: 4, kind: input, shape index: {}]
  %s5 = inlined_call_operand.vmem [shape: f32[7,8,1], index: 5, kind: input, shape index: {}]
  %s6 = inlined_call_operand.vmem [shape: f32[2,8], index: 6, kind: input, shape index: {}]
  %s7 = inlined_call_operand.vmem [shape: f32[2,1], index: 7, kind: input, shape index: {}]
  %s8 = inlined_call_operand.vmem [shape: f32[1,8,512], index: 8, kind: output, shape index: {}]
  %s9 = sld [smem:[#allocation0]]
  $region42: #{fsan_forward.1} parent=0
    _
  %s11 = ssub.s32 1, %s9
  %s12 = scalar_select 0, %s11, %s9
  // Predicated region
  $region2: #{fsan_forward.1} parent=0 // pred_check
    _
  $region3: #{fsan_forward.1} parent=0 // pred_check_branch
    %14 = sbr.rel (0) target = $region5
  $region4: #{fsan_forward.1} parent=0 // pred_region
    _
  $region5: #{fsan_forward.1} parent=0 // pred_fallthru
    _
  // Predicated region
  $region6: #{fsan_forward.1} parent=0 // pred_check
    _
  $region7: #{fsan_forward.1} parent=0 // pred_check_branch
    %16 = sbr.rel (0) target = $region9
  $region8: #{fsan_forward.1} parent=0 // pred_region
    _
  $region9: #{fsan_forward.1} parent=0 // pred_fallthru
    _
  // Predicated region
  $region10: #{fsan_forward.1} parent=0 // pred_check
    _
  $region11: #{fsan_forward.1} parent=0 // pred_check_branch
    %18 = sbr.rel (0) target = $region13
  $region12: #{fsan_forward.1} parent=0 // pred_region
    _
  $region13: #{fsan_forward.1} parent=0 // pred_fallthru
    _
  // Predicated region
  $region14: #{fsan_forward.1} parent=0 // pred_check
    _
  $region15: #{fsan_forward.1} parent=0 // pred_check_branch
    %20 = sbr.rel (0) target = $region17
  $region16: #{fsan_forward.1} parent=0 // pred_region
    _
  $region17: #{fsan_forward.1} parent=0 // pred_fallthru
    _
  // Predicated region
  $region18: #{fsan_forward.1} parent=0 // pred_check
    _
  $region19: #{fsan_forward.1} parent=0 // pred_check_branch
    %22 = sbr.rel (0) target = $region21
  $region20: #{fsan_forward.1} parent=0 // pred_region
    _
  $region21: #{fsan_forward.1} parent=0 // pred_fallthru
    _
  // Predicated region
  $region22: #{fsan_forward.1} parent=0 // pred_check
    _
  $region23: #{fsan_forward.1} parent=0 // pred_check_branch
    %24 = sbr.rel (0) target = $region25
  $region24: #{fsan_forward.1} parent=0 // pred_region
    _
  $region25: #{fsan_forward.1} parent=0 // pred_fallthru
    _
  // Predicated region
  $region26: #{fsan_forward.1} parent=0 // pred_check
    _
  $region27: #{fsan_forward.1} parent=0 // pred_check_branch
    %26 = sbr.rel (0) target = $region29
  $region28: #{fsan_forward.1} parent=0 // pred_region
    _
  $region29: #{fsan_forward.1} parent=0 // pred_fallthru
    _
  // Predicated region
  $region30: #{fsan_forward.1} parent=0 // pred_check
    _
  $region31: #{fsan_forward.1} parent=0 // pred_check_branch
    %28 = sbr.rel (0) target = $region33
  $region32: #{fsan_forward.1} parent=0 // pred_region
    _
  $region33: #{fsan_forward.1} parent=0 // pred_fallthru
    _
  %v29 = vld [vmem:[%s1] sm:$0xff]
  %v30 = vld [vmem:[%s1 + $0x8] sm:$0xff]
  %v31 = vld [vmem:[%s1 + $0x10] sm:$0xff]
  %v32 = vld [vmem:[%s1 + $0x18] sm:$0xff]
  %v33 = vld [vmem:[%s1 + $0x20] sm:$0x1]
  %v34 = vld [vmem:[%s1 + $0x28] sm:$0x1]
  %v35 = vld [vmem:[%s1 + $0x30] sm:$0x1]
  %v36 = vld [vmem:[%s1 + $0x38] sm:$0x1]
  %v37 = vld [vmem:[%s0] sm:$0xff]
  %v38 = vld [vmem:[%s0 + $0x8] sm:$0xff]
  %v39 = vld [vmem:[%s0 + $0x10] sm:$0xff]
  %v40 = vld [vmem:[%s0 + $0x18] sm:$0xff]
  %v41 = vld [vmem:[%s2] sm:$0xff]
  %v42 = vld [vmem:[%s5] sm:$0xff]
  %44 = vrot.lane.b32.xlu0 %v40, 17
  %v45 = vpop.permute.xlu0 %44
  %50 = vrot.lane.b32.xlu0 %v37, 17
  %v51 = vpop.permute.xlu0 %50
  %52 = vrot.lane.b32.xlu0 %v38, 17
  %v53 = vpop.permute.xlu0 %52
  %54 = vrot.lane.b32.xlu0 %v39, 17
  %v55 = vpop.permute.xlu0 %54
  %vm56 = vcmask 138240
  %v57 = vsel %vm56, %v51, %v53
  %v58 = vsel %vm56, %v53, %v55
  %v59 = vsel %vm56, %v55, %v45
  %v64 = vsel %vm56, %v45, %v51
  %v65 = vlaneseq
  %v66 = vshrl.u32 %v65, 7
  %v67 = vsub.s32 0, %v66
  %v68 = vrot.slane %v29, %v67
  %v69 = vlaneseq
  %v70 = vshrl.u32 %v69, 7
  %v71 = vsub.s32 0, %v70
  %v72 = vrot.slane %v30, %v71
  %v73 = vlaneseq
  %v74 = vshrl.u32 %v73, 7
  %v75 = vsub.s32 0, %v74
  %v76 = vrot.slane %v31, %v75
  %v77 = vlaneseq
  %v78 = vshrl.u32 %v77, 7
  %v79 = vsub.s32 0, %v78
  %v80 = vrot.slane %v32, %v79
  %v81 = vmul.f32 %v64, %v68
  %v82 = vmul.f32 %v57, %v72
  %v83 = vmul.f32 %v58, %v76
  %v84 = vmul.f32 %v59, %v80
  %85 = vrot.lane.b32.xlu0 %v40, 16
  %v86 = vpop.permute.xlu0 %85
  %88 = vrot.lane.b32.xlu0 %v37, 16
  %v89 = vpop.permute.xlu0 %88
  %90 = vrot.lane.b32.xlu0 %v38, 16
  %v91 = vpop.permute.xlu0 %90
  %92 = vrot.lane.b32.xlu0 %v39, 16
  %v93 = vpop.permute.xlu0 %92
  %vm94 = vcmask 130048
  %v95 = vsel %vm94, %v89, %v91
  %v96 = vsel %vm94, %v91, %v93
  %v97 = vsel %vm94, %v93, %v86
  %v102 = vsel %vm94, %v86, %v89
  %v103 = vlaneseq
  %v104 = vshrl.u32 %v103, 7
  %v105 = vsub.s32 1, %v104
  %v106 = vrot.slane %v29, %v105
  %v107 = vlaneseq
  %v108 = vshrl.u32 %v107, 7
  %v109 = vsub.s32 1, %v108
  %v110 = vrot.slane %v30, %v109
  %v111 = vlaneseq
  %v112 = vshrl.u32 %v111, 7
  %v113 = vsub.s32 1, %v112
  %v114 = vrot.slane %v31, %v113
  %v115 = vlaneseq
  %v116 = vshrl.u32 %v115, 7
  %v117 = vsub.s32 1, %v116
  %v118 = vrot.slane %v32, %v117
  %v119 = vmul.f32 %v102, %v106
  %v120 = vmul.f32 %v95, %v110
  %v121 = vmul.f32 %v96, %v114
  %v122 = vmul.f32 %v97, %v118
  %123 = vrot.lane.b32.xlu0 %v40, 15
  %v124 = vpop.permute.xlu0 %123
  %126 = vrot.lane.b32.xlu0 %v37, 15
  %v127 = vpop.permute.xlu0 %126
  %128 = vrot.lane.b32.xlu0 %v38, 15
  %v129 = vpop.permute.xlu0 %128
  %130 = vrot.lane.b32.xlu0 %v39, 15
  %v131 = vpop.permute.xlu0 %130
  %vm132 = vcmask 121856
  %v133 = vsel %vm132, %v127, %v129
  %v134 = vsel %vm132, %v129, %v131
  %v135 = vsel %vm132, %v131, %v124
  %v140 = vsel %vm132, %v124, %v127
  %v141 = vlaneseq
  %v142 = vshrl.u32 %v141, 7
  %v143 = vsub.s32 2, %v142
  %v144 = vrot.slane %v29, %v143
  %v145 = vlaneseq
  %v146 = vshrl.u32 %v145, 7
  %v147 = vsub.s32 2, %v146
  %v148 = vrot.slane %v30, %v147
  %v149 = vlaneseq
  %v150 = vshrl.u32 %v149, 7
  %v151 = vsub.s32 2, %v150
  %v152 = vrot.slane %v31, %v151
  %v153 = vlaneseq
  %v154 = vshrl.u32 %v153, 7
  %v155 = vsub.s32 2, %v154
  %v156 = vrot.slane %v32, %v155
  %v157 = vmul.f32 %v140, %v144
  %v158 = vmul.f32 %v133, %v148
  %v159 = vmul.f32 %v134, %v152
  %v160 = vmul.f32 %v135, %v156
  %161 = vrot.lane.b32.xlu0 %v40, 1
  %v162 = vpop.permute.xlu0 %161
  %164 = vrot.lane.b32.xlu0 %v37, 1
  %v165 = vpop.permute.xlu0 %164
  %166 = vrot.lane.b32.xlu0 %v38, 1
  %v167 = vpop.permute.xlu0 %166
  %168 = vrot.lane.b32.xlu0 %v39, 1
  %v169 = vpop.permute.xlu0 %168
  %vm170 = vcmask 7168
  %v171 = vsel %vm170, %v165, %v167
  %v172 = vsel %vm170, %v167, %v169
  %v173 = vsel %vm170, %v169, %v162
  %v178 = vsel %vm170, %v162, %v165
  %v179 = vlaneseq
  %v180 = vshrl.u32 %v179, 7
  %v181 = vsub.s32 3, %v180
  %v182 = vrot.slane %v29, %v181
  %v183 = vlaneseq
  %v184 = vshrl.u32 %v183, 7
  %v185 = vsub.s32 3, %v184
  %v186 = vrot.slane %v30, %v185
  %v187 = vlaneseq
  %v188 = vshrl.u32 %v187, 7
  %v189 = vsub.s32 3, %v188
  %v190 = vrot.slane %v31, %v189
  %v191 = vlaneseq
  %v192 = vshrl.u32 %v191, 7
  %v193 = vsub.s32 3, %v192
  %v194 = vrot.slane %v32, %v193
  %v195 = vmul.f32 %v178, %v182
  %v196 = vmul.f32 %v171, %v186
  %v197 = vmul.f32 %v172, %v190
  %v198 = vmul.f32 %v173, %v194
  %199 = vrot.lane.b32.xlu0 %v37, 127
  %v200 = vpop.permute.xlu0 %199
  %201 = vrot.lane.b32.xlu0 %v38, 127
  %v202 = vpop.permute.xlu0 %201
  %203 = vrot.lane.b32.xlu0 %v39, 127
  %v204 = vpop.permute.xlu0 %203
  %205 = vrot.lane.b32.xlu0 %v40, 127
  %v206 = vpop.permute.xlu0 %205
  %vm207 = vcmask 1039360
  %v208 = vsel %vm207, %v200, %v202
  %v209 = vsel %vm207, %v202, %v204
  %v210 = vsel %vm207, %v204, %v206
  %v216 = vsel %vm207, %v206, %v200
  %v217 = vlaneseq
  %v218 = vshrl.u32 %v217, 7
  %v219 = vsub.s32 5, %v218
  %v220 = vrot.slane %v29, %v219
  %v221 = vlaneseq
  %v222 = vshrl.u32 %v221, 7
  %v223 = vsub.s32 5, %v222
  %v224 = vrot.slane %v30, %v223
  %v225 = vlaneseq
  %v226 = vshrl.u32 %v225, 7
  %v227 = vsub.s32 5, %v226
  %v228 = vrot.slane %v31, %v227
  %v229 = vlaneseq
  %v230 = vshrl.u32 %v229, 7
  %v231 = vsub.s32 5, %v230
  %v232 = vrot.slane %v32, %v231
  %v233 = vmul.f32 %v208, %v220
  %v234 = vmul.f32 %v209, %v224
  %v235 = vmul.f32 %v210, %v228
  %v236 = vmul.f32 %v216, %v232
  %237 = vrot.lane.b32.xlu0 %v37, 113
  %v238 = vpop.permute.xlu0 %237
  %239 = vrot.lane.b32.xlu0 %v38, 113
  %v240 = vpop.permute.xlu0 %239
  %241 = vrot.lane.b32.xlu0 %v39, 113
  %v242 = vpop.permute.xlu0 %241
  %243 = vrot.lane.b32.xlu0 %v40, 113
  %v244 = vpop.permute.xlu0 %243
  %vm245 = vcmask 924672
  %v246 = vsel %vm245, %v238, %v240
  %v247 = vsel %vm245, %v240, %v242
  %v248 = vsel %vm245, %v242, %v244
  %v254 = vsel %vm245, %v244, %v238
  %v255 = vlaneseq
  %v256 = vshrl.u32 %v255, 7
  %v257 = vsub.s32 6, %v256
  %v258 = vrot.slane %v29, %v257
  %v259 = vlaneseq
  %v260 = vshrl.u32 %v259, 7
  %v261 = vsub.s32 6, %v260
  %v262 = vrot.slane %v30, %v261
  %v263 = vlaneseq
  %v264 = vshrl.u32 %v263, 7
  %v265 = vsub.s32 6, %v264
  %v266 = vrot.slane %v31, %v265
  %v267 = vlaneseq
  %v268 = vshrl.u32 %v267, 7
  %v269 = vsub.s32 6, %v268
  %v270 = vrot.slane %v32, %v269
  %v271 = vmul.f32 %v246, %v258
  %v272 = vmul.f32 %v247, %v262
  %v273 = vmul.f32 %v248, %v266
  %v274 = vmul.f32 %v254, %v270
  %275 = vrot.lane.b32.xlu0 %v37, 112
  %v276 = vpop.permute.xlu0 %275
  %277 = vrot.lane.b32.xlu0 %v38, 112
  %v278 = vpop.permute.xlu0 %277
  %279 = vrot.lane.b32.xlu0 %v39, 112
  %v280 = vpop.permute.xlu0 %279
  %281 = vrot.lane.b32.xlu0 %v40, 112
  %v282 = vpop.permute.xlu0 %281
  %vm283 = vcmask 916480
  %v284 = vsel %vm283, %v276, %v278
  %v285 = vsel %vm283, %v278, %v280
  %v286 = vsel %vm283, %v280, %v282
  %v292 = vsel %vm283, %v282, %v276
  %v293 = vlaneseq
  %v294 = vshrl.u32 %v293, 7
  %v295 = vsub.s32 7, %v294
  %v296 = vrot.slane %v29, %v295
  %v297 = vlaneseq
  %v298 = vshrl.u32 %v297, 7
  %v299 = vsub.s32 7, %v298
  %v300 = vrot.slane %v30, %v299
  %v301 = vlaneseq
  %v302 = vshrl.u32 %v301, 7
  %v303 = vsub.s32 7, %v302
  %v304 = vrot.slane %v31, %v303
  %v305 = vlaneseq
  %v306 = vshrl.u32 %v305, 7
  %v307 = vsub.s32 7, %v306
  %v308 = vrot.slane %v32, %v307
  %v309 = vmul.f32 %v284, %v296
  %v310 = vmul.f32 %v285, %v300
  %v311 = vmul.f32 %v286, %v304
  %v312 = vmul.f32 %v292, %v308
  %313 = vrot.lane.b32.xlu0 %v37, 111
  %v314 = vpop.permute.xlu0 %313
  %315 = vrot.lane.b32.xlu0 %v38, 111
  %v316 = vpop.permute.xlu0 %315
  %317 = vrot.lane.b32.xlu0 %v39, 111
  %v318 = vpop.permute.xlu0 %317
  %319 = vrot.lane.b32.xlu0 %v40, 111
  %v320 = vpop.permute.xlu0 %319
  %vm321 = vcmask 908288
  %v322 = vsel %vm321, %v314, %v316
  %v323 = vsel %vm321, %v316, %v318
  %v324 = vsel %vm321, %v318, %v320
  %v330 = vsel %vm321, %v320, %v314
  %v331 = vlaneseq
  %v332 = vshrl.u32 %v331, 7
  %v333 = vsub.s32 0, %v332
  %v334 = vrot.slane %v33, %v333
  %v335 = vlaneseq
  %v336 = vshrl.u32 %v335, 7
  %v337 = vsub.s32 0, %v336
  %v338 = vrot.slane %v34, %v337
  %v339 = vlaneseq
  %v340 = vshrl.u32 %v339, 7
  %v341 = vsub.s32 0, %v340
  %v342 = vrot.slane %v35, %v341
  %v343 = vlaneseq
  %v344 = vshrl.u32 %v343, 7
  %v345 = vsub.s32 0, %v344
  %v346 = vrot.slane %v36, %v345
  %v347 = vmul.f32 %v322, %v334
  %v348 = vmul.f32 %v323, %v338
  %v349 = vmul.f32 %v324, %v342
  %v350 = vmul.f32 %v330, %v346
  %352 = vset.pattern.permute.xlu0 0
  %353 = vperm.xlu0 %352, %v42
  %v354 = vpop.permute.xlu0 %353
  %vm356 = vcmask 588800
  %v358 = vsel %vm356, %v41, 0
  %360 = vmatprep.subr.mxu0 %v82
  %361 = vmatpush1.msra.mxu0 %v81
  %362 = vmatprep.subr.mxu0 %v120
  %363 = vmatpush1.msra.mxu0 %v119
  %364 = vmatprep.subr.mxu0 %v158
  %365 = vmatpush1.msra.mxu0 %v157
  %366 = vmatprep.subr.mxu0 %v196
  %367 = vmatpush1.msra.mxu0 %v195
  %368 = vmatprep.subr.mxu0 %v38
  %369 = vmatpush1.msra.mxu0 %v37
  %370 = vmatprep.subr.mxu0 %v234
  %371 = vmatpush1.msra.mxu0 %v233
  %372 = vmatprep.subr.mxu0 %v272
  %373 = vmatpush1.msra.mxu0 %v271
  %374 = vmatprep.subr.mxu0 %v310
  %375 = vmatpush1.msra.mxu0 %v309
  %376 = vmatprep.subr.mxu0 %v348
  %377 = vmatpush1.msra.mxu0 %v347
  %378 = vmatprep.subr.mxu0 0.0
  %379 = vmatpush1.msra.mxu0 0.0
  %380 = vmatprep.subr.mxu0 0.0
  %381 = vmatpush1.msra.mxu0 0.0
  %382 = vmatprep.subr.mxu0 0.0
  %383 = vmatpush1.msra.mxu0 0.0
  %384 = vmatprep.subr.mxu0 0.0
  %385 = vmatpush1.msra.mxu0 0.0
  %386 = vmatprep.subr.mxu0 0.0
  %387 = vmatpush1.msra.mxu0 0.0
  %388 = vmatprep.subr.mxu0 0.0
  %389 = vmatpush1.msra.mxu0 0.0
  %390 = vmatprep.subr.mxu0 0.0
  %391 = vmatpush1.msra.mxu0 0.0
  %392 = vmatprep.subr.mxu0 0.0
  %393 = vmatpush1.msra.mxu0 0.0
  %394 = vmatprep.subr.mxu0 0.0
  %395 = vmatpush1.msra.mxu0 0.0
  %396 = vmatprep.subr.mxu0 0.0
  %397 = vmatpush1.msra.mxu0 0.0
  %398 = vmatprep.subr.mxu0 0.0
  %399 = vmatpush1.msra.mxu0 0.0
  %400 = vmatprep.subr.mxu0 0.0
  %401 = vmatpush1.msra.mxu0 0.0
  %402 = vmatprep.subr.mxu0 0.0
  %403 = vmatpush1.msra.mxu0 0.0
  %404 = vmatprep.subr.mxu0 0.0
  %405 = vmatpush1.msra.mxu0 0.0
  %406 = vmatprep.subr.mxu0 0.0
  %407 = vmatpush1.msra.mxu0 0.0
  %408 = vmatprep.subr.mxu0 0.0
  %409 = vmatpush1.msra.mxu0 0.0
  %410 = vmatprep.subr.mxu0 0.0
  %411 = vmatpush1.msra.mxu0 0.0
  %412 = vmatprep.subr.mxu0 0.0
  %413 = vmatpush1.msra.mxu0 0.0
  %414 = vmatprep.subr.mxu0 0.0
  %415 = vmatpush1.msra.mxu0 0.0
  %416 = vmatprep.subr.mxu0 0.0
  %417 = vmatpush1.msra.mxu0 0.0
  %418 = vmatprep.subr.mxu0 0.0
  %419 = vmatpush1.msra.mxu0 0.0
  %420 = vmatprep.subr.mxu0 0.0
  %421 = vmatpush1.msra.mxu0 0.0
  %422 = vmatprep.subr.mxu0 0.0
  %423 = vmatpush1.msra.mxu0 0.0
  %424 = vmatprep.mubr.f32.mxu0 0.0
  %425 = vmatmul.mubr.f32.gmra.mrb[0].mxu0 %v358
  %v426 = vpop.f32.mrb[0].mxu0
  %v427 = vadd.f32 %v354, %v426
  %v428 = vpop.f32.mrb[0].mxu0
  %v429 = vadd.f32 %v354, %v428
  %430 = vdwg.mxu0
  %431 = vmatprep.subr.mxu0 %v84
  %432 = vmatpush1.msra.mxu0 %v83
  %433 = vmatprep.subr.mxu0 %v122
  %434 = vmatpush1.msra.mxu0 %v121
  %435 = vmatprep.subr.mxu0 %v160
  %436 = vmatpush1.msra.mxu0 %v159
  %437 = vmatprep.subr.mxu0 %v198
  %438 = vmatpush1.msra.mxu0 %v197
  %439 = vmatprep.subr.mxu0 %v40
  %440 = vmatpush1.msra.mxu0 %v39
  %441 = vmatprep.subr.mxu0 %v236
  %442 = vmatpush1.msra.mxu0 %v235
  %443 = vmatprep.subr.mxu0 %v274
  %444 = vmatpush1.msra.mxu0 %v273
  %445 = vmatprep.subr.mxu0 %v312
  %446 = vmatpush1.msra.mxu0 %v311
  %447 = vmatprep.subr.mxu0 %v350
  %448 = vmatpush1.msra.mxu0 %v349
  %449 = vmatprep.subr.mxu0 0.0
  %450 = vmatpush1.msra.mxu0 0.0
  %451 = vmatprep.subr.mxu0 0.0
  %452 = vmatpush1.msra.mxu0 0.0
  %453 = vmatprep.subr.mxu0 0.0
  %454 = vmatpush1.msra.mxu0 0.0
  %455 = vmatprep.subr.mxu0 0.0
  %456 = vmatpush1.msra.mxu0 0.0
  %457 = vmatprep.subr.mxu0 0.0
  %458 = vmatpush1.msra.mxu0 0.0
  %459 = vmatprep.subr.mxu0 0.0
  %460 = vmatpush1.msra.mxu0 0.0
  %461 = vmatprep.subr.mxu0 0.0
  %462 = vmatpush1.msra.mxu0 0.0
  %463 = vmatprep.subr.mxu0 0.0
  %464 = vmatpush1.msra.mxu0 0.0
  %465 = vmatprep.subr.mxu0 0.0
  %466 = vmatpush1.msra.mxu0 0.0
  %467 = vmatprep.subr.mxu0 0.0
  %468 = vmatpush1.msra.mxu0 0.0
  %469 = vmatprep.subr.mxu0 0.0
  %470 = vmatpush1.msra.mxu0 0.0
  %471 = vmatprep.subr.mxu0 0.0
  %472 = vmatpush1.msra.mxu0 0.0
  %473 = vmatprep.subr.mxu0 0.0
  %474 = vmatpush1.msra.mxu0 0.0
  %475 = vmatprep.subr.mxu0 0.0
  %476 = vmatpush1.msra.mxu0 0.0
  %477 = vmatprep.subr.mxu0 0.0
  %478 = vmatpush1.msra.mxu0 0.0
  %479 = vmatprep.subr.mxu0 0.0
  %480 = vmatpush1.msra.mxu0 0.0
  %481 = vmatprep.subr.mxu0 0.0
  %482 = vmatpush1.msra.mxu0 0.0
  %483 = vmatprep.subr.mxu0 0.0
  %484 = vmatpush1.msra.mxu0 0.0
  %485 = vmatprep.subr.mxu0 0.0
  %486 = vmatpush1.msra.mxu0 0.0
  %487 = vmatprep.subr.mxu0 0.0
  %488 = vmatpush1.msra.mxu0 0.0
  %489 = vmatprep.subr.mxu0 0.0
  %490 = vmatpush1.msra.mxu0 0.0
  %491 = vmatprep.subr.mxu0 0.0
  %492 = vmatpush1.msra.mxu0 0.0
  %493 = vmatprep.subr.mxu0 0.0
  %494 = vmatpush1.msra.mxu0 0.0
  %495 = vmatprep.mubr.f32.mxu0 0.0
  %496 = vmatmul.mubr.f32.gmra.mrb[0].mxu0 %v358
  %v497 = vpop.f32.mrb[0].mxu0
  %v498 = vadd.f32 %v354, %v497
  %v499 = vpop.f32.mrb[0].mxu0
  %v500 = vadd.f32 %v354, %v499
  %501 = vdwg.mxu0
  %v502 = vmax.f32 %v427, 0.0
  %v503 = vmax.f32 %v429, 0.0
  %v504 = vmax.f32 %v498, 0.0
  %v505 = vmax.f32 %v500, 0.0
  %v506 = vld [vmem:[%s4] sm:$0xff]
  %s507 = scalar_lea.vmem %s5, 8
  %v508 = vld [vmem:[%s507] sm:$0xff]
  %510 = vrot.lane.b32.xlu0 %v505, 17
  %v511 = vpop.permute.xlu0 %510
  %516 = vrot.lane.b32.xlu0 %v502, 17
  %v517 = vpop.permute.xlu0 %516
  %518 = vrot.lane.b32.xlu0 %v503, 17
  %v519 = vpop.permute.xlu0 %518
  %520 = vrot.lane.b32.xlu0 %v504, 17
  %v521 = vpop.permute.xlu0 %520
  %v522 = vsel %vm56, %v517, %v519
  %v523 = vsel %vm56, %v519, %v521
  %v524 = vsel %vm56, %v521, %v511
  %v529 = vsel %vm56, %v511, %v517
  %v530 = vmul.f32 %v529, %v68
  %v531 = vmul.f32 %v522, %v72
  %v532 = vmul.f32 %v523, %v76
  %v533 = vmul.f32 %v524, %v80
  %534 = vrot.lane.b32.xlu0 %v505, 16
  %v535 = vpop.permute.xlu0 %534
  %537 = vrot.lane.b32.xlu0 %v502, 16
  %v538 = vpop.permute.xlu0 %537
  %539 = vrot.lane.b32.xlu0 %v503, 16
  %v540 = vpop.permute.xlu0 %539
  %541 = vrot.lane.b32.xlu0 %v504, 16
  %v542 = vpop.permute.xlu0 %541
  %v543 = vsel %vm94, %v538, %v540
  %v544 = vsel %vm94, %v540, %v542
  %v545 = vsel %vm94, %v542, %v535
  %v550 = vsel %vm94, %v535, %v538
  %v551 = vmul.f32 %v550, %v106
  %v552 = vmul.f32 %v543, %v110
  %v553 = vmul.f32 %v544, %v114
  %v554 = vmul.f32 %v545, %v118
  %555 = vrot.lane.b32.xlu0 %v505, 15
  %v556 = vpop.permute.xlu0 %555
  %558 = vrot.lane.b32.xlu0 %v502, 15
  %v559 = vpop.permute.xlu0 %558
  %560 = vrot.lane.b32.xlu0 %v503, 15
  %v561 = vpop.permute.xlu0 %560
  %562 = vrot.lane.b32.xlu0 %v504, 15
  %v563 = vpop.permute.xlu0 %562
  %v564 = vsel %vm132, %v559, %v561
  %v565 = vsel %vm132, %v561, %v563
  %v566 = vsel %vm132, %v563, %v556
  %v571 = vsel %vm132, %v556, %v559
  %v572 = vmul.f32 %v571, %v144
  %v573 = vmul.f32 %v564, %v148
  %v574 = vmul.f32 %v565, %v152
  %v575 = vmul.f32 %v566, %v156
  %576 = vrot.lane.b32.xlu0 %v505, 1
  %v577 = vpop.permute.xlu0 %576
  %579 = vrot.lane.b32.xlu0 %v502, 1
  %v580 = vpop.permute.xlu0 %579
  %581 = vrot.lane.b32.xlu0 %v503, 1
  %v582 = vpop.permute.xlu0 %581
  %583 = vrot.lane.b32.xlu0 %v504, 1
  %v584 = vpop.permute.xlu0 %583
  %v585 = vsel %vm170, %v580, %v582
  %v586 = vsel %vm170, %v582, %v584
  %v587 = vsel %vm170, %v584, %v577
  %v592 = vsel %vm170, %v577, %v580
  %v593 = vmul.f32 %v592, %v182
  %v594 = vmul.f32 %v585, %v186
  %v595 = vmul.f32 %v586, %v190
  %v596 = vmul.f32 %v587, %v194
  %597 = vrot.lane.b32.xlu0 %v502, 127
  %v598 = vpop.permute.xlu0 %597
  %599 = vrot.lane.b32.xlu0 %v503, 127
  %v600 = vpop.permute.xlu0 %599
  %601 = vrot.lane.b32.xlu0 %v504, 127
  %v602 = vpop.permute.xlu0 %601
  %603 = vrot.lane.b32.xlu0 %v505, 127
  %v604 = vpop.permute.xlu0 %603
  %v605 = vsel %vm207, %v598, %v600
  %v606 = vsel %vm207, %v600, %v602
  %v607 = vsel %vm207, %v602, %v604
  %v613 = vsel %vm207, %v604, %v598
  %v614 = vmul.f32 %v605, %v220
  %v615 = vmul.f32 %v606, %v224
  %v616 = vmul.f32 %v607, %v228
  %v617 = vmul.f32 %v613, %v232
  %618 = vrot.lane.b32.xlu0 %v502, 113
  %v619 = vpop.permute.xlu0 %618
  %620 = vrot.lane.b32.xlu0 %v503, 113
  %v621 = vpop.permute.xlu0 %620
  %622 = vrot.lane.b32.xlu0 %v504, 113
  %v623 = vpop.permute.xlu0 %622
  %624 = vrot.lane.b32.xlu0 %v505, 113
  %v625 = vpop.permute.xlu0 %624
  %v626 = vsel %vm245, %v619, %v621
  %v627 = vsel %vm245, %v621, %v623
  %v628 = vsel %vm245, %v623, %v625
  %v634 = vsel %vm245, %v625, %v619
  %v635 = vmul.f32 %v626, %v258
  %v636 = vmul.f32 %v627, %v262
  %v637 = vmul.f32 %v628, %v266
  %v638 = vmul.f32 %v634, %v270
  %639 = vrot.lane.b32.xlu0 %v502, 112
  %v640 = vpop.permute.xlu0 %639
  %641 = vrot.lane.b32.xlu0 %v503, 112
  %v642 = vpop.permute.xlu0 %641
  %643 = vrot.lane.b32.xlu0 %v504, 112
  %v644 = vpop.permute.xlu0 %643
  %645 = vrot.lane.b32.xlu0 %v505, 112
  %v646 = vpop.permute.xlu0 %645
  %v647 = vsel %vm283, %v640, %v642
  %v648 = vsel %vm283, %v642, %v644
  %v649 = vsel %vm283, %v644, %v646
  %v655 = vsel %vm283, %v646, %v640
  %v656 = vmul.f32 %v647, %v296
  %v657 = vmul.f32 %v648, %v300
  %v658 = vmul.f32 %v649, %v304
  %v659 = vmul.f32 %v655, %v308
  %660 = vrot.lane.b32.xlu0 %v502, 111
  %v661 = vpop.permute.xlu0 %660
  %662 = vrot.lane.b32.xlu0 %v503, 111
  %v663 = vpop.permute.xlu0 %662
  %664 = vrot.lane.b32.xlu0 %v504, 111
  %v665 = vpop.permute.xlu0 %664
  %666 = vrot.lane.b32.xlu0 %v505, 111
  %v667 = vpop.permute.xlu0 %666
  %v668 = vsel %vm321, %v661, %v663
  %v669 = vsel %vm321, %v663, %v665
  %v670 = vsel %vm321, %v665, %v667
  %v676 = vsel %vm321, %v667, %v661
  %v677 = vmul.f32 %v668, %v334
  %v678 = vmul.f32 %v669, %v338
  %v679 = vmul.f32 %v670, %v342
  %v680 = vmul.f32 %v676, %v346
  %682 = vset.pattern.permute.xlu0 0
  %683 = vperm.xlu0 %682, %v508
  %v684 = vpop.permute.xlu0 %683
  %v687 = vsel %vm356, %v506, 0
  %689 = vmatprep.subr.mxu0 %v531
  %690 = vmatpush1.msra.mxu0 %v530
  %691 = vmatprep.subr.mxu0 %v552
  %692 = vmatpush1.msra.mxu0 %v551
  %693 = vmatprep.subr.mxu0 %v573
  %694 = vmatpush1.msra.mxu0 %v572
  %695 = vmatprep.subr.mxu0 %v594
  %696 = vmatpush1.msra.mxu0 %v593
  %697 = vmatprep.subr.mxu0 %v503
  %698 = vmatpush1.msra.mxu0 %v502
  %699 = vmatprep.subr.mxu0 %v615
  %700 = vmatpush1.msra.mxu0 %v614
  %701 = vmatprep.subr.mxu0 %v636
  %702 = vmatpush1.msra.mxu0 %v635
  %703 = vmatprep.subr.mxu0 %v657
  %704 = vmatpush1.msra.mxu0 %v656
  %705 = vmatprep.subr.mxu0 %v678
  %706 = vmatpush1.msra.mxu0 %v677
  %707 = vmatprep.subr.mxu0 0.0
  %708 = vmatpush1.msra.mxu0 0.0
  %709 = vmatprep.subr.mxu0 0.0
  %710 = vmatpush1.msra.mxu0 0.0
  %711 = vmatprep.subr.mxu0 0.0
  %712 = vmatpush1.msra.mxu0 0.0
  %713 = vmatprep.subr.mxu0 0.0
  %714 = vmatpush1.msra.mxu0 0.0
  %715 = vmatprep.subr.mxu0 0.0
  %716 = vmatpush1.msra.mxu0 0.0
  %717 = vmatprep.subr.mxu0 0.0
  %718 = vmatpush1.msra.mxu0 0.0
  %719 = vmatprep.subr.mxu0 0.0
  %720 = vmatpush1.msra.mxu0 0.0
  %721 = vmatprep.subr.mxu0 0.0
  %722 = vmatpush1.msra.mxu0 0.0
  %723 = vmatprep.subr.mxu0 0.0
  %724 = vmatpush1.msra.mxu0 0.0
  %725 = vmatprep.subr.mxu0 0.0
  %726 = vmatpush1.msra.mxu0 0.0
  %727 = vmatprep.subr.mxu0 0.0
  %728 = vmatpush1.msra.mxu0 0.0
  %729 = vmatprep.subr.mxu0 0.0
  %730 = vmatpush1.msra.mxu0 0.0
  %731 = vmatprep.subr.mxu0 0.0
  %732 = vmatpush1.msra.mxu0 0.0
  %733 = vmatprep.subr.mxu0 0.0
  %734 = vmatpush1.msra.mxu0 0.0
  %735 = vmatprep.subr.mxu0 0.0
  %736 = vmatpush1.msra.mxu0 0.0
  %737 = vmatprep.subr.mxu0 0.0
  %738 = vmatpush1.msra.mxu0 0.0
  %739 = vmatprep.subr.mxu0 0.0
  %740 = vmatpush1.msra.mxu0 0.0
  %741 = vmatprep.subr.mxu0 0.0
  %742 = vmatpush1.msra.mxu0 0.0
  %743 = vmatprep.subr.mxu0 0.0
  %744 = vmatpush1.msra.mxu0 0.0
  %745 = vmatprep.subr.mxu0 0.0
  %746 = vmatpush1.msra.mxu0 0.0
  %747 = vmatprep.subr.mxu0 0.0
  %748 = vmatpush1.msra.mxu0 0.0
  %749 = vmatprep.subr.mxu0 0.0
  %750 = vmatpush1.msra.mxu0 0.0
  %751 = vmatprep.subr.mxu0 0.0
  %752 = vmatpush1.msra.mxu0 0.0
  %753 = vmatprep.mubr.f32.mxu0 0.0
  %754 = vmatmul.mubr.f32.gmra.mrb[0].mxu0 %v687
  %v755 = vpop.f32.mrb[0].mxu0
  %v756 = vadd.f32 %v684, %v755
  %v757 = vpop.f32.mrb[0].mxu0
  %v758 = vadd.f32 %v684, %v757
  %759 = vdwg.mxu0
  %760 = vmatprep.subr.mxu0 %v533
  %761 = vmatpush1.msra.mxu0 %v532
  %762 = vmatprep.subr.mxu0 %v554
  %763 = vmatpush1.msra.mxu0 %v553
  %764 = vmatprep.subr.mxu0 %v575
  %765 = vmatpush1.msra.mxu0 %v574
  %766 = vmatprep.subr.mxu0 %v596
  %767 = vmatpush1.msra.mxu0 %v595
  %768 = vmatprep.subr.mxu0 %v505
  %769 = vmatpush1.msra.mxu0 %v504
  %770 = vmatprep.subr.mxu0 %v617
  %771 = vmatpush1.msra.mxu0 %v616
  %772 = vmatprep.subr.mxu0 %v638
  %773 = vmatpush1.msra.mxu0 %v637
  %774 = vmatprep.subr.mxu0 %v659
  %775 = vmatpush1.msra.mxu0 %v658
  %776 = vmatprep.subr.mxu0 %v680
  %777 = vmatpush1.msra.mxu0 %v679
  %778 = vmatprep.subr.mxu0 0.0
  %779 = vmatpush1.msra.mxu0 0.0
  %780 = vmatprep.subr.mxu0 0.0
  %781 = vmatpush1.msra.mxu0 0.0
  %782 = vmatprep.subr.mxu0 0.0
  %783 = vmatpush1.msra.mxu0 0.0
  %784 = vmatprep.subr.mxu0 0.0
  %785 = vmatpush1.msra.mxu0 0.0
  %786 = vmatprep.subr.mxu0 0.0
  %787 = vmatpush1.msra.mxu0 0.0
  %788 = vmatprep.subr.mxu0 0.0
  %789 = vmatpush1.msra.mxu0 0.0
  %790 = vmatprep.subr.mxu0 0.0
  %791 = vmatpush1.msra.mxu0 0.0
  %792 = vmatprep.subr.mxu0 0.0
  %793 = vmatpush1.msra.mxu0 0.0
  %794 = vmatprep.subr.mxu0 0.0
  %795 = vmatpush1.msra.mxu0 0.0
  %796 = vmatprep.subr.mxu0 0.0
  %797 = vmatpush1.msra.mxu0 0.0
  %798 = vmatprep.subr.mxu0 0.0
  %799 = vmatpush1.msra.mxu0 0.0
  %800 = vmatprep.subr.mxu0 0.0
  %801 = vmatpush1.msra.mxu0 0.0
  %802 = vmatprep.subr.mxu0 0.0
  %803 = vmatpush1.msra.mxu0 0.0
  %804 = vmatprep.subr.mxu0 0.0
  %805 = vmatpush1.msra.mxu0 0.0
  %806 = vmatprep.subr.mxu0 0.0
  %807 = vmatpush1.msra.mxu0 0.0
  %808 = vmatprep.subr.mxu0 0.0
  %809 = vmatpush1.msra.mxu0 0.0
  %810 = vmatprep.subr.mxu0 0.0
  %811 = vmatpush1.msra.mxu0 0.0
  %812 = vmatprep.subr.mxu0 0.0
  %813 = vmatpush1.msra.mxu0 0.0
  %814 = vmatprep.subr.mxu0 0.0
  %815 = vmatpush1.msra.mxu0 0.0
  %816 = vmatprep.subr.mxu0 0.0
  %817 = vmatpush1.msra.mxu0 0.0
  %818 = vmatprep.subr.mxu0 0.0
  %819 = vmatpush1.msra.mxu0 0.0
  %820 = vmatprep.subr.mxu0 0.0
  %821 = vmatpush1.msra.mxu0 0.0
  %822 = vmatprep.subr.mxu0 0.0
  %823 = vmatpush1.msra.mxu0 0.0
  %824 = vmatprep.mubr.f32.mxu0 0.0
  %825 = vmatmul.mubr.f32.gmra.mrb[0].mxu0 %v687
  %v826 = vpop.f32.mrb[0].mxu0
  %v827 = vadd.f32 %v684, %v826
  %v828 = vpop.f32.mrb[0].mxu0
  %v829 = vadd.f32 %v684, %v828
  %830 = vdwg.mxu0
  %v831 = vmax.f32 %v756, 0.0
  %v832 = vmax.f32 %v758, 0.0
  %v833 = vmax.f32 %v827, 0.0
  %v834 = vmax.f32 %v829, 0.0
  %v835 = vld [vmem:[%s3] sm:$0xff]
  %v836 = vld [vmem:[%s3 + $0x8] sm:$0xff]
  %s837 = scalar_lea.vmem %s5, 16
  %v838 = vld [vmem:[%s837] sm:$0xff]
  %840 = vrot.lane.b32.xlu0 %v834, 17
  %v841 = vpop.permute.xlu0 %840
  %846 = vrot.lane.b32.xlu0 %v831, 17
  %v847 = vpop.permute.xlu0 %846
  %848 = vrot.lane.b32.xlu0 %v832, 17
  %v849 = vpop.permute.xlu0 %848
  %850 = vrot.lane.b32.xlu0 %v833, 17
  %v851 = vpop.permute.xlu0 %850
  %v852 = vsel %vm56, %v847, %v849
  %v853 = vsel %vm56, %v849, %v851
  %v854 = vsel %vm56, %v851, %v841
  %v859 = vsel %vm56, %v841, %v847
  %v860 = vmul.f32 %v859, %v68
  %v861 = vmul.f32 %v852, %v72
  %v862 = vmul.f32 %v853, %v76
  %v863 = vmul.f32 %v854, %v80
  %864 = vrot.lane.b32.xlu0 %v834, 16
  %v865 = vpop.permute.xlu0 %864
  %867 = vrot.lane.b32.xlu0 %v831, 16
  %v868 = vpop.permute.xlu0 %867
  %869 = vrot.lane.b32.xlu0 %v832, 16
  %v870 = vpop.permute.xlu0 %869
  %871 = vrot.lane.b32.xlu0 %v833, 16
  %v872 = vpop.permute.xlu0 %871
  %v873 = vsel %vm94, %v868, %v870
  %v874 = vsel %vm94, %v870, %v872
  %v875 = vsel %vm94, %v872, %v865
  %v880 = vsel %vm94, %v865, %v868
  %v881 = vmul.f32 %v880, %v106
  %v882 = vmul.f32 %v873, %v110
  %v883 = vmul.f32 %v874, %v114
  %v884 = vmul.f32 %v875, %v118
  %885 = vrot.lane.b32.xlu0 %v834, 15
  %v886 = vpop.permute.xlu0 %885
  %888 = vrot.lane.b32.xlu0 %v831, 15
  %v889 = vpop.permute.xlu0 %888
  %890 = vrot.lane.b32.xlu0 %v832, 15
  %v891 = vpop.permute.xlu0 %890
  %892 = vrot.lane.b32.xlu0 %v833, 15
  %v893 = vpop.permute.xlu0 %892
  %v894 = vsel %vm132, %v889, %v891
  %v895 = vsel %vm132, %v891, %v893
  %v896 = vsel %vm132, %v893, %v886
  %v901 = vsel %vm132, %v886, %v889
  %v902 = vmul.f32 %v901, %v144
  %v903 = vmul.f32 %v894, %v148
  %v904 = vmul.f32 %v895, %v152
  %v905 = vmul.f32 %v896, %v156
  %906 = vrot.lane.b32.xlu0 %v834, 1
  %v907 = vpop.permute.xlu0 %906
  %909 = vrot.lane.b32.xlu0 %v831, 1
  %v910 = vpop.permute.xlu0 %909
  %911 = vrot.lane.b32.xlu0 %v832, 1
  %v912 = vpop.permute.xlu0 %911
  %913 = vrot.lane.b32.xlu0 %v833, 1
  %v914 = vpop.permute.xlu0 %913
  %v915 = vsel %vm170, %v910, %v912
  %v916 = vsel %vm170, %v912, %v914
  %v917 = vsel %vm170, %v914, %v907
  %v922 = vsel %vm170, %v907, %v910
  %v923 = vmul.f32 %v922, %v182
  %v924 = vmul.f32 %v915, %v186
  %v925 = vmul.f32 %v916, %v190
  %v926 = vmul.f32 %v917, %v194
  %927 = vrot.lane.b32.xlu0 %v831, 127
  %v928 = vpop.permute.xlu0 %927
  %929 = vrot.lane.b32.xlu0 %v832, 127
  %v930 = vpop.permute.xlu0 %929
  %931 = vrot.lane.b32.xlu0 %v833, 127
  %v932 = vpop.permute.xlu0 %931
  %933 = vrot.lane.b32.xlu0 %v834, 127
  %v934 = vpop.permute.xlu0 %933
  %v935 = vsel %vm207, %v928, %v930
  %v936 = vsel %vm207, %v930, %v932
  %v937 = vsel %vm207, %v932, %v934
  %v943 = vsel %vm207, %v934, %v928
  %v944 = vmul.f32 %v935, %v220
  %v945 = vmul.f32 %v936, %v224
  %v946 = vmul.f32 %v937, %v228
  %v947 = vmul.f32 %v943, %v232
  %948 = vrot.lane.b32.xlu0 %v831, 113
  %v949 = vpop.permute.xlu0 %948
  %950 = vrot.lane.b32.xlu0 %v832, 113
  %v951 = vpop.permute.xlu0 %950
  %952 = vrot.lane.b32.xlu0 %v833, 113
  %v953 = vpop.permute.xlu0 %952
  %954 = vrot.lane.b32.xlu0 %v834, 113
  %v955 = vpop.permute.xlu0 %954
  %v956 = vsel %vm245, %v949, %v951
  %v957 = vsel %vm245, %v951, %v953
  %v958 = vsel %vm245, %v953, %v955
  %v964 = vsel %vm245, %v955, %v949
  %v965 = vmul.f32 %v956, %v258
  %v966 = vmul.f32 %v957, %v262
  %v967 = vmul.f32 %v958, %v266
  %v968 = vmul.f32 %v964, %v270
  %969 = vrot.lane.b32.xlu0 %v831, 112
  %v970 = vpop.permute.xlu0 %969
  %971 = vrot.lane.b32.xlu0 %v832, 112
  %v972 = vpop.permute.xlu0 %971
  %973 = vrot.lane.b32.xlu0 %v833, 112
  %v974 = vpop.permute.xlu0 %973
  %975 = vrot.lane.b32.xlu0 %v834, 112
  %v976 = vpop.permute.xlu0 %975
  %v977 = vsel %vm283, %v970, %v972
  %v978 = vsel %vm283, %v972, %v974
  %v979 = vsel %vm283, %v974, %v976
  %v985 = vsel %vm283, %v976, %v970
  %v986 = vmul.f32 %v977, %v296
  %v987 = vmul.f32 %v978, %v300
  %v988 = vmul.f32 %v979, %v304
  %v989 = vmul.f32 %v985, %v308
  %990 = vrot.lane.b32.xlu0 %v831, 111
  %v991 = vpop.permute.xlu0 %990
  %992 = vrot.lane.b32.xlu0 %v832, 111
  %v993 = vpop.permute.xlu0 %992
  %994 = vrot.lane.b32.xlu0 %v833, 111
  %v995 = vpop.permute.xlu0 %994
  %996 = vrot.lane.b32.xlu0 %v834, 111
  %v997 = vpop.permute.xlu0 %996
  %v998 = vsel %vm321, %v991, %v993
  %v999 = vsel %vm321, %v993, %v995
  %v1000 = vsel %vm321, %v995, %v997
  %v1006 = vsel %vm321, %v997, %v991
  %v1007 = vmul.f32 %v998, %v334
  %v1008 = vmul.f32 %v999, %v338
  %v1009 = vmul.f32 %v1000, %v342
  %v1010 = vmul.f32 %v1006, %v346
  %1012 = vset.pattern.permute.xlu0 0
  %1013 = vperm.xlu0 %1012, %v838
  %v1014 = vpop.permute.xlu0 %1013
  %v1017 = vsel %vm94, %v836, 0
  %1019 = vmatprep.subr.mxu0 %v861
  %1020 = vmatpush1.msra.mxu0 %v860
  %1021 = vmatprep.subr.mxu0 %v861
  %1022 = vmatpush1.msra.mxu0 %v860
  %1023 = vmatprep.subr.mxu0 %v882
  %1024 = vmatpush1.msra.mxu0 %v881
  %1025 = vmatprep.subr.mxu0 %v882
  %1026 = vmatpush1.msra.mxu0 %v881
  %1027 = vmatprep.subr.mxu0 %v903
  %1028 = vmatpush1.msra.mxu0 %v902
  %1029 = vmatprep.subr.mxu0 %v903
  %1030 = vmatpush1.msra.mxu0 %v902
  %1031 = vmatprep.subr.mxu0 %v924
  %1032 = vmatpush1.msra.mxu0 %v923
  %1033 = vmatprep.subr.mxu0 %v924
  %1034 = vmatpush1.msra.mxu0 %v923
  %1035 = vmatprep.subr.mxu0 %v832
  %1036 = vmatpush1.msra.mxu0 %v831
  %1037 = vmatprep.subr.mxu0 %v832
  %1038 = vmatpush1.msra.mxu0 %v831
  %1039 = vmatprep.subr.mxu0 %v945
  %1040 = vmatpush1.msra.mxu0 %v944
  %1041 = vmatprep.subr.mxu0 %v945
  %1042 = vmatpush1.msra.mxu0 %v944
  %1043 = vmatprep.subr.mxu0 %v966
  %1044 = vmatpush1.msra.mxu0 %v965
  %1045 = vmatprep.subr.mxu0 %v966
  %1046 = vmatpush1.msra.mxu0 %v965
  %1047 = vmatprep.subr.mxu0 %v987
  %1048 = vmatpush1.msra.mxu0 %v986
  %1049 = vmatprep.subr.mxu0 %v987
  %1050 = vmatpush1.msra.mxu0 %v986
  %1051 = vmatprep.subr.mxu0 %v1008
  %1052 = vmatpush1.msra.mxu0 %v1007
  %1053 = vmatprep.subr.mxu0 %v1008
  %1054 = vmatpush1.msra.mxu0 %v1007
  %1055 = vmatprep.subr.mxu0 0.0
  %1056 = vmatpush1.msra.mxu0 0.0
  %1057 = vmatprep.subr.mxu0 0.0
  %1058 = vmatpush1.msra.mxu0 0.0
  %1059 = vmatprep.subr.mxu0 0.0
  %1060 = vmatpush1.msra.mxu0 0.0
  %1061 = vmatprep.subr.mxu0 0.0
  %1062 = vmatpush1.msra.mxu0 0.0
  %1063 = vmatprep.subr.mxu0 0.0
  %1064 = vmatpush1.msra.mxu0 0.0
  %1065 = vmatprep.subr.mxu0 0.0
  %1066 = vmatpush1.msra.mxu0 0.0
  %1067 = vmatprep.subr.mxu0 0.0
  %1068 = vmatpush1.msra.mxu0 0.0
  %1069 = vmatprep.subr.mxu0 0.0
  %1070 = vmatpush1.msra.mxu0 0.0
  %1071 = vmatprep.subr.mxu0 0.0
  %1072 = vmatpush1.msra.mxu0 0.0
  %1073 = vmatprep.subr.mxu0 0.0
  %1074 = vmatpush1.msra.mxu0 0.0
  %1075 = vmatprep.subr.mxu0 0.0
  %1076 = vmatpush1.msra.mxu0 0.0
  %1077 = vmatprep.subr.mxu0 0.0
  %1078 = vmatpush1.msra.mxu0 0.0
  %1079 = vmatprep.subr.mxu0 0.0
  %1080 = vmatpush1.msra.mxu0 0.0
  %1081 = vmatprep.subr.mxu0 0.0
  %1082 = vmatpush1.msra.mxu0 0.0
  %1083 = vmatprep.mubr.f32.mxu0 %v1017
  %1084 = vmatmul.mubr.f32.gmra.mrb[0].mxu0 %v835
  %v1085 = vpop.f32.mrb[0].mxu0
  %v1086 = vadd.f32 %v1014, %v1085
  %v1087 = vpop.f32.mrb[0].mxu0
  %v1088 = vadd.f32 %v1014, %v1087
  %1089 = vdwg.mxu0
  %1090 = vmatprep.subr.mxu0 %v863
  %1091 = vmatpush1.msra.mxu0 %v862
  %1092 = vmatprep.subr.mxu0 %v863
  %1093 = vmatpush1.msra.mxu0 %v862
  %1094 = vmatprep.subr.mxu0 %v884
  %1095 = vmatpush1.msra.mxu0 %v883
  %1096 = vmatprep.subr.mxu0 %v884
  %1097 = vmatpush1.msra.mxu0 %v883
  %1098 = vmatprep.subr.mxu0 %v905
  %1099 = vmatpush1.msra.mxu0 %v904
  %1100 = vmatprep.subr.mxu0 %v905
  %1101 = vmatpush1.msra.mxu0 %v904
  %1102 = vmatprep.subr.mxu0 %v926
  %1103 = vmatpush1.msra.mxu0 %v925
  %1104 = vmatprep.subr.mxu0 %v926
  %1105 = vmatpush1.msra.mxu0 %v925
  %1106 = vmatprep.subr.mxu0 %v834
  %1107 = vmatpush1.msra.mxu0 %v833
  %1108 = vmatprep.subr.mxu0 %v834
  %1109 = vmatpush1.msra.mxu0 %v833
  %1110 = vmatprep.subr.mxu0 %v947
  %1111 = vmatpush1.msra.mxu0 %v946
  %1112 = vmatprep.subr.mxu0 %v947
  %1113 = vmatpush1.msra.mxu0 %v946
  %1114 = vmatprep.subr.mxu0 %v968
  %1115 = vmatpush1.msra.mxu0 %v967
  %1116 = vmatprep.subr.mxu0 %v968
  %1117 = vmatpush1.msra.mxu0 %v967
  %1118 = vmatprep.subr.mxu0 %v989
  %1119 = vmatpush1.msra.mxu0 %v988
  %1120 = vmatprep.subr.mxu0 %v989
  %1121 = vmatpush1.msra.mxu0 %v988
  %1122 = vmatprep.subr.mxu0 %v1010
  %1123 = vmatpush1.msra.mxu0 %v1009
  %1124 = vmatprep.subr.mxu0 %v1010
  %1125 = vmatpush1.msra.mxu0 %v1009
  %1126 = vmatprep.subr.mxu0 0.0
  %1127 = vmatpush1.msra.mxu0 0.0
  %1128 = vmatprep.subr.mxu0 0.0
  %1129 = vmatpush1.msra.mxu0 0.0
  %1130 = vmatprep.subr.mxu0 0.0
  %1131 = vmatpush1.msra.mxu0 0.0
  %1132 = vmatprep.subr.mxu0 0.0
  %1133 = vmatpush1.msra.mxu0 0.0
  %1134 = vmatprep.subr.mxu0 0.0
  %1135 = vmatpush1.msra.mxu0 0.0
  %1136 = vmatprep.subr.mxu0 0.0
  %1137 = vmatpush1.msra.mxu0 0.0
  %1138 = vmatprep.subr.mxu0 0.0
  %1139 = vmatpush1.msra.mxu0 0.0
  %1140 = vmatprep.subr.mxu0 0.0
  %1141 = vmatpush1.msra.mxu0 0.0
  %1142 = vmatprep.subr.mxu0 0.0
  %1143 = vmatpush1.msra.mxu0 0.0
  %1144 = vmatprep.subr.mxu0 0.0
  %1145 = vmatpush1.msra.mxu0 0.0
  %1146 = vmatprep.subr.mxu0 0.0
  %1147 = vmatpush1.msra.mxu0 0.0
  %1148 = vmatprep.subr.mxu0 0.0
  %1149 = vmatpush1.msra.mxu0 0.0
  %1150 = vmatprep.subr.mxu0 0.0
  %1151 = vmatpush1.msra.mxu0 0.0
  %1152 = vmatprep.subr.mxu0 0.0
  %1153 = vmatpush1.msra.mxu0 0.0
  %1154 = vmatprep.mubr.f32.mxu0 %v1017
  %1155 = vmatmul.mubr.f32.gmra.mrb[0].mxu0 %v835
  %v1156 = vpop.f32.mrb[0].mxu0
  %v1157 = vadd.f32 %v1014, %v1156
  %v1158 = vpop.f32.mrb[0].mxu0
  %v1159 = vadd.f32 %v1014, %v1158
  %1160 = vdwg.mxu0
  %s1161 = scalar_lea.vmem %s4, 8
  %v1162 = vld [vmem:[%s1161] sm:$0xff]
  %s1163 = scalar_lea.vmem %s5, 24
  %v1164 = vld [vmem:[%s1163] sm:$0xff]
  %1166 = vrot.lane.b32.xlu0 %v1159, 17
  %v1167 = vpop.permute.xlu0 %1166
  %1172 = vrot.lane.b32.xlu0 %v1086, 17
  %v1173 = vpop.permute.xlu0 %1172
  %1174 = vrot.lane.b32.xlu0 %v1088, 17
  %v1175 = vpop.permute.xlu0 %1174
  %1176 = vrot.lane.b32.xlu0 %v1157, 17
  %v1177 = vpop.permute.xlu0 %1176
  %v1178 = vsel %vm56, %v1173, %v1175
  %v1179 = vsel %vm56, %v1175, %v1177
  %v1180 = vsel %vm56, %v1177, %v1167
  %v1185 = vsel %vm56, %v1167, %v1173
  %v1186 = vmul.f32 %v1185, %v68
  %v1187 = vmul.f32 %v1178, %v72
  %v1188 = vmul.f32 %v1179, %v76
  %v1189 = vmul.f32 %v1180, %v80
  %1190 = vrot.lane.b32.xlu0 %v1159, 16
  %v1191 = vpop.permute.xlu0 %1190
  %1193 = vrot.lane.b32.xlu0 %v1086, 16
  %v1194 = vpop.permute.xlu0 %1193
  %1195 = vrot.lane.b32.xlu0 %v1088, 16
  %v1196 = vpop.permute.xlu0 %1195
  %1197 = vrot.lane.b32.xlu0 %v1157, 16
  %v1198 = vpop.permute.xlu0 %1197
  %v1199 = vsel %vm94, %v1194, %v1196
  %v1200 = vsel %vm94, %v1196, %v1198
  %v1201 = vsel %vm94, %v1198, %v1191
  %v1206 = vsel %vm94, %v1191, %v1194
  %v1207 = vmul.f32 %v1206, %v106
  %v1208 = vmul.f32 %v1199, %v110
  %v1209 = vmul.f32 %v1200, %v114
  %v1210 = vmul.f32 %v1201, %v118
  %1211 = vrot.lane.b32.xlu0 %v1159, 15
  %v1212 = vpop.permute.xlu0 %1211
  %1214 = vrot.lane.b32.xlu0 %v1086, 15
  %v1215 = vpop.permute.xlu0 %1214
  %1216 = vrot.lane.b32.xlu0 %v1088, 15
  %v1217 = vpop.permute.xlu0 %1216
  %1218 = vrot.lane.b32.xlu0 %v1157, 15
  %v1219 = vpop.permute.xlu0 %1218
  %v1220 = vsel %vm132, %v1215, %v1217
  %v1221 = vsel %vm132, %v1217, %v1219
  %v1222 = vsel %vm132, %v1219, %v1212
  %v1227 = vsel %vm132, %v1212, %v1215
  %v1228 = vmul.f32 %v1227, %v144
  %v1229 = vmul.f32 %v1220, %v148
  %v1230 = vmul.f32 %v1221, %v152
  %v1231 = vmul.f32 %v1222, %v156
  %1232 = vrot.lane.b32.xlu0 %v1159, 1
  %v1233 = vpop.permute.xlu0 %1232
  %1235 = vrot.lane.b32.xlu0 %v1086, 1
  %v1236 = vpop.permute.xlu0 %1235
  %1237 = vrot.lane.b32.xlu0 %v1088, 1
  %v1238 = vpop.permute.xlu0 %1237
  %1239 = vrot.lane.b32.xlu0 %v1157, 1
  %v1240 = vpop.permute.xlu0 %1239
  %v1241 = vsel %vm170, %v1236, %v1238
  %v1242 = vsel %vm170, %v1238, %v1240
  %v1243 = vsel %vm170, %v1240, %v1233
  %v1248 = vsel %vm170, %v1233, %v1236
  %v1249 = vmul.f32 %v1248, %v182
  %v1250 = vmul.f32 %v1241, %v186
  %v1251 = vmul.f32 %v1242, %v190
  %v1252 = vmul.f32 %v1243, %v194
  %1253 = vrot.lane.b32.xlu0 %v1086, 127
  %v1254 = vpop.permute.xlu0 %1253
  %1255 = vrot.lane.b32.xlu0 %v1088, 127
  %v1256 = vpop.permute.xlu0 %1255
  %1257 = vrot.lane.b32.xlu0 %v1157, 127
  %v1258 = vpop.permute.xlu0 %1257
  %1259 = vrot.lane.b32.xlu0 %v1159, 127
  %v1260 = vpop.permute.xlu0 %1259
  %v1261 = vsel %vm207, %v1254, %v1256
  %v1262 = vsel %vm207, %v1256, %v1258
  %v1263 = vsel %vm207, %v1258, %v1260
  %v1269 = vsel %vm207, %v1260, %v1254
  %v1270 = vmul.f32 %v1261, %v220
  %v1271 = vmul.f32 %v1262, %v224
  %v1272 = vmul.f32 %v1263, %v228
  %v1273 = vmul.f32 %v1269, %v232
  %1274 = vrot.lane.b32.xlu0 %v1086, 113
  %v1275 = vpop.permute.xlu0 %1274
  %1276 = vrot.lane.b32.xlu0 %v1088, 113
  %v1277 = vpop.permute.xlu0 %1276
  %1278 = vrot.lane.b32.xlu0 %v1157, 113
  %v1279 = vpop.permute.xlu0 %1278
  %1280 = vrot.lane.b32.xlu0 %v1159, 113
  %v1281 = vpop.permute.xlu0 %1280
  %v1282 = vsel %vm245, %v1275, %v1277
  %v1283 = vsel %vm245, %v1277, %v1279
  %v1284 = vsel %vm245, %v1279, %v1281
  %v1290 = vsel %vm245, %v1281, %v1275
  %v1291 = vmul.f32 %v1282, %v258
  %v1292 = vmul.f32 %v1283, %v262
  %v1293 = vmul.f32 %v1284, %v266
  %v1294 = vmul.f32 %v1290, %v270
  %1295 = vrot.lane.b32.xlu0 %v1086, 112
  %v1296 = vpop.permute.xlu0 %1295
  %1297 = vrot.lane.b32.xlu0 %v1088, 112
  %v1298 = vpop.permute.xlu0 %1297
  %1299 = vrot.lane.b32.xlu0 %v1157, 112
  %v1300 = vpop.permute.xlu0 %1299
  %1301 = vrot.lane.b32.xlu0 %v1159, 112
  %v1302 = vpop.permute.xlu0 %1301
  %v1303 = vsel %vm283, %v1296, %v1298
  %v1304 = vsel %vm283, %v1298, %v1300
  %v1305 = vsel %vm283, %v1300, %v1302
  %v1311 = vsel %vm283, %v1302, %v1296
  %v1312 = vmul.f32 %v1303, %v296
  %v1313 = vmul.f32 %v1304, %v300
  %v1314 = vmul.f32 %v1305, %v304
  %v1315 = vmul.f32 %v1311, %v308
  %1316 = vrot.lane.b32.xlu0 %v1086, 111
  %v1317 = vpop.permute.xlu0 %1316
  %1318 = vrot.lane.b32.xlu0 %v1088, 111
  %v1319 = vpop.permute.xlu0 %1318
  %1320 = vrot.lane.b32.xlu0 %v1157, 111
  %v1321 = vpop.permute.xlu0 %1320
  %1322 = vrot.lane.b32.xlu0 %v1159, 111
  %v1323 = vpop.permute.xlu0 %1322
  %v1324 = vsel %vm321, %v1317, %v1319
  %v1325 = vsel %vm321, %v1319, %v1321
  %v1326 = vsel %vm321, %v1321, %v1323
  %v1332 = vsel %vm321, %v1323, %v1317
  %v1333 = vmul.f32 %v1324, %v334
  %v1334 = vmul.f32 %v1325, %v338
  %v1335 = vmul.f32 %v1326, %v342
  %v1336 = vmul.f32 %v1332, %v346
  %1338 = vset.pattern.permute.xlu0 0
  %1339 = vperm.xlu0 %1338, %v1164
  %v1340 = vpop.permute.xlu0 %1339
  %v1343 = vsel %vm356, %v1162, 0
  %1345 = vmatprep.subr.mxu0 %v1187
  %1346 = vmatpush1.msra.mxu0 %v1186
  %1347 = vmatprep.subr.mxu0 %v1208
  %1348 = vmatpush1.msra.mxu0 %v1207
  %1349 = vmatprep.subr.mxu0 %v1229
  %1350 = vmatpush1.msra.mxu0 %v1228
  %1351 = vmatprep.subr.mxu0 %v1250
  %1352 = vmatpush1.msra.mxu0 %v1249
  %1353 = vmatprep.subr.mxu0 %v1088
  %1354 = vmatpush1.msra.mxu0 %v1086
  %1355 = vmatprep.subr.mxu0 %v1271
  %1356 = vmatpush1.msra.mxu0 %v1270
  %1357 = vmatprep.subr.mxu0 %v1292
  %1358 = vmatpush1.msra.mxu0 %v1291
  %1359 = vmatprep.subr.mxu0 %v1313
  %1360 = vmatpush1.msra.mxu0 %v1312
  %1361 = vmatprep.subr.mxu0 %v1334
  %1362 = vmatpush1.msra.mxu0 %v1333
  %1363 = vmatprep.subr.mxu0 0.0
  %1364 = vmatpush1.msra.mxu0 0.0
  %1365 = vmatprep.subr.mxu0 0.0
  %1366 = vmatpush1.msra.mxu0 0.0
  %1367 = vmatprep.subr.mxu0 0.0
  %1368 = vmatpush1.msra.mxu0 0.0
  %1369 = vmatprep.subr.mxu0 0.0
  %1370 = vmatpush1.msra.mxu0 0.0
  %1371 = vmatprep.subr.mxu0 0.0
  %1372 = vmatpush1.msra.mxu0 0.0
  %1373 = vmatprep.subr.mxu0 0.0
  %1374 = vmatpush1.msra.mxu0 0.0
  %1375 = vmatprep.subr.mxu0 0.0
  %1376 = vmatpush1.msra.mxu0 0.0
  %1377 = vmatprep.subr.mxu0 0.0
  %1378 = vmatpush1.msra.mxu0 0.0
  %1379 = vmatprep.subr.mxu0 0.0
  %1380 = vmatpush1.msra.mxu0 0.0
  %1381 = vmatprep.subr.mxu0 0.0
  %1382 = vmatpush1.msra.mxu0 0.0
  %1383 = vmatprep.subr.mxu0 0.0
  %1384 = vmatpush1.msra.mxu0 0.0
  %1385 = vmatprep.subr.mxu0 0.0
  %1386 = vmatpush1.msra.mxu0 0.0
  %1387 = vmatprep.subr.mxu0 0.0
  %1388 = vmatpush1.msra.mxu0 0.0
  %1389 = vmatprep.subr.mxu0 0.0
  %1390 = vmatpush1.msra.mxu0 0.0
  %1391 = vmatprep.subr.mxu0 0.0
  %1392 = vmatpush1.msra.mxu0 0.0
  %1393 = vmatprep.subr.mxu0 0.0
  %1394 = vmatpush1.msra.mxu0 0.0
  %1395 = vmatprep.subr.mxu0 0.0
  %1396 = vmatpush1.msra.mxu0 0.0
  %1397 = vmatprep.subr.mxu0 0.0
  %1398 = vmatpush1.msra.mxu0 0.0
  %1399 = vmatprep.subr.mxu0 0.0
  %1400 = vmatpush1.msra.mxu0 0.0
  %1401 = vmatprep.subr.mxu0 0.0
  %1402 = vmatpush1.msra.mxu0 0.0
  %1403 = vmatprep.subr.mxu0 0.0
  %1404 = vmatpush1.msra.mxu0 0.0
  %1405 = vmatprep.subr.mxu0 0.0
  %1406 = vmatpush1.msra.mxu0 0.0
  %1407 = vmatprep.subr.mxu0 0.0
  %1408 = vmatpush1.msra.mxu0 0.0
  %1409 = vmatprep.mubr.f32.mxu0 0.0
  %1410 = vmatmul.mubr.f32.gmra.mrb[0].mxu0 %v1343
  %v1411 = vpop.f32.mrb[0].mxu0
  %v1412 = vadd.f32 %v1340, %v1411
  %v1413 = vpop.f32.mrb[0].mxu0
  %v1414 = vadd.f32 %v1340, %v1413
  %1415 = vdwg.mxu0
  %1416 = vmatprep.subr.mxu0 %v1189
  %1417 = vmatpush1.msra.mxu0 %v1188
  %1418 = vmatprep.subr.mxu0 %v1210
  %1419 = vmatpush1.msra.mxu0 %v1209
  %1420 = vmatprep.subr.mxu0 %v1231
  %1421 = vmatpush1.msra.mxu0 %v1230
  %1422 = vmatprep.subr.mxu0 %v1252
  %1423 = vmatpush1.msra.mxu0 %v1251
  %1424 = vmatprep.subr.mxu0 %v1159
  %1425 = vmatpush1.msra.mxu0 %v1157
  %1426 = vmatprep.subr.mxu0 %v1273
  %1427 = vmatpush1.msra.mxu0 %v1272
  %1428 = vmatprep.subr.mxu0 %v1294
  %1429 = vmatpush1.msra.mxu0 %v1293
  %1430 = vmatprep.subr.mxu0 %v1315
  %1431 = vmatpush1.msra.mxu0 %v1314
  %1432 = vmatprep.subr.mxu0 %v1336
  %1433 = vmatpush1.msra.mxu0 %v1335
  %1434 = vmatprep.subr.mxu0 0.0
  %1435 = vmatpush1.msra.mxu0 0.0
  %1436 = vmatprep.subr.mxu0 0.0
  %1437 = vmatpush1.msra.mxu0 0.0
  %1438 = vmatprep.subr.mxu0 0.0
  %1439 = vmatpush1.msra.mxu0 0.0
  %1440 = vmatprep.subr.mxu0 0.0
  %1441 = vmatpush1.msra.mxu0 0.0
  %1442 = vmatprep.subr.mxu0 0.0
  %1443 = vmatpush1.msra.mxu0 0.0
  %1444 = vmatprep.subr.mxu0 0.0
  %1445 = vmatpush1.msra.mxu0 0.0
  %1446 = vmatprep.subr.mxu0 0.0
  %1447 = vmatpush1.msra.mxu0 0.0
  %1448 = vmatprep.subr.mxu0 0.0
  %1449 = vmatpush1.msra.mxu0 0.0
  %1450 = vmatprep.subr.mxu0 0.0
  %1451 = vmatpush1.msra.mxu0 0.0
  %1452 = vmatprep.subr.mxu0 0.0
  %1453 = vmatpush1.msra.mxu0 0.0
  %1454 = vmatprep.subr.mxu0 0.0
  %1455 = vmatpush1.msra.mxu0 0.0
  %1456 = vmatprep.subr.mxu0 0.0
  %1457 = vmatpush1.msra.mxu0 0.0
  %1458 = vmatprep.subr.mxu0 0.0
  %1459 = vmatpush1.msra.mxu0 0.0
  %1460 = vmatprep.subr.mxu0 0.0
  %1461 = vmatpush1.msra.mxu0 0.0
  %1462 = vmatprep.subr.mxu0 0.0
  %1463 = vmatpush1.msra.mxu0 0.0
  %1464 = vmatprep.subr.mxu0 0.0
  %1465 = vmatpush1.msra.mxu0 0.0
  %1466 = vmatprep.subr.mxu0 0.0
  %1467 = vmatpush1.msra.mxu0 0.0
  %1468 = vmatprep.subr.mxu0 0.0
  %1469 = vmatpush1.msra.mxu0 0.0
  %1470 = vmatprep.subr.mxu0 0.0
  %1471 = vmatpush1.msra.mxu0 0.0
  %1472 = vmatprep.subr.mxu0 0.0
  %1473 = vmatpush1.msra.mxu0 0.0
  %1474 = vmatprep.subr.mxu0 0.0
  %1475 = vmatpush1.msra.mxu0 0.0
  %1476 = vmatprep.subr.mxu0 0.0
  %1477 = vmatpush1.msra.mxu0 0.0
  %1478 = vmatprep.subr.mxu0 0.0
  %1479 = vmatpush1.msra.mxu0 0.0
  %1480 = vmatprep.mubr.f32.mxu0 0.0
  %1481 = vmatmul.mubr.f32.gmra.mrb[0].mxu0 %v1343
  %v1482 = vpop.f32.mrb[0].mxu0
  %v1483 = vadd.f32 %v1340, %v1482
  %v1484 = vpop.f32.mrb[0].mxu0
  %v1485 = vadd.f32 %v1340, %v1484
  %1486 = vdwg.mxu0
  %1488 = vrot.lane.b32.xlu0 %v1485, 17
  %v1489 = vpop.permute.xlu0 %1488
  %1494 = vrot.lane.b32.xlu0 %v1412, 17
  %v1495 = vpop.permute.xlu0 %1494
  %1496 = vrot.lane.b32.xlu0 %v1414, 17
  %v1497 = vpop.permute.xlu0 %1496
  %1498 = vrot.lane.b32.xlu0 %v1483, 17
  %v1499 = vpop.permute.xlu0 %1498
  %v1500 = vsel %vm56, %v1495, %v1497
  %v1501 = vsel %vm56, %v1497, %v1499
  %v1502 = vsel %vm56, %v1499, %v1489
  %v1507 = vsel %vm56, %v1489, %v1495
  %v1508 = vmul.f32 %v1507, %v68
  %v1509 = vmul.f32 %v1500, %v72
  %v1510 = vmul.f32 %v1501, %v76
  %v1511 = vmul.f32 %v1502, %v80
  %1512 = vrot.lane.b32.xlu0 %v1485, 16
  %v1513 = vpop.permute.xlu0 %1512
  %1515 = vrot.lane.b32.xlu0 %v1412, 16
  %v1516 = vpop.permute.xlu0 %1515
  %1517 = vrot.lane.b32.xlu0 %v1414, 16
  %v1518 = vpop.permute.xlu0 %1517
  %1519 = vrot.lane.b32.xlu0 %v1483, 16
  %v1520 = vpop.permute.xlu0 %1519
  %v1521 = vsel %vm94, %v1516, %v1518
  %v1522 = vsel %vm94, %v1518, %v1520
  %v1523 = vsel %vm94, %v1520, %v1513
  %v1528 = vsel %vm94, %v1513, %v1516
  %v1529 = vmul.f32 %v1528, %v106
  %v1530 = vmul.f32 %v1521, %v110
  %v1531 = vmul.f32 %v1522, %v114
  %v1532 = vmul.f32 %v1523, %v118
  %1533 = vrot.lane.b32.xlu0 %v1485, 15
  %v1534 = vpop.permute.xlu0 %1533
  %1536 = vrot.lane.b32.xlu0 %v1412, 15
  %v1537 = vpop.permute.xlu0 %1536
  %1538 = vrot.lane.b32.xlu0 %v1414, 15
  %v1539 = vpop.permute.xlu0 %1538
  %1540 = vrot.lane.b32.xlu0 %v1483, 15
  %v1541 = vpop.permute.xlu0 %1540
  %v1542 = vsel %vm132, %v1537, %v1539
  %v1543 = vsel %vm132, %v1539, %v1541
  %v1544 = vsel %vm132, %v1541, %v1534
  %v1549 = vsel %vm132, %v1534, %v1537
  %v1550 = vmul.f32 %v1549, %v144
  %v1551 = vmul.f32 %v1542, %v148
  %v1552 = vmul.f32 %v1543, %v152
  %v1553 = vmul.f32 %v1544, %v156
  %1554 = vrot.lane.b32.xlu0 %v1485, 1
  %v1555 = vpop.permute.xlu0 %1554
  %1557 = vrot.lane.b32.xlu0 %v1412, 1
  %v1558 = vpop.permute.xlu0 %1557
  %1559 = vrot.lane.b32.xlu0 %v1414, 1
  %v1560 = vpop.permute.xlu0 %1559
  %1561 = vrot.lane.b32.xlu0 %v1483, 1
  %v1562 = vpop.permute.xlu0 %1561
  %v1563 = vsel %vm170, %v1558, %v1560
  %v1564 = vsel %vm170, %v1560, %v1562
  %v1565 = vsel %vm170, %v1562, %v1555
  %v1570 = vsel %vm170, %v1555, %v1558
  %v1571 = vmul.f32 %v1570, %v182
  %v1572 = vmul.f32 %v1563, %v186
  %v1573 = vmul.f32 %v1564, %v190
  %v1574 = vmul.f32 %v1565, %v194
  %1575 = vrot.lane.b32.xlu0 %v1412, 127
  %v1576 = vpop.permute.xlu0 %1575
  %1577 = vrot.lane.b32.xlu0 %v1414, 127
  %v1578 = vpop.permute.xlu0 %1577
  %1579 = vrot.lane.b32.xlu0 %v1483, 127
  %v1580 = vpop.permute.xlu0 %1579
  %1581 = vrot.lane.b32.xlu0 %v1485, 127
  %v1582 = vpop.permute.xlu0 %1581
  %v1583 = vsel %vm207, %v1576, %v1578
  %v1584 = vsel %vm207, %v1578, %v1580
  %v1585 = vsel %vm207, %v1580, %v1582
  %v1591 = vsel %vm207, %v1582, %v1576
  %v1592 = vmul.f32 %v1583, %v220
  %v1593 = vmul.f32 %v1584, %v224
  %v1594 = vmul.f32 %v1585, %v228
  %v1595 = vmul.f32 %v1591, %v232
  %1596 = vrot.lane.b32.xlu0 %v1412, 113
  %v1597 = vpop.permute.xlu0 %1596
  %1598 = vrot.lane.b32.xlu0 %v1414, 113
  %v1599 = vpop.permute.xlu0 %1598
  %1600 = vrot.lane.b32.xlu0 %v1483, 113
  %v1601 = vpop.permute.xlu0 %1600
  %1602 = vrot.lane.b32.xlu0 %v1485, 113
  %v1603 = vpop.permute.xlu0 %1602
  %v1604 = vsel %vm245, %v1597, %v1599
  %v1605 = vsel %vm245, %v1599, %v1601
  %v1606 = vsel %vm245, %v1601, %v1603
  %v1612 = vsel %vm245, %v1603, %v1597
  %v1613 = vmul.f32 %v1604, %v258
  %v1614 = vmul.f32 %v1605, %v262
  %v1615 = vmul.f32 %v1606, %v266
  %v1616 = vmul.f32 %v1612, %v270
  %1617 = vrot.lane.b32.xlu0 %v1412, 112
  %v1618 = vpop.permute.xlu0 %1617
  %1619 = vrot.lane.b32.xlu0 %v1414, 112
  %v1620 = vpop.permute.xlu0 %1619
  %1621 = vrot.lane.b32.xlu0 %v1483, 112
  %v1622 = vpop.permute.xlu0 %1621
  %1623 = vrot.lane.b32.xlu0 %v1485, 112
  %v1624 = vpop.permute.xlu0 %1623
  %v1625 = vsel %vm283, %v1618, %v1620
  %v1626 = vsel %vm283, %v1620, %v1622
  %v1627 = vsel %vm283, %v1622, %v1624
  %v1633 = vsel %vm283, %v1624, %v1618
  %v1634 = vmul.f32 %v1625, %v296
  %v1635 = vmul.f32 %v1626, %v300
  %v1636 = vmul.f32 %v1627, %v304
  %v1637 = vmul.f32 %v1633, %v308
  %1638 = vrot.lane.b32.xlu0 %v1412, 111
  %v1639 = vpop.permute.xlu0 %1638
  %1640 = vrot.lane.b32.xlu0 %v1414, 111
  %v1641 = vpop.permute.xlu0 %1640
  %1642 = vrot.lane.b32.xlu0 %v1483, 111
  %v1643 = vpop.permute.xlu0 %1642
  %1644 = vrot.lane.b32.xlu0 %v1485, 111
  %v1645 = vpop.permute.xlu0 %1644
  %v1646 = vsel %vm321, %v1639, %v1641
  %v1647 = vsel %vm321, %v1641, %v1643
  %v1648 = vsel %vm321, %v1643, %v1645
  %v1654 = vsel %vm321, %v1645, %v1639
  %v1655 = vmul.f32 %v1646, %v334
  %v1656 = vmul.f32 %v1647, %v338
  %v1657 = vmul.f32 %v1648, %v342
  %v1658 = vmul.f32 %v1654, %v346
  %1659 = vmatprep.subr.mxu0 %v1509
  %1660 = vmatpush1.msra.mxu0 %v1508
  %1661 = vmatprep.subr.mxu0 %v1530
  %1662 = vmatpush1.msra.mxu0 %v1529
  %1663 = vmatprep.subr.mxu0 %v1551
  %1664 = vmatpush1.msra.mxu0 %v1550
  %1665 = vmatprep.subr.mxu0 %v1572
  %1666 = vmatpush1.msra.mxu0 %v1571
  %1667 = vmatprep.subr.mxu0 %v1414
  %1668 = vmatpush1.msra.mxu0 %v1412
  %1669 = vmatprep.subr.mxu0 %v1593
  %1670 = vmatpush1.msra.mxu0 %v1592
  %1671 = vmatprep.subr.mxu0 %v1614
  %1672 = vmatpush1.msra.mxu0 %v1613
  %1673 = vmatprep.subr.mxu0 %v1635
  %1674 = vmatpush1.msra.mxu0 %v1634
  %1675 = vmatprep.subr.mxu0 %v1656
  %1676 = vmatpush1.msra.mxu0 %v1655
  %1677 = vmatprep.subr.mxu0 0.0
  %1678 = vmatpush1.msra.mxu0 0.0
  %1679 = vmatprep.subr.mxu0 0.0
  %1680 = vmatpush1.msra.mxu0 0.0
  %1681 = vmatprep.subr.mxu0 0.0
  %1682 = vmatpush1.msra.mxu0 0.0
  %1683 = vmatprep.subr.mxu0 0.0
  %1684 = vmatpush1.msra.mxu0 0.0
  %1685 = vmatprep.subr.mxu0 0.0
  %1686 = vmatpush1.msra.mxu0 0.0
  %1687 = vmatprep.subr.mxu0 0.0
  %1688 = vmatpush1.msra.mxu0 0.0
  %1689 = vmatprep.subr.mxu0 0.0
  %1690 = vmatpush1.msra.mxu0 0.0
  %1691 = vmatprep.subr.mxu0 0.0
  %1692 = vmatpush1.msra.mxu0 0.0
  %1693 = vmatprep.subr.mxu0 0.0
  %1694 = vmatpush1.msra.mxu0 0.0
  %1695 = vmatprep.subr.mxu0 0.0
  %1696 = vmatpush1.msra.mxu0 0.0
  %1697 = vmatprep.subr.mxu0 0.0
  %1698 = vmatpush1.msra.mxu0 0.0
  %1699 = vmatprep.subr.mxu0 0.0
  %1700 = vmatpush1.msra.mxu0 0.0
  %1701 = vmatprep.subr.mxu0 0.0
  %1702 = vmatpush1.msra.mxu0 0.0
  %1703 = vmatprep.subr.mxu0 0.0
  %1704 = vmatpush1.msra.mxu0 0.0
  %1705 = vmatprep.subr.mxu0 0.0
  %1706 = vmatpush1.msra.mxu0 0.0
  %1707 = vmatprep.subr.mxu0 0.0
  %1708 = vmatpush1.msra.mxu0 0.0
  %1709 = vmatprep.subr.mxu0 0.0
  %1710 = vmatpush1.msra.mxu0 0.0
  %1711 = vmatprep.subr.mxu0 0.0
  %1712 = vmatpush1.msra.mxu0 0.0
  %1713 = vmatprep.subr.mxu0 0.0
  %1714 = vmatpush1.msra.mxu0 0.0
  %1715 = vmatprep.subr.mxu0 0.0
  %1716 = vmatpush1.msra.mxu0 0.0
  %1717 = vmatprep.subr.mxu0 0.0
  %1718 = vmatpush1.msra.mxu0 0.0
  %1719 = vmatprep.subr.mxu0 0.0
  %1720 = vmatpush1.msra.mxu0 0.0
  %1721 = vmatprep.subr.mxu0 0.0
  %1722 = vmatpush1.msra.mxu0 0.0
  %1723 = vmatprep.mubr.f32.mxu0 0.0
  %1724 = vmatmul.mubr.f32.gmra.mrb[0].mxu0 %v1343
  %v1725 = vpop.f32.mrb[0].mxu0
  %v1726 = vadd.f32 %v1340, %v1725
  %v1727 = vpop.f32.mrb[0].mxu0
  %v1728 = vadd.f32 %v1340, %v1727
  %1729 = vdwg.mxu0
  %1730 = vmatprep.subr.mxu0 %v1511
  %1731 = vmatpush1.msra.mxu0 %v1510
  %1732 = vmatprep.subr.mxu0 %v1532
  %1733 = vmatpush1.msra.mxu0 %v1531
  %1734 = vmatprep.subr.mxu0 %v1553
  %1735 = vmatpush1.msra.mxu0 %v1552
  %1736 = vmatprep.subr.mxu0 %v1574
  %1737 = vmatpush1.msra.mxu0 %v1573
  %1738 = vmatprep.subr.mxu0 %v1485
  %1739 = vmatpush1.msra.mxu0 %v1483
  %1740 = vmatprep.subr.mxu0 %v1595
  %1741 = vmatpush1.msra.mxu0 %v1594
  %1742 = vmatprep.subr.mxu0 %v1616
  %1743 = vmatpush1.msra.mxu0 %v1615
  %1744 = vmatprep.subr.mxu0 %v1637
  %1745 = vmatpush1.msra.mxu0 %v1636
  %1746 = vmatprep.subr.mxu0 %v1658
  %1747 = vmatpush1.msra.mxu0 %v1657
  %1748 = vmatprep.subr.mxu0 0.0
  %1749 = vmatpush1.msra.mxu0 0.0
  %1750 = vmatprep.subr.mxu0 0.0
  %1751 = vmatpush1.msra.mxu0 0.0
  %1752 = vmatprep.subr.mxu0 0.0
  %1753 = vmatpush1.msra.mxu0 0.0
  %1754 = vmatprep.subr.mxu0 0.0
  %1755 = vmatpush1.msra.mxu0 0.0
  %1756 = vmatprep.subr.mxu0 0.0
  %1757 = vmatpush1.msra.mxu0 0.0
  %1758 = vmatprep.subr.mxu0 0.0
  %1759 = vmatpush1.msra.mxu0 0.0
  %1760 = vmatprep.subr.mxu0 0.0
  %1761 = vmatpush1.msra.mxu0 0.0
  %1762 = vmatprep.subr.mxu0 0.0
  %1763 = vmatpush1.msra.mxu0 0.0
  %1764 = vmatprep.subr.mxu0 0.0
  %1765 = vmatpush1.msra.mxu0 0.0
  %1766 = vmatprep.subr.mxu0 0.0
  %1767 = vmatpush1.msra.mxu0 0.0
  %1768 = vmatprep.subr.mxu0 0.0
  %1769 = vmatpush1.msra.mxu0 0.0
  %1770 = vmatprep.subr.mxu0 0.0
  %1771 = vmatpush1.msra.mxu0 0.0
  %1772 = vmatprep.subr.mxu0 0.0
  %1773 = vmatpush1.msra.mxu0 0.0
  %1774 = vmatprep.subr.mxu0 0.0
  %1775 = vmatpush1.msra.mxu0 0.0
  %1776 = vmatprep.subr.mxu0 0.0
  %1777 = vmatpush1.msra.mxu0 0.0
  %1778 = vmatprep.subr.mxu0 0.0
  %1779 = vmatpush1.msra.mxu0 0.0
  %1780 = vmatprep.subr.mxu0 0.0
  %1781 = vmatpush1.msra.mxu0 0.0
  %1782 = vmatprep.subr.mxu0 0.0
  %1783 = vmatpush1.msra.mxu0 0.0
  %1784 = vmatprep.subr.mxu0 0.0
  %1785 = vmatpush1.msra.mxu0 0.0
  %1786 = vmatprep.subr.mxu0 0.0
  %1787 = vmatpush1.msra.mxu0 0.0
  %1788 = vmatprep.subr.mxu0 0.0
  %1789 = vmatpush1.msra.mxu0 0.0
  %1790 = vmatprep.subr.mxu0 0.0
  %1791 = vmatpush1.msra.mxu0 0.0
  %1792 = vmatprep.subr.mxu0 0.0
  %1793 = vmatpush1.msra.mxu0 0.0
  %1794 = vmatprep.mubr.f32.mxu0 0.0
  %1795 = vmatmul.mubr.f32.gmra.mrb[0].mxu0 %v1343
  %v1796 = vpop.f32.mrb[0].mxu0
  %v1797 = vadd.f32 %v1340, %v1796
  %v1798 = vpop.f32.mrb[0].mxu0
  %v1799 = vadd.f32 %v1340, %v1798
  %1800 = vdwg.mxu0
  %s1801 = scalar_lea.vmem %s4, 16
  %v1802 = vld [vmem:[%s1801] sm:$0xff]
  %s1803 = scalar_lea.vmem %s5, 32
  %v1804 = vld [vmem:[%s1803] sm:$0xff]
  %1806 = vrot.lane.b32.xlu0 %v1799, 17
  %v1807 = vpop.permute.xlu0 %1806
  %1812 = vrot.lane.b32.xlu0 %v1726, 17
  %v1813 = vpop.permute.xlu0 %1812
  %1814 = vrot.lane.b32.xlu0 %v1728, 17
  %v1815 = vpop.permute.xlu0 %1814
  %1816 = vrot.lane.b32.xlu0 %v1797, 17
  %v1817 = vpop.permute.xlu0 %1816
  %v1818 = vsel %vm56, %v1813, %v1815
  %v1819 = vsel %vm56, %v1815, %v1817
  %v1820 = vsel %vm56, %v1817, %v1807
  %v1825 = vsel %vm56, %v1807, %v1813
  %v1826 = vmul.f32 %v1825, %v68
  %v1827 = vmul.f32 %v1818, %v72
  %v1828 = vmul.f32 %v1819, %v76
  %v1829 = vmul.f32 %v1820, %v80
  %1830 = vrot.lane.b32.xlu0 %v1799, 16
  %v1831 = vpop.permute.xlu0 %1830
  %1833 = vrot.lane.b32.xlu0 %v1726, 16
  %v1834 = vpop.permute.xlu0 %1833
  %1835 = vrot.lane.b32.xlu0 %v1728, 16
  %v1836 = vpop.permute.xlu0 %1835
  %1837 = vrot.lane.b32.xlu0 %v1797, 16
  %v1838 = vpop.permute.xlu0 %1837
  %v1839 = vsel %vm94, %v1834, %v1836
  %v1840 = vsel %vm94, %v1836, %v1838
  %v1841 = vsel %vm94, %v1838, %v1831
  %v1846 = vsel %vm94, %v1831, %v1834
  %v1847 = vmul.f32 %v1846, %v106
  %v1848 = vmul.f32 %v1839, %v110
  %v1849 = vmul.f32 %v1840, %v114
  %v1850 = vmul.f32 %v1841, %v118
  %1851 = vrot.lane.b32.xlu0 %v1799, 15
  %v1852 = vpop.permute.xlu0 %1851
  %1854 = vrot.lane.b32.xlu0 %v1726, 15
  %v1855 = vpop.permute.xlu0 %1854
  %1856 = vrot.lane.b32.xlu0 %v1728, 15
  %v1857 = vpop.permute.xlu0 %1856
  %1858 = vrot.lane.b32.xlu0 %v1797, 15
  %v1859 = vpop.permute.xlu0 %1858
  %v1860 = vsel %vm132, %v1855, %v1857
  %v1861 = vsel %vm132, %v1857, %v1859
  %v1862 = vsel %vm132, %v1859, %v1852
  %v1867 = vsel %vm132, %v1852, %v1855
  %v1868 = vmul.f32 %v1867, %v144
  %v1869 = vmul.f32 %v1860, %v148
  %v1870 = vmul.f32 %v1861, %v152
  %v1871 = vmul.f32 %v1862, %v156
  %1872 = vrot.lane.b32.xlu0 %v1799, 1
  %v1873 = vpop.permute.xlu0 %1872
  %1875 = vrot.lane.b32.xlu0 %v1726, 1
  %v1876 = vpop.permute.xlu0 %1875
  %1877 = vrot.lane.b32.xlu0 %v1728, 1
  %v1878 = vpop.permute.xlu0 %1877
  %1879 = vrot.lane.b32.xlu0 %v1797, 1
  %v1880 = vpop.permute.xlu0 %1879
  %v1881 = vsel %vm170, %v1876, %v1878
  %v1882 = vsel %vm170, %v1878, %v1880
  %v1883 = vsel %vm170, %v1880, %v1873
  %v1888 = vsel %vm170, %v1873, %v1876
  %v1889 = vmul.f32 %v1888, %v182
  %v1890 = vmul.f32 %v1881, %v186
  %v1891 = vmul.f32 %v1882, %v190
  %v1892 = vmul.f32 %v1883, %v194
  %1893 = vrot.lane.b32.xlu0 %v1726, 127
  %v1894 = vpop.permute.xlu0 %1893
  %1895 = vrot.lane.b32.xlu0 %v1728, 127
  %v1896 = vpop.permute.xlu0 %1895
  %1897 = vrot.lane.b32.xlu0 %v1797, 127
  %v1898 = vpop.permute.xlu0 %1897
  %1899 = vrot.lane.b32.xlu0 %v1799, 127
  %v1900 = vpop.permute.xlu0 %1899
  %v1901 = vsel %vm207, %v1894, %v1896
  %v1902 = vsel %vm207, %v1896, %v1898
  %v1903 = vsel %vm207, %v1898, %v1900
  %v1909 = vsel %vm207, %v1900, %v1894
  %v1910 = vmul.f32 %v1901, %v220
  %v1911 = vmul.f32 %v1902, %v224
  %v1912 = vmul.f32 %v1903, %v228
  %v1913 = vmul.f32 %v1909, %v232
  %1914 = vrot.lane.b32.xlu0 %v1726, 113
  %v1915 = vpop.permute.xlu0 %1914
  %1916 = vrot.lane.b32.xlu0 %v1728, 113
  %v1917 = vpop.permute.xlu0 %1916
  %1918 = vrot.lane.b32.xlu0 %v1797, 113
  %v1919 = vpop.permute.xlu0 %1918
  %1920 = vrot.lane.b32.xlu0 %v1799, 113
  %v1921 = vpop.permute.xlu0 %1920
  %v1922 = vsel %vm245, %v1915, %v1917
  %v1923 = vsel %vm245, %v1917, %v1919
  %v1924 = vsel %vm245, %v1919, %v1921
  %v1930 = vsel %vm245, %v1921, %v1915
  %v1931 = vmul.f32 %v1922, %v258
  %v1932 = vmul.f32 %v1923, %v262
  %v1933 = vmul.f32 %v1924, %v266
  %v1934 = vmul.f32 %v1930, %v270
  %1935 = vrot.lane.b32.xlu0 %v1726, 112
  %v1936 = vpop.permute.xlu0 %1935
  %1937 = vrot.lane.b32.xlu0 %v1728, 112
  %v1938 = vpop.permute.xlu0 %1937
  %1939 = vrot.lane.b32.xlu0 %v1797, 112
  %v1940 = vpop.permute.xlu0 %1939
  %1941 = vrot.lane.b32.xlu0 %v1799, 112
  %v1942 = vpop.permute.xlu0 %1941
  %v1943 = vsel %vm283, %v1936, %v1938
  %v1944 = vsel %vm283, %v1938, %v1940
  %v1945 = vsel %vm283, %v1940, %v1942
  %v1951 = vsel %vm283, %v1942, %v1936
  %v1952 = vmul.f32 %v1943, %v296
  %v1953 = vmul.f32 %v1944, %v300
  %v1954 = vmul.f32 %v1945, %v304
  %v1955 = vmul.f32 %v1951, %v308
  %1956 = vrot.lane.b32.xlu0 %v1726, 111
  %v1957 = vpop.permute.xlu0 %1956
  %1958 = vrot.lane.b32.xlu0 %v1728, 111
  %v1959 = vpop.permute.xlu0 %1958
  %1960 = vrot.lane.b32.xlu0 %v1797, 111
  %v1961 = vpop.permute.xlu0 %1960
  %1962 = vrot.lane.b32.xlu0 %v1799, 111
  %v1963 = vpop.permute.xlu0 %1962
  %v1964 = vsel %vm321, %v1957, %v1959
  %v1965 = vsel %vm321, %v1959, %v1961
  %v1966 = vsel %vm321, %v1961, %v1963
  %v1972 = vsel %vm321, %v1963, %v1957
  %v1973 = vmul.f32 %v1964, %v334
  %v1974 = vmul.f32 %v1965, %v338
  %v1975 = vmul.f32 %v1966, %v342
  %v1976 = vmul.f32 %v1972, %v346
  %1978 = vset.pattern.permute.xlu0 0
  %1979 = vperm.xlu0 %1978, %v1804
  %v1980 = vpop.permute.xlu0 %1979
  %v1983 = vsel %vm356, %v1802, 0
  %1985 = vmatprep.subr.mxu0 %v1827
  %1986 = vmatpush1.msra.mxu0 %v1826
  %1987 = vmatprep.subr.mxu0 %v1848
  %1988 = vmatpush1.msra.mxu0 %v1847
  %1989 = vmatprep.subr.mxu0 %v1869
  %1990 = vmatpush1.msra.mxu0 %v1868
  %1991 = vmatprep.subr.mxu0 %v1890
  %1992 = vmatpush1.msra.mxu0 %v1889
  %1993 = vmatprep.subr.mxu0 %v1728
  %1994 = vmatpush1.msra.mxu0 %v1726
  %1995 = vmatprep.subr.mxu0 %v1911
  %1996 = vmatpush1.msra.mxu0 %v1910
  %1997 = vmatprep.subr.mxu0 %v1932
  %1998 = vmatpush1.msra.mxu0 %v1931
  %1999 = vmatprep.subr.mxu0 %v1953
  %2000 = vmatpush1.msra.mxu0 %v1952
  %2001 = vmatprep.subr.mxu0 %v1974
  %2002 = vmatpush1.msra.mxu0 %v1973
  %2003 = vmatprep.subr.mxu0 0.0
  %2004 = vmatpush1.msra.mxu0 0.0
  %2005 = vmatprep.subr.mxu0 0.0
  %2006 = vmatpush1.msra.mxu0 0.0
  %2007 = vmatprep.subr.mxu0 0.0
  %2008 = vmatpush1.msra.mxu0 0.0
  %2009 = vmatprep.subr.mxu0 0.0
  %2010 = vmatpush1.msra.mxu0 0.0
  %2011 = vmatprep.subr.mxu0 0.0
  %2012 = vmatpush1.msra.mxu0 0.0
  %2013 = vmatprep.subr.mxu0 0.0
  %2014 = vmatpush1.msra.mxu0 0.0
  %2015 = vmatprep.subr.mxu0 0.0
  %2016 = vmatpush1.msra.mxu0 0.0
  %2017 = vmatprep.subr.mxu0 0.0
  %2018 = vmatpush1.msra.mxu0 0.0
  %2019 = vmatprep.subr.mxu0 0.0
  %2020 = vmatpush1.msra.mxu0 0.0
  %2021 = vmatprep.subr.mxu0 0.0
  %2022 = vmatpush1.msra.mxu0 0.0
  %2023 = vmatprep.subr.mxu0 0.0
  %2024 = vmatpush1.msra.mxu0 0.0
  %2025 = vmatprep.subr.mxu0 0.0
  %2026 = vmatpush1.msra.mxu0 0.0
  %2027 = vmatprep.subr.mxu0 0.0
  %2028 = vmatpush1.msra.mxu0 0.0
  %2029 = vmatprep.subr.mxu0 0.0
  %2030 = vmatpush1.msra.mxu0 0.0
  %2031 = vmatprep.subr.mxu0 0.0
  %2032 = vmatpush1.msra.mxu0 0.0
  %2033 = vmatprep.subr.mxu0 0.0
  %2034 = vmatpush1.msra.mxu0 0.0
  %2035 = vmatprep.subr.mxu0 0.0
  %2036 = vmatpush1.msra.mxu0 0.0
  %2037 = vmatprep.subr.mxu0 0.0
  %2038 = vmatpush1.msra.mxu0 0.0
  %2039 = vmatprep.subr.mxu0 0.0
  %2040 = vmatpush1.msra.mxu0 0.0
  %2041 = vmatprep.subr.mxu0 0.0
  %2042 = vmatpush1.msra.mxu0 0.0
  %2043 = vmatprep.subr.mxu0 0.0
  %2044 = vmatpush1.msra.mxu0 0.0
  %2045 = vmatprep.subr.mxu0 0.0
  %2046 = vmatpush1.msra.mxu0 0.0
  %2047 = vmatprep.subr.mxu0 0.0
  %2048 = vmatpush1.msra.mxu0 0.0
  %2049 = vmatprep.mubr.f32.mxu0 0.0
  %2050 = vmatmul.mubr.f32.gmra.mrb[0].mxu0 %v1983
  %v2051 = vpop.f32.mrb[0].mxu0
  %v2052 = vadd.f32 %v1980, %v2051
  %v2053 = vpop.f32.mrb[0].mxu0
  %v2054 = vadd.f32 %v1980, %v2053
  %2055 = vdwg.mxu0
  %2056 = vmatprep.subr.mxu0 %v1829
  %2057 = vmatpush1.msra.mxu0 %v1828
  %2058 = vmatprep.subr.mxu0 %v1850
  %2059 = vmatpush1.msra.mxu0 %v1849
  %2060 = vmatprep.subr.mxu0 %v1871
  %2061 = vmatpush1.msra.mxu0 %v1870
  %2062 = vmatprep.subr.mxu0 %v1892
  %2063 = vmatpush1.msra.mxu0 %v1891
  %2064 = vmatprep.subr.mxu0 %v1799
  %2065 = vmatpush1.msra.mxu0 %v1797
  %2066 = vmatprep.subr.mxu0 %v1913
  %2067 = vmatpush1.msra.mxu0 %v1912
  %2068 = vmatprep.subr.mxu0 %v1934
  %2069 = vmatpush1.msra.mxu0 %v1933
  %2070 = vmatprep.subr.mxu0 %v1955
  %2071 = vmatpush1.msra.mxu0 %v1954
  %2072 = vmatprep.subr.mxu0 %v1976
  %2073 = vmatpush1.msra.mxu0 %v1975
  %2074 = vmatprep.subr.mxu0 0.0
  %2075 = vmatpush1.msra.mxu0 0.0
  %2076 = vmatprep.subr.mxu0 0.0
  %2077 = vmatpush1.msra.mxu0 0.0
  %2078 = vmatprep.subr.mxu0 0.0
  %2079 = vmatpush1.msra.mxu0 0.0
  %2080 = vmatprep.subr.mxu0 0.0
  %2081 = vmatpush1.msra.mxu0 0.0
  %2082 = vmatprep.subr.mxu0 0.0
  %2083 = vmatpush1.msra.mxu0 0.0
  %2084 = vmatprep.subr.mxu0 0.0
  %2085 = vmatpush1.msra.mxu0 0.0
  %2086 = vmatprep.subr.mxu0 0.0
  %2087 = vmatpush1.msra.mxu0 0.0
  %2088 = vmatprep.subr.mxu0 0.0
  %2089 = vmatpush1.msra.mxu0 0.0
  %2090 = vmatprep.subr.mxu0 0.0
  %2091 = vmatpush1.msra.mxu0 0.0
  %2092 = vmatprep.subr.mxu0 0.0
  %2093 = vmatpush1.msra.mxu0 0.0
  %2094 = vmatprep.subr.mxu0 0.0
  %2095 = vmatpush1.msra.mxu0 0.0
  %2096 = vmatprep.subr.mxu0 0.0
  %2097 = vmatpush1.msra.mxu0 0.0
  %2098 = vmatprep.subr.mxu0 0.0
  %2099 = vmatpush1.msra.mxu0 0.0
  %2100 = vmatprep.subr.mxu0 0.0
  %2101 = vmatpush1.msra.mxu0 0.0
  %2102 = vmatprep.subr.mxu0 0.0
  %2103 = vmatpush1.msra.mxu0 0.0
  %2104 = vmatprep.subr.mxu0 0.0
  %2105 = vmatpush1.msra.mxu0 0.0
  %2106 = vmatprep.subr.mxu0 0.0
  %2107 = vmatpush1.msra.mxu0 0.0
  %2108 = vmatprep.subr.mxu0 0.0
  %2109 = vmatpush1.msra.mxu0 0.0
  %2110 = vmatprep.subr.mxu0 0.0
  %2111 = vmatpush1.msra.mxu0 0.0
  %2112 = vmatprep.subr.mxu0 0.0
  %2113 = vmatpush1.msra.mxu0 0.0
  %2114 = vmatprep.subr.mxu0 0.0
  %2115 = vmatpush1.msra.mxu0 0.0
  %2116 = vmatprep.subr.mxu0 0.0
  %2117 = vmatpush1.msra.mxu0 0.0
  %2118 = vmatprep.subr.mxu0 0.0
  %2119 = vmatpush1.msra.mxu0 0.0
  %2120 = vmatprep.mubr.f32.mxu0 0.0
  %2121 = vmatmul.mubr.f32.gmra.mrb[0].mxu0 %v1983
  %v2122 = vpop.f32.mrb[0].mxu0
  %v2123 = vadd.f32 %v1980, %v2122
  %v2124 = vpop.f32.mrb[0].mxu0
  %v2125 = vadd.f32 %v1980, %v2124
  %2126 = vdwg.mxu0
  %s2127 = scalar_lea.vmem %s4, 24
  %v2128 = vld [vmem:[%s2127] sm:$0xff]
  %s2129 = scalar_lea.vmem %s5, 40
  %v2130 = vld [vmem:[%s2129] sm:$0xff]
  %2132 = vrot.lane.b32.xlu0 %v2125, 17
  %v2133 = vpop.permute.xlu0 %2132
  %2138 = vrot.lane.b32.xlu0 %v2052, 17
  %v2139 = vpop.permute.xlu0 %2138
  %2140 = vrot.lane.b32.xlu0 %v2054, 17
  %v2141 = vpop.permute.xlu0 %2140
  %2142 = vrot.lane.b32.xlu0 %v2123, 17
  %v2143 = vpop.permute.xlu0 %2142
  %v2144 = vsel %vm56, %v2139, %v2141
  %v2145 = vsel %vm56, %v2141, %v2143
  %v2146 = vsel %vm56, %v2143, %v2133
  %v2151 = vsel %vm56, %v2133, %v2139
  %v2152 = vmul.f32 %v2151, %v68
  %v2153 = vmul.f32 %v2144, %v72
  %v2154 = vmul.f32 %v2145, %v76
  %v2155 = vmul.f32 %v2146, %v80
  %2156 = vrot.lane.b32.xlu0 %v2125, 16
  %v2157 = vpop.permute.xlu0 %2156
  %2159 = vrot.lane.b32.xlu0 %v2052, 16
  %v2160 = vpop.permute.xlu0 %2159
  %2161 = vrot.lane.b32.xlu0 %v2054, 16
  %v2162 = vpop.permute.xlu0 %2161
  %2163 = vrot.lane.b32.xlu0 %v2123, 16
  %v2164 = vpop.permute.xlu0 %2163
  %v2165 = vsel %vm94, %v2160, %v2162
  %v2166 = vsel %vm94, %v2162, %v2164
  %v2167 = vsel %vm94, %v2164, %v2157
  %v2172 = vsel %vm94, %v2157, %v2160
  %v2173 = vmul.f32 %v2172, %v106
  %v2174 = vmul.f32 %v2165, %v110
  %v2175 = vmul.f32 %v2166, %v114
  %v2176 = vmul.f32 %v2167, %v118
  %2177 = vrot.lane.b32.xlu0 %v2125, 15
  %v2178 = vpop.permute.xlu0 %2177
  %2180 = vrot.lane.b32.xlu0 %v2052, 15
  %v2181 = vpop.permute.xlu0 %2180
  %2182 = vrot.lane.b32.xlu0 %v2054, 15
  %v2183 = vpop.permute.xlu0 %2182
  %2184 = vrot.lane.b32.xlu0 %v2123, 15
  %v2185 = vpop.permute.xlu0 %2184
  %v2186 = vsel %vm132, %v2181, %v2183
  %v2187 = vsel %vm132, %v2183, %v2185
  %v2188 = vsel %vm132, %v2185, %v2178
  %v2193 = vsel %vm132, %v2178, %v2181
  %v2194 = vmul.f32 %v2193, %v144
  %v2195 = vmul.f32 %v2186, %v148
  %v2196 = vmul.f32 %v2187, %v152
  %v2197 = vmul.f32 %v2188, %v156
  %2198 = vrot.lane.b32.xlu0 %v2125, 1
  %v2199 = vpop.permute.xlu0 %2198
  %2201 = vrot.lane.b32.xlu0 %v2052, 1
  %v2202 = vpop.permute.xlu0 %2201
  %2203 = vrot.lane.b32.xlu0 %v2054, 1
  %v2204 = vpop.permute.xlu0 %2203
  %2205 = vrot.lane.b32.xlu0 %v2123, 1
  %v2206 = vpop.permute.xlu0 %2205
  %v2207 = vsel %vm170, %v2202, %v2204
  %v2208 = vsel %vm170, %v2204, %v2206
  %v2209 = vsel %vm170, %v2206, %v2199
  %v2214 = vsel %vm170, %v2199, %v2202
  %v2215 = vmul.f32 %v2214, %v182
  %v2216 = vmul.f32 %v2207, %v186
  %v2217 = vmul.f32 %v2208, %v190
  %v2218 = vmul.f32 %v2209, %v194
  %2219 = vrot.lane.b32.xlu0 %v2052, 127
  %v2220 = vpop.permute.xlu0 %2219
  %2221 = vrot.lane.b32.xlu0 %v2054, 127
  %v2222 = vpop.permute.xlu0 %2221
  %2223 = vrot.lane.b32.xlu0 %v2123, 127
  %v2224 = vpop.permute.xlu0 %2223
  %2225 = vrot.lane.b32.xlu0 %v2125, 127
  %v2226 = vpop.permute.xlu0 %2225
  %v2227 = vsel %vm207, %v2220, %v2222
  %v2228 = vsel %vm207, %v2222, %v2224
  %v2229 = vsel %vm207, %v2224, %v2226
  %v2235 = vsel %vm207, %v2226, %v2220
  %v2236 = vmul.f32 %v2227, %v220
  %v2237 = vmul.f32 %v2228, %v224
  %v2238 = vmul.f32 %v2229, %v228
  %v2239 = vmul.f32 %v2235, %v232
  %2240 = vrot.lane.b32.xlu0 %v2052, 113
  %v2241 = vpop.permute.xlu0 %2240
  %2242 = vrot.lane.b32.xlu0 %v2054, 113
  %v2243 = vpop.permute.xlu0 %2242
  %2244 = vrot.lane.b32.xlu0 %v2123, 113
  %v2245 = vpop.permute.xlu0 %2244
  %2246 = vrot.lane.b32.xlu0 %v2125, 113
  %v2247 = vpop.permute.xlu0 %2246
  %v2248 = vsel %vm245, %v2241, %v2243
  %v2249 = vsel %vm245, %v2243, %v2245
  %v2250 = vsel %vm245, %v2245, %v2247
  %v2256 = vsel %vm245, %v2247, %v2241
  %v2257 = vmul.f32 %v2248, %v258
  %v2258 = vmul.f32 %v2249, %v262
  %v2259 = vmul.f32 %v2250, %v266
  %v2260 = vmul.f32 %v2256, %v270
  %2261 = vrot.lane.b32.xlu0 %v2052, 112
  %v2262 = vpop.permute.xlu0 %2261
  %2263 = vrot.lane.b32.xlu0 %v2054, 112
  %v2264 = vpop.permute.xlu0 %2263
  %2265 = vrot.lane.b32.xlu0 %v2123, 112
  %v2266 = vpop.permute.xlu0 %2265
  %2267 = vrot.lane.b32.xlu0 %v2125, 112
  %v2268 = vpop.permute.xlu0 %2267
  %v2269 = vsel %vm283, %v2262, %v2264
  %v2270 = vsel %vm283, %v2264, %v2266
  %v2271 = vsel %vm283, %v2266, %v2268
  %v2277 = vsel %vm283, %v2268, %v2262
  %v2278 = vmul.f32 %v2269, %v296
  %v2279 = vmul.f32 %v2270, %v300
  %v2280 = vmul.f32 %v2271, %v304
  %v2281 = vmul.f32 %v2277, %v308
  %2282 = vrot.lane.b32.xlu0 %v2052, 111
  %v2283 = vpop.permute.xlu0 %2282
  %2284 = vrot.lane.b32.xlu0 %v2054, 111
  %v2285 = vpop.permute.xlu0 %2284
  %2286 = vrot.lane.b32.xlu0 %v2123, 111
  %v2287 = vpop.permute.xlu0 %2286
  %2288 = vrot.lane.b32.xlu0 %v2125, 111
  %v2289 = vpop.permute.xlu0 %2288
  %v2290 = vsel %vm321, %v2283, %v2285
  %v2291 = vsel %vm321, %v2285, %v2287
  %v2292 = vsel %vm321, %v2287, %v2289
  %v2298 = vsel %vm321, %v2289, %v2283
  %v2299 = vmul.f32 %v2290, %v334
  %v2300 = vmul.f32 %v2291, %v338
  %v2301 = vmul.f32 %v2292, %v342
  %v2302 = vmul.f32 %v2298, %v346
  %2304 = vset.pattern.permute.xlu0 0
  %2305 = vperm.xlu0 %2304, %v2130
  %v2306 = vpop.permute.xlu0 %2305
  %v2309 = vsel %vm356, %v2128, 0
  %2311 = vmatprep.subr.mxu0 %v2153
  %2312 = vmatpush1.msra.mxu0 %v2152
  %2313 = vmatprep.subr.mxu0 %v2174
  %2314 = vmatpush1.msra.mxu0 %v2173
  %2315 = vmatprep.subr.mxu0 %v2195
  %2316 = vmatpush1.msra.mxu0 %v2194
  %2317 = vmatprep.subr.mxu0 %v2216
  %2318 = vmatpush1.msra.mxu0 %v2215
  %2319 = vmatprep.subr.mxu0 %v2054
  %2320 = vmatpush1.msra.mxu0 %v2052
  %2321 = vmatprep.subr.mxu0 %v2237
  %2322 = vmatpush1.msra.mxu0 %v2236
  %2323 = vmatprep.subr.mxu0 %v2258
  %2324 = vmatpush1.msra.mxu0 %v2257
  %2325 = vmatprep.subr.mxu0 %v2279
  %2326 = vmatpush1.msra.mxu0 %v2278
  %2327 = vmatprep.subr.mxu0 %v2300
  %2328 = vmatpush1.msra.mxu0 %v2299
  %2329 = vmatprep.subr.mxu0 0.0
  %2330 = vmatpush1.msra.mxu0 0.0
  %2331 = vmatprep.subr.mxu0 0.0
  %2332 = vmatpush1.msra.mxu0 0.0
  %2333 = vmatprep.subr.mxu0 0.0
  %2334 = vmatpush1.msra.mxu0 0.0
  %2335 = vmatprep.subr.mxu0 0.0
  %2336 = vmatpush1.msra.mxu0 0.0
  %2337 = vmatprep.subr.mxu0 0.0
  %2338 = vmatpush1.msra.mxu0 0.0
  %2339 = vmatprep.subr.mxu0 0.0
  %2340 = vmatpush1.msra.mxu0 0.0
  %2341 = vmatprep.subr.mxu0 0.0
  %2342 = vmatpush1.msra.mxu0 0.0
  %2343 = vmatprep.subr.mxu0 0.0
  %2344 = vmatpush1.msra.mxu0 0.0
  %2345 = vmatprep.subr.mxu0 0.0
  %2346 = vmatpush1.msra.mxu0 0.0
  %2347 = vmatprep.subr.mxu0 0.0
  %2348 = vmatpush1.msra.mxu0 0.0
  %2349 = vmatprep.subr.mxu0 0.0
  %2350 = vmatpush1.msra.mxu0 0.0
  %2351 = vmatprep.subr.mxu0 0.0
  %2352 = vmatpush1.msra.mxu0 0.0
  %2353 = vmatprep.subr.mxu0 0.0
  %2354 = vmatpush1.msra.mxu0 0.0
  %2355 = vmatprep.subr.mxu0 0.0
  %2356 = vmatpush1.msra.mxu0 0.0
  %2357 = vmatprep.subr.mxu0 0.0
  %2358 = vmatpush1.msra.mxu0 0.0
  %2359 = vmatprep.subr.mxu0 0.0
  %2360 = vmatpush1.msra.mxu0 0.0
  %2361 = vmatprep.subr.mxu0 0.0
  %2362 = vmatpush1.msra.mxu0 0.0
  %2363 = vmatprep.subr.mxu0 0.0
  %2364 = vmatpush1.msra.mxu0 0.0
  %2365 = vmatprep.subr.mxu0 0.0
  %2366 = vmatpush1.msra.mxu0 0.0
  %2367 = vmatprep.subr.mxu0 0.0
  %2368 = vmatpush1.msra.mxu0 0.0
  %2369 = vmatprep.subr.mxu0 0.0
  %2370 = vmatpush1.msra.mxu0 0.0
  %2371 = vmatprep.subr.mxu0 0.0
  %2372 = vmatpush1.msra.mxu0 0.0
  %2373 = vmatprep.subr.mxu0 0.0
  %2374 = vmatpush1.msra.mxu0 0.0
  %2375 = vmatprep.mubr.f32.mxu0 0.0
  %2376 = vmatmul.mubr.f32.gmra.mrb[0].mxu0 %v2309
  %v2377 = vpop.f32.mrb[0].mxu0
  %v2378 = vadd.f32 %v2306, %v2377
  %v2379 = vpop.f32.mrb[0].mxu0
  %v2380 = vadd.f32 %v2306, %v2379
  %2381 = vdwg.mxu0
  %2382 = vmatprep.subr.mxu0 %v2155
  %2383 = vmatpush1.msra.mxu0 %v2154
  %2384 = vmatprep.subr.mxu0 %v2176
  %2385 = vmatpush1.msra.mxu0 %v2175
  %2386 = vmatprep.subr.mxu0 %v2197
  %2387 = vmatpush1.msra.mxu0 %v2196
  %2388 = vmatprep.subr.mxu0 %v2218
  %2389 = vmatpush1.msra.mxu0 %v2217
  %2390 = vmatprep.subr.mxu0 %v2125
  %2391 = vmatpush1.msra.mxu0 %v2123
  %2392 = vmatprep.subr.mxu0 %v2239
  %2393 = vmatpush1.msra.mxu0 %v2238
  %2394 = vmatprep.subr.mxu0 %v2260
  %2395 = vmatpush1.msra.mxu0 %v2259
  %2396 = vmatprep.subr.mxu0 %v2281
  %2397 = vmatpush1.msra.mxu0 %v2280
  %2398 = vmatprep.subr.mxu0 %v2302
  %2399 = vmatpush1.msra.mxu0 %v2301
  %2400 = vmatprep.subr.mxu0 0.0
  %2401 = vmatpush1.msra.mxu0 0.0
  %2402 = vmatprep.subr.mxu0 0.0
  %2403 = vmatpush1.msra.mxu0 0.0
  %2404 = vmatprep.subr.mxu0 0.0
  %2405 = vmatpush1.msra.mxu0 0.0
  %2406 = vmatprep.subr.mxu0 0.0
  %2407 = vmatpush1.msra.mxu0 0.0
  %2408 = vmatprep.subr.mxu0 0.0
  %2409 = vmatpush1.msra.mxu0 0.0
  %2410 = vmatprep.subr.mxu0 0.0
  %2411 = vmatpush1.msra.mxu0 0.0
  %2412 = vmatprep.subr.mxu0 0.0
  %2413 = vmatpush1.msra.mxu0 0.0
  %2414 = vmatprep.subr.mxu0 0.0
  %2415 = vmatpush1.msra.mxu0 0.0
  %2416 = vmatprep.subr.mxu0 0.0
  %2417 = vmatpush1.msra.mxu0 0.0
  %2418 = vmatprep.subr.mxu0 0.0
  %2419 = vmatpush1.msra.mxu0 0.0
  %2420 = vmatprep.subr.mxu0 0.0
  %2421 = vmatpush1.msra.mxu0 0.0
  %2422 = vmatprep.subr.mxu0 0.0
  %2423 = vmatpush1.msra.mxu0 0.0
  %2424 = vmatprep.subr.mxu0 0.0
  %2425 = vmatpush1.msra.mxu0 0.0
  %2426 = vmatprep.subr.mxu0 0.0
  %2427 = vmatpush1.msra.mxu0 0.0
  %2428 = vmatprep.subr.mxu0 0.0
  %2429 = vmatpush1.msra.mxu0 0.0
  %2430 = vmatprep.subr.mxu0 0.0
  %2431 = vmatpush1.msra.mxu0 0.0
  %2432 = vmatprep.subr.mxu0 0.0
  %2433 = vmatpush1.msra.mxu0 0.0
  %2434 = vmatprep.subr.mxu0 0.0
  %2435 = vmatpush1.msra.mxu0 0.0
  %2436 = vmatprep.subr.mxu0 0.0
  %2437 = vmatpush1.msra.mxu0 0.0
  %2438 = vmatprep.subr.mxu0 0.0
  %2439 = vmatpush1.msra.mxu0 0.0
  %2440 = vmatprep.subr.mxu0 0.0
  %2441 = vmatpush1.msra.mxu0 0.0
  %2442 = vmatprep.subr.mxu0 0.0
  %2443 = vmatpush1.msra.mxu0 0.0
  %2444 = vmatprep.subr.mxu0 0.0
  %2445 = vmatpush1.msra.mxu0 0.0
  %2446 = vmatprep.mubr.f32.mxu0 0.0
  %2447 = vmatmul.mubr.f32.gmra.mrb[0].mxu0 %v2309
  %v2448 = vpop.f32.mrb[0].mxu0
  %v2449 = vadd.f32 %v2306, %v2448
  %v2450 = vpop.f32.mrb[0].mxu0
  %v2451 = vadd.f32 %v2306, %v2450
  %2452 = vdwg.mxu0
  %s2453 = scalar_lea.vmem %s4, 32
  %v2454 = vld [vmem:[%s2453] sm:$0xff]
  %s2455 = scalar_lea.vmem %s5, 48
  %v2456 = vld [vmem:[%s2455] sm:$0xff]
  %2458 = vrot.lane.b32.xlu0 %v2451, 17
  %v2459 = vpop.permute.xlu0 %2458
  %2464 = vrot.lane.b32.xlu0 %v2378, 17
  %v2465 = vpop.permute.xlu0 %2464
  %2466 = vrot.lane.b32.xlu0 %v2380, 17
  %v2467 = vpop.permute.xlu0 %2466
  %2468 = vrot.lane.b32.xlu0 %v2449, 17
  %v2469 = vpop.permute.xlu0 %2468
  %v2470 = vsel %vm56, %v2465, %v2467
  %v2471 = vsel %vm56, %v2467, %v2469
  %v2472 = vsel %vm56, %v2469, %v2459
  %v2477 = vsel %vm56, %v2459, %v2465
  %v2478 = vmul.f32 %v2477, %v68
  %v2479 = vmul.f32 %v2470, %v72
  %v2480 = vmul.f32 %v2471, %v76
  %v2481 = vmul.f32 %v2472, %v80
  %2482 = vrot.lane.b32.xlu0 %v2451, 16
  %v2483 = vpop.permute.xlu0 %2482
  %2485 = vrot.lane.b32.xlu0 %v2378, 16
  %v2486 = vpop.permute.xlu0 %2485
  %2487 = vrot.lane.b32.xlu0 %v2380, 16
  %v2488 = vpop.permute.xlu0 %2487
  %2489 = vrot.lane.b32.xlu0 %v2449, 16
  %v2490 = vpop.permute.xlu0 %2489
  %v2491 = vsel %vm94, %v2486, %v2488
  %v2492 = vsel %vm94, %v2488, %v2490
  %v2493 = vsel %vm94, %v2490, %v2483
  %v2498 = vsel %vm94, %v2483, %v2486
  %v2499 = vmul.f32 %v2498, %v106
  %v2500 = vmul.f32 %v2491, %v110
  %v2501 = vmul.f32 %v2492, %v114
  %v2502 = vmul.f32 %v2493, %v118
  %2503 = vrot.lane.b32.xlu0 %v2451, 15
  %v2504 = vpop.permute.xlu0 %2503
  %2506 = vrot.lane.b32.xlu0 %v2378, 15
  %v2507 = vpop.permute.xlu0 %2506
  %2508 = vrot.lane.b32.xlu0 %v2380, 15
  %v2509 = vpop.permute.xlu0 %2508
  %2510 = vrot.lane.b32.xlu0 %v2449, 15
  %v2511 = vpop.permute.xlu0 %2510
  %v2512 = vsel %vm132, %v2507, %v2509
  %v2513 = vsel %vm132, %v2509, %v2511
  %v2514 = vsel %vm132, %v2511, %v2504
  %v2519 = vsel %vm132, %v2504, %v2507
  %v2520 = vmul.f32 %v2519, %v144
  %v2521 = vmul.f32 %v2512, %v148
  %v2522 = vmul.f32 %v2513, %v152
  %v2523 = vmul.f32 %v2514, %v156
  %2524 = vrot.lane.b32.xlu0 %v2451, 1
  %v2525 = vpop.permute.xlu0 %2524
  %2527 = vrot.lane.b32.xlu0 %v2378, 1
  %v2528 = vpop.permute.xlu0 %2527
  %2529 = vrot.lane.b32.xlu0 %v2380, 1
  %v2530 = vpop.permute.xlu0 %2529
  %2531 = vrot.lane.b32.xlu0 %v2449, 1
  %v2532 = vpop.permute.xlu0 %2531
  %v2533 = vsel %vm170, %v2528, %v2530
  %v2534 = vsel %vm170, %v2530, %v2532
  %v2535 = vsel %vm170, %v2532, %v2525
  %v2540 = vsel %vm170, %v2525, %v2528
  %v2541 = vmul.f32 %v2540, %v182
  %v2542 = vmul.f32 %v2533, %v186
  %v2543 = vmul.f32 %v2534, %v190
  %v2544 = vmul.f32 %v2535, %v194
  %2545 = vrot.lane.b32.xlu0 %v2378, 127
  %v2546 = vpop.permute.xlu0 %2545
  %2547 = vrot.lane.b32.xlu0 %v2380, 127
  %v2548 = vpop.permute.xlu0 %2547
  %2549 = vrot.lane.b32.xlu0 %v2449, 127
  %v2550 = vpop.permute.xlu0 %2549
  %2551 = vrot.lane.b32.xlu0 %v2451, 127
  %v2552 = vpop.permute.xlu0 %2551
  %v2553 = vsel %vm207, %v2546, %v2548
  %v2554 = vsel %vm207, %v2548, %v2550
  %v2555 = vsel %vm207, %v2550, %v2552
  %v2561 = vsel %vm207, %v2552, %v2546
  %v2562 = vmul.f32 %v2553, %v220
  %v2563 = vmul.f32 %v2554, %v224
  %v2564 = vmul.f32 %v2555, %v228
  %v2565 = vmul.f32 %v2561, %v232
  %2566 = vrot.lane.b32.xlu0 %v2378, 113
  %v2567 = vpop.permute.xlu0 %2566
  %2568 = vrot.lane.b32.xlu0 %v2380, 113
  %v2569 = vpop.permute.xlu0 %2568
  %2570 = vrot.lane.b32.xlu0 %v2449, 113
  %v2571 = vpop.permute.xlu0 %2570
  %2572 = vrot.lane.b32.xlu0 %v2451, 113
  %v2573 = vpop.permute.xlu0 %2572
  %v2574 = vsel %vm245, %v2567, %v2569
  %v2575 = vsel %vm245, %v2569, %v2571
  %v2576 = vsel %vm245, %v2571, %v2573
  %v2582 = vsel %vm245, %v2573, %v2567
  %v2583 = vmul.f32 %v2574, %v258
  %v2584 = vmul.f32 %v2575, %v262
  %v2585 = vmul.f32 %v2576, %v266
  %v2586 = vmul.f32 %v2582, %v270
  %2587 = vrot.lane.b32.xlu0 %v2378, 112
  %v2588 = vpop.permute.xlu0 %2587
  %2589 = vrot.lane.b32.xlu0 %v2380, 112
  %v2590 = vpop.permute.xlu0 %2589
  %2591 = vrot.lane.b32.xlu0 %v2449, 112
  %v2592 = vpop.permute.xlu0 %2591
  %2593 = vrot.lane.b32.xlu0 %v2451, 112
  %v2594 = vpop.permute.xlu0 %2593
  %v2595 = vsel %vm283, %v2588, %v2590
  %v2596 = vsel %vm283, %v2590, %v2592
  %v2597 = vsel %vm283, %v2592, %v2594
  %v2603 = vsel %vm283, %v2594, %v2588
  %v2604 = vmul.f32 %v2595, %v296
  %v2605 = vmul.f32 %v2596, %v300
  %v2606 = vmul.f32 %v2597, %v304
  %v2607 = vmul.f32 %v2603, %v308
  %2608 = vrot.lane.b32.xlu0 %v2378, 111
  %v2609 = vpop.permute.xlu0 %2608
  %2610 = vrot.lane.b32.xlu0 %v2380, 111
  %v2611 = vpop.permute.xlu0 %2610
  %2612 = vrot.lane.b32.xlu0 %v2449, 111
  %v2613 = vpop.permute.xlu0 %2612
  %2614 = vrot.lane.b32.xlu0 %v2451, 111
  %v2615 = vpop.permute.xlu0 %2614
  %v2616 = vsel %vm321, %v2609, %v2611
  %v2617 = vsel %vm321, %v2611, %v2613
  %v2618 = vsel %vm321, %v2613, %v2615
  %v2624 = vsel %vm321, %v2615, %v2609
  %v2625 = vmul.f32 %v2616, %v334
  %v2626 = vmul.f32 %v2617, %v338
  %v2627 = vmul.f32 %v2618, %v342
  %v2628 = vmul.f32 %v2624, %v346
  %2630 = vset.pattern.permute.xlu0 0
  %2631 = vperm.xlu0 %2630, %v2456
  %v2632 = vpop.permute.xlu0 %2631
  %v2635 = vsel %vm356, %v2454, 0
  %2637 = vmatprep.subr.mxu0 %v2479
  %2638 = vmatpush1.msra.mxu0 %v2478
  %2639 = vmatprep.subr.mxu0 %v2500
  %2640 = vmatpush1.msra.mxu0 %v2499
  %2641 = vmatprep.subr.mxu0 %v2521
  %2642 = vmatpush1.msra.mxu0 %v2520
  %2643 = vmatprep.subr.mxu0 %v2542
  %2644 = vmatpush1.msra.mxu0 %v2541
  %2645 = vmatprep.subr.mxu0 %v2380
  %2646 = vmatpush1.msra.mxu0 %v2378
  %2647 = vmatprep.subr.mxu0 %v2563
  %2648 = vmatpush1.msra.mxu0 %v2562
  %2649 = vmatprep.subr.mxu0 %v2584
  %2650 = vmatpush1.msra.mxu0 %v2583
  %2651 = vmatprep.subr.mxu0 %v2605
  %2652 = vmatpush1.msra.mxu0 %v2604
  %2653 = vmatprep.subr.mxu0 %v2626
  %2654 = vmatpush1.msra.mxu0 %v2625
  %2655 = vmatprep.subr.mxu0 0.0
  %2656 = vmatpush1.msra.mxu0 0.0
  %2657 = vmatprep.subr.mxu0 0.0
  %2658 = vmatpush1.msra.mxu0 0.0
  %2659 = vmatprep.subr.mxu0 0.0
  %2660 = vmatpush1.msra.mxu0 0.0
  %2661 = vmatprep.subr.mxu0 0.0
  %2662 = vmatpush1.msra.mxu0 0.0
  %2663 = vmatprep.subr.mxu0 0.0
  %2664 = vmatpush1.msra.mxu0 0.0
  %2665 = vmatprep.subr.mxu0 0.0
  %2666 = vmatpush1.msra.mxu0 0.0
  %2667 = vmatprep.subr.mxu0 0.0
  %2668 = vmatpush1.msra.mxu0 0.0
  %2669 = vmatprep.subr.mxu0 0.0
  %2670 = vmatpush1.msra.mxu0 0.0
  %2671 = vmatprep.subr.mxu0 0.0
  %2672 = vmatpush1.msra.mxu0 0.0
  %2673 = vmatprep.subr.mxu0 0.0
  %2674 = vmatpush1.msra.mxu0 0.0
  %2675 = vmatprep.subr.mxu0 0.0
  %2676 = vmatpush1.msra.mxu0 0.0
  %2677 = vmatprep.subr.mxu0 0.0
  %2678 = vmatpush1.msra.mxu0 0.0
  %2679 = vmatprep.subr.mxu0 0.0
  %2680 = vmatpush1.msra.mxu0 0.0
  %2681 = vmatprep.subr.mxu0 0.0
  %2682 = vmatpush1.msra.mxu0 0.0
  %2683 = vmatprep.subr.mxu0 0.0
  %2684 = vmatpush1.msra.mxu0 0.0
  %2685 = vmatprep.subr.mxu0 0.0
  %2686 = vmatpush1.msra.mxu0 0.0
  %2687 = vmatprep.subr.mxu0 0.0
  %2688 = vmatpush1.msra.mxu0 0.0
  %2689 = vmatprep.subr.mxu0 0.0
  %2690 = vmatpush1.msra.mxu0 0.0
  %2691 = vmatprep.subr.mxu0 0.0
  %2692 = vmatpush1.msra.mxu0 0.0
  %2693 = vmatprep.subr.mxu0 0.0
  %2694 = vmatpush1.msra.mxu0 0.0
  %2695 = vmatprep.subr.mxu0 0.0
  %2696 = vmatpush1.msra.mxu0 0.0
  %2697 = vmatprep.subr.mxu0 0.0
  %2698 = vmatpush1.msra.mxu0 0.0
  %2699 = vmatprep.subr.mxu0 0.0
  %2700 = vmatpush1.msra.mxu0 0.0
  %2701 = vmatprep.mubr.f32.mxu0 0.0
  %2702 = vmatmul.mubr.f32.gmra.mrb[0].mxu0 %v2635
  %v2703 = vpop.f32.mrb[0].mxu0
  %v2704 = vadd.f32 %v2632, %v2703
  %v2705 = vpop.f32.mrb[0].mxu0
  %v2706 = vadd.f32 %v2632, %v2705
  %2707 = vdwg.mxu0
  %2708 = vmatprep.subr.mxu0 %v2481
  %2709 = vmatpush1.msra.mxu0 %v2480
  %2710 = vmatprep.subr.mxu0 %v2502
  %2711 = vmatpush1.msra.mxu0 %v2501
  %2712 = vmatprep.subr.mxu0 %v2523
  %2713 = vmatpush1.msra.mxu0 %v2522
  %2714 = vmatprep.subr.mxu0 %v2544
  %2715 = vmatpush1.msra.mxu0 %v2543
  %2716 = vmatprep.subr.mxu0 %v2451
  %2717 = vmatpush1.msra.mxu0 %v2449
  %2718 = vmatprep.subr.mxu0 %v2565
  %2719 = vmatpush1.msra.mxu0 %v2564
  %2720 = vmatprep.subr.mxu0 %v2586
  %2721 = vmatpush1.msra.mxu0 %v2585
  %2722 = vmatprep.subr.mxu0 %v2607
  %2723 = vmatpush1.msra.mxu0 %v2606
  %2724 = vmatprep.subr.mxu0 %v2628
  %2725 = vmatpush1.msra.mxu0 %v2627
  %2726 = vmatprep.subr.mxu0 0.0
  %2727 = vmatpush1.msra.mxu0 0.0
  %2728 = vmatprep.subr.mxu0 0.0
  %2729 = vmatpush1.msra.mxu0 0.0
  %2730 = vmatprep.subr.mxu0 0.0
  %2731 = vmatpush1.msra.mxu0 0.0
  %2732 = vmatprep.subr.mxu0 0.0
  %2733 = vmatpush1.msra.mxu0 0.0
  %2734 = vmatprep.subr.mxu0 0.0
  %2735 = vmatpush1.msra.mxu0 0.0
  %2736 = vmatprep.subr.mxu0 0.0
  %2737 = vmatpush1.msra.mxu0 0.0
  %2738 = vmatprep.subr.mxu0 0.0
  %2739 = vmatpush1.msra.mxu0 0.0
  %2740 = vmatprep.subr.mxu0 0.0
  %2741 = vmatpush1.msra.mxu0 0.0
  %2742 = vmatprep.subr.mxu0 0.0
  %2743 = vmatpush1.msra.mxu0 0.0
  %2744 = vmatprep.subr.mxu0 0.0
  %2745 = vmatpush1.msra.mxu0 0.0
  %2746 = vmatprep.subr.mxu0 0.0
  %2747 = vmatpush1.msra.mxu0 0.0
  %2748 = vmatprep.subr.mxu0 0.0
  %2749 = vmatpush1.msra.mxu0 0.0
  %2750 = vmatprep.subr.mxu0 0.0
  %2751 = vmatpush1.msra.mxu0 0.0
  %2752 = vmatprep.subr.mxu0 0.0
  %2753 = vmatpush1.msra.mxu0 0.0
  %2754 = vmatprep.subr.mxu0 0.0
  %2755 = vmatpush1.msra.mxu0 0.0
  %2756 = vmatprep.subr.mxu0 0.0
  %2757 = vmatpush1.msra.mxu0 0.0
  %2758 = vmatprep.subr.mxu0 0.0
  %2759 = vmatpush1.msra.mxu0 0.0
  %2760 = vmatprep.subr.mxu0 0.0
  %2761 = vmatpush1.msra.mxu0 0.0
  %2762 = vmatprep.subr.mxu0 0.0
  %2763 = vmatpush1.msra.mxu0 0.0
  %2764 = vmatprep.subr.mxu0 0.0
  %2765 = vmatpush1.msra.mxu0 0.0
  %2766 = vmatprep.subr.mxu0 0.0
  %2767 = vmatpush1.msra.mxu0 0.0
  %2768 = vmatprep.subr.mxu0 0.0
  %2769 = vmatpush1.msra.mxu0 0.0
  %2770 = vmatprep.subr.mxu0 0.0
  %2771 = vmatpush1.msra.mxu0 0.0
  %2772 = vmatprep.mubr.f32.mxu0 0.0
  %2773 = vmatmul.mubr.f32.gmra.mrb[0].mxu0 %v2635
  %v2774 = vpop.f32.mrb[0].mxu0
  %v2775 = vadd.f32 %v2632, %v2774
  %v2776 = vpop.f32.mrb[0].mxu0
  %v2777 = vadd.f32 %v2632, %v2776
  %2778 = vdwg.mxu0
  %v2779 = vld [vmem:[%s6] sm:$0x3]
  %v2780 = vld [vmem:[%s7] sm:$0x3]
  %2782 = vset.pattern.permute.xlu0 0
  %2783 = vperm.xlu0 %2782, %v2780
  %v2784 = vpop.permute.xlu0 %2783
  %vm2786 = vcmask 64512
  %v2788 = vsel %vm2786, %v2779, 0
  %2790 = vmatprep.subr.mxu0 %v2706
  %2791 = vmatpush1.msra.mxu0 %v2704
  %2792 = vmatprep.subr.mxu0 0.0
  %2793 = vmatpush1.msra.mxu0 0.0
  %2794 = vmatprep.subr.mxu0 0.0
  %2795 = vmatpush1.msra.mxu0 0.0
  %2796 = vmatprep.subr.mxu0 0.0
  %2797 = vmatpush1.msra.mxu0 0.0
  %2798 = vmatprep.subr.mxu0 0.0
  %2799 = vmatpush1.msra.mxu0 0.0
  %2800 = vmatprep.subr.mxu0 0.0
  %2801 = vmatpush1.msra.mxu0 0.0
  %2802 = vmatprep.subr.mxu0 0.0
  %2803 = vmatpush1.msra.mxu0 0.0
  %2804 = vmatprep.subr.mxu0 0.0
  %2805 = vmatpush1.msra.mxu0 0.0
  %2806 = vmatprep.subr.mxu0 0.0
  %2807 = vmatpush1.msra.mxu0 0.0
  %2808 = vmatprep.subr.mxu0 0.0
  %2809 = vmatpush1.msra.mxu0 0.0
  %2810 = vmatprep.subr.mxu0 0.0
  %2811 = vmatpush1.msra.mxu0 0.0
  %2812 = vmatprep.subr.mxu0 0.0
  %2813 = vmatpush1.msra.mxu0 0.0
  %2814 = vmatprep.subr.mxu0 0.0
  %2815 = vmatpush1.msra.mxu0 0.0
  %2816 = vmatprep.subr.mxu0 0.0
  %2817 = vmatpush1.msra.mxu0 0.0
  %2818 = vmatprep.subr.mxu0 0.0
  %2819 = vmatpush1.msra.mxu0 0.0
  %2820 = vmatprep.subr.mxu0 0.0
  %2821 = vmatpush1.msra.mxu0 0.0
  %2822 = vmatprep.subr.mxu0 0.0
  %2823 = vmatpush1.msra.mxu0 0.0
  %2824 = vmatprep.subr.mxu0 0.0
  %2825 = vmatpush1.msra.mxu0 0.0
  %2826 = vmatprep.subr.mxu0 0.0
  %2827 = vmatpush1.msra.mxu0 0.0
  %2828 = vmatprep.subr.mxu0 0.0
  %2829 = vmatpush1.msra.mxu0 0.0
  %2830 = vmatprep.subr.mxu0 0.0
  %2831 = vmatpush1.msra.mxu0 0.0
  %2832 = vmatprep.subr.mxu0 0.0
  %2833 = vmatpush1.msra.mxu0 0.0
  %2834 = vmatprep.subr.mxu0 0.0
  %2835 = vmatpush1.msra.mxu0 0.0
  %2836 = vmatprep.subr.mxu0 0.0
  %2837 = vmatpush1.msra.mxu0 0.0
  %2838 = vmatprep.subr.mxu0 0.0
  %2839 = vmatpush1.msra.mxu0 0.0
  %2840 = vmatprep.subr.mxu0 0.0
  %2841 = vmatpush1.msra.mxu0 0.0
  %2842 = vmatprep.subr.mxu0 0.0
  %2843 = vmatpush1.msra.mxu0 0.0
  %2844 = vmatprep.subr.mxu0 0.0
  %2845 = vmatpush1.msra.mxu0 0.0
  %2846 = vmatprep.subr.mxu0 0.0
  %2847 = vmatpush1.msra.mxu0 0.0
  %2848 = vmatprep.subr.mxu0 0.0
  %2849 = vmatpush1.msra.mxu0 0.0
  %2850 = vmatprep.subr.mxu0 0.0
  %2851 = vmatpush1.msra.mxu0 0.0
  %2852 = vmatprep.subr.mxu0 0.0
  %2853 = vmatpush1.msra.mxu0 0.0
  %2854 = vmatprep.mubr.f32.mxu0 0.0
  %2855 = vmatmul.mubr.f32.gmra.mrb[0].mxu0 %v2788
  %v2856 = vpop.f32.mrb[0].mxu0
  %v2857 = vadd.f32 %v2784, %v2856
  %v2858 = vpop.f32.mrb[0].mxu0
  %v2859 = vadd.f32 %v2784, %v2858
  %2860 = vdwg.mxu0
  %2861 = vmatprep.subr.mxu0 %v2777
  %2862 = vmatpush1.msra.mxu0 %v2775
  %2863 = vmatprep.subr.mxu0 0.0
  %2864 = vmatpush1.msra.mxu0 0.0
  %2865 = vmatprep.subr.mxu0 0.0
  %2866 = vmatpush1.msra.mxu0 0.0
  %2867 = vmatprep.subr.mxu0 0.0
  %2868 = vmatpush1.msra.mxu0 0.0
  %2869 = vmatprep.subr.mxu0 0.0
  %2870 = vmatpush1.msra.mxu0 0.0
  %2871 = vmatprep.subr.mxu0 0.0
  %2872 = vmatpush1.msra.mxu0 0.0
  %2873 = vmatprep.subr.mxu0 0.0
  %2874 = vmatpush1.msra.mxu0 0.0
  %2875 = vmatprep.subr.mxu0 0.0
  %2876 = vmatpush1.msra.mxu0 0.0
  %2877 = vmatprep.subr.mxu0 0.0
  %2878 = vmatpush1.msra.mxu0 0.0
  %2879 = vmatprep.subr.mxu0 0.0
  %2880 = vmatpush1.msra.mxu0 0.0
  %2881 = vmatprep.subr.mxu0 0.0
  %2882 = vmatpush1.msra.mxu0 0.0
  %2883 = vmatprep.subr.mxu0 0.0
  %2884 = vmatpush1.msra.mxu0 0.0
  %2885 = vmatprep.subr.mxu0 0.0
  %2886 = vmatpush1.msra.mxu0 0.0
  %2887 = vmatprep.subr.mxu0 0.0
  %2888 = vmatpush1.msra.mxu0 0.0
  %2889 = vmatprep.subr.mxu0 0.0
  %2890 = vmatpush1.msra.mxu0 0.0
  %2891 = vmatprep.subr.mxu0 0.0
  %2892 = vmatpush1.msra.mxu0 0.0
  %2893 = vmatprep.subr.mxu0 0.0
  %2894 = vmatpush1.msra.mxu0 0.0
  %2895 = vmatprep.subr.mxu0 0.0
  %2896 = vmatpush1.msra.mxu0 0.0
  %2897 = vmatprep.subr.mxu0 0.0
  %2898 = vmatpush1.msra.mxu0 0.0
  %2899 = vmatprep.subr.mxu0 0.0
  %2900 = vmatpush1.msra.mxu0 0.0
  %2901 = vmatprep.subr.mxu0 0.0
  %2902 = vmatpush1.msra.mxu0 0.0
  %2903 = vmatprep.subr.mxu0 0.0
  %2904 = vmatpush1.msra.mxu0 0.0
  %2905 = vmatprep.subr.mxu0 0.0
  %2906 = vmatpush1.msra.mxu0 0.0
  %2907 = vmatprep.subr.mxu0 0.0
  %2908 = vmatpush1.msra.mxu0 0.0
  %2909 = vmatprep.subr.mxu0 0.0
  %2910 = vmatpush1.msra.mxu0 0.0
  %2911 = vmatprep.subr.mxu0 0.0
  %2912 = vmatpush1.msra.mxu0 0.0
  %2913 = vmatprep.subr.mxu0 0.0
  %2914 = vmatpush1.msra.mxu0 0.0
  %2915 = vmatprep.subr.mxu0 0.0
  %2916 = vmatpush1.msra.mxu0 0.0
  %2917 = vmatprep.subr.mxu0 0.0
  %2918 = vmatpush1.msra.mxu0 0.0
  %2919 = vmatprep.subr.mxu0 0.0
  %2920 = vmatpush1.msra.mxu0 0.0
  %2921 = vmatprep.subr.mxu0 0.0
  %2922 = vmatpush1.msra.mxu0 0.0
  %2923 = vmatprep.subr.mxu0 0.0
  %2924 = vmatpush1.msra.mxu0 0.0
  %2925 = vmatprep.mubr.f32.mxu0 0.0
  %2926 = vmatmul.mubr.f32.gmra.mrb[0].mxu0 %v2788
  %v2927 = vpop.f32.mrb[0].mxu0
  %v2928 = vadd.f32 %v2784, %v2927
  %v2929 = vpop.f32.mrb[0].mxu0
  %v2930 = vadd.f32 %v2784, %v2929
  %2931 = vdwg.mxu0
  %v2936 = vrot.slane %v2857, 7
  %v2937 = vrot.slane %v2859, 7
  %v2938 = vrot.slane %v2928, 7
  %v2939 = vrot.slane %v2930, 7
  %v2944 = vsub.f32 %v2857, %v2936
  %v2945 = vsub.f32 %v2859, %v2937
  %v2946 = vsub.f32 %v2928, %v2938
  %v2947 = vsub.f32 %v2930, %v2939
  %v2948 = vmul.f32 %v2944, 1.442695
  %v2949 = vpow.pop %v2948
  %v2950 = vmul.f32 %v2945, 1.442695
  %v2951 = vpow.pop %v2950
  %v2952 = vmul.f32 %v2946, 1.442695
  %v2953 = vpow.pop %v2952
  %v2954 = vmul.f32 %v2947, 1.442695
  %v2955 = vpow.pop %v2954
  %v2956 = vadd.f32 %v2949, 1.0
  %v2957 = vadd.f32 %v2951, 1.0
  %v2958 = vadd.f32 %v2953, 1.0
  %v2959 = vadd.f32 %v2955, 1.0
  %v2960 = vrcp.pop %v2956
  %v2961 = vmul.f32 1.0, %v2960
  %v2962 = vrcp.pop %v2957
  %v2963 = vmul.f32 1.0, %v2962
  %v2964 = vrcp.pop %v2958
  %v2965 = vmul.f32 1.0, %v2964
  %v2966 = vrcp.pop %v2959
  %v2967 = vmul.f32 1.0, %v2966
  %2968 = vmatprep.subr.mxu0 %v861
  %2969 = vmatpush1.msra.mxu0 %v860
  %2970 = vmatprep.subr.mxu0 %v2153
  %2971 = vmatpush1.msra.mxu0 %v2152
  %2972 = vmatprep.subr.mxu0 %v882
  %2973 = vmatpush1.msra.mxu0 %v881
  %2974 = vmatprep.subr.mxu0 %v2174
  %2975 = vmatpush1.msra.mxu0 %v2173
  %2976 = vmatprep.subr.mxu0 %v903
  %2977 = vmatpush1.msra.mxu0 %v902
  %2978 = vmatprep.subr.mxu0 %v2195
  %2979 = vmatpush1.msra.mxu0 %v2194
  %2980 = vmatprep.subr.mxu0 %v924
  %2981 = vmatpush1.msra.mxu0 %v923
  %2982 = vmatprep.subr.mxu0 %v2216
  %2983 = vmatpush1.msra.mxu0 %v2215
  %2984 = vmatprep.subr.mxu0 %v832
  %2985 = vmatpush1.msra.mxu0 %v831
  %2986 = vmatprep.subr.mxu0 %v2054
  %2987 = vmatpush1.msra.mxu0 %v2052
  %2988 = vmatprep.subr.mxu0 %v945
  %2989 = vmatpush1.msra.mxu0 %v944
  %2990 = vmatprep.subr.mxu0 %v2237
  %2991 = vmatpush1.msra.mxu0 %v2236
  %2992 = vmatprep.subr.mxu0 %v966
  %2993 = vmatpush1.msra.mxu0 %v965
  %2994 = vmatprep.subr.mxu0 %v2258
  %2995 = vmatpush1.msra.mxu0 %v2257
  %2996 = vmatprep.subr.mxu0 %v987
  %2997 = vmatpush1.msra.mxu0 %v986
  %2998 = vmatprep.subr.mxu0 %v2279
  %2999 = vmatpush1.msra.mxu0 %v2278
  %3000 = vmatprep.subr.mxu0 %v1008
  %3001 = vmatpush1.msra.mxu0 %v1007
  %3002 = vmatprep.subr.mxu0 %v2300
  %3003 = vmatpush1.msra.mxu0 %v2299
  %3004 = vmatprep.subr.mxu0 0.0
  %3005 = vmatpush1.msra.mxu0 0.0
  %3006 = vmatprep.subr.mxu0 0.0
  %3007 = vmatpush1.msra.mxu0 0.0
  %3008 = vmatprep.subr.mxu0 0.0
  %3009 = vmatpush1.msra.mxu0 0.0
  %3010 = vmatprep.subr.mxu0 0.0
  %3011 = vmatpush1.msra.mxu0 0.0
  %3012 = vmatprep.subr.mxu0 0.0
  %3013 = vmatpush1.msra.mxu0 0.0
  %3014 = vmatprep.subr.mxu0 0.0
  %3015 = vmatpush1.msra.mxu0 0.0
  %3016 = vmatprep.subr.mxu0 0.0
  %3017 = vmatpush1.msra.mxu0 0.0
  %3018 = vmatprep.subr.mxu0 0.0
  %3019 = vmatpush1.msra.mxu0 0.0
  %3020 = vmatprep.subr.mxu0 0.0
  %3021 = vmatpush1.msra.mxu0 0.0
  %3022 = vmatprep.subr.mxu0 0.0
  %3023 = vmatpush1.msra.mxu0 0.0
  %3024 = vmatprep.subr.mxu0 0.0
  %3025 = vmatpush1.msra.mxu0 0.0
  %3026 = vmatprep.subr.mxu0 0.0
  %3027 = vmatpush1.msra.mxu0 0.0
  %3028 = vmatprep.subr.mxu0 0.0
  %3029 = vmatpush1.msra.mxu0 0.0
  %3030 = vmatprep.subr.mxu0 0.0
  %3031 = vmatpush1.msra.mxu0 0.0
  %3032 = vmatprep.mubr.f32.mxu0 %v1017
  %3033 = vmatmul.mubr.f32.gmra.mrb[0].mxu0 %v835
  %v3034 = vpop.f32.mrb[0].mxu0
  %v3035 = vadd.f32 %v1014, %v3034
  %v3036 = vpop.f32.mrb[0].mxu0
  %v3037 = vadd.f32 %v1014, %v3036
  %3038 = vdwg.mxu0
  %3039 = vmatprep.subr.mxu0 %v863
  %3040 = vmatpush1.msra.mxu0 %v862
  %3041 = vmatprep.subr.mxu0 %v2155
  %3042 = vmatpush1.msra.mxu0 %v2154
  %3043 = vmatprep.subr.mxu0 %v884
  %3044 = vmatpush1.msra.mxu0 %v883
  %3045 = vmatprep.subr.mxu0 %v2176
  %3046 = vmatpush1.msra.mxu0 %v2175
  %3047 = vmatprep.subr.mxu0 %v905
  %3048 = vmatpush1.msra.mxu0 %v904
  %3049 = vmatprep.subr.mxu0 %v2197
  %3050 = vmatpush1.msra.mxu0 %v2196
  %3051 = vmatprep.subr.mxu0 %v926
  %3052 = vmatpush1.msra.mxu0 %v925
  %3053 = vmatprep.subr.mxu0 %v2218
  %3054 = vmatpush1.msra.mxu0 %v2217
  %3055 = vmatprep.subr.mxu0 %v834
  %3056 = vmatpush1.msra.mxu0 %v833
  %3057 = vmatprep.subr.mxu0 %v2125
  %3058 = vmatpush1.msra.mxu0 %v2123
  %3059 = vmatprep.subr.mxu0 %v947
  %3060 = vmatpush1.msra.mxu0 %v946
  %3061 = vmatprep.subr.mxu0 %v2239
  %3062 = vmatpush1.msra.mxu0 %v2238
  %3063 = vmatprep.subr.mxu0 %v968
  %3064 = vmatpush1.msra.mxu0 %v967
  %3065 = vmatprep.subr.mxu0 %v2260
  %3066 = vmatpush1.msra.mxu0 %v2259
  %3067 = vmatprep.subr.mxu0 %v989
  %3068 = vmatpush1.msra.mxu0 %v988
  %3069 = vmatprep.subr.mxu0 %v2281
  %3070 = vmatpush1.msra.mxu0 %v2280
  %3071 = vmatprep.subr.mxu0 %v1010
  %3072 = vmatpush1.msra.mxu0 %v1009
  %3073 = vmatprep.subr.mxu0 %v2302
  %3074 = vmatpush1.msra.mxu0 %v2301
  %3075 = vmatprep.subr.mxu0 0.0
  %3076 = vmatpush1.msra.mxu0 0.0
  %3077 = vmatprep.subr.mxu0 0.0
  %3078 = vmatpush1.msra.mxu0 0.0
  %3079 = vmatprep.subr.mxu0 0.0
  %3080 = vmatpush1.msra.mxu0 0.0
  %3081 = vmatprep.subr.mxu0 0.0
  %3082 = vmatpush1.msra.mxu0 0.0
  %3083 = vmatprep.subr.mxu0 0.0
  %3084 = vmatpush1.msra.mxu0 0.0
  %3085 = vmatprep.subr.mxu0 0.0
  %3086 = vmatpush1.msra.mxu0 0.0
  %3087 = vmatprep.subr.mxu0 0.0
  %3088 = vmatpush1.msra.mxu0 0.0
  %3089 = vmatprep.subr.mxu0 0.0
  %3090 = vmatpush1.msra.mxu0 0.0
  %3091 = vmatprep.subr.mxu0 0.0
  %3092 = vmatpush1.msra.mxu0 0.0
  %3093 = vmatprep.subr.mxu0 0.0
  %3094 = vmatpush1.msra.mxu0 0.0
  %3095 = vmatprep.subr.mxu0 0.0
  %3096 = vmatpush1.msra.mxu0 0.0
  %3097 = vmatprep.subr.mxu0 0.0
  %3098 = vmatpush1.msra.mxu0 0.0
  %3099 = vmatprep.subr.mxu0 0.0
  %3100 = vmatpush1.msra.mxu0 0.0
  %3101 = vmatprep.subr.mxu0 0.0
  %3102 = vmatpush1.msra.mxu0 0.0
  %3103 = vmatprep.mubr.f32.mxu0 %v1017
  %3104 = vmatmul.mubr.f32.gmra.mrb[0].mxu0 %v835
  %v3105 = vpop.f32.mrb[0].mxu0
  %v3106 = vadd.f32 %v1014, %v3105
  %v3107 = vpop.f32.mrb[0].mxu0
  %v3108 = vadd.f32 %v1014, %v3107
  %3109 = vdwg.mxu0
  %3111 = vrot.lane.b32.xlu0 %v3108, 17
  %v3112 = vpop.permute.xlu0 %3111
  %3117 = vrot.lane.b32.xlu0 %v3035, 17
  %v3118 = vpop.permute.xlu0 %3117
  %3119 = vrot.lane.b32.xlu0 %v3037, 17
  %v3120 = vpop.permute.xlu0 %3119
  %3121 = vrot.lane.b32.xlu0 %v3106, 17
  %v3122 = vpop.permute.xlu0 %3121
  %v3123 = vsel %vm56, %v3118, %v3120
  %v3124 = vsel %vm56, %v3120, %v3122
  %v3125 = vsel %vm56, %v3122, %v3112
  %v3130 = vsel %vm56, %v3112, %v3118
  %v3131 = vmul.f32 %v3130, %v68
  %v3132 = vmul.f32 %v3123, %v72
  %v3133 = vmul.f32 %v3124, %v76
  %v3134 = vmul.f32 %v3125, %v80
  %3135 = vrot.lane.b32.xlu0 %v3108, 16
  %v3136 = vpop.permute.xlu0 %3135
  %3138 = vrot.lane.b32.xlu0 %v3035, 16
  %v3139 = vpop.permute.xlu0 %3138
  %3140 = vrot.lane.b32.xlu0 %v3037, 16
  %v3141 = vpop.permute.xlu0 %3140
  %3142 = vrot.lane.b32.xlu0 %v3106, 16
  %v3143 = vpop.permute.xlu0 %3142
  %v3144 = vsel %vm94, %v3139, %v3141
  %v3145 = vsel %vm94, %v3141, %v3143
  %v3146 = vsel %vm94, %v3143, %v3136
  %v3151 = vsel %vm94, %v3136, %v3139
  %v3152 = vmul.f32 %v3151, %v106
  %v3153 = vmul.f32 %v3144, %v110
  %v3154 = vmul.f32 %v3145, %v114
  %v3155 = vmul.f32 %v3146, %v118
  %3156 = vrot.lane.b32.xlu0 %v3108, 15
  %v3157 = vpop.permute.xlu0 %3156
  %3159 = vrot.lane.b32.xlu0 %v3035, 15
  %v3160 = vpop.permute.xlu0 %3159
  %3161 = vrot.lane.b32.xlu0 %v3037, 15
  %v3162 = vpop.permute.xlu0 %3161
  %3163 = vrot.lane.b32.xlu0 %v3106, 15
  %v3164 = vpop.permute.xlu0 %3163
  %v3165 = vsel %vm132, %v3160, %v3162
  %v3166 = vsel %vm132, %v3162, %v3164
  %v3167 = vsel %vm132, %v3164, %v3157
  %v3172 = vsel %vm132, %v3157, %v3160
  %v3173 = vmul.f32 %v3172, %v144
  %v3174 = vmul.f32 %v3165, %v148
  %v3175 = vmul.f32 %v3166, %v152
  %v3176 = vmul.f32 %v3167, %v156
  %3177 = vrot.lane.b32.xlu0 %v3108, 1
  %v3178 = vpop.permute.xlu0 %3177
  %3180 = vrot.lane.b32.xlu0 %v3035, 1
  %v3181 = vpop.permute.xlu0 %3180
  %3182 = vrot.lane.b32.xlu0 %v3037, 1
  %v3183 = vpop.permute.xlu0 %3182
  %3184 = vrot.lane.b32.xlu0 %v3106, 1
  %v3185 = vpop.permute.xlu0 %3184
  %v3186 = vsel %vm170, %v3181, %v3183
  %v3187 = vsel %vm170, %v3183, %v3185
  %v3188 = vsel %vm170, %v3185, %v3178
  %v3193 = vsel %vm170, %v3178, %v3181
  %v3194 = vmul.f32 %v3193, %v182
  %v3195 = vmul.f32 %v3186, %v186
  %v3196 = vmul.f32 %v3187, %v190
  %v3197 = vmul.f32 %v3188, %v194
  %3198 = vrot.lane.b32.xlu0 %v3035, 127
  %v3199 = vpop.permute.xlu0 %3198
  %3200 = vrot.lane.b32.xlu0 %v3037, 127
  %v3201 = vpop.permute.xlu0 %3200
  %3202 = vrot.lane.b32.xlu0 %v3106, 127
  %v3203 = vpop.permute.xlu0 %3202
  %3204 = vrot.lane.b32.xlu0 %v3108, 127
  %v3205 = vpop.permute.xlu0 %3204
  %v3206 = vsel %vm207, %v3199, %v3201
  %v3207 = vsel %vm207, %v3201, %v3203
  %v3208 = vsel %vm207, %v3203, %v3205
  %v3214 = vsel %vm207, %v3205, %v3199
  %v3215 = vmul.f32 %v3206, %v220
  %v3216 = vmul.f32 %v3207, %v224
  %v3217 = vmul.f32 %v3208, %v228
  %v3218 = vmul.f32 %v3214, %v232
  %3219 = vrot.lane.b32.xlu0 %v3035, 113
  %v3220 = vpop.permute.xlu0 %3219
  %3221 = vrot.lane.b32.xlu0 %v3037, 113
  %v3222 = vpop.permute.xlu0 %3221
  %3223 = vrot.lane.b32.xlu0 %v3106, 113
  %v3224 = vpop.permute.xlu0 %3223
  %3225 = vrot.lane.b32.xlu0 %v3108, 113
  %v3226 = vpop.permute.xlu0 %3225
  %v3227 = vsel %vm245, %v3220, %v3222
  %v3228 = vsel %vm245, %v3222, %v3224
  %v3229 = vsel %vm245, %v3224, %v3226
  %v3235 = vsel %vm245, %v3226, %v3220
  %v3236 = vmul.f32 %v3227, %v258
  %v3237 = vmul.f32 %v3228, %v262
  %v3238 = vmul.f32 %v3229, %v266
  %v3239 = vmul.f32 %v3235, %v270
  %3240 = vrot.lane.b32.xlu0 %v3035, 112
  %v3241 = vpop.permute.xlu0 %3240
  %3242 = vrot.lane.b32.xlu0 %v3037, 112
  %v3243 = vpop.permute.xlu0 %3242
  %3244 = vrot.lane.b32.xlu0 %v3106, 112
  %v3245 = vpop.permute.xlu0 %3244
  %3246 = vrot.lane.b32.xlu0 %v3108, 112
  %v3247 = vpop.permute.xlu0 %3246
  %v3248 = vsel %vm283, %v3241, %v3243
  %v3249 = vsel %vm283, %v3243, %v3245
  %v3250 = vsel %vm283, %v3245, %v3247
  %v3256 = vsel %vm283, %v3247, %v3241
  %v3257 = vmul.f32 %v3248, %v296
  %v3258 = vmul.f32 %v3249, %v300
  %v3259 = vmul.f32 %v3250, %v304
  %v3260 = vmul.f32 %v3256, %v308
  %3261 = vrot.lane.b32.xlu0 %v3035, 111
  %v3262 = vpop.permute.xlu0 %3261
  %3263 = vrot.lane.b32.xlu0 %v3037, 111
  %v3264 = vpop.permute.xlu0 %3263
  %3265 = vrot.lane.b32.xlu0 %v3106, 111
  %v3266 = vpop.permute.xlu0 %3265
  %3267 = vrot.lane.b32.xlu0 %v3108, 111
  %v3268 = vpop.permute.xlu0 %3267
  %v3269 = vsel %vm321, %v3262, %v3264
  %v3270 = vsel %vm321, %v3264, %v3266
  %v3271 = vsel %vm321, %v3266, %v3268
  %v3277 = vsel %vm321, %v3268, %v3262
  %v3278 = vmul.f32 %v3269, %v334
  %v3279 = vmul.f32 %v3270, %v338
  %v3280 = vmul.f32 %v3271, %v342
  %v3281 = vmul.f32 %v3277, %v346
  %3282 = vmatprep.subr.mxu0 %v3132
  %3283 = vmatpush1.msra.mxu0 %v3131
  %3284 = vmatprep.subr.mxu0 %v3153
  %3285 = vmatpush1.msra.mxu0 %v3152
  %3286 = vmatprep.subr.mxu0 %v3174
  %3287 = vmatpush1.msra.mxu0 %v3173
  %3288 = vmatprep.subr.mxu0 %v3195
  %3289 = vmatpush1.msra.mxu0 %v3194
  %3290 = vmatprep.subr.mxu0 %v3037
  %3291 = vmatpush1.msra.mxu0 %v3035
  %3292 = vmatprep.subr.mxu0 %v3216
  %3293 = vmatpush1.msra.mxu0 %v3215
  %3294 = vmatprep.subr.mxu0 %v3237
  %3295 = vmatpush1.msra.mxu0 %v3236
  %3296 = vmatprep.subr.mxu0 %v3258
  %3297 = vmatpush1.msra.mxu0 %v3257
  %3298 = vmatprep.subr.mxu0 %v3279
  %3299 = vmatpush1.msra.mxu0 %v3278
  %3300 = vmatprep.subr.mxu0 0.0
  %3301 = vmatpush1.msra.mxu0 0.0
  %3302 = vmatprep.subr.mxu0 0.0
  %3303 = vmatpush1.msra.mxu0 0.0
  %3304 = vmatprep.subr.mxu0 0.0
  %3305 = vmatpush1.msra.mxu0 0.0
  %3306 = vmatprep.subr.mxu0 0.0
  %3307 = vmatpush1.msra.mxu0 0.0
  %3308 = vmatprep.subr.mxu0 0.0
  %3309 = vmatpush1.msra.mxu0 0.0
  %3310 = vmatprep.subr.mxu0 0.0
  %3311 = vmatpush1.msra.mxu0 0.0
  %3312 = vmatprep.subr.mxu0 0.0
  %3313 = vmatpush1.msra.mxu0 0.0
  %3314 = vmatprep.subr.mxu0 0.0
  %3315 = vmatpush1.msra.mxu0 0.0
  %3316 = vmatprep.subr.mxu0 0.0
  %3317 = vmatpush1.msra.mxu0 0.0
  %3318 = vmatprep.subr.mxu0 0.0
  %3319 = vmatpush1.msra.mxu0 0.0
  %3320 = vmatprep.subr.mxu0 0.0
  %3321 = vmatpush1.msra.mxu0 0.0
  %3322 = vmatprep.subr.mxu0 0.0
  %3323 = vmatpush1.msra.mxu0 0.0
  %3324 = vmatprep.subr.mxu0 0.0
  %3325 = vmatpush1.msra.mxu0 0.0
  %3326 = vmatprep.subr.mxu0 0.0
  %3327 = vmatpush1.msra.mxu0 0.0
  %3328 = vmatprep.subr.mxu0 0.0
  %3329 = vmatpush1.msra.mxu0 0.0
  %3330 = vmatprep.subr.mxu0 0.0
  %3331 = vmatpush1.msra.mxu0 0.0
  %3332 = vmatprep.subr.mxu0 0.0
  %3333 = vmatpush1.msra.mxu0 0.0
  %3334 = vmatprep.subr.mxu0 0.0
  %3335 = vmatpush1.msra.mxu0 0.0
  %3336 = vmatprep.subr.mxu0 0.0
  %3337 = vmatpush1.msra.mxu0 0.0
  %3338 = vmatprep.subr.mxu0 0.0
  %3339 = vmatpush1.msra.mxu0 0.0
  %3340 = vmatprep.subr.mxu0 0.0
  %3341 = vmatpush1.msra.mxu0 0.0
  %3342 = vmatprep.subr.mxu0 0.0
  %3343 = vmatpush1.msra.mxu0 0.0
  %3344 = vmatprep.subr.mxu0 0.0
  %3345 = vmatpush1.msra.mxu0 0.0
  %3346 = vmatprep.mubr.f32.mxu0 0.0
  %3347 = vmatmul.mubr.f32.gmra.mrb[0].mxu0 %v1343
  %v3348 = vpop.f32.mrb[0].mxu0
  %v3349 = vadd.f32 %v1340, %v3348
  %v3350 = vpop.f32.mrb[0].mxu0
  %v3351 = vadd.f32 %v1340, %v3350
  %3352 = vdwg.mxu0
  %3353 = vmatprep.subr.mxu0 %v3134
  %3354 = vmatpush1.msra.mxu0 %v3133
  %3355 = vmatprep.subr.mxu0 %v3155
  %3356 = vmatpush1.msra.mxu0 %v3154
  %3357 = vmatprep.subr.mxu0 %v3176
  %3358 = vmatpush1.msra.mxu0 %v3175
  %3359 = vmatprep.subr.mxu0 %v3197
  %3360 = vmatpush1.msra.mxu0 %v3196
  %3361 = vmatprep.subr.mxu0 %v3108
  %3362 = vmatpush1.msra.mxu0 %v3106
  %3363 = vmatprep.subr.mxu0 %v3218
  %3364 = vmatpush1.msra.mxu0 %v3217
  %3365 = vmatprep.subr.mxu0 %v3239
  %3366 = vmatpush1.msra.mxu0 %v3238
  %3367 = vmatprep.subr.mxu0 %v3260
  %3368 = vmatpush1.msra.mxu0 %v3259
  %3369 = vmatprep.subr.mxu0 %v3281
  %3370 = vmatpush1.msra.mxu0 %v3280
  %3371 = vmatprep.subr.mxu0 0.0
  %3372 = vmatpush1.msra.mxu0 0.0
  %3373 = vmatprep.subr.mxu0 0.0
  %3374 = vmatpush1.msra.mxu0 0.0
  %3375 = vmatprep.subr.mxu0 0.0
  %3376 = vmatpush1.msra.mxu0 0.0
  %3377 = vmatprep.subr.mxu0 0.0
  %3378 = vmatpush1.msra.mxu0 0.0
  %3379 = vmatprep.subr.mxu0 0.0
  %3380 = vmatpush1.msra.mxu0 0.0
  %3381 = vmatprep.subr.mxu0 0.0
  %3382 = vmatpush1.msra.mxu0 0.0
  %3383 = vmatprep.subr.mxu0 0.0
  %3384 = vmatpush1.msra.mxu0 0.0
  %3385 = vmatprep.subr.mxu0 0.0
  %3386 = vmatpush1.msra.mxu0 0.0
  %3387 = vmatprep.subr.mxu0 0.0
  %3388 = vmatpush1.msra.mxu0 0.0
  %3389 = vmatprep.subr.mxu0 0.0
  %3390 = vmatpush1.msra.mxu0 0.0
  %3391 = vmatprep.subr.mxu0 0.0
  %3392 = vmatpush1.msra.mxu0 0.0
  %3393 = vmatprep.subr.mxu0 0.0
  %3394 = vmatpush1.msra.mxu0 0.0
  %3395 = vmatprep.subr.mxu0 0.0
  %3396 = vmatpush1.msra.mxu0 0.0
  %3397 = vmatprep.subr.mxu0 0.0
  %3398 = vmatpush1.msra.mxu0 0.0
  %3399 = vmatprep.subr.mxu0 0.0
  %3400 = vmatpush1.msra.mxu0 0.0
  %3401 = vmatprep.subr.mxu0 0.0
  %3402 = vmatpush1.msra.mxu0 0.0
  %3403 = vmatprep.subr.mxu0 0.0
  %3404 = vmatpush1.msra.mxu0 0.0
  %3405 = vmatprep.subr.mxu0 0.0
  %3406 = vmatpush1.msra.mxu0 0.0
  %3407 = vmatprep.subr.mxu0 0.0
  %3408 = vmatpush1.msra.mxu0 0.0
  %3409 = vmatprep.subr.mxu0 0.0
  %3410 = vmatpush1.msra.mxu0 0.0
  %3411 = vmatprep.subr.mxu0 0.0
  %3412 = vmatpush1.msra.mxu0 0.0
  %3413 = vmatprep.subr.mxu0 0.0
  %3414 = vmatpush1.msra.mxu0 0.0
  %3415 = vmatprep.subr.mxu0 0.0
  %3416 = vmatpush1.msra.mxu0 0.0
  %3417 = vmatprep.mubr.f32.mxu0 0.0
  %3418 = vmatmul.mubr.f32.gmra.mrb[0].mxu0 %v1343
  %v3419 = vpop.f32.mrb[0].mxu0
  %v3420 = vadd.f32 %v1340, %v3419
  %v3421 = vpop.f32.mrb[0].mxu0
  %v3422 = vadd.f32 %v1340, %v3421
  %3423 = vdwg.mxu0
  %3425 = vrot.lane.b32.xlu0 %v3422, 17
  %v3426 = vpop.permute.xlu0 %3425
  %3431 = vrot.lane.b32.xlu0 %v3349, 17
  %v3432 = vpop.permute.xlu0 %3431
  %3433 = vrot.lane.b32.xlu0 %v3351, 17
  %v3434 = vpop.permute.xlu0 %3433
  %3435 = vrot.lane.b32.xlu0 %v3420, 17
  %v3436 = vpop.permute.xlu0 %3435
  %v3437 = vsel %vm56, %v3432, %v3434
  %v3438 = vsel %vm56, %v3434, %v3436
  %v3439 = vsel %vm56, %v3436, %v3426
  %v3444 = vsel %vm56, %v3426, %v3432
  %v3445 = vmul.f32 %v3444, %v68
  %v3446 = vmul.f32 %v3437, %v72
  %v3447 = vmul.f32 %v3438, %v76
  %v3448 = vmul.f32 %v3439, %v80
  %3449 = vrot.lane.b32.xlu0 %v3422, 16
  %v3450 = vpop.permute.xlu0 %3449
  %3452 = vrot.lane.b32.xlu0 %v3349, 16
  %v3453 = vpop.permute.xlu0 %3452
  %3454 = vrot.lane.b32.xlu0 %v3351, 16
  %v3455 = vpop.permute.xlu0 %3454
  %3456 = vrot.lane.b32.xlu0 %v3420, 16
  %v3457 = vpop.permute.xlu0 %3456
  %v3458 = vsel %vm94, %v3453, %v3455
  %v3459 = vsel %vm94, %v3455, %v3457
  %v3460 = vsel %vm94, %v3457, %v3450
  %v3465 = vsel %vm94, %v3450, %v3453
  %v3466 = vmul.f32 %v3465, %v106
  %v3467 = vmul.f32 %v3458, %v110
  %v3468 = vmul.f32 %v3459, %v114
  %v3469 = vmul.f32 %v3460, %v118
  %3470 = vrot.lane.b32.xlu0 %v3422, 15
  %v3471 = vpop.permute.xlu0 %3470
  %3473 = vrot.lane.b32.xlu0 %v3349, 15
  %v3474 = vpop.permute.xlu0 %3473
  %3475 = vrot.lane.b32.xlu0 %v3351, 15
  %v3476 = vpop.permute.xlu0 %3475
  %3477 = vrot.lane.b32.xlu0 %v3420, 15
  %v3478 = vpop.permute.xlu0 %3477
  %v3479 = vsel %vm132, %v3474, %v3476
  %v3480 = vsel %vm132, %v3476, %v3478
  %v3481 = vsel %vm132, %v3478, %v3471
  %v3486 = vsel %vm132, %v3471, %v3474
  %v3487 = vmul.f32 %v3486, %v144
  %v3488 = vmul.f32 %v3479, %v148
  %v3489 = vmul.f32 %v3480, %v152
  %v3490 = vmul.f32 %v3481, %v156
  %3491 = vrot.lane.b32.xlu0 %v3422, 1
  %v3492 = vpop.permute.xlu0 %3491
  %3494 = vrot.lane.b32.xlu0 %v3349, 1
  %v3495 = vpop.permute.xlu0 %3494
  %3496 = vrot.lane.b32.xlu0 %v3351, 1
  %v3497 = vpop.permute.xlu0 %3496
  %3498 = vrot.lane.b32.xlu0 %v3420, 1
  %v3499 = vpop.permute.xlu0 %3498
  %v3500 = vsel %vm170, %v3495, %v3497
  %v3501 = vsel %vm170, %v3497, %v3499
  %v3502 = vsel %vm170, %v3499, %v3492
  %v3507 = vsel %vm170, %v3492, %v3495
  %v3508 = vmul.f32 %v3507, %v182
  %v3509 = vmul.f32 %v3500, %v186
  %v3510 = vmul.f32 %v3501, %v190
  %v3511 = vmul.f32 %v3502, %v194
  %3512 = vrot.lane.b32.xlu0 %v3349, 127
  %v3513 = vpop.permute.xlu0 %3512
  %3514 = vrot.lane.b32.xlu0 %v3351, 127
  %v3515 = vpop.permute.xlu0 %3514
  %3516 = vrot.lane.b32.xlu0 %v3420, 127
  %v3517 = vpop.permute.xlu0 %3516
  %3518 = vrot.lane.b32.xlu0 %v3422, 127
  %v3519 = vpop.permute.xlu0 %3518
  %v3520 = vsel %vm207, %v3513, %v3515
  %v3521 = vsel %vm207, %v3515, %v3517
  %v3522 = vsel %vm207, %v3517, %v3519
  %v3528 = vsel %vm207, %v3519, %v3513
  %v3529 = vmul.f32 %v3520, %v220
  %v3530 = vmul.f32 %v3521, %v224
  %v3531 = vmul.f32 %v3522, %v228
  %v3532 = vmul.f32 %v3528, %v232
  %3533 = vrot.lane.b32.xlu0 %v3349, 113
  %v3534 = vpop.permute.xlu0 %3533
  %3535 = vrot.lane.b32.xlu0 %v3351, 113
  %v3536 = vpop.permute.xlu0 %3535
  %3537 = vrot.lane.b32.xlu0 %v3420, 113
  %v3538 = vpop.permute.xlu0 %3537
  %3539 = vrot.lane.b32.xlu0 %v3422, 113
  %v3540 = vpop.permute.xlu0 %3539
  %v3541 = vsel %vm245, %v3534, %v3536
  %v3542 = vsel %vm245, %v3536, %v3538
  %v3543 = vsel %vm245, %v3538, %v3540
  %v3549 = vsel %vm245, %v3540, %v3534
  %v3550 = vmul.f32 %v3541, %v258
  %v3551 = vmul.f32 %v3542, %v262
  %v3552 = vmul.f32 %v3543, %v266
  %v3553 = vmul.f32 %v3549, %v270
  %3554 = vrot.lane.b32.xlu0 %v3349, 112
  %v3555 = vpop.permute.xlu0 %3554
  %3556 = vrot.lane.b32.xlu0 %v3351, 112
  %v3557 = vpop.permute.xlu0 %3556
  %3558 = vrot.lane.b32.xlu0 %v3420, 112
  %v3559 = vpop.permute.xlu0 %3558
  %3560 = vrot.lane.b32.xlu0 %v3422, 112
  %v3561 = vpop.permute.xlu0 %3560
  %v3562 = vsel %vm283, %v3555, %v3557
  %v3563 = vsel %vm283, %v3557, %v3559
  %v3564 = vsel %vm283, %v3559, %v3561
  %v3570 = vsel %vm283, %v3561, %v3555
  %v3571 = vmul.f32 %v3562, %v296
  %v3572 = vmul.f32 %v3563, %v300
  %v3573 = vmul.f32 %v3564, %v304
  %v3574 = vmul.f32 %v3570, %v308
  %3575 = vrot.lane.b32.xlu0 %v3349, 111
  %v3576 = vpop.permute.xlu0 %3575
  %3577 = vrot.lane.b32.xlu0 %v3351, 111
  %v3578 = vpop.permute.xlu0 %3577
  %3579 = vrot.lane.b32.xlu0 %v3420, 111
  %v3580 = vpop.permute.xlu0 %3579
  %3581 = vrot.lane.b32.xlu0 %v3422, 111
  %v3582 = vpop.permute.xlu0 %3581
  %v3583 = vsel %vm321, %v3576, %v3578
  %v3584 = vsel %vm321, %v3578, %v3580
  %v3585 = vsel %vm321, %v3580, %v3582
  %v3591 = vsel %vm321, %v3582, %v3576
  %v3592 = vmul.f32 %v3583, %v334
  %v3593 = vmul.f32 %v3584, %v338
  %v3594 = vmul.f32 %v3585, %v342
  %v3595 = vmul.f32 %v3591, %v346
  %3596 = vmatprep.subr.mxu0 %v3446
  %3597 = vmatpush1.msra.mxu0 %v3445
  %3598 = vmatprep.subr.mxu0 %v3467
  %3599 = vmatpush1.msra.mxu0 %v3466
  %3600 = vmatprep.subr.mxu0 %v3488
  %3601 = vmatpush1.msra.mxu0 %v3487
  %3602 = vmatprep.subr.mxu0 %v3509
  %3603 = vmatpush1.msra.mxu0 %v3508
  %3604 = vmatprep.subr.mxu0 %v3351
  %3605 = vmatpush1.msra.mxu0 %v3349
  %3606 = vmatprep.subr.mxu0 %v3530
  %3607 = vmatpush1.msra.mxu0 %v3529
  %3608 = vmatprep.subr.mxu0 %v3551
  %3609 = vmatpush1.msra.mxu0 %v3550
  %3610 = vmatprep.subr.mxu0 %v3572
  %3611 = vmatpush1.msra.mxu0 %v3571
  %3612 = vmatprep.subr.mxu0 %v3593
  %3613 = vmatpush1.msra.mxu0 %v3592
  %3614 = vmatprep.subr.mxu0 0.0
  %3615 = vmatpush1.msra.mxu0 0.0
  %3616 = vmatprep.subr.mxu0 0.0
  %3617 = vmatpush1.msra.mxu0 0.0
  %3618 = vmatprep.subr.mxu0 0.0
  %3619 = vmatpush1.msra.mxu0 0.0
  %3620 = vmatprep.subr.mxu0 0.0
  %3621 = vmatpush1.msra.mxu0 0.0
  %3622 = vmatprep.subr.mxu0 0.0
  %3623 = vmatpush1.msra.mxu0 0.0
  %3624 = vmatprep.subr.mxu0 0.0
  %3625 = vmatpush1.msra.mxu0 0.0
  %3626 = vmatprep.subr.mxu0 0.0
  %3627 = vmatpush1.msra.mxu0 0.0
  %3628 = vmatprep.subr.mxu0 0.0
  %3629 = vmatpush1.msra.mxu0 0.0
  %3630 = vmatprep.subr.mxu0 0.0
  %3631 = vmatpush1.msra.mxu0 0.0
  %3632 = vmatprep.subr.mxu0 0.0
  %3633 = vmatpush1.msra.mxu0 0.0
  %3634 = vmatprep.subr.mxu0 0.0
  %3635 = vmatpush1.msra.mxu0 0.0
  %3636 = vmatprep.subr.mxu0 0.0
  %3637 = vmatpush1.msra.mxu0 0.0
  %3638 = vmatprep.subr.mxu0 0.0
  %3639 = vmatpush1.msra.mxu0 0.0
  %3640 = vmatprep.subr.mxu0 0.0
  %3641 = vmatpush1.msra.mxu0 0.0
  %3642 = vmatprep.subr.mxu0 0.0
  %3643 = vmatpush1.msra.mxu0 0.0
  %3644 = vmatprep.subr.mxu0 0.0
  %3645 = vmatpush1.msra.mxu0 0.0
  %3646 = vmatprep.subr.mxu0 0.0
  %3647 = vmatpush1.msra.mxu0 0.0
  %3648 = vmatprep.subr.mxu0 0.0
  %3649 = vmatpush1.msra.mxu0 0.0
  %3650 = vmatprep.subr.mxu0 0.0
  %3651 = vmatpush1.msra.mxu0 0.0
  %3652 = vmatprep.subr.mxu0 0.0
  %3653 = vmatpush1.msra.mxu0 0.0
  %3654 = vmatprep.subr.mxu0 0.0
  %3655 = vmatpush1.msra.mxu0 0.0
  %3656 = vmatprep.subr.mxu0 0.0
  %3657 = vmatpush1.msra.mxu0 0.0
  %3658 = vmatprep.subr.mxu0 0.0
  %3659 = vmatpush1.msra.mxu0 0.0
  %3660 = vmatprep.mubr.f32.mxu0 0.0
  %3661 = vmatmul.mubr.f32.gmra.mrb[0].mxu0 %v1343
  %v3662 = vpop.f32.mrb[0].mxu0
  %v3663 = vadd.f32 %v1340, %v3662
  %v3664 = vpop.f32.mrb[0].mxu0
  %v3665 = vadd.f32 %v1340, %v3664
  %3666 = vdwg.mxu0
  %3667 = vmatprep.subr.mxu0 %v3448
  %3668 = vmatpush1.msra.mxu0 %v3447
  %3669 = vmatprep.subr.mxu0 %v3469
  %3670 = vmatpush1.msra.mxu0 %v3468
  %3671 = vmatprep.subr.mxu0 %v3490
  %3672 = vmatpush1.msra.mxu0 %v3489
  %3673 = vmatprep.subr.mxu0 %v3511
  %3674 = vmatpush1.msra.mxu0 %v3510
  %3675 = vmatprep.subr.mxu0 %v3422
  %3676 = vmatpush1.msra.mxu0 %v3420
  %3677 = vmatprep.subr.mxu0 %v3532
  %3678 = vmatpush1.msra.mxu0 %v3531
  %3679 = vmatprep.subr.mxu0 %v3553
  %3680 = vmatpush1.msra.mxu0 %v3552
  %3681 = vmatprep.subr.mxu0 %v3574
  %3682 = vmatpush1.msra.mxu0 %v3573
  %3683 = vmatprep.subr.mxu0 %v3595
  %3684 = vmatpush1.msra.mxu0 %v3594
  %3685 = vmatprep.subr.mxu0 0.0
  %3686 = vmatpush1.msra.mxu0 0.0
  %3687 = vmatprep.subr.mxu0 0.0
  %3688 = vmatpush1.msra.mxu0 0.0
  %3689 = vmatprep.subr.mxu0 0.0
  %3690 = vmatpush1.msra.mxu0 0.0
  %3691 = vmatprep.subr.mxu0 0.0
  %3692 = vmatpush1.msra.mxu0 0.0
  %3693 = vmatprep.subr.mxu0 0.0
  %3694 = vmatpush1.msra.mxu0 0.0
  %3695 = vmatprep.subr.mxu0 0.0
  %3696 = vmatpush1.msra.mxu0 0.0
  %3697 = vmatprep.subr.mxu0 0.0
  %3698 = vmatpush1.msra.mxu0 0.0
  %3699 = vmatprep.subr.mxu0 0.0
  %3700 = vmatpush1.msra.mxu0 0.0
  %3701 = vmatprep.subr.mxu0 0.0
  %3702 = vmatpush1.msra.mxu0 0.0
  %3703 = vmatprep.subr.mxu0 0.0
  %3704 = vmatpush1.msra.mxu0 0.0
  %3705 = vmatprep.subr.mxu0 0.0
  %3706 = vmatpush1.msra.mxu0 0.0
  %3707 = vmatprep.subr.mxu0 0.0
  %3708 = vmatpush1.msra.mxu0 0.0
  %3709 = vmatprep.subr.mxu0 0.0
  %3710 = vmatpush1.msra.mxu0 0.0
  %3711 = vmatprep.subr.mxu0 0.0
  %3712 = vmatpush1.msra.mxu0 0.0
  %3713 = vmatprep.subr.mxu0 0.0
  %3714 = vmatpush1.msra.mxu0 0.0
  %3715 = vmatprep.subr.mxu0 0.0
  %3716 = vmatpush1.msra.mxu0 0.0
  %3717 = vmatprep.subr.mxu0 0.0
  %3718 = vmatpush1.msra.mxu0 0.0
  %3719 = vmatprep.subr.mxu0 0.0
  %3720 = vmatpush1.msra.mxu0 0.0
  %3721 = vmatprep.subr.mxu0 0.0
  %3722 = vmatpush1.msra.mxu0 0.0
  %3723 = vmatprep.subr.mxu0 0.0
  %3724 = vmatpush1.msra.mxu0 0.0
  %3725 = vmatprep.subr.mxu0 0.0
  %3726 = vmatpush1.msra.mxu0 0.0
  %3727 = vmatprep.subr.mxu0 0.0
  %3728 = vmatpush1.msra.mxu0 0.0
  %3729 = vmatprep.subr.mxu0 0.0
  %3730 = vmatpush1.msra.mxu0 0.0
  %3731 = vmatprep.mubr.f32.mxu0 0.0
  %3732 = vmatmul.mubr.f32.gmra.mrb[0].mxu0 %v1343
  %v3733 = vpop.f32.mrb[0].mxu0
  %v3734 = vadd.f32 %v1340, %v3733
  %v3735 = vpop.f32.mrb[0].mxu0
  %v3736 = vadd.f32 %v1340, %v3735
  %3737 = vdwg.mxu0
  %3739 = vrot.lane.b32.xlu0 %v3736, 17
  %v3740 = vpop.permute.xlu0 %3739
  %3745 = vrot.lane.b32.xlu0 %v3663, 17
  %v3746 = vpop.permute.xlu0 %3745
  %3747 = vrot.lane.b32.xlu0 %v3665, 17
  %v3748 = vpop.permute.xlu0 %3747
  %3749 = vrot.lane.b32.xlu0 %v3734, 17
  %v3750 = vpop.permute.xlu0 %3749
  %v3751 = vsel %vm56, %v3746, %v3748
  %v3752 = vsel %vm56, %v3748, %v3750
  %v3753 = vsel %vm56, %v3750, %v3740
  %v3758 = vsel %vm56, %v3740, %v3746
  %v3759 = vmul.f32 %v3758, %v68
  %v3760 = vmul.f32 %v3751, %v72
  %v3761 = vmul.f32 %v3752, %v76
  %v3762 = vmul.f32 %v3753, %v80
  %3763 = vrot.lane.b32.xlu0 %v3736, 16
  %v3764 = vpop.permute.xlu0 %3763
  %3766 = vrot.lane.b32.xlu0 %v3663, 16
  %v3767 = vpop.permute.xlu0 %3766
  %3768 = vrot.lane.b32.xlu0 %v3665, 16
  %v3769 = vpop.permute.xlu0 %3768
  %3770 = vrot.lane.b32.xlu0 %v3734, 16
  %v3771 = vpop.permute.xlu0 %3770
  %v3772 = vsel %vm94, %v3767, %v3769
  %v3773 = vsel %vm94, %v3769, %v3771
  %v3774 = vsel %vm94, %v3771, %v3764
  %v3779 = vsel %vm94, %v3764, %v3767
  %v3780 = vmul.f32 %v3779, %v106
  %v3781 = vmul.f32 %v3772, %v110
  %v3782 = vmul.f32 %v3773, %v114
  %v3783 = vmul.f32 %v3774, %v118
  %3784 = vrot.lane.b32.xlu0 %v3736, 15
  %v3785 = vpop.permute.xlu0 %3784
  %3787 = vrot.lane.b32.xlu0 %v3663, 15
  %v3788 = vpop.permute.xlu0 %3787
  %3789 = vrot.lane.b32.xlu0 %v3665, 15
  %v3790 = vpop.permute.xlu0 %3789
  %3791 = vrot.lane.b32.xlu0 %v3734, 15
  %v3792 = vpop.permute.xlu0 %3791
  %v3793 = vsel %vm132, %v3788, %v3790
  %v3794 = vsel %vm132, %v3790, %v3792
  %v3795 = vsel %vm132, %v3792, %v3785
  %v3800 = vsel %vm132, %v3785, %v3788
  %v3801 = vmul.f32 %v3800, %v144
  %v3802 = vmul.f32 %v3793, %v148
  %v3803 = vmul.f32 %v3794, %v152
  %v3804 = vmul.f32 %v3795, %v156
  %3805 = vrot.lane.b32.xlu0 %v3736, 1
  %v3806 = vpop.permute.xlu0 %3805
  %3808 = vrot.lane.b32.xlu0 %v3663, 1
  %v3809 = vpop.permute.xlu0 %3808
  %3810 = vrot.lane.b32.xlu0 %v3665, 1
  %v3811 = vpop.permute.xlu0 %3810
  %3812 = vrot.lane.b32.xlu0 %v3734, 1
  %v3813 = vpop.permute.xlu0 %3812
  %v3814 = vsel %vm170, %v3809, %v3811
  %v3815 = vsel %vm170, %v3811, %v3813
  %v3816 = vsel %vm170, %v3813, %v3806
  %v3821 = vsel %vm170, %v3806, %v3809
  %v3822 = vmul.f32 %v3821, %v182
  %v3823 = vmul.f32 %v3814, %v186
  %v3824 = vmul.f32 %v3815, %v190
  %v3825 = vmul.f32 %v3816, %v194
  %3826 = vrot.lane.b32.xlu0 %v3663, 127
  %v3827 = vpop.permute.xlu0 %3826
  %3828 = vrot.lane.b32.xlu0 %v3665, 127
  %v3829 = vpop.permute.xlu0 %3828
  %3830 = vrot.lane.b32.xlu0 %v3734, 127
  %v3831 = vpop.permute.xlu0 %3830
  %3832 = vrot.lane.b32.xlu0 %v3736, 127
  %v3833 = vpop.permute.xlu0 %3832
  %v3834 = vsel %vm207, %v3827, %v3829
  %v3835 = vsel %vm207, %v3829, %v3831
  %v3836 = vsel %vm207, %v3831, %v3833
  %v3842 = vsel %vm207, %v3833, %v3827
  %v3843 = vmul.f32 %v3834, %v220
  %v3844 = vmul.f32 %v3835, %v224
  %v3845 = vmul.f32 %v3836, %v228
  %v3846 = vmul.f32 %v3842, %v232
  %3847 = vrot.lane.b32.xlu0 %v3663, 113
  %v3848 = vpop.permute.xlu0 %3847
  %3849 = vrot.lane.b32.xlu0 %v3665, 113
  %v3850 = vpop.permute.xlu0 %3849
  %3851 = vrot.lane.b32.xlu0 %v3734, 113
  %v3852 = vpop.permute.xlu0 %3851
  %3853 = vrot.lane.b32.xlu0 %v3736, 113
  %v3854 = vpop.permute.xlu0 %3853
  %v3855 = vsel %vm245, %v3848, %v3850
  %v3856 = vsel %vm245, %v3850, %v3852
  %v3857 = vsel %vm245, %v3852, %v3854
  %v3863 = vsel %vm245, %v3854, %v3848
  %v3864 = vmul.f32 %v3855, %v258
  %v3865 = vmul.f32 %v3856, %v262
  %v3866 = vmul.f32 %v3857, %v266
  %v3867 = vmul.f32 %v3863, %v270
  %3868 = vrot.lane.b32.xlu0 %v3663, 112
  %v3869 = vpop.permute.xlu0 %3868
  %3870 = vrot.lane.b32.xlu0 %v3665, 112
  %v3871 = vpop.permute.xlu0 %3870
  %3872 = vrot.lane.b32.xlu0 %v3734, 112
  %v3873 = vpop.permute.xlu0 %3872
  %3874 = vrot.lane.b32.xlu0 %v3736, 112
  %v3875 = vpop.permute.xlu0 %3874
  %v3876 = vsel %vm283, %v3869, %v3871
  %v3877 = vsel %vm283, %v3871, %v3873
  %v3878 = vsel %vm283, %v3873, %v3875
  %v3884 = vsel %vm283, %v3875, %v3869
  %v3885 = vmul.f32 %v3876, %v296
  %v3886 = vmul.f32 %v3877, %v300
  %v3887 = vmul.f32 %v3878, %v304
  %v3888 = vmul.f32 %v3884, %v308
  %3889 = vrot.lane.b32.xlu0 %v3663, 111
  %v3890 = vpop.permute.xlu0 %3889
  %3891 = vrot.lane.b32.xlu0 %v3665, 111
  %v3892 = vpop.permute.xlu0 %3891
  %3893 = vrot.lane.b32.xlu0 %v3734, 111
  %v3894 = vpop.permute.xlu0 %3893
  %3895 = vrot.lane.b32.xlu0 %v3736, 111
  %v3896 = vpop.permute.xlu0 %3895
  %v3897 = vsel %vm321, %v3890, %v3892
  %v3898 = vsel %vm321, %v3892, %v3894
  %v3899 = vsel %vm321, %v3894, %v3896
  %v3905 = vsel %vm321, %v3896, %v3890
  %v3906 = vmul.f32 %v3897, %v334
  %v3907 = vmul.f32 %v3898, %v338
  %v3908 = vmul.f32 %v3899, %v342
  %v3909 = vmul.f32 %v3905, %v346
  %3910 = vmatprep.subr.mxu0 %v3760
  %3911 = vmatpush1.msra.mxu0 %v3759
  %3912 = vmatprep.subr.mxu0 %v3781
  %3913 = vmatpush1.msra.mxu0 %v3780
  %3914 = vmatprep.subr.mxu0 %v3802
  %3915 = vmatpush1.msra.mxu0 %v3801
  %3916 = vmatprep.subr.mxu0 %v3823
  %3917 = vmatpush1.msra.mxu0 %v3822
  %3918 = vmatprep.subr.mxu0 %v3665
  %3919 = vmatpush1.msra.mxu0 %v3663
  %3920 = vmatprep.subr.mxu0 %v3844
  %3921 = vmatpush1.msra.mxu0 %v3843
  %3922 = vmatprep.subr.mxu0 %v3865
  %3923 = vmatpush1.msra.mxu0 %v3864
  %3924 = vmatprep.subr.mxu0 %v3886
  %3925 = vmatpush1.msra.mxu0 %v3885
  %3926 = vmatprep.subr.mxu0 %v3907
  %3927 = vmatpush1.msra.mxu0 %v3906
  %3928 = vmatprep.subr.mxu0 0.0
  %3929 = vmatpush1.msra.mxu0 0.0
  %3930 = vmatprep.subr.mxu0 0.0
  %3931 = vmatpush1.msra.mxu0 0.0
  %3932 = vmatprep.subr.mxu0 0.0
  %3933 = vmatpush1.msra.mxu0 0.0
  %3934 = vmatprep.subr.mxu0 0.0
  %3935 = vmatpush1.msra.mxu0 0.0
  %3936 = vmatprep.subr.mxu0 0.0
  %3937 = vmatpush1.msra.mxu0 0.0
  %3938 = vmatprep.subr.mxu0 0.0
  %3939 = vmatpush1.msra.mxu0 0.0
  %3940 = vmatprep.subr.mxu0 0.0
  %3941 = vmatpush1.msra.mxu0 0.0
  %3942 = vmatprep.subr.mxu0 0.0
  %3943 = vmatpush1.msra.mxu0 0.0
  %3944 = vmatprep.subr.mxu0 0.0
  %3945 = vmatpush1.msra.mxu0 0.0
  %3946 = vmatprep.subr.mxu0 0.0
  %3947 = vmatpush1.msra.mxu0 0.0
  %3948 = vmatprep.subr.mxu0 0.0
  %3949 = vmatpush1.msra.mxu0 0.0
  %3950 = vmatprep.subr.mxu0 0.0
  %3951 = vmatpush1.msra.mxu0 0.0
  %3952 = vmatprep.subr.mxu0 0.0
  %3953 = vmatpush1.msra.mxu0 0.0
  %3954 = vmatprep.subr.mxu0 0.0
  %3955 = vmatpush1.msra.mxu0 0.0
  %3956 = vmatprep.subr.mxu0 0.0
  %3957 = vmatpush1.msra.mxu0 0.0
  %3958 = vmatprep.subr.mxu0 0.0
  %3959 = vmatpush1.msra.mxu0 0.0
  %3960 = vmatprep.subr.mxu0 0.0
  %3961 = vmatpush1.msra.mxu0 0.0
  %3962 = vmatprep.subr.mxu0 0.0
  %3963 = vmatpush1.msra.mxu0 0.0
  %3964 = vmatprep.subr.mxu0 0.0
  %3965 = vmatpush1.msra.mxu0 0.0
  %3966 = vmatprep.subr.mxu0 0.0
  %3967 = vmatpush1.msra.mxu0 0.0
  %3968 = vmatprep.subr.mxu0 0.0
  %3969 = vmatpush1.msra.mxu0 0.0
  %3970 = vmatprep.subr.mxu0 0.0
  %3971 = vmatpush1.msra.mxu0 0.0
  %3972 = vmatprep.subr.mxu0 0.0
  %3973 = vmatpush1.msra.mxu0 0.0
  %3974 = vmatprep.mubr.f32.mxu0 0.0
  %3975 = vmatmul.mubr.f32.gmra.mrb[0].mxu0 %v1983
  %v3976 = vpop.f32.mrb[0].mxu0
  %v3977 = vadd.f32 %v1980, %v3976
  %v3978 = vpop.f32.mrb[0].mxu0
  %v3979 = vadd.f32 %v1980, %v3978
  %3980 = vdwg.mxu0
  %3981 = vmatprep.subr.mxu0 %v3762
  %3982 = vmatpush1.msra.mxu0 %v3761
  %3983 = vmatprep.subr.mxu0 %v3783
  %3984 = vmatpush1.msra.mxu0 %v3782
  %3985 = vmatprep.subr.mxu0 %v3804
  %3986 = vmatpush1.msra.mxu0 %v3803
  %3987 = vmatprep.subr.mxu0 %v3825
  %3988 = vmatpush1.msra.mxu0 %v3824
  %3989 = vmatprep.subr.mxu0 %v3736
  %3990 = vmatpush1.msra.mxu0 %v3734
  %3991 = vmatprep.subr.mxu0 %v3846
  %3992 = vmatpush1.msra.mxu0 %v3845
  %3993 = vmatprep.subr.mxu0 %v3867
  %3994 = vmatpush1.msra.mxu0 %v3866
  %3995 = vmatprep.subr.mxu0 %v3888
  %3996 = vmatpush1.msra.mxu0 %v3887
  %3997 = vmatprep.subr.mxu0 %v3909
  %3998 = vmatpush1.msra.mxu0 %v3908
  %3999 = vmatprep.subr.mxu0 0.0
  %4000 = vmatpush1.msra.mxu0 0.0
  %4001 = vmatprep.subr.mxu0 0.0
  %4002 = vmatpush1.msra.mxu0 0.0
  %4003 = vmatprep.subr.mxu0 0.0
  %4004 = vmatpush1.msra.mxu0 0.0
  %4005 = vmatprep.subr.mxu0 0.0
  %4006 = vmatpush1.msra.mxu0 0.0
  %4007 = vmatprep.subr.mxu0 0.0
  %4008 = vmatpush1.msra.mxu0 0.0
  %4009 = vmatprep.subr.mxu0 0.0
  %4010 = vmatpush1.msra.mxu0 0.0
  %4011 = vmatprep.subr.mxu0 0.0
  %4012 = vmatpush1.msra.mxu0 0.0
  %4013 = vmatprep.subr.mxu0 0.0
  %4014 = vmatpush1.msra.mxu0 0.0
  %4015 = vmatprep.subr.mxu0 0.0
  %4016 = vmatpush1.msra.mxu0 0.0
  %4017 = vmatprep.subr.mxu0 0.0
  %4018 = vmatpush1.msra.mxu0 0.0
  %4019 = vmatprep.subr.mxu0 0.0
  %4020 = vmatpush1.msra.mxu0 0.0
  %4021 = vmatprep.subr.mxu0 0.0
  %4022 = vmatpush1.msra.mxu0 0.0
  %4023 = vmatprep.subr.mxu0 0.0
  %4024 = vmatpush1.msra.mxu0 0.0
  %4025 = vmatprep.subr.mxu0 0.0
  %4026 = vmatpush1.msra.mxu0 0.0
  %4027 = vmatprep.subr.mxu0 0.0
  %4028 = vmatpush1.msra.mxu0 0.0
  %4029 = vmatprep.subr.mxu0 0.0
  %4030 = vmatpush1.msra.mxu0 0.0
  %4031 = vmatprep.subr.mxu0 0.0
  %4032 = vmatpush1.msra.mxu0 0.0
  %4033 = vmatprep.subr.mxu0 0.0
  %4034 = vmatpush1.msra.mxu0 0.0
  %4035 = vmatprep.subr.mxu0 0.0
  %4036 = vmatpush1.msra.mxu0 0.0
  %4037 = vmatprep.subr.mxu0 0.0
  %4038 = vmatpush1.msra.mxu0 0.0
  %4039 = vmatprep.subr.mxu0 0.0
  %4040 = vmatpush1.msra.mxu0 0.0
  %4041 = vmatprep.subr.mxu0 0.0
  %4042 = vmatpush1.msra.mxu0 0.0
  %4043 = vmatprep.subr.mxu0 0.0
  %4044 = vmatpush1.msra.mxu0 0.0
  %4045 = vmatprep.mubr.f32.mxu0 0.0
  %4046 = vmatmul.mubr.f32.gmra.mrb[0].mxu0 %v1983
  %v4047 = vpop.f32.mrb[0].mxu0
  %v4048 = vadd.f32 %v1980, %v4047
  %v4049 = vpop.f32.mrb[0].mxu0
  %v4050 = vadd.f32 %v1980, %v4049
  %4051 = vdwg.mxu0
  %4053 = vrot.lane.b32.xlu0 %v4050, 17
  %v4054 = vpop.permute.xlu0 %4053
  %4059 = vrot.lane.b32.xlu0 %v3977, 17
  %v4060 = vpop.permute.xlu0 %4059
  %4061 = vrot.lane.b32.xlu0 %v3979, 17
  %v4062 = vpop.permute.xlu0 %4061
  %4063 = vrot.lane.b32.xlu0 %v4048, 17
  %v4064 = vpop.permute.xlu0 %4063
  %v4065 = vsel %vm56, %v4060, %v4062
  %v4066 = vsel %vm56, %v4062, %v4064
  %v4067 = vsel %vm56, %v4064, %v4054
  %v4072 = vsel %vm56, %v4054, %v4060
  %v4073 = vmul.f32 %v4072, %v68
  %v4074 = vmul.f32 %v4065, %v72
  %v4075 = vmul.f32 %v4066, %v76
  %v4076 = vmul.f32 %v4067, %v80
  %4077 = vrot.lane.b32.xlu0 %v4050, 16
  %v4078 = vpop.permute.xlu0 %4077
  %4080 = vrot.lane.b32.xlu0 %v3977, 16
  %v4081 = vpop.permute.xlu0 %4080
  %4082 = vrot.lane.b32.xlu0 %v3979, 16
  %v4083 = vpop.permute.xlu0 %4082
  %4084 = vrot.lane.b32.xlu0 %v4048, 16
  %v4085 = vpop.permute.xlu0 %4084
  %v4086 = vsel %vm94, %v4081, %v4083
  %v4087 = vsel %vm94, %v4083, %v4085
  %v4088 = vsel %vm94, %v4085, %v4078
  %v4093 = vsel %vm94, %v4078, %v4081
  %v4094 = vmul.f32 %v4093, %v106
  %v4095 = vmul.f32 %v4086, %v110
  %v4096 = vmul.f32 %v4087, %v114
  %v4097 = vmul.f32 %v4088, %v118
  %4098 = vrot.lane.b32.xlu0 %v4050, 15
  %v4099 = vpop.permute.xlu0 %4098
  %4101 = vrot.lane.b32.xlu0 %v3977, 15
  %v4102 = vpop.permute.xlu0 %4101
  %4103 = vrot.lane.b32.xlu0 %v3979, 15
  %v4104 = vpop.permute.xlu0 %4103
  %4105 = vrot.lane.b32.xlu0 %v4048, 15
  %v4106 = vpop.permute.xlu0 %4105
  %v4107 = vsel %vm132, %v4102, %v4104
  %v4108 = vsel %vm132, %v4104, %v4106
  %v4109 = vsel %vm132, %v4106, %v4099
  %v4114 = vsel %vm132, %v4099, %v4102
  %v4115 = vmul.f32 %v4114, %v144
  %v4116 = vmul.f32 %v4107, %v148
  %v4117 = vmul.f32 %v4108, %v152
  %v4118 = vmul.f32 %v4109, %v156
  %4119 = vrot.lane.b32.xlu0 %v4050, 1
  %v4120 = vpop.permute.xlu0 %4119
  %4122 = vrot.lane.b32.xlu0 %v3977, 1
  %v4123 = vpop.permute.xlu0 %4122
  %4124 = vrot.lane.b32.xlu0 %v3979, 1
  %v4125 = vpop.permute.xlu0 %4124
  %4126 = vrot.lane.b32.xlu0 %v4048, 1
  %v4127 = vpop.permute.xlu0 %4126
  %v4128 = vsel %vm170, %v4123, %v4125
  %v4129 = vsel %vm170, %v4125, %v4127
  %v4130 = vsel %vm170, %v4127, %v4120
  %v4135 = vsel %vm170, %v4120, %v4123
  %v4136 = vmul.f32 %v4135, %v182
  %v4137 = vmul.f32 %v4128, %v186
  %v4138 = vmul.f32 %v4129, %v190
  %v4139 = vmul.f32 %v4130, %v194
  %4140 = vrot.lane.b32.xlu0 %v3977, 127
  %v4141 = vpop.permute.xlu0 %4140
  %4142 = vrot.lane.b32.xlu0 %v3979, 127
  %v4143 = vpop.permute.xlu0 %4142
  %4144 = vrot.lane.b32.xlu0 %v4048, 127
  %v4145 = vpop.permute.xlu0 %4144
  %4146 = vrot.lane.b32.xlu0 %v4050, 127
  %v4147 = vpop.permute.xlu0 %4146
  %v4148 = vsel %vm207, %v4141, %v4143
  %v4149 = vsel %vm207, %v4143, %v4145
  %v4150 = vsel %vm207, %v4145, %v4147
  %v4156 = vsel %vm207, %v4147, %v4141
  %v4157 = vmul.f32 %v4148, %v220
  %v4158 = vmul.f32 %v4149, %v224
  %v4159 = vmul.f32 %v4150, %v228
  %v4160 = vmul.f32 %v4156, %v232
  %4161 = vrot.lane.b32.xlu0 %v3977, 113
  %v4162 = vpop.permute.xlu0 %4161
  %4163 = vrot.lane.b32.xlu0 %v3979, 113
  %v4164 = vpop.permute.xlu0 %4163
  %4165 = vrot.lane.b32.xlu0 %v4048, 113
  %v4166 = vpop.permute.xlu0 %4165
  %4167 = vrot.lane.b32.xlu0 %v4050, 113
  %v4168 = vpop.permute.xlu0 %4167
  %v4169 = vsel %vm245, %v4162, %v4164
  %v4170 = vsel %vm245, %v4164, %v4166
  %v4171 = vsel %vm245, %v4166, %v4168
  %v4177 = vsel %vm245, %v4168, %v4162
  %v4178 = vmul.f32 %v4169, %v258
  %v4179 = vmul.f32 %v4170, %v262
  %v4180 = vmul.f32 %v4171, %v266
  %v4181 = vmul.f32 %v4177, %v270
  %4182 = vrot.lane.b32.xlu0 %v3977, 112
  %v4183 = vpop.permute.xlu0 %4182
  %4184 = vrot.lane.b32.xlu0 %v3979, 112
  %v4185 = vpop.permute.xlu0 %4184
  %4186 = vrot.lane.b32.xlu0 %v4048, 112
  %v4187 = vpop.permute.xlu0 %4186
  %4188 = vrot.lane.b32.xlu0 %v4050, 112
  %v4189 = vpop.permute.xlu0 %4188
  %v4190 = vsel %vm283, %v4183, %v4185
  %v4191 = vsel %vm283, %v4185, %v4187
  %v4192 = vsel %vm283, %v4187, %v4189
  %v4198 = vsel %vm283, %v4189, %v4183
  %v4199 = vmul.f32 %v4190, %v296
  %v4200 = vmul.f32 %v4191, %v300
  %v4201 = vmul.f32 %v4192, %v304
  %v4202 = vmul.f32 %v4198, %v308
  %4203 = vrot.lane.b32.xlu0 %v3977, 111
  %v4204 = vpop.permute.xlu0 %4203
  %4205 = vrot.lane.b32.xlu0 %v3979, 111
  %v4206 = vpop.permute.xlu0 %4205
  %4207 = vrot.lane.b32.xlu0 %v4048, 111
  %v4208 = vpop.permute.xlu0 %4207
  %4209 = vrot.lane.b32.xlu0 %v4050, 111
  %v4210 = vpop.permute.xlu0 %4209
  %v4211 = vsel %vm321, %v4204, %v4206
  %v4212 = vsel %vm321, %v4206, %v4208
  %v4213 = vsel %vm321, %v4208, %v4210
  %v4219 = vsel %vm321, %v4210, %v4204
  %v4220 = vmul.f32 %v4211, %v334
  %v4221 = vmul.f32 %v4212, %v338
  %v4222 = vmul.f32 %v4213, %v342
  %v4223 = vmul.f32 %v4219, %v346
  %4224 = vmatprep.subr.mxu0 %v4074
  %4225 = vmatpush1.msra.mxu0 %v4073
  %4226 = vmatprep.subr.mxu0 %v4095
  %4227 = vmatpush1.msra.mxu0 %v4094
  %4228 = vmatprep.subr.mxu0 %v4116
  %4229 = vmatpush1.msra.mxu0 %v4115
  %4230 = vmatprep.subr.mxu0 %v4137
  %4231 = vmatpush1.msra.mxu0 %v4136
  %4232 = vmatprep.subr.mxu0 %v3979
  %4233 = vmatpush1.msra.mxu0 %v3977
  %4234 = vmatprep.subr.mxu0 %v4158
  %4235 = vmatpush1.msra.mxu0 %v4157
  %4236 = vmatprep.subr.mxu0 %v4179
  %4237 = vmatpush1.msra.mxu0 %v4178
  %4238 = vmatprep.subr.mxu0 %v4200
  %4239 = vmatpush1.msra.mxu0 %v4199
  %4240 = vmatprep.subr.mxu0 %v4221
  %4241 = vmatpush1.msra.mxu0 %v4220
  %4242 = vmatprep.subr.mxu0 0.0
  %4243 = vmatpush1.msra.mxu0 0.0
  %4244 = vmatprep.subr.mxu0 0.0
  %4245 = vmatpush1.msra.mxu0 0.0
  %4246 = vmatprep.subr.mxu0 0.0
  %4247 = vmatpush1.msra.mxu0 0.0
  %4248 = vmatprep.subr.mxu0 0.0
  %4249 = vmatpush1.msra.mxu0 0.0
  %4250 = vmatprep.subr.mxu0 0.0
  %4251 = vmatpush1.msra.mxu0 0.0
  %4252 = vmatprep.subr.mxu0 0.0
  %4253 = vmatpush1.msra.mxu0 0.0
  %4254 = vmatprep.subr.mxu0 0.0
  %4255 = vmatpush1.msra.mxu0 0.0
  %4256 = vmatprep.subr.mxu0 0.0
  %4257 = vmatpush1.msra.mxu0 0.0
  %4258 = vmatprep.subr.mxu0 0.0
  %4259 = vmatpush1.msra.mxu0 0.0
  %4260 = vmatprep.subr.mxu0 0.0
  %4261 = vmatpush1.msra.mxu0 0.0
  %4262 = vmatprep.subr.mxu0 0.0
  %4263 = vmatpush1.msra.mxu0 0.0
  %4264 = vmatprep.subr.mxu0 0.0
  %4265 = vmatpush1.msra.mxu0 0.0
  %4266 = vmatprep.subr.mxu0 0.0
  %4267 = vmatpush1.msra.mxu0 0.0
  %4268 = vmatprep.subr.mxu0 0.0
  %4269 = vmatpush1.msra.mxu0 0.0
  %4270 = vmatprep.subr.mxu0 0.0
  %4271 = vmatpush1.msra.mxu0 0.0
  %4272 = vmatprep.subr.mxu0 0.0
  %4273 = vmatpush1.msra.mxu0 0.0
  %4274 = vmatprep.subr.mxu0 0.0
  %4275 = vmatpush1.msra.mxu0 0.0
  %4276 = vmatprep.subr.mxu0 0.0
  %4277 = vmatpush1.msra.mxu0 0.0
  %4278 = vmatprep.subr.mxu0 0.0
  %4279 = vmatpush1.msra.mxu0 0.0
  %4280 = vmatprep.subr.mxu0 0.0
  %4281 = vmatpush1.msra.mxu0 0.0
  %4282 = vmatprep.subr.mxu0 0.0
  %4283 = vmatpush1.msra.mxu0 0.0
  %4284 = vmatprep.subr.mxu0 0.0
  %4285 = vmatpush1.msra.mxu0 0.0
  %4286 = vmatprep.subr.mxu0 0.0
  %4287 = vmatpush1.msra.mxu0 0.0
  %4288 = vmatprep.mubr.f32.mxu0 0.0
  %4289 = vmatmul.mubr.f32.gmra.mrb[0].mxu0 %v2309
  %v4290 = vpop.f32.mrb[0].mxu0
  %v4291 = vadd.f32 %v2306, %v4290
  %v4292 = vpop.f32.mrb[0].mxu0
  %v4293 = vadd.f32 %v2306, %v4292
  %4294 = vdwg.mxu0
  %4295 = vmatprep.subr.mxu0 %v4076
  %4296 = vmatpush1.msra.mxu0 %v4075
  %4297 = vmatprep.subr.mxu0 %v4097
  %4298 = vmatpush1.msra.mxu0 %v4096
  %4299 = vmatprep.subr.mxu0 %v4118
  %4300 = vmatpush1.msra.mxu0 %v4117
  %4301 = vmatprep.subr.mxu0 %v4139
  %4302 = vmatpush1.msra.mxu0 %v4138
  %4303 = vmatprep.subr.mxu0 %v4050
  %4304 = vmatpush1.msra.mxu0 %v4048
  %4305 = vmatprep.subr.mxu0 %v4160
  %4306 = vmatpush1.msra.mxu0 %v4159
  %4307 = vmatprep.subr.mxu0 %v4181
  %4308 = vmatpush1.msra.mxu0 %v4180
  %4309 = vmatprep.subr.mxu0 %v4202
  %4310 = vmatpush1.msra.mxu0 %v4201
  %4311 = vmatprep.subr.mxu0 %v4223
  %4312 = vmatpush1.msra.mxu0 %v4222
  %4313 = vmatprep.subr.mxu0 0.0
  %4314 = vmatpush1.msra.mxu0 0.0
  %4315 = vmatprep.subr.mxu0 0.0
  %4316 = vmatpush1.msra.mxu0 0.0
  %4317 = vmatprep.subr.mxu0 0.0
  %4318 = vmatpush1.msra.mxu0 0.0
  %4319 = vmatprep.subr.mxu0 0.0
  %4320 = vmatpush1.msra.mxu0 0.0
  %4321 = vmatprep.subr.mxu0 0.0
  %4322 = vmatpush1.msra.mxu0 0.0
  %4323 = vmatprep.subr.mxu0 0.0
  %4324 = vmatpush1.msra.mxu0 0.0
  %4325 = vmatprep.subr.mxu0 0.0
  %4326 = vmatpush1.msra.mxu0 0.0
  %4327 = vmatprep.subr.mxu0 0.0
  %4328 = vmatpush1.msra.mxu0 0.0
  %4329 = vmatprep.subr.mxu0 0.0
  %4330 = vmatpush1.msra.mxu0 0.0
  %4331 = vmatprep.subr.mxu0 0.0
  %4332 = vmatpush1.msra.mxu0 0.0
  %4333 = vmatprep.subr.mxu0 0.0
  %4334 = vmatpush1.msra.mxu0 0.0
  %4335 = vmatprep.subr.mxu0 0.0
  %4336 = vmatpush1.msra.mxu0 0.0
  %4337 = vmatprep.subr.mxu0 0.0
  %4338 = vmatpush1.msra.mxu0 0.0
  %4339 = vmatprep.subr.mxu0 0.0
  %4340 = vmatpush1.msra.mxu0 0.0
  %4341 = vmatprep.subr.mxu0 0.0
  %4342 = vmatpush1.msra.mxu0 0.0
  %4343 = vmatprep.subr.mxu0 0.0
  %4344 = vmatpush1.msra.mxu0 0.0
  %4345 = vmatprep.subr.mxu0 0.0
  %4346 = vmatpush1.msra.mxu0 0.0
  %4347 = vmatprep.subr.mxu0 0.0
  %4348 = vmatpush1.msra.mxu0 0.0
  %4349 = vmatprep.subr.mxu0 0.0
  %4350 = vmatpush1.msra.mxu0 0.0
  %4351 = vmatprep.subr.mxu0 0.0
  %4352 = vmatpush1.msra.mxu0 0.0
  %4353 = vmatprep.subr.mxu0 0.0
  %4354 = vmatpush1.msra.mxu0 0.0
  %4355 = vmatprep.subr.mxu0 0.0
  %4356 = vmatpush1.msra.mxu0 0.0
  %4357 = vmatprep.subr.mxu0 0.0
  %4358 = vmatpush1.msra.mxu0 0.0
  %4359 = vmatprep.mubr.f32.mxu0 0.0
  %4360 = vmatmul.mubr.f32.gmra.mrb[0].mxu0 %v2309
  %v4361 = vpop.f32.mrb[0].mxu0
  %v4362 = vadd.f32 %v2306, %v4361
  %v4363 = vpop.f32.mrb[0].mxu0
  %v4364 = vadd.f32 %v2306, %v4363
  %4365 = vdwg.mxu0
  %4367 = vrot.lane.b32.xlu0 %v4364, 17
  %v4368 = vpop.permute.xlu0 %4367
  %4373 = vrot.lane.b32.xlu0 %v4291, 17
  %v4374 = vpop.permute.xlu0 %4373
  %4375 = vrot.lane.b32.xlu0 %v4293, 17
  %v4376 = vpop.permute.xlu0 %4375
  %4377 = vrot.lane.b32.xlu0 %v4362, 17
  %v4378 = vpop.permute.xlu0 %4377
  %v4379 = vsel %vm56, %v4374, %v4376
  %v4380 = vsel %vm56, %v4376, %v4378
  %v4381 = vsel %vm56, %v4378, %v4368
  %v4386 = vsel %vm56, %v4368, %v4374
  %v4387 = vmul.f32 %v4386, %v68
  %v4388 = vmul.f32 %v4379, %v72
  %v4389 = vmul.f32 %v4380, %v76
  %v4390 = vmul.f32 %v4381, %v80
  %4391 = vrot.lane.b32.xlu0 %v4364, 16
  %v4392 = vpop.permute.xlu0 %4391
  %4394 = vrot.lane.b32.xlu0 %v4291, 16
  %v4395 = vpop.permute.xlu0 %4394
  %4396 = vrot.lane.b32.xlu0 %v4293, 16
  %v4397 = vpop.permute.xlu0 %4396
  %4398 = vrot.lane.b32.xlu0 %v4362, 16
  %v4399 = vpop.permute.xlu0 %4398
  %v4400 = vsel %vm94, %v4395, %v4397
  %v4401 = vsel %vm94, %v4397, %v4399
  %v4402 = vsel %vm94, %v4399, %v4392
  %v4407 = vsel %vm94, %v4392, %v4395
  %v4408 = vmul.f32 %v4407, %v106
  %v4409 = vmul.f32 %v4400, %v110
  %v4410 = vmul.f32 %v4401, %v114
  %v4411 = vmul.f32 %v4402, %v118
  %4412 = vrot.lane.b32.xlu0 %v4364, 15
  %v4413 = vpop.permute.xlu0 %4412
  %4415 = vrot.lane.b32.xlu0 %v4291, 15
  %v4416 = vpop.permute.xlu0 %4415
  %4417 = vrot.lane.b32.xlu0 %v4293, 15
  %v4418 = vpop.permute.xlu0 %4417
  %4419 = vrot.lane.b32.xlu0 %v4362, 15
  %v4420 = vpop.permute.xlu0 %4419
  %v4421 = vsel %vm132, %v4416, %v4418
  %v4422 = vsel %vm132, %v4418, %v4420
  %v4423 = vsel %vm132, %v4420, %v4413
  %v4428 = vsel %vm132, %v4413, %v4416
  %v4429 = vmul.f32 %v4428, %v144
  %v4430 = vmul.f32 %v4421, %v148
  %v4431 = vmul.f32 %v4422, %v152
  %v4432 = vmul.f32 %v4423, %v156
  %4433 = vrot.lane.b32.xlu0 %v4364, 1
  %v4434 = vpop.permute.xlu0 %4433
  %4436 = vrot.lane.b32.xlu0 %v4291, 1
  %v4437 = vpop.permute.xlu0 %4436
  %4438 = vrot.lane.b32.xlu0 %v4293, 1
  %v4439 = vpop.permute.xlu0 %4438
  %4440 = vrot.lane.b32.xlu0 %v4362, 1
  %v4441 = vpop.permute.xlu0 %4440
  %v4442 = vsel %vm170, %v4437, %v4439
  %v4443 = vsel %vm170, %v4439, %v4441
  %v4444 = vsel %vm170, %v4441, %v4434
  %v4449 = vsel %vm170, %v4434, %v4437
  %v4450 = vmul.f32 %v4449, %v182
  %v4451 = vmul.f32 %v4442, %v186
  %v4452 = vmul.f32 %v4443, %v190
  %v4453 = vmul.f32 %v4444, %v194
  %4454 = vrot.lane.b32.xlu0 %v4291, 127
  %v4455 = vpop.permute.xlu0 %4454
  %4456 = vrot.lane.b32.xlu0 %v4293, 127
  %v4457 = vpop.permute.xlu0 %4456
  %4458 = vrot.lane.b32.xlu0 %v4362, 127
  %v4459 = vpop.permute.xlu0 %4458
  %4460 = vrot.lane.b32.xlu0 %v4364, 127
  %v4461 = vpop.permute.xlu0 %4460
  %v4462 = vsel %vm207, %v4455, %v4457
  %v4463 = vsel %vm207, %v4457, %v4459
  %v4464 = vsel %vm207, %v4459, %v4461
  %v4470 = vsel %vm207, %v4461, %v4455
  %v4471 = vmul.f32 %v4462, %v220
  %v4472 = vmul.f32 %v4463, %v224
  %v4473 = vmul.f32 %v4464, %v228
  %v4474 = vmul.f32 %v4470, %v232
  %4475 = vrot.lane.b32.xlu0 %v4291, 113
  %v4476 = vpop.permute.xlu0 %4475
  %4477 = vrot.lane.b32.xlu0 %v4293, 113
  %v4478 = vpop.permute.xlu0 %4477
  %4479 = vrot.lane.b32.xlu0 %v4362, 113
  %v4480 = vpop.permute.xlu0 %4479
  %4481 = vrot.lane.b32.xlu0 %v4364, 113
  %v4482 = vpop.permute.xlu0 %4481
  %v4483 = vsel %vm245, %v4476, %v4478
  %v4484 = vsel %vm245, %v4478, %v4480
  %v4485 = vsel %vm245, %v4480, %v4482
  %v4491 = vsel %vm245, %v4482, %v4476
  %v4492 = vmul.f32 %v4483, %v258
  %v4493 = vmul.f32 %v4484, %v262
  %v4494 = vmul.f32 %v4485, %v266
  %v4495 = vmul.f32 %v4491, %v270
  %4496 = vrot.lane.b32.xlu0 %v4291, 112
  %v4497 = vpop.permute.xlu0 %4496
  %4498 = vrot.lane.b32.xlu0 %v4293, 112
  %v4499 = vpop.permute.xlu0 %4498
  %4500 = vrot.lane.b32.xlu0 %v4362, 112
  %v4501 = vpop.permute.xlu0 %4500
  %4502 = vrot.lane.b32.xlu0 %v4364, 112
  %v4503 = vpop.permute.xlu0 %4502
  %v4504 = vsel %vm283, %v4497, %v4499
  %v4505 = vsel %vm283, %v4499, %v4501
  %v4506 = vsel %vm283, %v4501, %v4503
  %v4512 = vsel %vm283, %v4503, %v4497
  %v4513 = vmul.f32 %v4504, %v296
  %v4514 = vmul.f32 %v4505, %v300
  %v4515 = vmul.f32 %v4506, %v304
  %v4516 = vmul.f32 %v4512, %v308
  %4517 = vrot.lane.b32.xlu0 %v4291, 111
  %v4518 = vpop.permute.xlu0 %4517
  %4519 = vrot.lane.b32.xlu0 %v4293, 111
  %v4520 = vpop.permute.xlu0 %4519
  %4521 = vrot.lane.b32.xlu0 %v4362, 111
  %v4522 = vpop.permute.xlu0 %4521
  %4523 = vrot.lane.b32.xlu0 %v4364, 111
  %v4524 = vpop.permute.xlu0 %4523
  %v4525 = vsel %vm321, %v4518, %v4520
  %v4526 = vsel %vm321, %v4520, %v4522
  %v4527 = vsel %vm321, %v4522, %v4524
  %v4533 = vsel %vm321, %v4524, %v4518
  %v4534 = vmul.f32 %v4525, %v334
  %v4535 = vmul.f32 %v4526, %v338
  %v4536 = vmul.f32 %v4527, %v342
  %v4537 = vmul.f32 %v4533, %v346
  %4538 = vmatprep.subr.mxu0 %v4388
  %4539 = vmatpush1.msra.mxu0 %v4387
  %4540 = vmatprep.subr.mxu0 %v4409
  %4541 = vmatpush1.msra.mxu0 %v4408
  %4542 = vmatprep.subr.mxu0 %v4430
  %4543 = vmatpush1.msra.mxu0 %v4429
  %4544 = vmatprep.subr.mxu0 %v4451
  %4545 = vmatpush1.msra.mxu0 %v4450
  %4546 = vmatprep.subr.mxu0 %v4293
  %4547 = vmatpush1.msra.mxu0 %v4291
  %4548 = vmatprep.subr.mxu0 %v4472
  %4549 = vmatpush1.msra.mxu0 %v4471
  %4550 = vmatprep.subr.mxu0 %v4493
  %4551 = vmatpush1.msra.mxu0 %v4492
  %4552 = vmatprep.subr.mxu0 %v4514
  %4553 = vmatpush1.msra.mxu0 %v4513
  %4554 = vmatprep.subr.mxu0 %v4535
  %4555 = vmatpush1.msra.mxu0 %v4534
  %4556 = vmatprep.subr.mxu0 0.0
  %4557 = vmatpush1.msra.mxu0 0.0
  %4558 = vmatprep.subr.mxu0 0.0
  %4559 = vmatpush1.msra.mxu0 0.0
  %4560 = vmatprep.subr.mxu0 0.0
  %4561 = vmatpush1.msra.mxu0 0.0
  %4562 = vmatprep.subr.mxu0 0.0
  %4563 = vmatpush1.msra.mxu0 0.0
  %4564 = vmatprep.subr.mxu0 0.0
  %4565 = vmatpush1.msra.mxu0 0.0
  %4566 = vmatprep.subr.mxu0 0.0
  %4567 = vmatpush1.msra.mxu0 0.0
  %4568 = vmatprep.subr.mxu0 0.0
  %4569 = vmatpush1.msra.mxu0 0.0
  %4570 = vmatprep.subr.mxu0 0.0
  %4571 = vmatpush1.msra.mxu0 0.0
  %4572 = vmatprep.subr.mxu0 0.0
  %4573 = vmatpush1.msra.mxu0 0.0
  %4574 = vmatprep.subr.mxu0 0.0
  %4575 = vmatpush1.msra.mxu0 0.0
  %4576 = vmatprep.subr.mxu0 0.0
  %4577 = vmatpush1.msra.mxu0 0.0
  %4578 = vmatprep.subr.mxu0 0.0
  %4579 = vmatpush1.msra.mxu0 0.0
  %4580 = vmatprep.subr.mxu0 0.0
  %4581 = vmatpush1.msra.mxu0 0.0
  %4582 = vmatprep.subr.mxu0 0.0
  %4583 = vmatpush1.msra.mxu0 0.0
  %4584 = vmatprep.subr.mxu0 0.0
  %4585 = vmatpush1.msra.mxu0 0.0
  %4586 = vmatprep.subr.mxu0 0.0
  %4587 = vmatpush1.msra.mxu0 0.0
  %4588 = vmatprep.subr.mxu0 0.0
  %4589 = vmatpush1.msra.mxu0 0.0
  %4590 = vmatprep.subr.mxu0 0.0
  %4591 = vmatpush1.msra.mxu0 0.0
  %4592 = vmatprep.subr.mxu0 0.0
  %4593 = vmatpush1.msra.mxu0 0.0
  %4594 = vmatprep.subr.mxu0 0.0
  %4595 = vmatpush1.msra.mxu0 0.0
  %4596 = vmatprep.subr.mxu0 0.0
  %4597 = vmatpush1.msra.mxu0 0.0
  %4598 = vmatprep.subr.mxu0 0.0
  %4599 = vmatpush1.msra.mxu0 0.0
  %4600 = vmatprep.subr.mxu0 0.0
  %4601 = vmatpush1.msra.mxu0 0.0
  %4602 = vmatprep.mubr.f32.mxu0 0.0
  %4603 = vmatmul.mubr.f32.gmra.mrb[0].mxu0 %v2635
  %v4604 = vpop.f32.mrb[0].mxu0
  %v4605 = vadd.f32 %v2632, %v4604
  %v4606 = vpop.f32.mrb[0].mxu0
  %v4607 = vadd.f32 %v2632, %v4606
  %4608 = vdwg.mxu0
  %4609 = vmatprep.subr.mxu0 %v4390
  %4610 = vmatpush1.msra.mxu0 %v4389
  %4611 = vmatprep.subr.mxu0 %v4411
  %4612 = vmatpush1.msra.mxu0 %v4410
  %4613 = vmatprep.subr.mxu0 %v4432
  %4614 = vmatpush1.msra.mxu0 %v4431
  %4615 = vmatprep.subr.mxu0 %v4453
  %4616 = vmatpush1.msra.mxu0 %v4452
  %4617 = vmatprep.subr.mxu0 %v4364
  %4618 = vmatpush1.msra.mxu0 %v4362
  %4619 = vmatprep.subr.mxu0 %v4474
  %4620 = vmatpush1.msra.mxu0 %v4473
  %4621 = vmatprep.subr.mxu0 %v4495
  %4622 = vmatpush1.msra.mxu0 %v4494
  %4623 = vmatprep.subr.mxu0 %v4516
  %4624 = vmatpush1.msra.mxu0 %v4515
  %4625 = vmatprep.subr.mxu0 %v4537
  %4626 = vmatpush1.msra.mxu0 %v4536
  %4627 = vmatprep.subr.mxu0 0.0
  %4628 = vmatpush1.msra.mxu0 0.0
  %4629 = vmatprep.subr.mxu0 0.0
  %4630 = vmatpush1.msra.mxu0 0.0
  %4631 = vmatprep.subr.mxu0 0.0
  %4632 = vmatpush1.msra.mxu0 0.0
  %4633 = vmatprep.subr.mxu0 0.0
  %4634 = vmatpush1.msra.mxu0 0.0
  %4635 = vmatprep.subr.mxu0 0.0
  %4636 = vmatpush1.msra.mxu0 0.0
  %4637 = vmatprep.subr.mxu0 0.0
  %4638 = vmatpush1.msra.mxu0 0.0
  %4639 = vmatprep.subr.mxu0 0.0
  %4640 = vmatpush1.msra.mxu0 0.0
  %4641 = vmatprep.subr.mxu0 0.0
  %4642 = vmatpush1.msra.mxu0 0.0
  %4643 = vmatprep.subr.mxu0 0.0
  %4644 = vmatpush1.msra.mxu0 0.0
  %4645 = vmatprep.subr.mxu0 0.0
  %4646 = vmatpush1.msra.mxu0 0.0
  %4647 = vmatprep.subr.mxu0 0.0
  %4648 = vmatpush1.msra.mxu0 0.0
  %4649 = vmatprep.subr.mxu0 0.0
  %4650 = vmatpush1.msra.mxu0 0.0
  %4651 = vmatprep.subr.mxu0 0.0
  %4652 = vmatpush1.msra.mxu0 0.0
  %4653 = vmatprep.subr.mxu0 0.0
  %4654 = vmatpush1.msra.mxu0 0.0
  %4655 = vmatprep.subr.mxu0 0.0
  %4656 = vmatpush1.msra.mxu0 0.0
  %4657 = vmatprep.subr.mxu0 0.0
  %4658 = vmatpush1.msra.mxu0 0.0
  %4659 = vmatprep.subr.mxu0 0.0
  %4660 = vmatpush1.msra.mxu0 0.0
  %4661 = vmatprep.subr.mxu0 0.0
  %4662 = vmatpush1.msra.mxu0 0.0
  %4663 = vmatprep.subr.mxu0 0.0
  %4664 = vmatpush1.msra.mxu0 0.0
  %4665 = vmatprep.subr.mxu0 0.0
  %4666 = vmatpush1.msra.mxu0 0.0
  %4667 = vmatprep.subr.mxu0 0.0
  %4668 = vmatpush1.msra.mxu0 0.0
  %4669 = vmatprep.subr.mxu0 0.0
  %4670 = vmatpush1.msra.mxu0 0.0
  %4671 = vmatprep.subr.mxu0 0.0
  %4672 = vmatpush1.msra.mxu0 0.0
  %4673 = vmatprep.mubr.f32.mxu0 0.0
  %4674 = vmatmul.mubr.f32.gmra.mrb[0].mxu0 %v2635
  %v4675 = vpop.f32.mrb[0].mxu0
  %v4676 = vadd.f32 %v2632, %v4675
  %v4677 = vpop.f32.mrb[0].mxu0
  %v4678 = vadd.f32 %v2632, %v4677
  %4679 = vdwg.mxu0
  %4680 = vmatprep.subr.mxu0 %v4607
  %4681 = vmatpush1.msra.mxu0 %v4605
  %4682 = vmatprep.subr.mxu0 0.0
  %4683 = vmatpush1.msra.mxu0 0.0
  %4684 = vmatprep.subr.mxu0 0.0
  %4685 = vmatpush1.msra.mxu0 0.0
  %4686 = vmatprep.subr.mxu0 0.0
  %4687 = vmatpush1.msra.mxu0 0.0
  %4688 = vmatprep.subr.mxu0 0.0
  %4689 = vmatpush1.msra.mxu0 0.0
  %4690 = vmatprep.subr.mxu0 0.0
  %4691 = vmatpush1.msra.mxu0 0.0
  %4692 = vmatprep.subr.mxu0 0.0
  %4693 = vmatpush1.msra.mxu0 0.0
  %4694 = vmatprep.subr.mxu0 0.0
  %4695 = vmatpush1.msra.mxu0 0.0
  %4696 = vmatprep.subr.mxu0 0.0
  %4697 = vmatpush1.msra.mxu0 0.0
  %4698 = vmatprep.subr.mxu0 0.0
  %4699 = vmatpush1.msra.mxu0 0.0
  %4700 = vmatprep.subr.mxu0 0.0
  %4701 = vmatpush1.msra.mxu0 0.0
  %4702 = vmatprep.subr.mxu0 0.0
  %4703 = vmatpush1.msra.mxu0 0.0
  %4704 = vmatprep.subr.mxu0 0.0
  %4705 = vmatpush1.msra.mxu0 0.0
  %4706 = vmatprep.subr.mxu0 0.0
  %4707 = vmatpush1.msra.mxu0 0.0
  %4708 = vmatprep.subr.mxu0 0.0
  %4709 = vmatpush1.msra.mxu0 0.0
  %4710 = vmatprep.subr.mxu0 0.0
  %4711 = vmatpush1.msra.mxu0 0.0
  %4712 = vmatprep.subr.mxu0 0.0
  %4713 = vmatpush1.msra.mxu0 0.0
  %4714 = vmatprep.subr.mxu0 0.0
  %4715 = vmatpush1.msra.mxu0 0.0
  %4716 = vmatprep.subr.mxu0 0.0
  %4717 = vmatpush1.msra.mxu0 0.0
  %4718 = vmatprep.subr.mxu0 0.0
  %4719 = vmatpush1.msra.mxu0 0.0
  %4720 = vmatprep.subr.mxu0 0.0
  %4721 = vmatpush1.msra.mxu0 0.0
  %4722 = vmatprep.subr.mxu0 0.0
  %4723 = vmatpush1.msra.mxu0 0.0
  %4724 = vmatprep.subr.mxu0 0.0
  %4725 = vmatpush1.msra.mxu0 0.0
  %4726 = vmatprep.subr.mxu0 0.0
  %4727 = vmatpush1.msra.mxu0 0.0
  %4728 = vmatprep.subr.mxu0 0.0
  %4729 = vmatpush1.msra.mxu0 0.0
  %4730 = vmatprep.subr.mxu0 0.0
  %4731 = vmatpush1.msra.mxu0 0.0
  %4732 = vmatprep.subr.mxu0 0.0
  %4733 = vmatpush1.msra.mxu0 0.0
  %4734 = vmatprep.subr.mxu0 0.0
  %4735 = vmatpush1.msra.mxu0 0.0
  %4736 = vmatprep.subr.mxu0 0.0
  %4737 = vmatpush1.msra.mxu0 0.0
  %4738 = vmatprep.subr.mxu0 0.0
  %4739 = vmatpush1.msra.mxu0 0.0
  %4740 = vmatprep.subr.mxu0 0.0
  %4741 = vmatpush1.msra.mxu0 0.0
  %4742 = vmatprep.subr.mxu0 0.0
  %4743 = vmatpush1.msra.mxu0 0.0
  %4744 = vmatprep.mubr.f32.mxu0 0.0
  %4745 = vmatmul.mubr.f32.gmra.mrb[0].mxu0 %v2788
  %v4746 = vpop.f32.mrb[0].mxu0
  %v4747 = vadd.f32 %v2784, %v4746
  %v4748 = vpop.f32.mrb[0].mxu0
  %v4749 = vadd.f32 %v2784, %v4748
  %4750 = vdwg.mxu0
  %4751 = vmatprep.subr.mxu0 %v4678
  %4752 = vmatpush1.msra.mxu0 %v4676
  %4753 = vmatprep.subr.mxu0 0.0
  %4754 = vmatpush1.msra.mxu0 0.0
  %4755 = vmatprep.subr.mxu0 0.0
  %4756 = vmatpush1.msra.mxu0 0.0
  %4757 = vmatprep.subr.mxu0 0.0
  %4758 = vmatpush1.msra.mxu0 0.0
  %4759 = vmatprep.subr.mxu0 0.0
  %4760 = vmatpush1.msra.mxu0 0.0
  %4761 = vmatprep.subr.mxu0 0.0
  %4762 = vmatpush1.msra.mxu0 0.0
  %4763 = vmatprep.subr.mxu0 0.0
  %4764 = vmatpush1.msra.mxu0 0.0
  %4765 = vmatprep.subr.mxu0 0.0
  %4766 = vmatpush1.msra.mxu0 0.0
  %4767 = vmatprep.subr.mxu0 0.0
  %4768 = vmatpush1.msra.mxu0 0.0
  %4769 = vmatprep.subr.mxu0 0.0
  %4770 = vmatpush1.msra.mxu0 0.0
  %4771 = vmatprep.subr.mxu0 0.0
  %4772 = vmatpush1.msra.mxu0 0.0
  %4773 = vmatprep.subr.mxu0 0.0
  %4774 = vmatpush1.msra.mxu0 0.0
  %4775 = vmatprep.subr.mxu0 0.0
  %4776 = vmatpush1.msra.mxu0 0.0
  %4777 = vmatprep.subr.mxu0 0.0
  %4778 = vmatpush1.msra.mxu0 0.0
  %4779 = vmatprep.subr.mxu0 0.0
  %4780 = vmatpush1.msra.mxu0 0.0
  %4781 = vmatprep.subr.mxu0 0.0
  %4782 = vmatpush1.msra.mxu0 0.0
  %4783 = vmatprep.subr.mxu0 0.0
  %4784 = vmatpush1.msra.mxu0 0.0
  %4785 = vmatprep.subr.mxu0 0.0
  %4786 = vmatpush1.msra.mxu0 0.0
  %4787 = vmatprep.subr.mxu0 0.0
  %4788 = vmatpush1.msra.mxu0 0.0
  %4789 = vmatprep.subr.mxu0 0.0
  %4790 = vmatpush1.msra.mxu0 0.0
  %4791 = vmatprep.subr.mxu0 0.0
  %4792 = vmatpush1.msra.mxu0 0.0
  %4793 = vmatprep.subr.mxu0 0.0
  %4794 = vmatpush1.msra.mxu0 0.0
  %4795 = vmatprep.subr.mxu0 0.0
  %4796 = vmatpush1.msra.mxu0 0.0
  %4797 = vmatprep.subr.mxu0 0.0
  %4798 = vmatpush1.msra.mxu0 0.0
  %4799 = vmatprep.subr.mxu0 0.0
  %4800 = vmatpush1.msra.mxu0 0.0
  %4801 = vmatprep.subr.mxu0 0.0
  %4802 = vmatpush1.msra.mxu0 0.0
  %4803 = vmatprep.subr.mxu0 0.0
  %4804 = vmatpush1.msra.mxu0 0.0
  %4805 = vmatprep.subr.mxu0 0.0
  %4806 = vmatpush1.msra.mxu0 0.0
  %4807 = vmatprep.subr.mxu0 0.0
  %4808 = vmatpush1.msra.mxu0 0.0
  %4809 = vmatprep.subr.mxu0 0.0
  %4810 = vmatpush1.msra.mxu0 0.0
  %4811 = vmatprep.subr.mxu0 0.0
  %4812 = vmatpush1.msra.mxu0 0.0
  %4813 = vmatprep.subr.mxu0 0.0
  %4814 = vmatpush1.msra.mxu0 0.0
  %4815 = vmatprep.mubr.f32.mxu0 0.0
  %4816 = vmatmul.mubr.f32.gmra.mrb[0].mxu0 %v2788
  %v4817 = vpop.f32.mrb[0].mxu0
  %v4818 = vadd.f32 %v2784, %v4817
  %v4819 = vpop.f32.mrb[0].mxu0
  %v4820 = vadd.f32 %v2784, %v4819
  %4821 = vdwg.mxu0
  %v4826 = vrot.slane %v4747, 7
  %v4827 = vrot.slane %v4749, 7
  %v4828 = vrot.slane %v4818, 7
  %v4829 = vrot.slane %v4820, 7
  %v4834 = vsub.f32 %v4747, %v4826
  %v4835 = vsub.f32 %v4749, %v4827
  %v4836 = vsub.f32 %v4818, %v4828
  %v4837 = vsub.f32 %v4820, %v4829
  %v4838 = vmul.f32 %v4834, 1.442695
  %v4839 = vpow.pop %v4838
  %v4840 = vmul.f32 %v4835, 1.442695
  %v4841 = vpow.pop %v4840
  %v4842 = vmul.f32 %v4836, 1.442695
  %v4843 = vpow.pop %v4842
  %v4844 = vmul.f32 %v4837, 1.442695
  %v4845 = vpow.pop %v4844
  %v4846 = vadd.f32 %v4839, 1.0
  %v4847 = vadd.f32 %v4841, 1.0
  %v4848 = vadd.f32 %v4843, 1.0
  %v4849 = vadd.f32 %v4845, 1.0
  %v4850 = vrcp.pop %v4846
  %v4851 = vmul.f32 1.0, %v4850
  %v4852 = vrcp.pop %v4847
  %v4853 = vmul.f32 1.0, %v4852
  %v4854 = vrcp.pop %v4848
  %v4855 = vmul.f32 1.0, %v4854
  %v4856 = vrcp.pop %v4849
  %v4857 = vmul.f32 1.0, %v4856
  %4858 = vmatprep.subr.mxu0 %v861
  %4859 = vmatpush1.msra.mxu0 %v860
  %4860 = vmatprep.subr.mxu0 %v4074
  %4861 = vmatpush1.msra.mxu0 %v4073
  %4862 = vmatprep.subr.mxu0 %v882
  %4863 = vmatpush1.msra.mxu0 %v881
  %4864 = vmatprep.subr.mxu0 %v4095
  %4865 = vmatpush1.msra.mxu0 %v4094
  %4866 = vmatprep.subr.mxu0 %v903
  %4867 = vmatpush1.msra.mxu0 %v902
  %4868 = vmatprep.subr.mxu0 %v4116
  %4869 = vmatpush1.msra.mxu0 %v4115
  %4870 = vmatprep.subr.mxu0 %v924
  %4871 = vmatpush1.msra.mxu0 %v923
  %4872 = vmatprep.subr.mxu0 %v4137
  %4873 = vmatpush1.msra.mxu0 %v4136
  %4874 = vmatprep.subr.mxu0 %v832
  %4875 = vmatpush1.msra.mxu0 %v831
  %4876 = vmatprep.subr.mxu0 %v3979
  %4877 = vmatpush1.msra.mxu0 %v3977
  %4878 = vmatprep.subr.mxu0 %v945
  %4879 = vmatpush1.msra.mxu0 %v944
  %4880 = vmatprep.subr.mxu0 %v4158
  %4881 = vmatpush1.msra.mxu0 %v4157
  %4882 = vmatprep.subr.mxu0 %v966
  %4883 = vmatpush1.msra.mxu0 %v965
  %4884 = vmatprep.subr.mxu0 %v4179
  %4885 = vmatpush1.msra.mxu0 %v4178
  %4886 = vmatprep.subr.mxu0 %v987
  %4887 = vmatpush1.msra.mxu0 %v986
  %4888 = vmatprep.subr.mxu0 %v4200
  %4889 = vmatpush1.msra.mxu0 %v4199
  %4890 = vmatprep.subr.mxu0 %v1008
  %4891 = vmatpush1.msra.mxu0 %v1007
  %4892 = vmatprep.subr.mxu0 %v4221
  %4893 = vmatpush1.msra.mxu0 %v4220
  %4894 = vmatprep.subr.mxu0 0.0
  %4895 = vmatpush1.msra.mxu0 0.0
  %4896 = vmatprep.subr.mxu0 0.0
  %4897 = vmatpush1.msra.mxu0 0.0
  %4898 = vmatprep.subr.mxu0 0.0
  %4899 = vmatpush1.msra.mxu0 0.0
  %4900 = vmatprep.subr.mxu0 0.0
  %4901 = vmatpush1.msra.mxu0 0.0
  %4902 = vmatprep.subr.mxu0 0.0
  %4903 = vmatpush1.msra.mxu0 0.0
  %4904 = vmatprep.subr.mxu0 0.0
  %4905 = vmatpush1.msra.mxu0 0.0
  %4906 = vmatprep.subr.mxu0 0.0
  %4907 = vmatpush1.msra.mxu0 0.0
  %4908 = vmatprep.subr.mxu0 0.0
  %4909 = vmatpush1.msra.mxu0 0.0
  %4910 = vmatprep.subr.mxu0 0.0
  %4911 = vmatpush1.msra.mxu0 0.0
  %4912 = vmatprep.subr.mxu0 0.0
  %4913 = vmatpush1.msra.mxu0 0.0
  %4914 = vmatprep.subr.mxu0 0.0
  %4915 = vmatpush1.msra.mxu0 0.0
  %4916 = vmatprep.subr.mxu0 0.0
  %4917 = vmatpush1.msra.mxu0 0.0
  %4918 = vmatprep.subr.mxu0 0.0
  %4919 = vmatpush1.msra.mxu0 0.0
  %4920 = vmatprep.subr.mxu0 0.0
  %4921 = vmatpush1.msra.mxu0 0.0
  %4922 = vmatprep.mubr.f32.mxu0 %v1017
  %4923 = vmatmul.mubr.f32.gmra.mrb[0].mxu0 %v835
  %v4924 = vpop.f32.mrb[0].mxu0
  %v4925 = vadd.f32 %v1014, %v4924
  %v4926 = vpop.f32.mrb[0].mxu0
  %v4927 = vadd.f32 %v1014, %v4926
  %4928 = vdwg.mxu0
  %4929 = vmatprep.subr.mxu0 %v863
  %4930 = vmatpush1.msra.mxu0 %v862
  %4931 = vmatprep.subr.mxu0 %v4076
  %4932 = vmatpush1.msra.mxu0 %v4075
  %4933 = vmatprep.subr.mxu0 %v884
  %4934 = vmatpush1.msra.mxu0 %v883
  %4935 = vmatprep.subr.mxu0 %v4097
  %4936 = vmatpush1.msra.mxu0 %v4096
  %4937 = vmatprep.subr.mxu0 %v905
  %4938 = vmatpush1.msra.mxu0 %v904
  %4939 = vmatprep.subr.mxu0 %v4118
  %4940 = vmatpush1.msra.mxu0 %v4117
  %4941 = vmatprep.subr.mxu0 %v926
  %4942 = vmatpush1.msra.mxu0 %v925
  %4943 = vmatprep.subr.mxu0 %v4139
  %4944 = vmatpush1.msra.mxu0 %v4138
  %4945 = vmatprep.subr.mxu0 %v834
  %4946 = vmatpush1.msra.mxu0 %v833
  %4947 = vmatprep.subr.mxu0 %v4050
  %4948 = vmatpush1.msra.mxu0 %v4048
  %4949 = vmatprep.subr.mxu0 %v947
  %4950 = vmatpush1.msra.mxu0 %v946
  %4951 = vmatprep.subr.mxu0 %v4160
  %4952 = vmatpush1.msra.mxu0 %v4159
  %4953 = vmatprep.subr.mxu0 %v968
  %4954 = vmatpush1.msra.mxu0 %v967
  %4955 = vmatprep.subr.mxu0 %v4181
  %4956 = vmatpush1.msra.mxu0 %v4180
  %4957 = vmatprep.subr.mxu0 %v989
  %4958 = vmatpush1.msra.mxu0 %v988
  %4959 = vmatprep.subr.mxu0 %v4202
  %4960 = vmatpush1.msra.mxu0 %v4201
  %4961 = vmatprep.subr.mxu0 %v1010
  %4962 = vmatpush1.msra.mxu0 %v1009
  %4963 = vmatprep.subr.mxu0 %v4223
  %4964 = vmatpush1.msra.mxu0 %v4222
  %4965 = vmatprep.subr.mxu0 0.0
  %4966 = vmatpush1.msra.mxu0 0.0
  %4967 = vmatprep.subr.mxu0 0.0
  %4968 = vmatpush1.msra.mxu0 0.0
  %4969 = vmatprep.subr.mxu0 0.0
  %4970 = vmatpush1.msra.mxu0 0.0
  %4971 = vmatprep.subr.mxu0 0.0
  %4972 = vmatpush1.msra.mxu0 0.0
  %4973 = vmatprep.subr.mxu0 0.0
  %4974 = vmatpush1.msra.mxu0 0.0
  %4975 = vmatprep.subr.mxu0 0.0
  %4976 = vmatpush1.msra.mxu0 0.0
  %4977 = vmatprep.subr.mxu0 0.0
  %4978 = vmatpush1.msra.mxu0 0.0
  %4979 = vmatprep.subr.mxu0 0.0
  %4980 = vmatpush1.msra.mxu0 0.0
  %4981 = vmatprep.subr.mxu0 0.0
  %4982 = vmatpush1.msra.mxu0 0.0
  %4983 = vmatprep.subr.mxu0 0.0
  %4984 = vmatpush1.msra.mxu0 0.0
  %4985 = vmatprep.subr.mxu0 0.0
  %4986 = vmatpush1.msra.mxu0 0.0
  %4987 = vmatprep.subr.mxu0 0.0
  %4988 = vmatpush1.msra.mxu0 0.0
  %4989 = vmatprep.subr.mxu0 0.0
  %4990 = vmatpush1.msra.mxu0 0.0
  %4991 = vmatprep.subr.mxu0 0.0
  %4992 = vmatpush1.msra.mxu0 0.0
  %4993 = vmatprep.mubr.f32.mxu0 %v1017
  %4994 = vmatmul.mubr.f32.gmra.mrb[0].mxu0 %v835
  %v4995 = vpop.f32.mrb[0].mxu0
  %v4996 = vadd.f32 %v1014, %v4995
  %v4997 = vpop.f32.mrb[0].mxu0
  %v4998 = vadd.f32 %v1014, %v4997
  %4999 = vdwg.mxu0
  %5001 = vrot.lane.b32.xlu0 %v4998, 17
  %v5002 = vpop.permute.xlu0 %5001
  %5007 = vrot.lane.b32.xlu0 %v4925, 17
  %v5008 = vpop.permute.xlu0 %5007
  %5009 = vrot.lane.b32.xlu0 %v4927, 17
  %v5010 = vpop.permute.xlu0 %5009
  %5011 = vrot.lane.b32.xlu0 %v4996, 17
  %v5012 = vpop.permute.xlu0 %5011
  %v5013 = vsel %vm56, %v5008, %v5010
  %v5014 = vsel %vm56, %v5010, %v5012
  %v5015 = vsel %vm56, %v5012, %v5002
  %v5020 = vsel %vm56, %v5002, %v5008
  %v5021 = vmul.f32 %v5020, %v68
  %v5022 = vmul.f32 %v5013, %v72
  %v5023 = vmul.f32 %v5014, %v76
  %v5024 = vmul.f32 %v5015, %v80
  %5025 = vrot.lane.b32.xlu0 %v4998, 16
  %v5026 = vpop.permute.xlu0 %5025
  %5028 = vrot.lane.b32.xlu0 %v4925, 16
  %v5029 = vpop.permute.xlu0 %5028
  %5030 = vrot.lane.b32.xlu0 %v4927, 16
  %v5031 = vpop.permute.xlu0 %5030
  %5032 = vrot.lane.b32.xlu0 %v4996, 16
  %v5033 = vpop.permute.xlu0 %5032
  %v5034 = vsel %vm94, %v5029, %v5031
  %v5035 = vsel %vm94, %v5031, %v5033
  %v5036 = vsel %vm94, %v5033, %v5026
  %v5041 = vsel %vm94, %v5026, %v5029
  %v5042 = vmul.f32 %v5041, %v106
  %v5043 = vmul.f32 %v5034, %v110
  %v5044 = vmul.f32 %v5035, %v114
  %v5045 = vmul.f32 %v5036, %v118
  %5046 = vrot.lane.b32.xlu0 %v4998, 15
  %v5047 = vpop.permute.xlu0 %5046
  %5049 = vrot.lane.b32.xlu0 %v4925, 15
  %v5050 = vpop.permute.xlu0 %5049
  %5051 = vrot.lane.b32.xlu0 %v4927, 15
  %v5052 = vpop.permute.xlu0 %5051
  %5053 = vrot.lane.b32.xlu0 %v4996, 15
  %v5054 = vpop.permute.xlu0 %5053
  %v5055 = vsel %vm132, %v5050, %v5052
  %v5056 = vsel %vm132, %v5052, %v5054
  %v5057 = vsel %vm132, %v5054, %v5047
  %v5062 = vsel %vm132, %v5047, %v5050
  %v5063 = vmul.f32 %v5062, %v144
  %v5064 = vmul.f32 %v5055, %v148
  %v5065 = vmul.f32 %v5056, %v152
  %v5066 = vmul.f32 %v5057, %v156
  %5067 = vrot.lane.b32.xlu0 %v4998, 1
  %v5068 = vpop.permute.xlu0 %5067
  %5070 = vrot.lane.b32.xlu0 %v4925, 1
  %v5071 = vpop.permute.xlu0 %5070
  %5072 = vrot.lane.b32.xlu0 %v4927, 1
  %v5073 = vpop.permute.xlu0 %5072
  %5074 = vrot.lane.b32.xlu0 %v4996, 1
  %v5075 = vpop.permute.xlu0 %5074
  %v5076 = vsel %vm170, %v5071, %v5073
  %v5077 = vsel %vm170, %v5073, %v5075
  %v5078 = vsel %vm170, %v5075, %v5068
  %v5083 = vsel %vm170, %v5068, %v5071
  %v5084 = vmul.f32 %v5083, %v182
  %v5085 = vmul.f32 %v5076, %v186
  %v5086 = vmul.f32 %v5077, %v190
  %v5087 = vmul.f32 %v5078, %v194
  %5088 = vrot.lane.b32.xlu0 %v4925, 127
  %v5089 = vpop.permute.xlu0 %5088
  %5090 = vrot.lane.b32.xlu0 %v4927, 127
  %v5091 = vpop.permute.xlu0 %5090
  %5092 = vrot.lane.b32.xlu0 %v4996, 127
  %v5093 = vpop.permute.xlu0 %5092
  %5094 = vrot.lane.b32.xlu0 %v4998, 127
  %v5095 = vpop.permute.xlu0 %5094
  %v5096 = vsel %vm207, %v5089, %v5091
  %v5097 = vsel %vm207, %v5091, %v5093
  %v5098 = vsel %vm207, %v5093, %v5095
  %v5104 = vsel %vm207, %v5095, %v5089
  %v5105 = vmul.f32 %v5096, %v220
  %v5106 = vmul.f32 %v5097, %v224
  %v5107 = vmul.f32 %v5098, %v228
  %v5108 = vmul.f32 %v5104, %v232
  %5109 = vrot.lane.b32.xlu0 %v4925, 113
  %v5110 = vpop.permute.xlu0 %5109
  %5111 = vrot.lane.b32.xlu0 %v4927, 113
  %v5112 = vpop.permute.xlu0 %5111
  %5113 = vrot.lane.b32.xlu0 %v4996, 113
  %v5114 = vpop.permute.xlu0 %5113
  %5115 = vrot.lane.b32.xlu0 %v4998, 113
  %v5116 = vpop.permute.xlu0 %5115
  %v5117 = vsel %vm245, %v5110, %v5112
  %v5118 = vsel %vm245, %v5112, %v5114
  %v5119 = vsel %vm245, %v5114, %v5116
  %v5125 = vsel %vm245, %v5116, %v5110
  %v5126 = vmul.f32 %v5117, %v258
  %v5127 = vmul.f32 %v5118, %v262
  %v5128 = vmul.f32 %v5119, %v266
  %v5129 = vmul.f32 %v5125, %v270
  %5130 = vrot.lane.b32.xlu0 %v4925, 112
  %v5131 = vpop.permute.xlu0 %5130
  %5132 = vrot.lane.b32.xlu0 %v4927, 112
  %v5133 = vpop.permute.xlu0 %5132
  %5134 = vrot.lane.b32.xlu0 %v4996, 112
  %v5135 = vpop.permute.xlu0 %5134
  %5136 = vrot.lane.b32.xlu0 %v4998, 112
  %v5137 = vpop.permute.xlu0 %5136
  %v5138 = vsel %vm283, %v5131, %v5133
  %v5139 = vsel %vm283, %v5133, %v5135
  %v5140 = vsel %vm283, %v5135, %v5137
  %v5146 = vsel %vm283, %v5137, %v5131
  %v5147 = vmul.f32 %v5138, %v296
  %v5148 = vmul.f32 %v5139, %v300
  %v5149 = vmul.f32 %v5140, %v304
  %v5150 = vmul.f32 %v5146, %v308
  %5151 = vrot.lane.b32.xlu0 %v4925, 111
  %v5152 = vpop.permute.xlu0 %5151
  %5153 = vrot.lane.b32.xlu0 %v4927, 111
  %v5154 = vpop.permute.xlu0 %5153
  %5155 = vrot.lane.b32.xlu0 %v4996, 111
  %v5156 = vpop.permute.xlu0 %5155
  %5157 = vrot.lane.b32.xlu0 %v4998, 111
  %v5158 = vpop.permute.xlu0 %5157
  %v5159 = vsel %vm321, %v5152, %v5154
  %v5160 = vsel %vm321, %v5154, %v5156
  %v5161 = vsel %vm321, %v5156, %v5158
  %v5167 = vsel %vm321, %v5158, %v5152
  %v5168 = vmul.f32 %v5159, %v334
  %v5169 = vmul.f32 %v5160, %v338
  %v5170 = vmul.f32 %v5161, %v342
  %v5171 = vmul.f32 %v5167, %v346
  %5172 = vmatprep.subr.mxu0 %v5022
  %5173 = vmatpush1.msra.mxu0 %v5021
  %5174 = vmatprep.subr.mxu0 %v5043
  %5175 = vmatpush1.msra.mxu0 %v5042
  %5176 = vmatprep.subr.mxu0 %v5064
  %5177 = vmatpush1.msra.mxu0 %v5063
  %5178 = vmatprep.subr.mxu0 %v5085
  %5179 = vmatpush1.msra.mxu0 %v5084
  %5180 = vmatprep.subr.mxu0 %v4927
  %5181 = vmatpush1.msra.mxu0 %v4925
  %5182 = vmatprep.subr.mxu0 %v5106
  %5183 = vmatpush1.msra.mxu0 %v5105
  %5184 = vmatprep.subr.mxu0 %v5127
  %5185 = vmatpush1.msra.mxu0 %v5126
  %5186 = vmatprep.subr.mxu0 %v5148
  %5187 = vmatpush1.msra.mxu0 %v5147
  %5188 = vmatprep.subr.mxu0 %v5169
  %5189 = vmatpush1.msra.mxu0 %v5168
  %5190 = vmatprep.subr.mxu0 0.0
  %5191 = vmatpush1.msra.mxu0 0.0
  %5192 = vmatprep.subr.mxu0 0.0
  %5193 = vmatpush1.msra.mxu0 0.0
  %5194 = vmatprep.subr.mxu0 0.0
  %5195 = vmatpush1.msra.mxu0 0.0
  %5196 = vmatprep.subr.mxu0 0.0
  %5197 = vmatpush1.msra.mxu0 0.0
  %5198 = vmatprep.subr.mxu0 0.0
  %5199 = vmatpush1.msra.mxu0 0.0
  %5200 = vmatprep.subr.mxu0 0.0
  %5201 = vmatpush1.msra.mxu0 0.0
  %5202 = vmatprep.subr.mxu0 0.0
  %5203 = vmatpush1.msra.mxu0 0.0
  %5204 = vmatprep.subr.mxu0 0.0
  %5205 = vmatpush1.msra.mxu0 0.0
  %5206 = vmatprep.subr.mxu0 0.0
  %5207 = vmatpush1.msra.mxu0 0.0
  %5208 = vmatprep.subr.mxu0 0.0
  %5209 = vmatpush1.msra.mxu0 0.0
  %5210 = vmatprep.subr.mxu0 0.0
  %5211 = vmatpush1.msra.mxu0 0.0
  %5212 = vmatprep.subr.mxu0 0.0
  %5213 = vmatpush1.msra.mxu0 0.0
  %5214 = vmatprep.subr.mxu0 0.0
  %5215 = vmatpush1.msra.mxu0 0.0
  %5216 = vmatprep.subr.mxu0 0.0
  %5217 = vmatpush1.msra.mxu0 0.0
  %5218 = vmatprep.subr.mxu0 0.0
  %5219 = vmatpush1.msra.mxu0 0.0
  %5220 = vmatprep.subr.mxu0 0.0
  %5221 = vmatpush1.msra.mxu0 0.0
  %5222 = vmatprep.subr.mxu0 0.0
  %5223 = vmatpush1.msra.mxu0 0.0
  %5224 = vmatprep.subr.mxu0 0.0
  %5225 = vmatpush1.msra.mxu0 0.0
  %5226 = vmatprep.subr.mxu0 0.0
  %5227 = vmatpush1.msra.mxu0 0.0
  %5228 = vmatprep.subr.mxu0 0.0
  %5229 = vmatpush1.msra.mxu0 0.0
  %5230 = vmatprep.subr.mxu0 0.0
  %5231 = vmatpush1.msra.mxu0 0.0
  %5232 = vmatprep.subr.mxu0 0.0
  %5233 = vmatpush1.msra.mxu0 0.0
  %5234 = vmatprep.subr.mxu0 0.0
  %5235 = vmatpush1.msra.mxu0 0.0
  %5236 = vmatprep.mubr.f32.mxu0 0.0
  %5237 = vmatmul.mubr.f32.gmra.mrb[0].mxu0 %v1343
  %v5238 = vpop.f32.mrb[0].mxu0
  %v5239 = vadd.f32 %v1340, %v5238
  %v5240 = vpop.f32.mrb[0].mxu0
  %v5241 = vadd.f32 %v1340, %v5240
  %5242 = vdwg.mxu0
  %5243 = vmatprep.subr.mxu0 %v5024
  %5244 = vmatpush1.msra.mxu0 %v5023
  %5245 = vmatprep.subr.mxu0 %v5045
  %5246 = vmatpush1.msra.mxu0 %v5044
  %5247 = vmatprep.subr.mxu0 %v5066
  %5248 = vmatpush1.msra.mxu0 %v5065
  %5249 = vmatprep.subr.mxu0 %v5087
  %5250 = vmatpush1.msra.mxu0 %v5086
  %5251 = vmatprep.subr.mxu0 %v4998
  %5252 = vmatpush1.msra.mxu0 %v4996
  %5253 = vmatprep.subr.mxu0 %v5108
  %5254 = vmatpush1.msra.mxu0 %v5107
  %5255 = vmatprep.subr.mxu0 %v5129
  %5256 = vmatpush1.msra.mxu0 %v5128
  %5257 = vmatprep.subr.mxu0 %v5150
  %5258 = vmatpush1.msra.mxu0 %v5149
  %5259 = vmatprep.subr.mxu0 %v5171
  %5260 = vmatpush1.msra.mxu0 %v5170
  %5261 = vmatprep.subr.mxu0 0.0
  %5262 = vmatpush1.msra.mxu0 0.0
  %5263 = vmatprep.subr.mxu0 0.0
  %5264 = vmatpush1.msra.mxu0 0.0
  %5265 = vmatprep.subr.mxu0 0.0
  %5266 = vmatpush1.msra.mxu0 0.0
  %5267 = vmatprep.subr.mxu0 0.0
  %5268 = vmatpush1.msra.mxu0 0.0
  %5269 = vmatprep.subr.mxu0 0.0
  %5270 = vmatpush1.msra.mxu0 0.0
  %5271 = vmatprep.subr.mxu0 0.0
  %5272 = vmatpush1.msra.mxu0 0.0
  %5273 = vmatprep.subr.mxu0 0.0
  %5274 = vmatpush1.msra.mxu0 0.0
  %5275 = vmatprep.subr.mxu0 0.0
  %5276 = vmatpush1.msra.mxu0 0.0
  %5277 = vmatprep.subr.mxu0 0.0
  %5278 = vmatpush1.msra.mxu0 0.0
  %5279 = vmatprep.subr.mxu0 0.0
  %5280 = vmatpush1.msra.mxu0 0.0
  %5281 = vmatprep.subr.mxu0 0.0
  %5282 = vmatpush1.msra.mxu0 0.0
  %5283 = vmatprep.subr.mxu0 0.0
  %5284 = vmatpush1.msra.mxu0 0.0
  %5285 = vmatprep.subr.mxu0 0.0
  %5286 = vmatpush1.msra.mxu0 0.0
  %5287 = vmatprep.subr.mxu0 0.0
  %5288 = vmatpush1.msra.mxu0 0.0
  %5289 = vmatprep.subr.mxu0 0.0
  %5290 = vmatpush1.msra.mxu0 0.0
  %5291 = vmatprep.subr.mxu0 0.0
  %5292 = vmatpush1.msra.mxu0 0.0
  %5293 = vmatprep.subr.mxu0 0.0
  %5294 = vmatpush1.msra.mxu0 0.0
  %5295 = vmatprep.subr.mxu0 0.0
  %5296 = vmatpush1.msra.mxu0 0.0
  %5297 = vmatprep.subr.mxu0 0.0
  %5298 = vmatpush1.msra.mxu0 0.0
  %5299 = vmatprep.subr.mxu0 0.0
  %5300 = vmatpush1.msra.mxu0 0.0
  %5301 = vmatprep.subr.mxu0 0.0
  %5302 = vmatpush1.msra.mxu0 0.0
  %5303 = vmatprep.subr.mxu0 0.0
  %5304 = vmatpush1.msra.mxu0 0.0
  %5305 = vmatprep.subr.mxu0 0.0
  %5306 = vmatpush1.msra.mxu0 0.0
  %5307 = vmatprep.mubr.f32.mxu0 0.0
  %5308 = vmatmul.mubr.f32.gmra.mrb[0].mxu0 %v1343
  %v5309 = vpop.f32.mrb[0].mxu0
  %v5310 = vadd.f32 %v1340, %v5309
  %v5311 = vpop.f32.mrb[0].mxu0
  %v5312 = vadd.f32 %v1340, %v5311
  %5313 = vdwg.mxu0
  %5315 = vrot.lane.b32.xlu0 %v5312, 17
  %v5316 = vpop.permute.xlu0 %5315
  %5321 = vrot.lane.b32.xlu0 %v5239, 17
  %v5322 = vpop.permute.xlu0 %5321
  %5323 = vrot.lane.b32.xlu0 %v5241, 17
  %v5324 = vpop.permute.xlu0 %5323
  %5325 = vrot.lane.b32.xlu0 %v5310, 17
  %v5326 = vpop.permute.xlu0 %5325
  %v5327 = vsel %vm56, %v5322, %v5324
  %v5328 = vsel %vm56, %v5324, %v5326
  %v5329 = vsel %vm56, %v5326, %v5316
  %v5334 = vsel %vm56, %v5316, %v5322
  %v5335 = vmul.f32 %v5334, %v68
  %v5336 = vmul.f32 %v5327, %v72
  %v5337 = vmul.f32 %v5328, %v76
  %v5338 = vmul.f32 %v5329, %v80
  %5339 = vrot.lane.b32.xlu0 %v5312, 16
  %v5340 = vpop.permute.xlu0 %5339
  %5342 = vrot.lane.b32.xlu0 %v5239, 16
  %v5343 = vpop.permute.xlu0 %5342
  %5344 = vrot.lane.b32.xlu0 %v5241, 16
  %v5345 = vpop.permute.xlu0 %5344
  %5346 = vrot.lane.b32.xlu0 %v5310, 16
  %v5347 = vpop.permute.xlu0 %5346
  %v5348 = vsel %vm94, %v5343, %v5345
  %v5349 = vsel %vm94, %v5345, %v5347
  %v5350 = vsel %vm94, %v5347, %v5340
  %v5355 = vsel %vm94, %v5340, %v5343
  %v5356 = vmul.f32 %v5355, %v106
  %v5357 = vmul.f32 %v5348, %v110
  %v5358 = vmul.f32 %v5349, %v114
  %v5359 = vmul.f32 %v5350, %v118
  %5360 = vrot.lane.b32.xlu0 %v5312, 15
  %v5361 = vpop.permute.xlu0 %5360
  %5363 = vrot.lane.b32.xlu0 %v5239, 15
  %v5364 = vpop.permute.xlu0 %5363
  %5365 = vrot.lane.b32.xlu0 %v5241, 15
  %v5366 = vpop.permute.xlu0 %5365
  %5367 = vrot.lane.b32.xlu0 %v5310, 15
  %v5368 = vpop.permute.xlu0 %5367
  %v5369 = vsel %vm132, %v5364, %v5366
  %v5370 = vsel %vm132, %v5366, %v5368
  %v5371 = vsel %vm132, %v5368, %v5361
  %v5376 = vsel %vm132, %v5361, %v5364
  %v5377 = vmul.f32 %v5376, %v144
  %v5378 = vmul.f32 %v5369, %v148
  %v5379 = vmul.f32 %v5370, %v152
  %v5380 = vmul.f32 %v5371, %v156
  %5381 = vrot.lane.b32.xlu0 %v5312, 1
  %v5382 = vpop.permute.xlu0 %5381
  %5384 = vrot.lane.b32.xlu0 %v5239, 1
  %v5385 = vpop.permute.xlu0 %5384
  %5386 = vrot.lane.b32.xlu0 %v5241, 1
  %v5387 = vpop.permute.xlu0 %5386
  %5388 = vrot.lane.b32.xlu0 %v5310, 1
  %v5389 = vpop.permute.xlu0 %5388
  %v5390 = vsel %vm170, %v5385, %v5387
  %v5391 = vsel %vm170, %v5387, %v5389
  %v5392 = vsel %vm170, %v5389, %v5382
  %v5397 = vsel %vm170, %v5382, %v5385
  %v5398 = vmul.f32 %v5397, %v182
  %v5399 = vmul.f32 %v5390, %v186
  %v5400 = vmul.f32 %v5391, %v190
  %v5401 = vmul.f32 %v5392, %v194
  %5402 = vrot.lane.b32.xlu0 %v5239, 127
  %v5403 = vpop.permute.xlu0 %5402
  %5404 = vrot.lane.b32.xlu0 %v5241, 127
  %v5405 = vpop.permute.xlu0 %5404
  %5406 = vrot.lane.b32.xlu0 %v5310, 127
  %v5407 = vpop.permute.xlu0 %5406
  %5408 = vrot.lane.b32.xlu0 %v5312, 127
  %v5409 = vpop.permute.xlu0 %5408
  %v5410 = vsel %vm207, %v5403, %v5405
  %v5411 = vsel %vm207, %v5405, %v5407
  %v5412 = vsel %vm207, %v5407, %v5409
  %v5418 = vsel %vm207, %v5409, %v5403
  %v5419 = vmul.f32 %v5410, %v220
  %v5420 = vmul.f32 %v5411, %v224
  %v5421 = vmul.f32 %v5412, %v228
  %v5422 = vmul.f32 %v5418, %v232
  %5423 = vrot.lane.b32.xlu0 %v5239, 113
  %v5424 = vpop.permute.xlu0 %5423
  %5425 = vrot.lane.b32.xlu0 %v5241, 113
  %v5426 = vpop.permute.xlu0 %5425
  %5427 = vrot.lane.b32.xlu0 %v5310, 113
  %v5428 = vpop.permute.xlu0 %5427
  %5429 = vrot.lane.b32.xlu0 %v5312, 113
  %v5430 = vpop.permute.xlu0 %5429
  %v5431 = vsel %vm245, %v5424, %v5426
  %v5432 = vsel %vm245, %v5426, %v5428
  %v5433 = vsel %vm245, %v5428, %v5430
  %v5439 = vsel %vm245, %v5430, %v5424
  %v5440 = vmul.f32 %v5431, %v258
  %v5441 = vmul.f32 %v5432, %v262
  %v5442 = vmul.f32 %v5433, %v266
  %v5443 = vmul.f32 %v5439, %v270
  %5444 = vrot.lane.b32.xlu0 %v5239, 112
  %v5445 = vpop.permute.xlu0 %5444
  %5446 = vrot.lane.b32.xlu0 %v5241, 112
  %v5447 = vpop.permute.xlu0 %5446
  %5448 = vrot.lane.b32.xlu0 %v5310, 112
  %v5449 = vpop.permute.xlu0 %5448
  %5450 = vrot.lane.b32.xlu0 %v5312, 112
  %v5451 = vpop.permute.xlu0 %5450
  %v5452 = vsel %vm283, %v5445, %v5447
  %v5453 = vsel %vm283, %v5447, %v5449
  %v5454 = vsel %vm283, %v5449, %v5451
  %v5460 = vsel %vm283, %v5451, %v5445
  %v5461 = vmul.f32 %v5452, %v296
  %v5462 = vmul.f32 %v5453, %v300
  %v5463 = vmul.f32 %v5454, %v304
  %v5464 = vmul.f32 %v5460, %v308
  %5465 = vrot.lane.b32.xlu0 %v5239, 111
  %v5466 = vpop.permute.xlu0 %5465
  %5467 = vrot.lane.b32.xlu0 %v5241, 111
  %v5468 = vpop.permute.xlu0 %5467
  %5469 = vrot.lane.b32.xlu0 %v5310, 111
  %v5470 = vpop.permute.xlu0 %5469
  %5471 = vrot.lane.b32.xlu0 %v5312, 111
  %v5472 = vpop.permute.xlu0 %5471
  %v5473 = vsel %vm321, %v5466, %v5468
  %v5474 = vsel %vm321, %v5468, %v5470
  %v5475 = vsel %vm321, %v5470, %v5472
  %v5481 = vsel %vm321, %v5472, %v5466
  %v5482 = vmul.f32 %v5473, %v334
  %v5483 = vmul.f32 %v5474, %v338
  %v5484 = vmul.f32 %v5475, %v342
  %v5485 = vmul.f32 %v5481, %v346
  %5486 = vmatprep.subr.mxu0 %v5336
  %5487 = vmatpush1.msra.mxu0 %v5335
  %5488 = vmatprep.subr.mxu0 %v5357
  %5489 = vmatpush1.msra.mxu0 %v5356
  %5490 = vmatprep.subr.mxu0 %v5378
  %5491 = vmatpush1.msra.mxu0 %v5377
  %5492 = vmatprep.subr.mxu0 %v5399
  %5493 = vmatpush1.msra.mxu0 %v5398
  %5494 = vmatprep.subr.mxu0 %v5241
  %5495 = vmatpush1.msra.mxu0 %v5239
  %5496 = vmatprep.subr.mxu0 %v5420
  %5497 = vmatpush1.msra.mxu0 %v5419
  %5498 = vmatprep.subr.mxu0 %v5441
  %5499 = vmatpush1.msra.mxu0 %v5440
  %5500 = vmatprep.subr.mxu0 %v5462
  %5501 = vmatpush1.msra.mxu0 %v5461
  %5502 = vmatprep.subr.mxu0 %v5483
  %5503 = vmatpush1.msra.mxu0 %v5482
  %5504 = vmatprep.subr.mxu0 0.0
  %5505 = vmatpush1.msra.mxu0 0.0
  %5506 = vmatprep.subr.mxu0 0.0
  %5507 = vmatpush1.msra.mxu0 0.0
  %5508 = vmatprep.subr.mxu0 0.0
  %5509 = vmatpush1.msra.mxu0 0.0
  %5510 = vmatprep.subr.mxu0 0.0
  %5511 = vmatpush1.msra.mxu0 0.0
  %5512 = vmatprep.subr.mxu0 0.0
  %5513 = vmatpush1.msra.mxu0 0.0
  %5514 = vmatprep.subr.mxu0 0.0
  %5515 = vmatpush1.msra.mxu0 0.0
  %5516 = vmatprep.subr.mxu0 0.0
  %5517 = vmatpush1.msra.mxu0 0.0
  %5518 = vmatprep.subr.mxu0 0.0
  %5519 = vmatpush1.msra.mxu0 0.0
  %5520 = vmatprep.subr.mxu0 0.0
  %5521 = vmatpush1.msra.mxu0 0.0
  %5522 = vmatprep.subr.mxu0 0.0
  %5523 = vmatpush1.msra.mxu0 0.0
  %5524 = vmatprep.subr.mxu0 0.0
  %5525 = vmatpush1.msra.mxu0 0.0
  %5526 = vmatprep.subr.mxu0 0.0
  %5527 = vmatpush1.msra.mxu0 0.0
  %5528 = vmatprep.subr.mxu0 0.0
  %5529 = vmatpush1.msra.mxu0 0.0
  %5530 = vmatprep.subr.mxu0 0.0
  %5531 = vmatpush1.msra.mxu0 0.0
  %5532 = vmatprep.subr.mxu0 0.0
  %5533 = vmatpush1.msra.mxu0 0.0
  %5534 = vmatprep.subr.mxu0 0.0
  %5535 = vmatpush1.msra.mxu0 0.0
  %5536 = vmatprep.subr.mxu0 0.0
  %5537 = vmatpush1.msra.mxu0 0.0
  %5538 = vmatprep.subr.mxu0 0.0
  %5539 = vmatpush1.msra.mxu0 0.0
  %5540 = vmatprep.subr.mxu0 0.0
  %5541 = vmatpush1.msra.mxu0 0.0
  %5542 = vmatprep.subr.mxu0 0.0
  %5543 = vmatpush1.msra.mxu0 0.0
  %5544 = vmatprep.subr.mxu0 0.0
  %5545 = vmatpush1.msra.mxu0 0.0
  %5546 = vmatprep.subr.mxu0 0.0
  %5547 = vmatpush1.msra.mxu0 0.0
  %5548 = vmatprep.subr.mxu0 0.0
  %5549 = vmatpush1.msra.mxu0 0.0
  %5550 = vmatprep.mubr.f32.mxu0 0.0
  %5551 = vmatmul.mubr.f32.gmra.mrb[0].mxu0 %v1343
  %v5552 = vpop.f32.mrb[0].mxu0
  %v5553 = vadd.f32 %v1340, %v5552
  %v5554 = vpop.f32.mrb[0].mxu0
  %v5555 = vadd.f32 %v1340, %v5554
  %5556 = vdwg.mxu0
  %5557 = vmatprep.subr.mxu0 %v5338
  %5558 = vmatpush1.msra.mxu0 %v5337
  %5559 = vmatprep.subr.mxu0 %v5359
  %5560 = vmatpush1.msra.mxu0 %v5358
  %5561 = vmatprep.subr.mxu0 %v5380
  %5562 = vmatpush1.msra.mxu0 %v5379
  %5563 = vmatprep.subr.mxu0 %v5401
  %5564 = vmatpush1.msra.mxu0 %v5400
  %5565 = vmatprep.subr.mxu0 %v5312
  %5566 = vmatpush1.msra.mxu0 %v5310
  %5567 = vmatprep.subr.mxu0 %v5422
  %5568 = vmatpush1.msra.mxu0 %v5421
  %5569 = vmatprep.subr.mxu0 %v5443
  %5570 = vmatpush1.msra.mxu0 %v5442
  %5571 = vmatprep.subr.mxu0 %v5464
  %5572 = vmatpush1.msra.mxu0 %v5463
  %5573 = vmatprep.subr.mxu0 %v5485
  %5574 = vmatpush1.msra.mxu0 %v5484
  %5575 = vmatprep.subr.mxu0 0.0
  %5576 = vmatpush1.msra.mxu0 0.0
  %5577 = vmatprep.subr.mxu0 0.0
  %5578 = vmatpush1.msra.mxu0 0.0
  %5579 = vmatprep.subr.mxu0 0.0
  %5580 = vmatpush1.msra.mxu0 0.0
  %5581 = vmatprep.subr.mxu0 0.0
  %5582 = vmatpush1.msra.mxu0 0.0
  %5583 = vmatprep.subr.mxu0 0.0
  %5584 = vmatpush1.msra.mxu0 0.0
  %5585 = vmatprep.subr.mxu0 0.0
  %5586 = vmatpush1.msra.mxu0 0.0
  %5587 = vmatprep.subr.mxu0 0.0
  %5588 = vmatpush1.msra.mxu0 0.0
  %5589 = vmatprep.subr.mxu0 0.0
  %5590 = vmatpush1.msra.mxu0 0.0
  %5591 = vmatprep.subr.mxu0 0.0
  %5592 = vmatpush1.msra.mxu0 0.0
  %5593 = vmatprep.subr.mxu0 0.0
  %5594 = vmatpush1.msra.mxu0 0.0
  %5595 = vmatprep.subr.mxu0 0.0
  %5596 = vmatpush1.msra.mxu0 0.0
  %5597 = vmatprep.subr.mxu0 0.0
  %5598 = vmatpush1.msra.mxu0 0.0
  %5599 = vmatprep.subr.mxu0 0.0
  %5600 = vmatpush1.msra.mxu0 0.0
  %5601 = vmatprep.subr.mxu0 0.0
  %5602 = vmatpush1.msra.mxu0 0.0
  %5603 = vmatprep.subr.mxu0 0.0
  %5604 = vmatpush1.msra.mxu0 0.0
  %5605 = vmatprep.subr.mxu0 0.0
  %5606 = vmatpush1.msra.mxu0 0.0
  %5607 = vmatprep.subr.mxu0 0.0
  %5608 = vmatpush1.msra.mxu0 0.0
  %5609 = vmatprep.subr.mxu0 0.0
  %5610 = vmatpush1.msra.mxu0 0.0
  %5611 = vmatprep.subr.mxu0 0.0
  %5612 = vmatpush1.msra.mxu0 0.0
  %5613 = vmatprep.subr.mxu0 0.0
  %5614 = vmatpush1.msra.mxu0 0.0
  %5615 = vmatprep.subr.mxu0 0.0
  %5616 = vmatpush1.msra.mxu0 0.0
  %5617 = vmatprep.subr.mxu0 0.0
  %5618 = vmatpush1.msra.mxu0 0.0
  %5619 = vmatprep.subr.mxu0 0.0
  %5620 = vmatpush1.msra.mxu0 0.0
  %5621 = vmatprep.mubr.f32.mxu0 0.0
  %5622 = vmatmul.mubr.f32.gmra.mrb[0].mxu0 %v1343
  %v5623 = vpop.f32.mrb[0].mxu0
  %v5624 = vadd.f32 %v1340, %v5623
  %v5625 = vpop.f32.mrb[0].mxu0
  %v5626 = vadd.f32 %v1340, %v5625
  %5627 = vdwg.mxu0
  %5629 = vrot.lane.b32.xlu0 %v5626, 17
  %v5630 = vpop.permute.xlu0 %5629
  %5635 = vrot.lane.b32.xlu0 %v5553, 17
  %v5636 = vpop.permute.xlu0 %5635
  %5637 = vrot.lane.b32.xlu0 %v5555, 17
  %v5638 = vpop.permute.xlu0 %5637
  %5639 = vrot.lane.b32.xlu0 %v5624, 17
  %v5640 = vpop.permute.xlu0 %5639
  %v5641 = vsel %vm56, %v5636, %v5638
  %v5642 = vsel %vm56, %v5638, %v5640
  %v5643 = vsel %vm56, %v5640, %v5630
  %v5648 = vsel %vm56, %v5630, %v5636
  %v5649 = vmul.f32 %v5648, %v68
  %v5650 = vmul.f32 %v5641, %v72
  %v5651 = vmul.f32 %v5642, %v76
  %v5652 = vmul.f32 %v5643, %v80
  %5653 = vrot.lane.b32.xlu0 %v5626, 16
  %v5654 = vpop.permute.xlu0 %5653
  %5656 = vrot.lane.b32.xlu0 %v5553, 16
  %v5657 = vpop.permute.xlu0 %5656
  %5658 = vrot.lane.b32.xlu0 %v5555, 16
  %v5659 = vpop.permute.xlu0 %5658
  %5660 = vrot.lane.b32.xlu0 %v5624, 16
  %v5661 = vpop.permute.xlu0 %5660
  %v5662 = vsel %vm94, %v5657, %v5659
  %v5663 = vsel %vm94, %v5659, %v5661
  %v5664 = vsel %vm94, %v5661, %v5654
  %v5669 = vsel %vm94, %v5654, %v5657
  %v5670 = vmul.f32 %v5669, %v106
  %v5671 = vmul.f32 %v5662, %v110
  %v5672 = vmul.f32 %v5663, %v114
  %v5673 = vmul.f32 %v5664, %v118
  %5674 = vrot.lane.b32.xlu0 %v5626, 15
  %v5675 = vpop.permute.xlu0 %5674
  %5677 = vrot.lane.b32.xlu0 %v5553, 15
  %v5678 = vpop.permute.xlu0 %5677
  %5679 = vrot.lane.b32.xlu0 %v5555, 15
  %v5680 = vpop.permute.xlu0 %5679
  %5681 = vrot.lane.b32.xlu0 %v5624, 15
  %v5682 = vpop.permute.xlu0 %5681
  %v5683 = vsel %vm132, %v5678, %v5680
  %v5684 = vsel %vm132, %v5680, %v5682
  %v5685 = vsel %vm132, %v5682, %v5675
  %v5690 = vsel %vm132, %v5675, %v5678
  %v5691 = vmul.f32 %v5690, %v144
  %v5692 = vmul.f32 %v5683, %v148
  %v5693 = vmul.f32 %v5684, %v152
  %v5694 = vmul.f32 %v5685, %v156
  %5695 = vrot.lane.b32.xlu0 %v5626, 1
  %v5696 = vpop.permute.xlu0 %5695
  %5698 = vrot.lane.b32.xlu0 %v5553, 1
  %v5699 = vpop.permute.xlu0 %5698
  %5700 = vrot.lane.b32.xlu0 %v5555, 1
  %v5701 = vpop.permute.xlu0 %5700
  %5702 = vrot.lane.b32.xlu0 %v5624, 1
  %v5703 = vpop.permute.xlu0 %5702
  %v5704 = vsel %vm170, %v5699, %v5701
  %v5705 = vsel %vm170, %v5701, %v5703
  %v5706 = vsel %vm170, %v5703, %v5696
  %v5711 = vsel %vm170, %v5696, %v5699
  %v5712 = vmul.f32 %v5711, %v182
  %v5713 = vmul.f32 %v5704, %v186
  %v5714 = vmul.f32 %v5705, %v190
  %v5715 = vmul.f32 %v5706, %v194
  %5716 = vrot.lane.b32.xlu0 %v5553, 127
  %v5717 = vpop.permute.xlu0 %5716
  %5718 = vrot.lane.b32.xlu0 %v5555, 127
  %v5719 = vpop.permute.xlu0 %5718
  %5720 = vrot.lane.b32.xlu0 %v5624, 127
  %v5721 = vpop.permute.xlu0 %5720
  %5722 = vrot.lane.b32.xlu0 %v5626, 127
  %v5723 = vpop.permute.xlu0 %5722
  %v5724 = vsel %vm207, %v5717, %v5719
  %v5725 = vsel %vm207, %v5719, %v5721
  %v5726 = vsel %vm207, %v5721, %v5723
  %v5732 = vsel %vm207, %v5723, %v5717
  %v5733 = vmul.f32 %v5724, %v220
  %v5734 = vmul.f32 %v5725, %v224
  %v5735 = vmul.f32 %v5726, %v228
  %v5736 = vmul.f32 %v5732, %v232
  %5737 = vrot.lane.b32.xlu0 %v5553, 113
  %v5738 = vpop.permute.xlu0 %5737
  %5739 = vrot.lane.b32.xlu0 %v5555, 113
  %v5740 = vpop.permute.xlu0 %5739
  %5741 = vrot.lane.b32.xlu0 %v5624, 113
  %v5742 = vpop.permute.xlu0 %5741
  %5743 = vrot.lane.b32.xlu0 %v5626, 113
  %v5744 = vpop.permute.xlu0 %5743
  %v5745 = vsel %vm245, %v5738, %v5740
  %v5746 = vsel %vm245, %v5740, %v5742
  %v5747 = vsel %vm245, %v5742, %v5744
  %v5753 = vsel %vm245, %v5744, %v5738
  %v5754 = vmul.f32 %v5745, %v258
  %v5755 = vmul.f32 %v5746, %v262
  %v5756 = vmul.f32 %v5747, %v266
  %v5757 = vmul.f32 %v5753, %v270
  %5758 = vrot.lane.b32.xlu0 %v5553, 112
  %v5759 = vpop.permute.xlu0 %5758
  %5760 = vrot.lane.b32.xlu0 %v5555, 112
  %v5761 = vpop.permute.xlu0 %5760
  %5762 = vrot.lane.b32.xlu0 %v5624, 112
  %v5763 = vpop.permute.xlu0 %5762
  %5764 = vrot.lane.b32.xlu0 %v5626, 112
  %v5765 = vpop.permute.xlu0 %5764
  %v5766 = vsel %vm283, %v5759, %v5761
  %v5767 = vsel %vm283, %v5761, %v5763
  %v5768 = vsel %vm283, %v5763, %v5765
  %v5774 = vsel %vm283, %v5765, %v5759
  %v5775 = vmul.f32 %v5766, %v296
  %v5776 = vmul.f32 %v5767, %v300
  %v5777 = vmul.f32 %v5768, %v304
  %v5778 = vmul.f32 %v5774, %v308
  %5779 = vrot.lane.b32.xlu0 %v5553, 111
  %v5780 = vpop.permute.xlu0 %5779
  %5781 = vrot.lane.b32.xlu0 %v5555, 111
  %v5782 = vpop.permute.xlu0 %5781
  %5783 = vrot.lane.b32.xlu0 %v5624, 111
  %v5784 = vpop.permute.xlu0 %5783
  %5785 = vrot.lane.b32.xlu0 %v5626, 111
  %v5786 = vpop.permute.xlu0 %5785
  %v5787 = vsel %vm321, %v5780, %v5782
  %v5788 = vsel %vm321, %v5782, %v5784
  %v5789 = vsel %vm321, %v5784, %v5786
  %v5795 = vsel %vm321, %v5786, %v5780
  %v5796 = vmul.f32 %v5787, %v334
  %v5797 = vmul.f32 %v5788, %v338
  %v5798 = vmul.f32 %v5789, %v342
  %v5799 = vmul.f32 %v5795, %v346
  %5800 = vmatprep.subr.mxu0 %v5650
  %5801 = vmatpush1.msra.mxu0 %v5649
  %5802 = vmatprep.subr.mxu0 %v5671
  %5803 = vmatpush1.msra.mxu0 %v5670
  %5804 = vmatprep.subr.mxu0 %v5692
  %5805 = vmatpush1.msra.mxu0 %v5691
  %5806 = vmatprep.subr.mxu0 %v5713
  %5807 = vmatpush1.msra.mxu0 %v5712
  %5808 = vmatprep.subr.mxu0 %v5555
  %5809 = vmatpush1.msra.mxu0 %v5553
  %5810 = vmatprep.subr.mxu0 %v5734
  %5811 = vmatpush1.msra.mxu0 %v5733
  %5812 = vmatprep.subr.mxu0 %v5755
  %5813 = vmatpush1.msra.mxu0 %v5754
  %5814 = vmatprep.subr.mxu0 %v5776
  %5815 = vmatpush1.msra.mxu0 %v5775
  %5816 = vmatprep.subr.mxu0 %v5797
  %5817 = vmatpush1.msra.mxu0 %v5796
  %5818 = vmatprep.subr.mxu0 0.0
  %5819 = vmatpush1.msra.mxu0 0.0
  %5820 = vmatprep.subr.mxu0 0.0
  %5821 = vmatpush1.msra.mxu0 0.0
  %5822 = vmatprep.subr.mxu0 0.0
  %5823 = vmatpush1.msra.mxu0 0.0
  %5824 = vmatprep.subr.mxu0 0.0
  %5825 = vmatpush1.msra.mxu0 0.0
  %5826 = vmatprep.subr.mxu0 0.0
  %5827 = vmatpush1.msra.mxu0 0.0
  %5828 = vmatprep.subr.mxu0 0.0
  %5829 = vmatpush1.msra.mxu0 0.0
  %5830 = vmatprep.subr.mxu0 0.0
  %5831 = vmatpush1.msra.mxu0 0.0
  %5832 = vmatprep.subr.mxu0 0.0
  %5833 = vmatpush1.msra.mxu0 0.0
  %5834 = vmatprep.subr.mxu0 0.0
  %5835 = vmatpush1.msra.mxu0 0.0
  %5836 = vmatprep.subr.mxu0 0.0
  %5837 = vmatpush1.msra.mxu0 0.0
  %5838 = vmatprep.subr.mxu0 0.0
  %5839 = vmatpush1.msra.mxu0 0.0
  %5840 = vmatprep.subr.mxu0 0.0
  %5841 = vmatpush1.msra.mxu0 0.0
  %5842 = vmatprep.subr.mxu0 0.0
  %5843 = vmatpush1.msra.mxu0 0.0
  %5844 = vmatprep.subr.mxu0 0.0
  %5845 = vmatpush1.msra.mxu0 0.0
  %5846 = vmatprep.subr.mxu0 0.0
  %5847 = vmatpush1.msra.mxu0 0.0
  %5848 = vmatprep.subr.mxu0 0.0
  %5849 = vmatpush1.msra.mxu0 0.0
  %5850 = vmatprep.subr.mxu0 0.0
  %5851 = vmatpush1.msra.mxu0 0.0
  %5852 = vmatprep.subr.mxu0 0.0
  %5853 = vmatpush1.msra.mxu0 0.0
  %5854 = vmatprep.subr.mxu0 0.0
  %5855 = vmatpush1.msra.mxu0 0.0
  %5856 = vmatprep.subr.mxu0 0.0
  %5857 = vmatpush1.msra.mxu0 0.0
  %5858 = vmatprep.subr.mxu0 0.0
  %5859 = vmatpush1.msra.mxu0 0.0
  %5860 = vmatprep.subr.mxu0 0.0
  %5861 = vmatpush1.msra.mxu0 0.0
  %5862 = vmatprep.subr.mxu0 0.0
  %5863 = vmatpush1.msra.mxu0 0.0
  %5864 = vmatprep.mubr.f32.mxu0 0.0
  %5865 = vmatmul.mubr.f32.gmra.mrb[0].mxu0 %v1983
  %v5866 = vpop.f32.mrb[0].mxu0
  %v5867 = vadd.f32 %v1980, %v5866
  %v5868 = vpop.f32.mrb[0].mxu0
  %v5869 = vadd.f32 %v1980, %v5868
  %5870 = vdwg.mxu0
  %5871 = vmatprep.subr.mxu0 %v5652
  %5872 = vmatpush1.msra.mxu0 %v5651
  %5873 = vmatprep.subr.mxu0 %v5673
  %5874 = vmatpush1.msra.mxu0 %v5672
  %5875 = vmatprep.subr.mxu0 %v5694
  %5876 = vmatpush1.msra.mxu0 %v5693
  %5877 = vmatprep.subr.mxu0 %v5715
  %5878 = vmatpush1.msra.mxu0 %v5714
  %5879 = vmatprep.subr.mxu0 %v5626
  %5880 = vmatpush1.msra.mxu0 %v5624
  %5881 = vmatprep.subr.mxu0 %v5736
  %5882 = vmatpush1.msra.mxu0 %v5735
  %5883 = vmatprep.subr.mxu0 %v5757
  %5884 = vmatpush1.msra.mxu0 %v5756
  %5885 = vmatprep.subr.mxu0 %v5778
  %5886 = vmatpush1.msra.mxu0 %v5777
  %5887 = vmatprep.subr.mxu0 %v5799
  %5888 = vmatpush1.msra.mxu0 %v5798
  %5889 = vmatprep.subr.mxu0 0.0
  %5890 = vmatpush1.msra.mxu0 0.0
  %5891 = vmatprep.subr.mxu0 0.0
  %5892 = vmatpush1.msra.mxu0 0.0
  %5893 = vmatprep.subr.mxu0 0.0
  %5894 = vmatpush1.msra.mxu0 0.0
  %5895 = vmatprep.subr.mxu0 0.0
  %5896 = vmatpush1.msra.mxu0 0.0
  %5897 = vmatprep.subr.mxu0 0.0
  %5898 = vmatpush1.msra.mxu0 0.0
  %5899 = vmatprep.subr.mxu0 0.0
  %5900 = vmatpush1.msra.mxu0 0.0
  %5901 = vmatprep.subr.mxu0 0.0
  %5902 = vmatpush1.msra.mxu0 0.0
  %5903 = vmatprep.subr.mxu0 0.0
  %5904 = vmatpush1.msra.mxu0 0.0
  %5905 = vmatprep.subr.mxu0 0.0
  %5906 = vmatpush1.msra.mxu0 0.0
  %5907 = vmatprep.subr.mxu0 0.0
  %5908 = vmatpush1.msra.mxu0 0.0
  %5909 = vmatprep.subr.mxu0 0.0
  %5910 = vmatpush1.msra.mxu0 0.0
  %5911 = vmatprep.subr.mxu0 0.0
  %5912 = vmatpush1.msra.mxu0 0.0
  %5913 = vmatprep.subr.mxu0 0.0
  %5914 = vmatpush1.msra.mxu0 0.0
  %5915 = vmatprep.subr.mxu0 0.0
  %5916 = vmatpush1.msra.mxu0 0.0
  %5917 = vmatprep.subr.mxu0 0.0
  %5918 = vmatpush1.msra.mxu0 0.0
  %5919 = vmatprep.subr.mxu0 0.0
  %5920 = vmatpush1.msra.mxu0 0.0
  %5921 = vmatprep.subr.mxu0 0.0
  %5922 = vmatpush1.msra.mxu0 0.0
  %5923 = vmatprep.subr.mxu0 0.0
  %5924 = vmatpush1.msra.mxu0 0.0
  %5925 = vmatprep.subr.mxu0 0.0
  %5926 = vmatpush1.msra.mxu0 0.0
  %5927 = vmatprep.subr.mxu0 0.0
  %5928 = vmatpush1.msra.mxu0 0.0
  %5929 = vmatprep.subr.mxu0 0.0
  %5930 = vmatpush1.msra.mxu0 0.0
  %5931 = vmatprep.subr.mxu0 0.0
  %5932 = vmatpush1.msra.mxu0 0.0
  %5933 = vmatprep.subr.mxu0 0.0
  %5934 = vmatpush1.msra.mxu0 0.0
  %5935 = vmatprep.mubr.f32.mxu0 0.0
  %5936 = vmatmul.mubr.f32.gmra.mrb[0].mxu0 %v1983
  %v5937 = vpop.f32.mrb[0].mxu0
  %v5938 = vadd.f32 %v1980, %v5937
  %v5939 = vpop.f32.mrb[0].mxu0
  %v5940 = vadd.f32 %v1980, %v5939
  %5941 = vdwg.mxu0
  %5943 = vrot.lane.b32.xlu0 %v5940, 17
  %v5944 = vpop.permute.xlu0 %5943
  %5949 = vrot.lane.b32.xlu0 %v5867, 17
  %v5950 = vpop.permute.xlu0 %5949
  %5951 = vrot.lane.b32.xlu0 %v5869, 17
  %v5952 = vpop.permute.xlu0 %5951
  %5953 = vrot.lane.b32.xlu0 %v5938, 17
  %v5954 = vpop.permute.xlu0 %5953
  %v5955 = vsel %vm56, %v5950, %v5952
  %v5956 = vsel %vm56, %v5952, %v5954
  %v5957 = vsel %vm56, %v5954, %v5944
  %v5962 = vsel %vm56, %v5944, %v5950
  %v5963 = vmul.f32 %v5962, %v68
  %v5964 = vmul.f32 %v5955, %v72
  %v5965 = vmul.f32 %v5956, %v76
  %v5966 = vmul.f32 %v5957, %v80
  %5967 = vrot.lane.b32.xlu0 %v5940, 16
  %v5968 = vpop.permute.xlu0 %5967
  %5970 = vrot.lane.b32.xlu0 %v5867, 16
  %v5971 = vpop.permute.xlu0 %5970
  %5972 = vrot.lane.b32.xlu0 %v5869, 16
  %v5973 = vpop.permute.xlu0 %5972
  %5974 = vrot.lane.b32.xlu0 %v5938, 16
  %v5975 = vpop.permute.xlu0 %5974
  %v5976 = vsel %vm94, %v5971, %v5973
  %v5977 = vsel %vm94, %v5973, %v5975
  %v5978 = vsel %vm94, %v5975, %v5968
  %v5983 = vsel %vm94, %v5968, %v5971
  %v5984 = vmul.f32 %v5983, %v106
  %v5985 = vmul.f32 %v5976, %v110
  %v5986 = vmul.f32 %v5977, %v114
  %v5987 = vmul.f32 %v5978, %v118
  %5988 = vrot.lane.b32.xlu0 %v5940, 15
  %v5989 = vpop.permute.xlu0 %5988
  %5991 = vrot.lane.b32.xlu0 %v5867, 15
  %v5992 = vpop.permute.xlu0 %5991
  %5993 = vrot.lane.b32.xlu0 %v5869, 15
  %v5994 = vpop.permute.xlu0 %5993
  %5995 = vrot.lane.b32.xlu0 %v5938, 15
  %v5996 = vpop.permute.xlu0 %5995
  %v5997 = vsel %vm132, %v5992, %v5994
  %v5998 = vsel %vm132, %v5994, %v5996
  %v5999 = vsel %vm132, %v5996, %v5989
  %v6004 = vsel %vm132, %v5989, %v5992
  %v6005 = vmul.f32 %v6004, %v144
  %v6006 = vmul.f32 %v5997, %v148
  %v6007 = vmul.f32 %v5998, %v152
  %v6008 = vmul.f32 %v5999, %v156
  %6009 = vrot.lane.b32.xlu0 %v5940, 1
  %v6010 = vpop.permute.xlu0 %6009
  %6012 = vrot.lane.b32.xlu0 %v5867, 1
  %v6013 = vpop.permute.xlu0 %6012
  %6014 = vrot.lane.b32.xlu0 %v5869, 1
  %v6015 = vpop.permute.xlu0 %6014
  %6016 = vrot.lane.b32.xlu0 %v5938, 1
  %v6017 = vpop.permute.xlu0 %6016
  %v6018 = vsel %vm170, %v6013, %v6015
  %v6019 = vsel %vm170, %v6015, %v6017
  %v6020 = vsel %vm170, %v6017, %v6010
  %v6025 = vsel %vm170, %v6010, %v6013
  %v6026 = vmul.f32 %v6025, %v182
  %v6027 = vmul.f32 %v6018, %v186
  %v6028 = vmul.f32 %v6019, %v190
  %v6029 = vmul.f32 %v6020, %v194
  %6030 = vrot.lane.b32.xlu0 %v5867, 127
  %v6031 = vpop.permute.xlu0 %6030
  %6032 = vrot.lane.b32.xlu0 %v5869, 127
  %v6033 = vpop.permute.xlu0 %6032
  %6034 = vrot.lane.b32.xlu0 %v5938, 127
  %v6035 = vpop.permute.xlu0 %6034
  %6036 = vrot.lane.b32.xlu0 %v5940, 127
  %v6037 = vpop.permute.xlu0 %6036
  %v6038 = vsel %vm207, %v6031, %v6033
  %v6039 = vsel %vm207, %v6033, %v6035
  %v6040 = vsel %vm207, %v6035, %v6037
  %v6046 = vsel %vm207, %v6037, %v6031
  %v6047 = vmul.f32 %v6038, %v220
  %v6048 = vmul.f32 %v6039, %v224
  %v6049 = vmul.f32 %v6040, %v228
  %v6050 = vmul.f32 %v6046, %v232
  %6051 = vrot.lane.b32.xlu0 %v5867, 113
  %v6052 = vpop.permute.xlu0 %6051
  %6053 = vrot.lane.b32.xlu0 %v5869, 113
  %v6054 = vpop.permute.xlu0 %6053
  %6055 = vrot.lane.b32.xlu0 %v5938, 113
  %v6056 = vpop.permute.xlu0 %6055
  %6057 = vrot.lane.b32.xlu0 %v5940, 113
  %v6058 = vpop.permute.xlu0 %6057
  %v6059 = vsel %vm245, %v6052, %v6054
  %v6060 = vsel %vm245, %v6054, %v6056
  %v6061 = vsel %vm245, %v6056, %v6058
  %v6067 = vsel %vm245, %v6058, %v6052
  %v6068 = vmul.f32 %v6059, %v258
  %v6069 = vmul.f32 %v6060, %v262
  %v6070 = vmul.f32 %v6061, %v266
  %v6071 = vmul.f32 %v6067, %v270
  %6072 = vrot.lane.b32.xlu0 %v5867, 112
  %v6073 = vpop.permute.xlu0 %6072
  %6074 = vrot.lane.b32.xlu0 %v5869, 112
  %v6075 = vpop.permute.xlu0 %6074
  %6076 = vrot.lane.b32.xlu0 %v5938, 112
  %v6077 = vpop.permute.xlu0 %6076
  %6078 = vrot.lane.b32.xlu0 %v5940, 112
  %v6079 = vpop.permute.xlu0 %6078
  %v6080 = vsel %vm283, %v6073, %v6075
  %v6081 = vsel %vm283, %v6075, %v6077
  %v6082 = vsel %vm283, %v6077, %v6079
  %v6088 = vsel %vm283, %v6079, %v6073
  %v6089 = vmul.f32 %v6080, %v296
  %v6090 = vmul.f32 %v6081, %v300
  %v6091 = vmul.f32 %v6082, %v304
  %v6092 = vmul.f32 %v6088, %v308
  %6093 = vrot.lane.b32.xlu0 %v5867, 111
  %v6094 = vpop.permute.xlu0 %6093
  %6095 = vrot.lane.b32.xlu0 %v5869, 111
  %v6096 = vpop.permute.xlu0 %6095
  %6097 = vrot.lane.b32.xlu0 %v5938, 111
  %v6098 = vpop.permute.xlu0 %6097
  %6099 = vrot.lane.b32.xlu0 %v5940, 111
  %v6100 = vpop.permute.xlu0 %6099
  %v6101 = vsel %vm321, %v6094, %v6096
  %v6102 = vsel %vm321, %v6096, %v6098
  %v6103 = vsel %vm321, %v6098, %v6100
  %v6109 = vsel %vm321, %v6100, %v6094
  %v6110 = vmul.f32 %v6101, %v334
  %v6111 = vmul.f32 %v6102, %v338
  %v6112 = vmul.f32 %v6103, %v342
  %v6113 = vmul.f32 %v6109, %v346
  %6114 = vmatprep.subr.mxu0 %v5964
  %6115 = vmatpush1.msra.mxu0 %v5963
  %6116 = vmatprep.subr.mxu0 %v5985
  %6117 = vmatpush1.msra.mxu0 %v5984
  %6118 = vmatprep.subr.mxu0 %v6006
  %6119 = vmatpush1.msra.mxu0 %v6005
  %6120 = vmatprep.subr.mxu0 %v6027
  %6121 = vmatpush1.msra.mxu0 %v6026
  %6122 = vmatprep.subr.mxu0 %v5869
  %6123 = vmatpush1.msra.mxu0 %v5867
  %6124 = vmatprep.subr.mxu0 %v6048
  %6125 = vmatpush1.msra.mxu0 %v6047
  %6126 = vmatprep.subr.mxu0 %v6069
  %6127 = vmatpush1.msra.mxu0 %v6068
  %6128 = vmatprep.subr.mxu0 %v6090
  %6129 = vmatpush1.msra.mxu0 %v6089
  %6130 = vmatprep.subr.mxu0 %v6111
  %6131 = vmatpush1.msra.mxu0 %v6110
  %6132 = vmatprep.subr.mxu0 0.0
  %6133 = vmatpush1.msra.mxu0 0.0
  %6134 = vmatprep.subr.mxu0 0.0
  %6135 = vmatpush1.msra.mxu0 0.0
  %6136 = vmatprep.subr.mxu0 0.0
  %6137 = vmatpush1.msra.mxu0 0.0
  %6138 = vmatprep.subr.mxu0 0.0
  %6139 = vmatpush1.msra.mxu0 0.0
  %6140 = vmatprep.subr.mxu0 0.0
  %6141 = vmatpush1.msra.mxu0 0.0
  %6142 = vmatprep.subr.mxu0 0.0
  %6143 = vmatpush1.msra.mxu0 0.0
  %6144 = vmatprep.subr.mxu0 0.0
  %6145 = vmatpush1.msra.mxu0 0.0
  %6146 = vmatprep.subr.mxu0 0.0
  %6147 = vmatpush1.msra.mxu0 0.0
  %6148 = vmatprep.subr.mxu0 0.0
  %6149 = vmatpush1.msra.mxu0 0.0
  %6150 = vmatprep.subr.mxu0 0.0
  %6151 = vmatpush1.msra.mxu0 0.0
  %6152 = vmatprep.subr.mxu0 0.0
  %6153 = vmatpush1.msra.mxu0 0.0
  %6154 = vmatprep.subr.mxu0 0.0
  %6155 = vmatpush1.msra.mxu0 0.0
  %6156 = vmatprep.subr.mxu0 0.0
  %6157 = vmatpush1.msra.mxu0 0.0
  %6158 = vmatprep.subr.mxu0 0.0
  %6159 = vmatpush1.msra.mxu0 0.0
  %6160 = vmatprep.subr.mxu0 0.0
  %6161 = vmatpush1.msra.mxu0 0.0
  %6162 = vmatprep.subr.mxu0 0.0
  %6163 = vmatpush1.msra.mxu0 0.0
  %6164 = vmatprep.subr.mxu0 0.0
  %6165 = vmatpush1.msra.mxu0 0.0
  %6166 = vmatprep.subr.mxu0 0.0
  %6167 = vmatpush1.msra.mxu0 0.0
  %6168 = vmatprep.subr.mxu0 0.0
  %6169 = vmatpush1.msra.mxu0 0.0
  %6170 = vmatprep.subr.mxu0 0.0
  %6171 = vmatpush1.msra.mxu0 0.0
  %6172 = vmatprep.subr.mxu0 0.0
  %6173 = vmatpush1.msra.mxu0 0.0
  %6174 = vmatprep.subr.mxu0 0.0
  %6175 = vmatpush1.msra.mxu0 0.0
  %6176 = vmatprep.subr.mxu0 0.0
  %6177 = vmatpush1.msra.mxu0 0.0
  %6178 = vmatprep.mubr.f32.mxu0 0.0
  %6179 = vmatmul.mubr.f32.gmra.mrb[0].mxu0 %v2309
  %v6180 = vpop.f32.mrb[0].mxu0
  %v6181 = vadd.f32 %v2306, %v6180
  %v6182 = vpop.f32.mrb[0].mxu0
  %v6183 = vadd.f32 %v2306, %v6182
  %6184 = vdwg.mxu0
  %6185 = vmatprep.subr.mxu0 %v5966
  %6186 = vmatpush1.msra.mxu0 %v5965
  %6187 = vmatprep.subr.mxu0 %v5987
  %6188 = vmatpush1.msra.mxu0 %v5986
  %6189 = vmatprep.subr.mxu0 %v6008
  %6190 = vmatpush1.msra.mxu0 %v6007
  %6191 = vmatprep.subr.mxu0 %v6029
  %6192 = vmatpush1.msra.mxu0 %v6028
  %6193 = vmatprep.subr.mxu0 %v5940
  %6194 = vmatpush1.msra.mxu0 %v5938
  %6195 = vmatprep.subr.mxu0 %v6050
  %6196 = vmatpush1.msra.mxu0 %v6049
  %6197 = vmatprep.subr.mxu0 %v6071
  %6198 = vmatpush1.msra.mxu0 %v6070
  %6199 = vmatprep.subr.mxu0 %v6092
  %6200 = vmatpush1.msra.mxu0 %v6091
  %6201 = vmatprep.subr.mxu0 %v6113
  %6202 = vmatpush1.msra.mxu0 %v6112
  %6203 = vmatprep.subr.mxu0 0.0
  %6204 = vmatpush1.msra.mxu0 0.0
  %6205 = vmatprep.subr.mxu0 0.0
  %6206 = vmatpush1.msra.mxu0 0.0
  %6207 = vmatprep.subr.mxu0 0.0
  %6208 = vmatpush1.msra.mxu0 0.0
  %6209 = vmatprep.subr.mxu0 0.0
  %6210 = vmatpush1.msra.mxu0 0.0
  %6211 = vmatprep.subr.mxu0 0.0
  %6212 = vmatpush1.msra.mxu0 0.0
  %6213 = vmatprep.subr.mxu0 0.0
  %6214 = vmatpush1.msra.mxu0 0.0
  %6215 = vmatprep.subr.mxu0 0.0
  %6216 = vmatpush1.msra.mxu0 0.0
  %6217 = vmatprep.subr.mxu0 0.0
  %6218 = vmatpush1.msra.mxu0 0.0
  %6219 = vmatprep.subr.mxu0 0.0
  %6220 = vmatpush1.msra.mxu0 0.0
  %6221 = vmatprep.subr.mxu0 0.0
  %6222 = vmatpush1.msra.mxu0 0.0
  %6223 = vmatprep.subr.mxu0 0.0
  %6224 = vmatpush1.msra.mxu0 0.0
  %6225 = vmatprep.subr.mxu0 0.0
  %6226 = vmatpush1.msra.mxu0 0.0
  %6227 = vmatprep.subr.mxu0 0.0
  %6228 = vmatpush1.msra.mxu0 0.0
  %6229 = vmatprep.subr.mxu0 0.0
  %6230 = vmatpush1.msra.mxu0 0.0
  %6231 = vmatprep.subr.mxu0 0.0
  %6232 = vmatpush1.msra.mxu0 0.0
  %6233 = vmatprep.subr.mxu0 0.0
  %6234 = vmatpush1.msra.mxu0 0.0
  %6235 = vmatprep.subr.mxu0 0.0
  %6236 = vmatpush1.msra.mxu0 0.0
  %6237 = vmatprep.subr.mxu0 0.0
  %6238 = vmatpush1.msra.mxu0 0.0
  %6239 = vmatprep.subr.mxu0 0.0
  %6240 = vmatpush1.msra.mxu0 0.0
  %6241 = vmatprep.subr.mxu0 0.0
  %6242 = vmatpush1.msra.mxu0 0.0
  %6243 = vmatprep.subr.mxu0 0.0
  %6244 = vmatpush1.msra.mxu0 0.0
  %6245 = vmatprep.subr.mxu0 0.0
  %6246 = vmatpush1.msra.mxu0 0.0
  %6247 = vmatprep.subr.mxu0 0.0
  %6248 = vmatpush1.msra.mxu0 0.0
  %6249 = vmatprep.mubr.f32.mxu0 0.0
  %6250 = vmatmul.mubr.f32.gmra.mrb[0].mxu0 %v2309
  %v6251 = vpop.f32.mrb[0].mxu0
  %v6252 = vadd.f32 %v2306, %v6251
  %v6253 = vpop.f32.mrb[0].mxu0
  %v6254 = vadd.f32 %v2306, %v6253
  %6255 = vdwg.mxu0
  %6257 = vrot.lane.b32.xlu0 %v6254, 17
  %v6258 = vpop.permute.xlu0 %6257
  %6263 = vrot.lane.b32.xlu0 %v6181, 17
  %v6264 = vpop.permute.xlu0 %6263
  %6265 = vrot.lane.b32.xlu0 %v6183, 17
  %v6266 = vpop.permute.xlu0 %6265
  %6267 = vrot.lane.b32.xlu0 %v6252, 17
  %v6268 = vpop.permute.xlu0 %6267
  %v6269 = vsel %vm56, %v6264, %v6266
  %v6270 = vsel %vm56, %v6266, %v6268
  %v6271 = vsel %vm56, %v6268, %v6258
  %v6276 = vsel %vm56, %v6258, %v6264
  %v6277 = vmul.f32 %v6276, %v68
  %v6278 = vmul.f32 %v6269, %v72
  %v6279 = vmul.f32 %v6270, %v76
  %v6280 = vmul.f32 %v6271, %v80
  %6281 = vrot.lane.b32.xlu0 %v6254, 16
  %v6282 = vpop.permute.xlu0 %6281
  %6284 = vrot.lane.b32.xlu0 %v6181, 16
  %v6285 = vpop.permute.xlu0 %6284
  %6286 = vrot.lane.b32.xlu0 %v6183, 16
  %v6287 = vpop.permute.xlu0 %6286
  %6288 = vrot.lane.b32.xlu0 %v6252, 16
  %v6289 = vpop.permute.xlu0 %6288
  %v6290 = vsel %vm94, %v6285, %v6287
  %v6291 = vsel %vm94, %v6287, %v6289
  %v6292 = vsel %vm94, %v6289, %v6282
  %v6297 = vsel %vm94, %v6282, %v6285
  %v6298 = vmul.f32 %v6297, %v106
  %v6299 = vmul.f32 %v6290, %v110
  %v6300 = vmul.f32 %v6291, %v114
  %v6301 = vmul.f32 %v6292, %v118
  %6302 = vrot.lane.b32.xlu0 %v6254, 15
  %v6303 = vpop.permute.xlu0 %6302
  %6305 = vrot.lane.b32.xlu0 %v6181, 15
  %v6306 = vpop.permute.xlu0 %6305
  %6307 = vrot.lane.b32.xlu0 %v6183, 15
  %v6308 = vpop.permute.xlu0 %6307
  %6309 = vrot.lane.b32.xlu0 %v6252, 15
  %v6310 = vpop.permute.xlu0 %6309
  %v6311 = vsel %vm132, %v6306, %v6308
  %v6312 = vsel %vm132, %v6308, %v6310
  %v6313 = vsel %vm132, %v6310, %v6303
  %v6318 = vsel %vm132, %v6303, %v6306
  %v6319 = vmul.f32 %v6318, %v144
  %v6320 = vmul.f32 %v6311, %v148
  %v6321 = vmul.f32 %v6312, %v152
  %v6322 = vmul.f32 %v6313, %v156
  %6323 = vrot.lane.b32.xlu0 %v6254, 1
  %v6324 = vpop.permute.xlu0 %6323
  %6326 = vrot.lane.b32.xlu0 %v6181, 1
  %v6327 = vpop.permute.xlu0 %6326
  %6328 = vrot.lane.b32.xlu0 %v6183, 1
  %v6329 = vpop.permute.xlu0 %6328
  %6330 = vrot.lane.b32.xlu0 %v6252, 1
  %v6331 = vpop.permute.xlu0 %6330
  %v6332 = vsel %vm170, %v6327, %v6329
  %v6333 = vsel %vm170, %v6329, %v6331
  %v6334 = vsel %vm170, %v6331, %v6324
  %v6339 = vsel %vm170, %v6324, %v6327
  %v6340 = vmul.f32 %v6339, %v182
  %v6341 = vmul.f32 %v6332, %v186
  %v6342 = vmul.f32 %v6333, %v190
  %v6343 = vmul.f32 %v6334, %v194
  %6344 = vrot.lane.b32.xlu0 %v6181, 127
  %v6345 = vpop.permute.xlu0 %6344
  %6346 = vrot.lane.b32.xlu0 %v6183, 127
  %v6347 = vpop.permute.xlu0 %6346
  %6348 = vrot.lane.b32.xlu0 %v6252, 127
  %v6349 = vpop.permute.xlu0 %6348
  %6350 = vrot.lane.b32.xlu0 %v6254, 127
  %v6351 = vpop.permute.xlu0 %6350
  %v6352 = vsel %vm207, %v6345, %v6347
  %v6353 = vsel %vm207, %v6347, %v6349
  %v6354 = vsel %vm207, %v6349, %v6351
  %v6360 = vsel %vm207, %v6351, %v6345
  %v6361 = vmul.f32 %v6352, %v220
  %v6362 = vmul.f32 %v6353, %v224
  %v6363 = vmul.f32 %v6354, %v228
  %v6364 = vmul.f32 %v6360, %v232
  %6365 = vrot.lane.b32.xlu0 %v6181, 113
  %v6366 = vpop.permute.xlu0 %6365
  %6367 = vrot.lane.b32.xlu0 %v6183, 113
  %v6368 = vpop.permute.xlu0 %6367
  %6369 = vrot.lane.b32.xlu0 %v6252, 113
  %v6370 = vpop.permute.xlu0 %6369
  %6371 = vrot.lane.b32.xlu0 %v6254, 113
  %v6372 = vpop.permute.xlu0 %6371
  %v6373 = vsel %vm245, %v6366, %v6368
  %v6374 = vsel %vm245, %v6368, %v6370
  %v6375 = vsel %vm245, %v6370, %v6372
  %v6381 = vsel %vm245, %v6372, %v6366
  %v6382 = vmul.f32 %v6373, %v258
  %v6383 = vmul.f32 %v6374, %v262
  %v6384 = vmul.f32 %v6375, %v266
  %v6385 = vmul.f32 %v6381, %v270
  %6386 = vrot.lane.b32.xlu0 %v6181, 112
  %v6387 = vpop.permute.xlu0 %6386
  %6388 = vrot.lane.b32.xlu0 %v6183, 112
  %v6389 = vpop.permute.xlu0 %6388
  %6390 = vrot.lane.b32.xlu0 %v6252, 112
  %v6391 = vpop.permute.xlu0 %6390
  %6392 = vrot.lane.b32.xlu0 %v6254, 112
  %v6393 = vpop.permute.xlu0 %6392
  %v6394 = vsel %vm283, %v6387, %v6389
  %v6395 = vsel %vm283, %v6389, %v6391
  %v6396 = vsel %vm283, %v6391, %v6393
  %v6402 = vsel %vm283, %v6393, %v6387
  %v6403 = vmul.f32 %v6394, %v296
  %v6404 = vmul.f32 %v6395, %v300
  %v6405 = vmul.f32 %v6396, %v304
  %v6406 = vmul.f32 %v6402, %v308
  %6407 = vrot.lane.b32.xlu0 %v6181, 111
  %v6408 = vpop.permute.xlu0 %6407
  %6409 = vrot.lane.b32.xlu0 %v6183, 111
  %v6410 = vpop.permute.xlu0 %6409
  %6411 = vrot.lane.b32.xlu0 %v6252, 111
  %v6412 = vpop.permute.xlu0 %6411
  %6413 = vrot.lane.b32.xlu0 %v6254, 111
  %v6414 = vpop.permute.xlu0 %6413
  %v6415 = vsel %vm321, %v6408, %v6410
  %v6416 = vsel %vm321, %v6410, %v6412
  %v6417 = vsel %vm321, %v6412, %v6414
  %v6423 = vsel %vm321, %v6414, %v6408
  %v6424 = vmul.f32 %v6415, %v334
  %v6425 = vmul.f32 %v6416, %v338
  %v6426 = vmul.f32 %v6417, %v342
  %v6427 = vmul.f32 %v6423, %v346
  %6428 = vmatprep.subr.mxu0 %v6278
  %6429 = vmatpush1.msra.mxu0 %v6277
  %6430 = vmatprep.subr.mxu0 %v6299
  %6431 = vmatpush1.msra.mxu0 %v6298
  %6432 = vmatprep.subr.mxu0 %v6320
  %6433 = vmatpush1.msra.mxu0 %v6319
  %6434 = vmatprep.subr.mxu0 %v6341
  %6435 = vmatpush1.msra.mxu0 %v6340
  %6436 = vmatprep.subr.mxu0 %v6183
  %6437 = vmatpush1.msra.mxu0 %v6181
  %6438 = vmatprep.subr.mxu0 %v6362
  %6439 = vmatpush1.msra.mxu0 %v6361
  %6440 = vmatprep.subr.mxu0 %v6383
  %6441 = vmatpush1.msra.mxu0 %v6382
  %6442 = vmatprep.subr.mxu0 %v6404
  %6443 = vmatpush1.msra.mxu0 %v6403
  %6444 = vmatprep.subr.mxu0 %v6425
  %6445 = vmatpush1.msra.mxu0 %v6424
  %6446 = vmatprep.subr.mxu0 0.0
  %6447 = vmatpush1.msra.mxu0 0.0
  %6448 = vmatprep.subr.mxu0 0.0
  %6449 = vmatpush1.msra.mxu0 0.0
  %6450 = vmatprep.subr.mxu0 0.0
  %6451 = vmatpush1.msra.mxu0 0.0
  %6452 = vmatprep.subr.mxu0 0.0
  %6453 = vmatpush1.msra.mxu0 0.0
  %6454 = vmatprep.subr.mxu0 0.0
  %6455 = vmatpush1.msra.mxu0 0.0
  %6456 = vmatprep.subr.mxu0 0.0
  %6457 = vmatpush1.msra.mxu0 0.0
  %6458 = vmatprep.subr.mxu0 0.0
  %6459 = vmatpush1.msra.mxu0 0.0
  %6460 = vmatprep.subr.mxu0 0.0
  %6461 = vmatpush1.msra.mxu0 0.0
  %6462 = vmatprep.subr.mxu0 0.0
  %6463 = vmatpush1.msra.mxu0 0.0
  %6464 = vmatprep.subr.mxu0 0.0
  %6465 = vmatpush1.msra.mxu0 0.0
  %6466 = vmatprep.subr.mxu0 0.0
  %6467 = vmatpush1.msra.mxu0 0.0
  %6468 = vmatprep.subr.mxu0 0.0
  %6469 = vmatpush1.msra.mxu0 0.0
  %6470 = vmatprep.subr.mxu0 0.0
  %6471 = vmatpush1.msra.mxu0 0.0
  %6472 = vmatprep.subr.mxu0 0.0
  %6473 = vmatpush1.msra.mxu0 0.0
  %6474 = vmatprep.subr.mxu0 0.0
  %6475 = vmatpush1.msra.mxu0 0.0
  %6476 = vmatprep.subr.mxu0 0.0
  %6477 = vmatpush1.msra.mxu0 0.0
  %6478 = vmatprep.subr.mxu0 0.0
  %6479 = vmatpush1.msra.mxu0 0.0
  %6480 = vmatprep.subr.mxu0 0.0
  %6481 = vmatpush1.msra.mxu0 0.0
  %6482 = vmatprep.subr.mxu0 0.0
  %6483 = vmatpush1.msra.mxu0 0.0
  %6484 = vmatprep.subr.mxu0 0.0
  %6485 = vmatpush1.msra.mxu0 0.0
  %6486 = vmatprep.subr.mxu0 0.0
  %6487 = vmatpush1.msra.mxu0 0.0
  %6488 = vmatprep.subr.mxu0 0.0
  %6489 = vmatpush1.msra.mxu0 0.0
  %6490 = vmatprep.subr.mxu0 0.0
  %6491 = vmatpush1.msra.mxu0 0.0
  %6492 = vmatprep.mubr.f32.mxu0 0.0
  %6493 = vmatmul.mubr.f32.gmra.mrb[0].mxu0 %v2635
  %v6494 = vpop.f32.mrb[0].mxu0
  %v6495 = vadd.f32 %v2632, %v6494
  %v6496 = vpop.f32.mrb[0].mxu0
  %v6497 = vadd.f32 %v2632, %v6496
  %6498 = vdwg.mxu0
  %6499 = vmatprep.subr.mxu0 %v6280
  %6500 = vmatpush1.msra.mxu0 %v6279
  %6501 = vmatprep.subr.mxu0 %v6301
  %6502 = vmatpush1.msra.mxu0 %v6300
  %6503 = vmatprep.subr.mxu0 %v6322
  %6504 = vmatpush1.msra.mxu0 %v6321
  %6505 = vmatprep.subr.mxu0 %v6343
  %6506 = vmatpush1.msra.mxu0 %v6342
  %6507 = vmatprep.subr.mxu0 %v6254
  %6508 = vmatpush1.msra.mxu0 %v6252
  %6509 = vmatprep.subr.mxu0 %v6364
  %6510 = vmatpush1.msra.mxu0 %v6363
  %6511 = vmatprep.subr.mxu0 %v6385
  %6512 = vmatpush1.msra.mxu0 %v6384
  %6513 = vmatprep.subr.mxu0 %v6406
  %6514 = vmatpush1.msra.mxu0 %v6405
  %6515 = vmatprep.subr.mxu0 %v6427
  %6516 = vmatpush1.msra.mxu0 %v6426
  %6517 = vmatprep.subr.mxu0 0.0
  %6518 = vmatpush1.msra.mxu0 0.0
  %6519 = vmatprep.subr.mxu0 0.0
  %6520 = vmatpush1.msra.mxu0 0.0
  %6521 = vmatprep.subr.mxu0 0.0
  %6522 = vmatpush1.msra.mxu0 0.0
  %6523 = vmatprep.subr.mxu0 0.0
  %6524 = vmatpush1.msra.mxu0 0.0
  %6525 = vmatprep.subr.mxu0 0.0
  %6526 = vmatpush1.msra.mxu0 0.0
  %6527 = vmatprep.subr.mxu0 0.0
  %6528 = vmatpush1.msra.mxu0 0.0
  %6529 = vmatprep.subr.mxu0 0.0
  %6530 = vmatpush1.msra.mxu0 0.0
  %6531 = vmatprep.subr.mxu0 0.0
  %6532 = vmatpush1.msra.mxu0 0.0
  %6533 = vmatprep.subr.mxu0 0.0
  %6534 = vmatpush1.msra.mxu0 0.0
  %6535 = vmatprep.subr.mxu0 0.0
  %6536 = vmatpush1.msra.mxu0 0.0
  %6537 = vmatprep.subr.mxu0 0.0
  %6538 = vmatpush1.msra.mxu0 0.0
  %6539 = vmatprep.subr.mxu0 0.0
  %6540 = vmatpush1.msra.mxu0 0.0
  %6541 = vmatprep.subr.mxu0 0.0
  %6542 = vmatpush1.msra.mxu0 0.0
  %6543 = vmatprep.subr.mxu0 0.0
  %6544 = vmatpush1.msra.mxu0 0.0
  %6545 = vmatprep.subr.mxu0 0.0
  %6546 = vmatpush1.msra.mxu0 0.0
  %6547 = vmatprep.subr.mxu0 0.0
  %6548 = vmatpush1.msra.mxu0 0.0
  %6549 = vmatprep.subr.mxu0 0.0
  %6550 = vmatpush1.msra.mxu0 0.0
  %6551 = vmatprep.subr.mxu0 0.0
  %6552 = vmatpush1.msra.mxu0 0.0
  %6553 = vmatprep.subr.mxu0 0.0
  %6554 = vmatpush1.msra.mxu0 0.0
  %6555 = vmatprep.subr.mxu0 0.0
  %6556 = vmatpush1.msra.mxu0 0.0
  %6557 = vmatprep.subr.mxu0 0.0
  %6558 = vmatpush1.msra.mxu0 0.0
  %6559 = vmatprep.subr.mxu0 0.0
  %6560 = vmatpush1.msra.mxu0 0.0
  %6561 = vmatprep.subr.mxu0 0.0
  %6562 = vmatpush1.msra.mxu0 0.0
  %6563 = vmatprep.mubr.f32.mxu0 0.0
  %6564 = vmatmul.mubr.f32.gmra.mrb[0].mxu0 %v2635
  %v6565 = vpop.f32.mrb[0].mxu0
  %v6566 = vadd.f32 %v2632, %v6565
  %v6567 = vpop.f32.mrb[0].mxu0
  %v6568 = vadd.f32 %v2632, %v6567
  %6569 = vdwg.mxu0
  %6570 = vmatprep.subr.mxu0 %v6497
  %6571 = vmatpush1.msra.mxu0 %v6495
  %6572 = vmatprep.subr.mxu0 0.0
  %6573 = vmatpush1.msra.mxu0 0.0
  %6574 = vmatprep.subr.mxu0 0.0
  %6575 = vmatpush1.msra.mxu0 0.0
  %6576 = vmatprep.subr.mxu0 0.0
  %6577 = vmatpush1.msra.mxu0 0.0
  %6578 = vmatprep.subr.mxu0 0.0
  %6579 = vmatpush1.msra.mxu0 0.0
  %6580 = vmatprep.subr.mxu0 0.0
  %6581 = vmatpush1.msra.mxu0 0.0
  %6582 = vmatprep.subr.mxu0 0.0
  %6583 = vmatpush1.msra.mxu0 0.0
  %6584 = vmatprep.subr.mxu0 0.0
  %6585 = vmatpush1.msra.mxu0 0.0
  %6586 = vmatprep.subr.mxu0 0.0
  %6587 = vmatpush1.msra.mxu0 0.0
  %6588 = vmatprep.subr.mxu0 0.0
  %6589 = vmatpush1.msra.mxu0 0.0
  %6590 = vmatprep.subr.mxu0 0.0
  %6591 = vmatpush1.msra.mxu0 0.0
  %6592 = vmatprep.subr.mxu0 0.0
  %6593 = vmatpush1.msra.mxu0 0.0
  %6594 = vmatprep.subr.mxu0 0.0
  %6595 = vmatpush1.msra.mxu0 0.0
  %6596 = vmatprep.subr.mxu0 0.0
  %6597 = vmatpush1.msra.mxu0 0.0
  %6598 = vmatprep.subr.mxu0 0.0
  %6599 = vmatpush1.msra.mxu0 0.0
  %6600 = vmatprep.subr.mxu0 0.0
  %6601 = vmatpush1.msra.mxu0 0.0
  %6602 = vmatprep.subr.mxu0 0.0
  %6603 = vmatpush1.msra.mxu0 0.0
  %6604 = vmatprep.subr.mxu0 0.0
  %6605 = vmatpush1.msra.mxu0 0.0
  %6606 = vmatprep.subr.mxu0 0.0
  %6607 = vmatpush1.msra.mxu0 0.0
  %6608 = vmatprep.subr.mxu0 0.0
  %6609 = vmatpush1.msra.mxu0 0.0
  %6610 = vmatprep.subr.mxu0 0.0
  %6611 = vmatpush1.msra.mxu0 0.0
  %6612 = vmatprep.subr.mxu0 0.0
  %6613 = vmatpush1.msra.mxu0 0.0
  %6614 = vmatprep.subr.mxu0 0.0
  %6615 = vmatpush1.msra.mxu0 0.0
  %6616 = vmatprep.subr.mxu0 0.0
  %6617 = vmatpush1.msra.mxu0 0.0
  %6618 = vmatprep.subr.mxu0 0.0
  %6619 = vmatpush1.msra.mxu0 0.0
  %6620 = vmatprep.subr.mxu0 0.0
  %6621 = vmatpush1.msra.mxu0 0.0
  %6622 = vmatprep.subr.mxu0 0.0
  %6623 = vmatpush1.msra.mxu0 0.0
  %6624 = vmatprep.subr.mxu0 0.0
  %6625 = vmatpush1.msra.mxu0 0.0
  %6626 = vmatprep.subr.mxu0 0.0
  %6627 = vmatpush1.msra.mxu0 0.0
  %6628 = vmatprep.subr.mxu0 0.0
  %6629 = vmatpush1.msra.mxu0 0.0
  %6630 = vmatprep.subr.mxu0 0.0
  %6631 = vmatpush1.msra.mxu0 0.0
  %6632 = vmatprep.subr.mxu0 0.0
  %6633 = vmatpush1.msra.mxu0 0.0
  %6634 = vmatprep.mubr.f32.mxu0 0.0
  %6635 = vmatmul.mubr.f32.gmra.mrb[0].mxu0 %v2788
  %v6636 = vpop.f32.mrb[0].mxu0
  %v6637 = vadd.f32 %v2784, %v6636
  %v6638 = vpop.f32.mrb[0].mxu0
  %v6639 = vadd.f32 %v2784, %v6638
  %6640 = vdwg.mxu0
  %6641 = vmatprep.subr.mxu0 %v6568
  %6642 = vmatpush1.msra.mxu0 %v6566
  %6643 = vmatprep.subr.mxu0 0.0
  %6644 = vmatpush1.msra.mxu0 0.0
  %6645 = vmatprep.subr.mxu0 0.0
  %6646 = vmatpush1.msra.mxu0 0.0
  %6647 = vmatprep.subr.mxu0 0.0
  %6648 = vmatpush1.msra.mxu0 0.0
  %6649 = vmatprep.subr.mxu0 0.0
  %6650 = vmatpush1.msra.mxu0 0.0
  %6651 = vmatprep.subr.mxu0 0.0
  %6652 = vmatpush1.msra.mxu0 0.0
  %6653 = vmatprep.subr.mxu0 0.0
  %6654 = vmatpush1.msra.mxu0 0.0
  %6655 = vmatprep.subr.mxu0 0.0
  %6656 = vmatpush1.msra.mxu0 0.0
  %6657 = vmatprep.subr.mxu0 0.0
  %6658 = vmatpush1.msra.mxu0 0.0
  %6659 = vmatprep.subr.mxu0 0.0
  %6660 = vmatpush1.msra.mxu0 0.0
  %6661 = vmatprep.subr.mxu0 0.0
  %6662 = vmatpush1.msra.mxu0 0.0
  %6663 = vmatprep.subr.mxu0 0.0
  %6664 = vmatpush1.msra.mxu0 0.0
  %6665 = vmatprep.subr.mxu0 0.0
  %6666 = vmatpush1.msra.mxu0 0.0
  %6667 = vmatprep.subr.mxu0 0.0
  %6668 = vmatpush1.msra.mxu0 0.0
  %6669 = vmatprep.subr.mxu0 0.0
  %6670 = vmatpush1.msra.mxu0 0.0
  %6671 = vmatprep.subr.mxu0 0.0
  %6672 = vmatpush1.msra.mxu0 0.0
  %6673 = vmatprep.subr.mxu0 0.0
  %6674 = vmatpush1.msra.mxu0 0.0
  %6675 = vmatprep.subr.mxu0 0.0
  %6676 = vmatpush1.msra.mxu0 0.0
  %6677 = vmatprep.subr.mxu0 0.0
  %6678 = vmatpush1.msra.mxu0 0.0
  %6679 = vmatprep.subr.mxu0 0.0
  %6680 = vmatpush1.msra.mxu0 0.0
  %6681 = vmatprep.subr.mxu0 0.0
  %6682 = vmatpush1.msra.mxu0 0.0
  %6683 = vmatprep.subr.mxu0 0.0
  %6684 = vmatpush1.msra.mxu0 0.0
  %6685 = vmatprep.subr.mxu0 0.0
  %6686 = vmatpush1.msra.mxu0 0.0
  %6687 = vmatprep.subr.mxu0 0.0
  %6688 = vmatpush1.msra.mxu0 0.0
  %6689 = vmatprep.subr.mxu0 0.0
  %6690 = vmatpush1.msra.mxu0 0.0
  %6691 = vmatprep.subr.mxu0 0.0
  %6692 = vmatpush1.msra.mxu0 0.0
  %6693 = vmatprep.subr.mxu0 0.0
  %6694 = vmatpush1.msra.mxu0 0.0
  %6695 = vmatprep.subr.mxu0 0.0
  %6696 = vmatpush1.msra.mxu0 0.0
  %6697 = vmatprep.subr.mxu0 0.0
  %6698 = vmatpush1.msra.mxu0 0.0
  %6699 = vmatprep.subr.mxu0 0.0
  %6700 = vmatpush1.msra.mxu0 0.0
  %6701 = vmatprep.subr.mxu0 0.0
  %6702 = vmatpush1.msra.mxu0 0.0
  %6703 = vmatprep.subr.mxu0 0.0
  %6704 = vmatpush1.msra.mxu0 0.0
  %6705 = vmatprep.mubr.f32.mxu0 0.0
  %6706 = vmatmul.mubr.f32.gmra.mrb[0].mxu0 %v2788
  %v6707 = vpop.f32.mrb[0].mxu0
  %v6708 = vadd.f32 %v2784, %v6707
  %v6709 = vpop.f32.mrb[0].mxu0
  %v6710 = vadd.f32 %v2784, %v6709
  %6711 = vdwg.mxu0
  %v6716 = vrot.slane %v6637, 7
  %v6717 = vrot.slane %v6639, 7
  %v6718 = vrot.slane %v6708, 7
  %v6719 = vrot.slane %v6710, 7
  %v6724 = vsub.f32 %v6637, %v6716
  %v6725 = vsub.f32 %v6639, %v6717
  %v6726 = vsub.f32 %v6708, %v6718
  %v6727 = vsub.f32 %v6710, %v6719
  %v6728 = vmul.f32 %v6724, 1.442695
  %v6729 = vpow.pop %v6728
  %v6730 = vmul.f32 %v6725, 1.442695
  %v6731 = vpow.pop %v6730
  %v6732 = vmul.f32 %v6726, 1.442695
  %v6733 = vpow.pop %v6732
  %v6734 = vmul.f32 %v6727, 1.442695
  %v6735 = vpow.pop %v6734
  %v6736 = vadd.f32 %v6729, 1.0
  %v6737 = vadd.f32 %v6731, 1.0
  %v6738 = vadd.f32 %v6733, 1.0
  %v6739 = vadd.f32 %v6735, 1.0
  %v6740 = vrcp.pop %v6736
  %v6741 = vmul.f32 1.0, %v6740
  %v6742 = vrcp.pop %v6737
  %v6743 = vmul.f32 1.0, %v6742
  %v6744 = vrcp.pop %v6738
  %v6745 = vmul.f32 1.0, %v6744
  %v6746 = vrcp.pop %v6739
  %v6747 = vmul.f32 1.0, %v6746
  %v6748 = vsub.f32 1.0, %v2961
  %v6749 = vsub.f32 1.0, %v2963
  %v6750 = vsub.f32 1.0, %v2965
  %v6751 = vsub.f32 1.0, %v2967
  %v6752 = vsub.f32 1.0, %v4851
  %v6753 = vsub.f32 1.0, %v4853
  %v6754 = vsub.f32 1.0, %v4855
  %v6755 = vsub.f32 1.0, %v4857
  %v6756 = vsub.f32 1.0, %v6741
  %v6757 = vsub.f32 1.0, %v6743
  %v6758 = vsub.f32 1.0, %v6745
  %v6759 = vsub.f32 1.0, %v6747
  %v6760 = vadd.f32 %v2961, %v4851
  %v6761 = vadd.f32 %v2963, %v4853
  %v6762 = vadd.f32 %v2965, %v4855
  %v6763 = vadd.f32 %v2967, %v4857
  %v6764 = vadd.f32 %v6760, %v6741
  %v6765 = vadd.f32 %v6761, %v6743
  %v6766 = vadd.f32 %v6762, %v6745
  %v6767 = vadd.f32 %v6763, %v6747
  %v6768 = vmul.f32 %v6764, 0.33333334
  %v6769 = vmul.f32 %v6765, 0.33333334
  %v6770 = vmul.f32 %v6766, 0.33333334
  %v6771 = vmul.f32 %v6767, 0.33333334
  %v6772 = vmul.f32 %v6768, 2.0
  %v6773 = vmul.f32 %v6769, 2.0
  %v6774 = vmul.f32 %v6770, 2.0
  %v6775 = vmul.f32 %v6771, 2.0
  %v6776 = vsub.f32 1.0, %v6772
  %v6777 = vsub.f32 1.0, %v6773
  %v6778 = vsub.f32 1.0, %v6774
  %v6779 = vsub.f32 1.0, %v6775
  %v6780 = vmul.f32 %v6776, 1.442695
  %v6781 = vpow.pop %v6780
  %v6782 = vmul.f32 %v6777, 1.442695
  %v6783 = vpow.pop %v6782
  %v6784 = vmul.f32 %v6778, 1.442695
  %v6785 = vpow.pop %v6784
  %v6786 = vmul.f32 %v6779, 1.442695
  %v6787 = vpow.pop %v6786
  %v6788 = vadd.f32 %v6781, 1.0
  %v6789 = vadd.f32 %v6783, 1.0
  %v6790 = vadd.f32 %v6785, 1.0
  %v6791 = vadd.f32 %v6787, 1.0
  %v6792 = vrcp.pop %v6788
  %v6793 = vmul.f32 1.0, %v6792
  %v6794 = vrcp.pop %v6789
  %v6795 = vmul.f32 1.0, %v6794
  %v6796 = vrcp.pop %v6790
  %v6797 = vmul.f32 1.0, %v6796
  %v6798 = vrcp.pop %v6791
  %v6799 = vmul.f32 1.0, %v6798
  %v6800 = vsub.f32 1.0, %v6793
  %v6801 = vsub.f32 1.0, %v6795
  %v6802 = vsub.f32 1.0, %v6797
  %v6803 = vsub.f32 1.0, %v6799
  %v6808 = vrot.slane %v2961, 1
  %v6809 = vrot.slane %v2963, 1
  %v6810 = vrot.slane %v2965, 1
  %v6811 = vrot.slane %v2967, 1
  %v6820 = vrot.slane %v4851, 7
  %v6821 = vrot.slane %v4853, 7
  %v6822 = vrot.slane %v4855, 7
  %v6823 = vrot.slane %v4857, 7
  %v6832 = vrot.slane %v6752, 6
  %v6833 = vrot.slane %v6753, 6
  %v6834 = vrot.slane %v6754, 6
  %v6835 = vrot.slane %v6755, 6
  %v6844 = vrot.slane %v6741, 5
  %v6845 = vrot.slane %v6743, 5
  %v6846 = vrot.slane %v6745, 5
  %v6847 = vrot.slane %v6747, 5
  %v6856 = vrot.slane %v6756, 4
  %v6857 = vrot.slane %v6757, 4
  %v6858 = vrot.slane %v6758, 4
  %v6859 = vrot.slane %v6759, 4
  %v6868 = vrot.slane %v6793, 3
  %v6869 = vrot.slane %v6795, 3
  %v6870 = vrot.slane %v6797, 3
  %v6871 = vrot.slane %v6799, 3
  %v6880 = vrot.slane %v6800, 2
  %v6881 = vrot.slane %v6801, 2
  %v6882 = vrot.slane %v6802, 2
  %v6883 = vrot.slane %v6803, 2
  %vm6888 = vcmask 1040384
  %v6889 = vsel %vm6888, %v6808, %v6748
  %v6890 = vsel %vm6888, %v6809, %v6749
  %v6891 = vsel %vm6888, %v6810, %v6750
  %v6892 = vsel %vm6888, %v6811, %v6751
  %vm6893 = vcmask 1041408
  %v6894 = vsel %vm6893, %v6889, %v6820
  %v6895 = vsel %vm6893, %v6890, %v6821
  %v6896 = vsel %vm6893, %v6891, %v6822
  %v6897 = vsel %vm6893, %v6892, %v6823
  %vm6898 = vcmask 1042432
  %v6899 = vsel %vm6898, %v6894, %v6832
  %v6900 = vsel %vm6898, %v6895, %v6833
  %v6901 = vsel %vm6898, %v6896, %v6834
  %v6902 = vsel %vm6898, %v6897, %v6835
  %vm6903 = vcmask 1043456
  %v6904 = vsel %vm6903, %v6899, %v6844
  %v6905 = vsel %vm6903, %v6900, %v6845
  %v6906 = vsel %vm6903, %v6901, %v6846
  %v6907 = vsel %vm6903, %v6902, %v6847
  %vm6908 = vcmask 1044480
  %v6909 = vsel %vm6908, %v6904, %v6856
  %v6910 = vsel %vm6908, %v6905, %v6857
  %v6911 = vsel %vm6908, %v6906, %v6858
  %v6912 = vsel %vm6908, %v6907, %v6859
  %vm6913 = vcmask 1045504
  %v6914 = vsel %vm6913, %v6909, %v6868
  %v6915 = vsel %vm6913, %v6910, %v6869
  %v6916 = vsel %vm6913, %v6911, %v6870
  %v6917 = vsel %vm6913, %v6912, %v6871
  %vm6918 = vcmask 1046528
  %v6919 = vsel %vm6918, %v6914, %v6880
  %v6920 = vsel %vm6918, %v6915, %v6881
  %v6921 = vsel %vm6918, %v6916, %v6882
  %v6922 = vsel %vm6918, %v6917, %v6883
  %6923 = vst [vmem:[%s8] sm:$0xff] %v6919
  %6924 = vst [vmem:[%s8 + $0x8] sm:$0xff] %v6920
  %6925 = vst [vmem:[%s8 + $0x10] sm:$0xff] %v6921
  %6926 = vst [vmem:[%s8 + $0x18] sm:$0xff] %v6922
  // Predicated region
  $region34: #{fsan_forward.1} parent=0 // pred_check
    _
  $region35: #{fsan_forward.1} parent=0 // pred_check_branch
    %6928 = sbr.rel (0) target = $region37
  $region36: #{fsan_forward.1} parent=0 // pred_region
    _
  $region37: #{fsan_forward.1} parent=0 // pred_fallthru
    _
  // Predicated region
  $region38: #{fsan_forward.1} parent=0 // pred_check
    _
  $region39: #{fsan_forward.1} parent=0 // pred_check_branch
    %6930 = sbr.rel (0) target = $region41
  $region40: #{fsan_forward.1} parent=0 // pred_region
    _
  $region41: #{fsan_forward.1} parent=0 // pred_fallthru
    _

</llo_original>
